<compile_context>
chip_gen: v6e
topology: v6e:2x2x1
jax: 0.10.0
libtpu: 0.0.40
codegen_flags: <defaults>
</compile_context>

<pallas_src>
import functools

import numpy as np
import jax
import jax.numpy as jnp
from jax import lax
from jax.experimental import pallas as pl
from jax.experimental.pallas import tpu as pltpu

P_DROP = 0.1
_KEEP_SCALE = np.float32(1.0 / (1.0 - P_DROP))
_DROP_THRESH16 = np.int32(round(P_DROP * 65536.0))   # drop iff (hash & 0xFFFF) < thresh
TILE_B = 128                                          # >=128 fills MXU sublanes; fits v7x VMEM


def _as_i32(v):
    """Wrap a Python int into int32 two's-complement (bit-exact uint32 arithmetic)."""
    v &= 0xFFFFFFFF
    return np.int32(v - (1 << 32) if v >= (1 << 31) else v)


_H1 = _as_i32(0x7FEB352D)
_H2 = _as_i32(0x846CA68B)
# Distinct odd per-layer multipliers -> decorrelated dropout masks per layer.
_LAYER_MULT = tuple(_as_i32(m) for m in
                    (0x9E3779B1, 0x85EBCA77, 0xC2B2AE3D,
                     0x27D4EB2F, 0x165667B1, 0x3C6EF373))


def _relu_dropout(z, salt, layer):
    """dropout(relu(z), p=0.1, train=True) fused into one select.

    Random bits come from a counter-based integer hash (lowbias32), so no
    pltpu.prng_* primitives are needed and the kernel runs both compiled
    (Mosaic) and under interpret mode.
    """
    # TODO(synk): randomness stream is statistically equivalent but not bit-identical
    # to torch.dropout's RNG.
    shape = z.shape
    r = lax.broadcasted_iota(jnp.int32, shape, 0)
    c = lax.broadcasted_iota(jnp.int32, shape, 1)
    x = (r * np.int32(shape[1]) + c) * _LAYER_MULT[layer] + salt
    x = x ^ lax.shift_right_logical(x, np.int32(16))
    x = x * _H1
    x = x ^ lax.shift_right_logical(x, np.int32(15))
    x = x * _H2
    x = x ^ lax.shift_right_logical(x, np.int32(16))
    keep = (x & np.int32(0xFFFF)) >= _DROP_THRESH16
    return jnp.where(jnp.logical_and(keep, z > 0.0),
                     z * _KEEP_SCALE, jnp.float32(0.0))


def quantum_gnn_kernel(seed_ref, x_ref,
                       w1_ref, b1_ref, w2_ref, b2_ref,
                       w3_ref, b3_ref, w4_ref, b4_ref,
                       w5_ref, b5_ref, w6_ref, b6_ref,
                       wout_ref, bout_ref,
                       o_ref):
    # Per-tile salt: fold program_id in so each batch tile gets its own dropout mask.
    # (Caller should vary `seed` per training step to get fresh masks per call.)
    salt = seed_ref[0] + pl.program_id(0) * np.int32(1000003)

    def linear(h, w_ref, b_ref):
        # bf16 MXU inputs, f32 accumulation; elementwise math stays f32.
        return (jnp.dot(h.astype(jnp.bfloat16), w_ref[...],
                        preferred_element_type=jnp.float32) + b_ref[...])

    h = x_ref[...]                                              # (TILE_B, q) f32; posEmbed already added
    h = _relu_dropout(linear(h, w1_ref, b1_ref), salt, 0)       # fc1
    h = _relu_dropout(linear(h, w2_ref, b2_ref), salt, 1)       # fc2
    h = _relu_dropout(linear(h, w3_ref, b3_ref), salt, 2) + h   # fc3 + residual
    h = _relu_dropout(linear(h, w4_ref, b4_ref), salt, 3) + h   # fc4 + residual
    h = _relu_dropout(linear(h, w5_ref, b5_ref), salt, 4) + h   # fc5 + residual
    h = _relu_dropout(linear(h, w6_ref, b6_ref), salt, 5) + h   # fc6 + residual

    # fcout: (B,256)@(256,1) replaced by VPU multiply + lane reduction (avoids N=1 MXU pass).
    o_ref[...] = (jnp.sum(h * wout_ref[...], axis=-1, keepdims=True)
                  + bout_ref[...]).astype(o_ref.dtype)


def init_params(key, q_num):
    """Deterministic init mimicking nn.Linear (uniform +/- 1/sqrt(fan_in)); weights (in,out)."""
    dims = [(q_num, q_num),   # posEmbed
            (q_num, 512),     # fc1
            (512, 256),       # fc2
            (256, 256),       # fc3
            (256, 256),       # fc4
            (256, 256),       # fc5
            (256, 256),       # fc6
            (256, 1)]         # fcout
    params = []
    for (fan_in, fan_out) in dims:
        key, kw, kb = jax.random.split(key, 3)
        bound = 1.0 / jnp.sqrt(jnp.float32(fan_in))
        w = jax.random.uniform(kw, (fan_in, fan_out), jnp.float32, -bound, bound)
        b = jax.random.uniform(kb, (1, fan_out), jnp.float32, -bound, bound)
        params.append((w, b))
    return params


@functools.partial(jax.jit, static_argnames=("q_num",))
def quantum_gnn_forward(x, params, seed, *, q_num):
    (wpos, bpos), (w1, b1), (w2, b2), (w3, b3), (w4, b4), (w5, b5), (w6, b6), \
        (wout, bout) = params

    # ---- glue (plain JAX) ----
    x_pos = x[:, -1].astype(jnp.int32)            # (B,)
    x_feat = x[:, :-1]                            # (B, q_num)
    # posEmbed applied to a one-hot is just a row gather of its weight matrix.
    h0 = x_feat + wpos[x_pos] + bpos              # (B, q_num) f32

    B = h0.shape[0]
    n_tiles = pl.cdiv(B, TILE_B)
    Bp = n_tiles * TILE_B
    if Bp != B:
        h0 = jnp.pad(h0, ((0, Bp - B), (0, 0)))   # padded rows are sliced off below

    # bf16 weights: halve HBM->VMEM weight streaming, native MXU input dtype.
    w_bf16 = [w.astype(jnp.bfloat16) for w in (w1, w2, w3, w4, w5, w6)]
    biases = [b1, b2, b3, b4, b5, b6]
    wout_row = wout.reshape(1, -1)                # (1, 256) f32, used on the VPU path

    def tiled(shape):
        return pl.BlockSpec(shape, lambda i, seed_ref: (i, 0))

    def resident(arr):
        # Same block index every grid step -> stays VMEM-resident, no re-DMA per tile.
        return pl.BlockSpec(arr.shape, lambda i, seed_ref: (0, 0))

    operands = []
    in_specs = [tiled((TILE_B, q_num))]
    for w, b in zip(w_bf16, biases):
        operands += [w, b]
        in_specs += [resident(w), resident(b)]
    operands += [wout_row, bout]
    in_specs += [resident(wout_row), resident(bout)]

    out = pl.pallas_call(
        quantum_gnn_kernel,
        out_shape=jax.ShapeDtypeStruct((Bp, 1), jnp.float32),
        grid_spec=pltpu.PrefetchScalarGridSpec(
            num_scalar_prefetch=1,               # seed -> SMEM scalar
            grid=(n_tiles,),
            in_specs=in_specs,
            out_specs=tiled((TILE_B, 1)),
        ),
        compiler_params=pltpu.CompilerParams(
            dimension_semantics=("parallel",),    # batch tiles independent (v7x megacore)
            vmem_limit_bytes=32 * 1024 * 1024,    # weights ~0.8 MB bf16 + activation tiles
        ),
    )(seed, h0, *operands)

    return out[:B]


if __name__ == "__main__":
    Q_NUM = 16
    BATCH = 8

    key = jax.random.PRNGKey(0)
    key, k_feat, k_pos = jax.random.split(key, 3)

    # Input: (B, q_num + 1); last column holds an integer position index (as float).
    feats = jax.random.uniform(k_feat, (BATCH, Q_NUM), jnp.float32)
    pos_idx = jax.random.randint(k_pos, (BATCH,), 0, Q_NUM).astype(jnp.float32)
    x = jnp.concatenate([feats, pos_idx[:, None]], axis=1)    # (8, 17)

    params = init_params(jax.random.PRNGKey(0), Q_NUM)
    seed = jnp.array([1234], dtype=jnp.int32)

    out = quantum_gnn_forward(x, params, seed, q_num=Q_NUM)
    out = jax.block_until_ready(out)
    assert out.shape == (BATCH, 1)
    assert bool(jnp.all(jnp.isfinite(out)))
    print("KERNEL_OK")
</pallas_src>

<mosaic_0001>
module attributes {stable_mosaic.version = 11 : i64} {
  func.func @quantum_gnn_kernel(%arg0: i32, %arg1: memref<1xi32, #tpu.memory_space<smem>>, %arg2: memref<128x16xf32, #tpu.memory_space<vmem>>, %arg3: memref<16x512xbf16, #tpu.memory_space<vmem>>, %arg4: memref<1x512xf32, #tpu.memory_space<vmem>>, %arg5: memref<512x256xbf16, #tpu.memory_space<vmem>>, %arg6: memref<1x256xf32, #tpu.memory_space<vmem>>, %arg7: memref<256x256xbf16, #tpu.memory_space<vmem>>, %arg8: memref<1x256xf32, #tpu.memory_space<vmem>>, %arg9: memref<256x256xbf16, #tpu.memory_space<vmem>>, %arg10: memref<1x256xf32, #tpu.memory_space<vmem>>, %arg11: memref<256x256xbf16, #tpu.memory_space<vmem>>, %arg12: memref<1x256xf32, #tpu.memory_space<vmem>>, %arg13: memref<256x256xbf16, #tpu.memory_space<vmem>>, %arg14: memref<1x256xf32, #tpu.memory_space<vmem>>, %arg15: memref<1x256xf32, #tpu.memory_space<vmem>>, %arg16: memref<1x1xf32, #tpu.memory_space<vmem>>, %arg17: memref<128x1xf32, #tpu.memory_space<vmem>>) attributes {dimension_semantics = [#tpu.dimension_semantics<parallel>], iteration_bounds = array<i64: 1>, scalar_prefetch = 1 : i64, scratch_operands = 0 : i64, tpu.core_type = #tpu.core_type<tc>, window_params = [{transform_indices = @transform_0, window_bounds = array<i64: 128, 16>}, {pipeline_mode = #tpu.pipeline_mode<synchronous>, transform_indices = @transform_1, window_bounds = array<i64: 16, 512>}, {pipeline_mode = #tpu.pipeline_mode<synchronous>, transform_indices = @transform_2, window_bounds = array<i64: 1, 512>}, {pipeline_mode = #tpu.pipeline_mode<synchronous>, transform_indices = @transform_3, window_bounds = array<i64: 512, 256>}, {pipeline_mode = #tpu.pipeline_mode<synchronous>, transform_indices = @transform_4, window_bounds = array<i64: 1, 256>}, {pipeline_mode = #tpu.pipeline_mode<synchronous>, transform_indices = @transform_5, window_bounds = array<i64: 256, 256>}, {pipeline_mode = #tpu.pipeline_mode<synchronous>, transform_indices = @transform_6, window_bounds = array<i64: 1, 256>}, {pipeline_mode = #tpu.pipeline_mode<synchronous>, transform_indices = @transform_7, window_bounds = array<i64: 256, 256>}, {pipeline_mode = #tpu.pipeline_mode<synchronous>, transform_indices = @transform_8, window_bounds = array<i64: 1, 256>}, {pipeline_mode = #tpu.pipeline_mode<synchronous>, transform_indices = @transform_9, window_bounds = array<i64: 256, 256>}, {pipeline_mode = #tpu.pipeline_mode<synchronous>, transform_indices = @transform_10, window_bounds = array<i64: 1, 256>}, {pipeline_mode = #tpu.pipeline_mode<synchronous>, transform_indices = @transform_11, window_bounds = array<i64: 256, 256>}, {pipeline_mode = #tpu.pipeline_mode<synchronous>, transform_indices = @transform_12, window_bounds = array<i64: 1, 256>}, {pipeline_mode = #tpu.pipeline_mode<synchronous>, transform_indices = @transform_13, window_bounds = array<i64: 1, 256>}, {pipeline_mode = #tpu.pipeline_mode<synchronous>, transform_indices = @transform_14, window_bounds = array<i64: 1, 1>}, {transform_indices = @transform_15, window_bounds = array<i64: 128, 1>}]} {
    %c0 = arith.constant 0 : index
    %0 = memref.load %arg1[%c0] : memref<1xi32, #tpu.memory_space<smem>>
    %c1000003_i32 = arith.constant 1000003 : i32
    %1 = arith.muli %arg0, %c1000003_i32 : i32
    %2 = arith.addi %0, %1 : i32
    %c0_0 = arith.constant 0 : index
    %c0_1 = arith.constant 0 : index
    %3 = vector.load %arg2[%c0_0, %c0_1] : memref<128x16xf32, #tpu.memory_space<vmem>>, vector<128x16xf32>
    %4 = arith.truncf %3 : vector<128x16xf32> to vector<128x16xbf16>
    %c0_2 = arith.constant 0 : index
    %c0_3 = arith.constant 0 : index
    %5 = vector.load %arg3[%c0_2, %c0_3] : memref<16x512xbf16, #tpu.memory_space<vmem>>, vector<16x512xbf16>
    %cst = arith.constant dense<0.000000e+00> : vector<128x512xf32>
    %6 = tpu.matmul %4, %5, %cst {dimension_numbers = #tpu.dot_dimension_numbers<[1], [0], [0], [1], [0, 0, 1, 1], [], []>} : vector<128x16xbf16>, vector<16x512xbf16>, vector<128x512xf32> -> vector<128x512xf32>
    %c0_4 = arith.constant 0 : index
    %c0_5 = arith.constant 0 : index
    %7 = vector.load %arg4[%c0_4, %c0_5] : memref<1x512xf32, #tpu.memory_space<vmem>>, vector<1x512xf32>
    %8 = vector.broadcast %7 : vector<1x512xf32> to vector<128x512xf32>
    %9 = arith.addf %6, %8 : vector<128x512xf32>
    %10 = tpu.iota {dimensions = array<i32: 0>} : vector<128x512xi32>
    %11 = tpu.iota {dimensions = array<i32: 1>} : vector<128x512xi32>
    %c512_i32 = arith.constant 512 : i32
    %12 = vector.broadcast %c512_i32 : i32 to vector<128x512xi32>
    %13 = arith.muli %10, %12 : vector<128x512xi32>
    %14 = arith.addi %13, %11 : vector<128x512xi32>
    %c-1640531535_i32 = arith.constant -1640531535 : i32
    %15 = vector.broadcast %c-1640531535_i32 : i32 to vector<128x512xi32>
    %16 = arith.muli %14, %15 : vector<128x512xi32>
    %17 = vector.broadcast %2 : i32 to vector<128x512xi32>
    %18 = arith.addi %16, %17 : vector<128x512xi32>
    %c16_i32 = arith.constant 16 : i32
    %19 = vector.broadcast %c16_i32 : i32 to vector<128x512xi32>
    %20 = arith.shrui %18, %19 : vector<128x512xi32>
    %21 = arith.xori %18, %20 : vector<128x512xi32>
    %c2146121005_i32 = arith.constant 2146121005 : i32
    %22 = vector.broadcast %c2146121005_i32 : i32 to vector<128x512xi32>
    %23 = arith.muli %21, %22 : vector<128x512xi32>
    %c15_i32 = arith.constant 15 : i32
    %24 = vector.broadcast %c15_i32 : i32 to vector<128x512xi32>
    %25 = arith.shrui %23, %24 : vector<128x512xi32>
    %26 = arith.xori %23, %25 : vector<128x512xi32>
    %c-2073254261_i32 = arith.constant -2073254261 : i32
    %27 = vector.broadcast %c-2073254261_i32 : i32 to vector<128x512xi32>
    %28 = arith.muli %26, %27 : vector<128x512xi32>
    %c16_i32_6 = arith.constant 16 : i32
    %29 = vector.broadcast %c16_i32_6 : i32 to vector<128x512xi32>
    %30 = arith.shrui %28, %29 : vector<128x512xi32>
    %31 = arith.xori %28, %30 : vector<128x512xi32>
    %c65535_i32 = arith.constant 65535 : i32
    %32 = vector.broadcast %c65535_i32 : i32 to vector<128x512xi32>
    %33 = arith.andi %31, %32 : vector<128x512xi32>
    %c6554_i32 = arith.constant 6554 : i32
    %34 = vector.broadcast %c6554_i32 : i32 to vector<128x512xi32>
    %35 = arith.cmpi sge, %33, %34 : vector<128x512xi32>
    %cst_7 = arith.constant 0.000000e+00 : f32
    %36 = vector.broadcast %cst_7 : f32 to vector<128x512xf32>
    %37 = arith.cmpf ogt, %9, %36 : vector<128x512xf32>
    %38 = arith.andi %35, %37 : vector<128x512xi1>
    %cst_8 = arith.constant 1.11111116 : f32
    %39 = vector.broadcast %cst_8 : f32 to vector<128x512xf32>
    %40 = arith.mulf %9, %39 : vector<128x512xf32>
    %cst_9 = arith.constant 0.000000e+00 : f32
    %41 = vector.broadcast %cst_9 : f32 to vector<128x512xf32>
    %42 = arith.select %38, %40, %41 : vector<128x512xi1>, vector<128x512xf32>
    %43 = arith.truncf %42 : vector<128x512xf32> to vector<128x512xbf16>
    %c0_10 = arith.constant 0 : index
    %c0_11 = arith.constant 0 : index
    %44 = vector.load %arg5[%c0_10, %c0_11] : memref<512x256xbf16, #tpu.memory_space<vmem>>, vector<512x256xbf16>
    %cst_12 = arith.constant dense<0.000000e+00> : vector<128x256xf32>
    %45 = tpu.matmul %43, %44, %cst_12 {dimension_numbers = #tpu.dot_dimension_numbers<[1], [0], [0], [1], [0, 0, 1, 1], [], []>} : vector<128x512xbf16>, vector<512x256xbf16>, vector<128x256xf32> -> vector<128x256xf32>
    %c0_13 = arith.constant 0 : index
    %c0_14 = arith.constant 0 : index
    %46 = vector.load %arg6[%c0_13, %c0_14] : memref<1x256xf32, #tpu.memory_space<vmem>>, vector<1x256xf32>
    %47 = vector.broadcast %46 : vector<1x256xf32> to vector<128x256xf32>
    %48 = arith.addf %45, %47 : vector<128x256xf32>
    %49 = tpu.iota {dimensions = array<i32: 0>} : vector<128x256xi32>
    %50 = tpu.iota {dimensions = array<i32: 1>} : vector<128x256xi32>
    %c256_i32 = arith.constant 256 : i32
    %51 = vector.broadcast %c256_i32 : i32 to vector<128x256xi32>
    %52 = arith.muli %49, %51 : vector<128x256xi32>
    %53 = arith.addi %52, %50 : vector<128x256xi32>
    %c-2048144777_i32 = arith.constant -2048144777 : i32
    %54 = vector.broadcast %c-2048144777_i32 : i32 to vector<128x256xi32>
    %55 = arith.muli %53, %54 : vector<128x256xi32>
    %56 = vector.broadcast %2 : i32 to vector<128x256xi32>
    %57 = arith.addi %55, %56 : vector<128x256xi32>
    %c16_i32_15 = arith.constant 16 : i32
    %58 = vector.broadcast %c16_i32_15 : i32 to vector<128x256xi32>
    %59 = arith.shrui %57, %58 : vector<128x256xi32>
    %60 = arith.xori %57, %59 : vector<128x256xi32>
    %c2146121005_i32_16 = arith.constant 2146121005 : i32
    %61 = vector.broadcast %c2146121005_i32_16 : i32 to vector<128x256xi32>
    %62 = arith.muli %60, %61 : vector<128x256xi32>
    %c15_i32_17 = arith.constant 15 : i32
    %63 = vector.broadcast %c15_i32_17 : i32 to vector<128x256xi32>
    %64 = arith.shrui %62, %63 : vector<128x256xi32>
    %65 = arith.xori %62, %64 : vector<128x256xi32>
    %c-2073254261_i32_18 = arith.constant -2073254261 : i32
    %66 = vector.broadcast %c-2073254261_i32_18 : i32 to vector<128x256xi32>
    %67 = arith.muli %65, %66 : vector<128x256xi32>
    %c16_i32_19 = arith.constant 16 : i32
    %68 = vector.broadcast %c16_i32_19 : i32 to vector<128x256xi32>
    %69 = arith.shrui %67, %68 : vector<128x256xi32>
    %70 = arith.xori %67, %69 : vector<128x256xi32>
    %c65535_i32_20 = arith.constant 65535 : i32
    %71 = vector.broadcast %c65535_i32_20 : i32 to vector<128x256xi32>
    %72 = arith.andi %70, %71 : vector<128x256xi32>
    %c6554_i32_21 = arith.constant 6554 : i32
    %73 = vector.broadcast %c6554_i32_21 : i32 to vector<128x256xi32>
    %74 = arith.cmpi sge, %72, %73 : vector<128x256xi32>
    %cst_22 = arith.constant 0.000000e+00 : f32
    %75 = vector.broadcast %cst_22 : f32 to vector<128x256xf32>
    %76 = arith.cmpf ogt, %48, %75 : vector<128x256xf32>
    %77 = arith.andi %74, %76 : vector<128x256xi1>
    %cst_23 = arith.constant 1.11111116 : f32
    %78 = vector.broadcast %cst_23 : f32 to vector<128x256xf32>
    %79 = arith.mulf %48, %78 : vector<128x256xf32>
    %cst_24 = arith.constant 0.000000e+00 : f32
    %80 = vector.broadcast %cst_24 : f32 to vector<128x256xf32>
    %81 = arith.select %77, %79, %80 : vector<128x256xi1>, vector<128x256xf32>
    %82 = arith.truncf %81 : vector<128x256xf32> to vector<128x256xbf16>
    %c0_25 = arith.constant 0 : index
    %c0_26 = arith.constant 0 : index
    %83 = vector.load %arg7[%c0_25, %c0_26] : memref<256x256xbf16, #tpu.memory_space<vmem>>, vector<256x256xbf16>
    %cst_27 = arith.constant dense<0.000000e+00> : vector<128x256xf32>
    %84 = tpu.matmul %82, %83, %cst_27 {dimension_numbers = #tpu.dot_dimension_numbers<[1], [0], [0], [1], [0, 0, 1, 1], [], []>} : vector<128x256xbf16>, vector<256x256xbf16>, vector<128x256xf32> -> vector<128x256xf32>
    %c0_28 = arith.constant 0 : index
    %c0_29 = arith.constant 0 : index
    %85 = vector.load %arg8[%c0_28, %c0_29] : memref<1x256xf32, #tpu.memory_space<vmem>>, vector<1x256xf32>
    %86 = vector.broadcast %85 : vector<1x256xf32> to vector<128x256xf32>
    %87 = arith.addf %84, %86 : vector<128x256xf32>
    %88 = tpu.iota {dimensions = array<i32: 0>} : vector<128x256xi32>
    %89 = tpu.iota {dimensions = array<i32: 1>} : vector<128x256xi32>
    %c256_i32_30 = arith.constant 256 : i32
    %90 = vector.broadcast %c256_i32_30 : i32 to vector<128x256xi32>
    %91 = arith.muli %88, %90 : vector<128x256xi32>
    %92 = arith.addi %91, %89 : vector<128x256xi32>
    %c-1028477379_i32 = arith.constant -1028477379 : i32
    %93 = vector.broadcast %c-1028477379_i32 : i32 to vector<128x256xi32>
    %94 = arith.muli %92, %93 : vector<128x256xi32>
    %95 = vector.broadcast %2 : i32 to vector<128x256xi32>
    %96 = arith.addi %94, %95 : vector<128x256xi32>
    %c16_i32_31 = arith.constant 16 : i32
    %97 = vector.broadcast %c16_i32_31 : i32 to vector<128x256xi32>
    %98 = arith.shrui %96, %97 : vector<128x256xi32>
    %99 = arith.xori %96, %98 : vector<128x256xi32>
    %c2146121005_i32_32 = arith.constant 2146121005 : i32
    %100 = vector.broadcast %c2146121005_i32_32 : i32 to vector<128x256xi32>
    %101 = arith.muli %99, %100 : vector<128x256xi32>
    %c15_i32_33 = arith.constant 15 : i32
    %102 = vector.broadcast %c15_i32_33 : i32 to vector<128x256xi32>
    %103 = arith.shrui %101, %102 : vector<128x256xi32>
    %104 = arith.xori %101, %103 : vector<128x256xi32>
    %c-2073254261_i32_34 = arith.constant -2073254261 : i32
    %105 = vector.broadcast %c-2073254261_i32_34 : i32 to vector<128x256xi32>
    %106 = arith.muli %104, %105 : vector<128x256xi32>
    %c16_i32_35 = arith.constant 16 : i32
    %107 = vector.broadcast %c16_i32_35 : i32 to vector<128x256xi32>
    %108 = arith.shrui %106, %107 : vector<128x256xi32>
    %109 = arith.xori %106, %108 : vector<128x256xi32>
    %c65535_i32_36 = arith.constant 65535 : i32
    %110 = vector.broadcast %c65535_i32_36 : i32 to vector<128x256xi32>
    %111 = arith.andi %109, %110 : vector<128x256xi32>
    %c6554_i32_37 = arith.constant 6554 : i32
    %112 = vector.broadcast %c6554_i32_37 : i32 to vector<128x256xi32>
    %113 = arith.cmpi sge, %111, %112 : vector<128x256xi32>
    %cst_38 = arith.constant 0.000000e+00 : f32
    %114 = vector.broadcast %cst_38 : f32 to vector<128x256xf32>
    %115 = arith.cmpf ogt, %87, %114 : vector<128x256xf32>
    %116 = arith.andi %113, %115 : vector<128x256xi1>
    %cst_39 = arith.constant 1.11111116 : f32
    %117 = vector.broadcast %cst_39 : f32 to vector<128x256xf32>
    %118 = arith.mulf %87, %117 : vector<128x256xf32>
    %cst_40 = arith.constant 0.000000e+00 : f32
    %119 = vector.broadcast %cst_40 : f32 to vector<128x256xf32>
    %120 = arith.select %116, %118, %119 : vector<128x256xi1>, vector<128x256xf32>
    %121 = arith.addf %120, %81 : vector<128x256xf32>
    %122 = arith.truncf %121 : vector<128x256xf32> to vector<128x256xbf16>
    %c0_41 = arith.constant 0 : index
    %c0_42 = arith.constant 0 : index
    %123 = vector.load %arg9[%c0_41, %c0_42] : memref<256x256xbf16, #tpu.memory_space<vmem>>, vector<256x256xbf16>
    %cst_43 = arith.constant dense<0.000000e+00> : vector<128x256xf32>
    %124 = tpu.matmul %122, %123, %cst_43 {dimension_numbers = #tpu.dot_dimension_numbers<[1], [0], [0], [1], [0, 0, 1, 1], [], []>} : vector<128x256xbf16>, vector<256x256xbf16>, vector<128x256xf32> -> vector<128x256xf32>
    %c0_44 = arith.constant 0 : index
    %c0_45 = arith.constant 0 : index
    %125 = vector.load %arg10[%c0_44, %c0_45] : memref<1x256xf32, #tpu.memory_space<vmem>>, vector<1x256xf32>
    %126 = vector.broadcast %125 : vector<1x256xf32> to vector<128x256xf32>
    %127 = arith.addf %124, %126 : vector<128x256xf32>
    %128 = tpu.iota {dimensions = array<i32: 0>} : vector<128x256xi32>
    %129 = tpu.iota {dimensions = array<i32: 1>} : vector<128x256xi32>
    %c256_i32_46 = arith.constant 256 : i32
    %130 = vector.broadcast %c256_i32_46 : i32 to vector<128x256xi32>
    %131 = arith.muli %128, %130 : vector<128x256xi32>
    %132 = arith.addi %131, %129 : vector<128x256xi32>
    %c668265263_i32 = arith.constant 668265263 : i32
    %133 = vector.broadcast %c668265263_i32 : i32 to vector<128x256xi32>
    %134 = arith.muli %132, %133 : vector<128x256xi32>
    %135 = vector.broadcast %2 : i32 to vector<128x256xi32>
    %136 = arith.addi %134, %135 : vector<128x256xi32>
    %c16_i32_47 = arith.constant 16 : i32
    %137 = vector.broadcast %c16_i32_47 : i32 to vector<128x256xi32>
    %138 = arith.shrui %136, %137 : vector<128x256xi32>
    %139 = arith.xori %136, %138 : vector<128x256xi32>
    %c2146121005_i32_48 = arith.constant 2146121005 : i32
    %140 = vector.broadcast %c2146121005_i32_48 : i32 to vector<128x256xi32>
    %141 = arith.muli %139, %140 : vector<128x256xi32>
    %c15_i32_49 = arith.constant 15 : i32
    %142 = vector.broadcast %c15_i32_49 : i32 to vector<128x256xi32>
    %143 = arith.shrui %141, %142 : vector<128x256xi32>
    %144 = arith.xori %141, %143 : vector<128x256xi32>
    %c-2073254261_i32_50 = arith.constant -2073254261 : i32
    %145 = vector.broadcast %c-2073254261_i32_50 : i32 to vector<128x256xi32>
    %146 = arith.muli %144, %145 : vector<128x256xi32>
    %c16_i32_51 = arith.constant 16 : i32
    %147 = vector.broadcast %c16_i32_51 : i32 to vector<128x256xi32>
    %148 = arith.shrui %146, %147 : vector<128x256xi32>
    %149 = arith.xori %146, %148 : vector<128x256xi32>
    %c65535_i32_52 = arith.constant 65535 : i32
    %150 = vector.broadcast %c65535_i32_52 : i32 to vector<128x256xi32>
    %151 = arith.andi %149, %150 : vector<128x256xi32>
    %c6554_i32_53 = arith.constant 6554 : i32
    %152 = vector.broadcast %c6554_i32_53 : i32 to vector<128x256xi32>
    %153 = arith.cmpi sge, %151, %152 : vector<128x256xi32>
    %cst_54 = arith.constant 0.000000e+00 : f32
    %154 = vector.broadcast %cst_54 : f32 to vector<128x256xf32>
    %155 = arith.cmpf ogt, %127, %154 : vector<128x256xf32>
    %156 = arith.andi %153, %155 : vector<128x256xi1>
    %cst_55 = arith.constant 1.11111116 : f32
    %157 = vector.broadcast %cst_55 : f32 to vector<128x256xf32>
    %158 = arith.mulf %127, %157 : vector<128x256xf32>
    %cst_56 = arith.constant 0.000000e+00 : f32
    %159 = vector.broadcast %cst_56 : f32 to vector<128x256xf32>
    %160 = arith.select %156, %158, %159 : vector<128x256xi1>, vector<128x256xf32>
    %161 = arith.addf %160, %121 : vector<128x256xf32>
    %162 = arith.truncf %161 : vector<128x256xf32> to vector<128x256xbf16>
    %c0_57 = arith.constant 0 : index
    %c0_58 = arith.constant 0 : index
    %163 = vector.load %arg11[%c0_57, %c0_58] : memref<256x256xbf16, #tpu.memory_space<vmem>>, vector<256x256xbf16>
    %cst_59 = arith.constant dense<0.000000e+00> : vector<128x256xf32>
    %164 = tpu.matmul %162, %163, %cst_59 {dimension_numbers = #tpu.dot_dimension_numbers<[1], [0], [0], [1], [0, 0, 1, 1], [], []>} : vector<128x256xbf16>, vector<256x256xbf16>, vector<128x256xf32> -> vector<128x256xf32>
    %c0_60 = arith.constant 0 : index
    %c0_61 = arith.constant 0 : index
    %165 = vector.load %arg12[%c0_60, %c0_61] : memref<1x256xf32, #tpu.memory_space<vmem>>, vector<1x256xf32>
    %166 = vector.broadcast %165 : vector<1x256xf32> to vector<128x256xf32>
    %167 = arith.addf %164, %166 : vector<128x256xf32>
    %168 = tpu.iota {dimensions = array<i32: 0>} : vector<128x256xi32>
    %169 = tpu.iota {dimensions = array<i32: 1>} : vector<128x256xi32>
    %c256_i32_62 = arith.constant 256 : i32
    %170 = vector.broadcast %c256_i32_62 : i32 to vector<128x256xi32>
    %171 = arith.muli %168, %170 : vector<128x256xi32>
    %172 = arith.addi %171, %169 : vector<128x256xi32>
    %c374761393_i32 = arith.constant 374761393 : i32
    %173 = vector.broadcast %c374761393_i32 : i32 to vector<128x256xi32>
    %174 = arith.muli %172, %173 : vector<128x256xi32>
    %175 = vector.broadcast %2 : i32 to vector<128x256xi32>
    %176 = arith.addi %174, %175 : vector<128x256xi32>
    %c16_i32_63 = arith.constant 16 : i32
    %177 = vector.broadcast %c16_i32_63 : i32 to vector<128x256xi32>
    %178 = arith.shrui %176, %177 : vector<128x256xi32>
    %179 = arith.xori %176, %178 : vector<128x256xi32>
    %c2146121005_i32_64 = arith.constant 2146121005 : i32
    %180 = vector.broadcast %c2146121005_i32_64 : i32 to vector<128x256xi32>
    %181 = arith.muli %179, %180 : vector<128x256xi32>
    %c15_i32_65 = arith.constant 15 : i32
    %182 = vector.broadcast %c15_i32_65 : i32 to vector<128x256xi32>
    %183 = arith.shrui %181, %182 : vector<128x256xi32>
    %184 = arith.xori %181, %183 : vector<128x256xi32>
    %c-2073254261_i32_66 = arith.constant -2073254261 : i32
    %185 = vector.broadcast %c-2073254261_i32_66 : i32 to vector<128x256xi32>
    %186 = arith.muli %184, %185 : vector<128x256xi32>
    %c16_i32_67 = arith.constant 16 : i32
    %187 = vector.broadcast %c16_i32_67 : i32 to vector<128x256xi32>
    %188 = arith.shrui %186, %187 : vector<128x256xi32>
    %189 = arith.xori %186, %188 : vector<128x256xi32>
    %c65535_i32_68 = arith.constant 65535 : i32
    %190 = vector.broadcast %c65535_i32_68 : i32 to vector<128x256xi32>
    %191 = arith.andi %189, %190 : vector<128x256xi32>
    %c6554_i32_69 = arith.constant 6554 : i32
    %192 = vector.broadcast %c6554_i32_69 : i32 to vector<128x256xi32>
    %193 = arith.cmpi sge, %191, %192 : vector<128x256xi32>
    %cst_70 = arith.constant 0.000000e+00 : f32
    %194 = vector.broadcast %cst_70 : f32 to vector<128x256xf32>
    %195 = arith.cmpf ogt, %167, %194 : vector<128x256xf32>
    %196 = arith.andi %193, %195 : vector<128x256xi1>
    %cst_71 = arith.constant 1.11111116 : f32
    %197 = vector.broadcast %cst_71 : f32 to vector<128x256xf32>
    %198 = arith.mulf %167, %197 : vector<128x256xf32>
    %cst_72 = arith.constant 0.000000e+00 : f32
    %199 = vector.broadcast %cst_72 : f32 to vector<128x256xf32>
    %200 = arith.select %196, %198, %199 : vector<128x256xi1>, vector<128x256xf32>
    %201 = arith.addf %200, %161 : vector<128x256xf32>
    %202 = arith.truncf %201 : vector<128x256xf32> to vector<128x256xbf16>
    %c0_73 = arith.constant 0 : index
    %c0_74 = arith.constant 0 : index
    %203 = vector.load %arg13[%c0_73, %c0_74] : memref<256x256xbf16, #tpu.memory_space<vmem>>, vector<256x256xbf16>
    %cst_75 = arith.constant dense<0.000000e+00> : vector<128x256xf32>
    %204 = tpu.matmul %202, %203, %cst_75 {dimension_numbers = #tpu.dot_dimension_numbers<[1], [0], [0], [1], [0, 0, 1, 1], [], []>} : vector<128x256xbf16>, vector<256x256xbf16>, vector<128x256xf32> -> vector<128x256xf32>
    %c0_76 = arith.constant 0 : index
    %c0_77 = arith.constant 0 : index
    %205 = vector.load %arg14[%c0_76, %c0_77] : memref<1x256xf32, #tpu.memory_space<vmem>>, vector<1x256xf32>
    %206 = vector.broadcast %205 : vector<1x256xf32> to vector<128x256xf32>
    %207 = arith.addf %204, %206 : vector<128x256xf32>
    %208 = tpu.iota {dimensions = array<i32: 0>} : vector<128x256xi32>
    %209 = tpu.iota {dimensions = array<i32: 1>} : vector<128x256xi32>
    %c256_i32_78 = arith.constant 256 : i32
    %210 = vector.broadcast %c256_i32_78 : i32 to vector<128x256xi32>
    %211 = arith.muli %208, %210 : vector<128x256xi32>
    %212 = arith.addi %211, %209 : vector<128x256xi32>
    %c1013904243_i32 = arith.constant 1013904243 : i32
    %213 = vector.broadcast %c1013904243_i32 : i32 to vector<128x256xi32>
    %214 = arith.muli %212, %213 : vector<128x256xi32>
    %215 = vector.broadcast %2 : i32 to vector<128x256xi32>
    %216 = arith.addi %214, %215 : vector<128x256xi32>
    %c16_i32_79 = arith.constant 16 : i32
    %217 = vector.broadcast %c16_i32_79 : i32 to vector<128x256xi32>
    %218 = arith.shrui %216, %217 : vector<128x256xi32>
    %219 = arith.xori %216, %218 : vector<128x256xi32>
    %c2146121005_i32_80 = arith.constant 2146121005 : i32
    %220 = vector.broadcast %c2146121005_i32_80 : i32 to vector<128x256xi32>
    %221 = arith.muli %219, %220 : vector<128x256xi32>
    %c15_i32_81 = arith.constant 15 : i32
    %222 = vector.broadcast %c15_i32_81 : i32 to vector<128x256xi32>
    %223 = arith.shrui %221, %222 : vector<128x256xi32>
    %224 = arith.xori %221, %223 : vector<128x256xi32>
    %c-2073254261_i32_82 = arith.constant -2073254261 : i32
    %225 = vector.broadcast %c-2073254261_i32_82 : i32 to vector<128x256xi32>
    %226 = arith.muli %224, %225 : vector<128x256xi32>
    %c16_i32_83 = arith.constant 16 : i32
    %227 = vector.broadcast %c16_i32_83 : i32 to vector<128x256xi32>
    %228 = arith.shrui %226, %227 : vector<128x256xi32>
    %229 = arith.xori %226, %228 : vector<128x256xi32>
    %c65535_i32_84 = arith.constant 65535 : i32
    %230 = vector.broadcast %c65535_i32_84 : i32 to vector<128x256xi32>
    %231 = arith.andi %229, %230 : vector<128x256xi32>
    %c6554_i32_85 = arith.constant 6554 : i32
    %232 = vector.broadcast %c6554_i32_85 : i32 to vector<128x256xi32>
    %233 = arith.cmpi sge, %231, %232 : vector<128x256xi32>
    %cst_86 = arith.constant 0.000000e+00 : f32
    %234 = vector.broadcast %cst_86 : f32 to vector<128x256xf32>
    %235 = arith.cmpf ogt, %207, %234 : vector<128x256xf32>
    %236 = arith.andi %233, %235 : vector<128x256xi1>
    %cst_87 = arith.constant 1.11111116 : f32
    %237 = vector.broadcast %cst_87 : f32 to vector<128x256xf32>
    %238 = arith.mulf %207, %237 : vector<128x256xf32>
    %cst_88 = arith.constant 0.000000e+00 : f32
    %239 = vector.broadcast %cst_88 : f32 to vector<128x256xf32>
    %240 = arith.select %236, %238, %239 : vector<128x256xi1>, vector<128x256xf32>
    %241 = arith.addf %240, %201 : vector<128x256xf32>
    %c0_89 = arith.constant 0 : index
    %c0_90 = arith.constant 0 : index
    %242 = vector.load %arg15[%c0_89, %c0_90] : memref<1x256xf32, #tpu.memory_space<vmem>>, vector<1x256xf32>
    %243 = vector.broadcast %242 : vector<1x256xf32> to vector<128x256xf32>
    %244 = arith.mulf %241, %243 : vector<128x256xf32>
    %cst_91 = arith.constant dense<0.000000e+00> : vector<128xf32>
    %245 = vector.multi_reduction <add>, %244, %cst_91 [1] : vector<128x256xf32> to vector<128xf32>
    %246 = vector.shape_cast %245 : vector<128xf32> to vector<128x1xf32>
    %c0_92 = arith.constant 0 : index
    %c0_93 = arith.constant 0 : index
    %247 = vector.load %arg16[%c0_92, %c0_93] : memref<1x1xf32, #tpu.memory_space<vmem>>, vector<1x1xf32>
    %248 = vector.broadcast %247 : vector<1x1xf32> to vector<128x1xf32>
    %249 = arith.addf %246, %248 : vector<128x1xf32>
    %c0_94 = arith.constant 0 : index
    %c0_95 = arith.constant 0 : index
    %250 = vector.load %arg17[%c0_94, %c0_95] : memref<128x1xf32, #tpu.memory_space<vmem>>, vector<128x1xf32>
    tpu.vector_store %arg17[%c0_94, %c0_95], %249 {strides = array<i32>} : memref<128x1xf32, #tpu.memory_space<vmem>>, vector<128x1xf32>,
    return
  }
  func.func @transform_0(%arg0: i32, %arg1: memref<1xi32, #tpu.memory_space<smem>>) -> (i32, i32) {
    %c0_i32 = arith.constant 0 : i32
    %c0_i32_0 = arith.constant 0 : i32
    return %arg0, %c0_i32 : i32, i32
  }
  func.func @transform_1(%arg0: i32, %arg1: memref<1xi32, #tpu.memory_space<smem>>) -> (i32, i32) {
    %c0_i32 = arith.constant 0 : i32
    %c0_i32_0 = arith.constant 0 : i32
    %c0_i32_1 = arith.constant 0 : i32
    return %c0_i32, %c0_i32_0 : i32, i32
  }
  func.func @transform_2(%arg0: i32, %arg1: memref<1xi32, #tpu.memory_space<smem>>) -> (i32, i32) {
    %c0_i32 = arith.constant 0 : i32
    %c0_i32_0 = arith.constant 0 : i32
    %c0_i32_1 = arith.constant 0 : i32
    return %c0_i32, %c0_i32_0 : i32, i32
  }
  func.func @transform_3(%arg0: i32, %arg1: memref<1xi32, #tpu.memory_space<smem>>) -> (i32, i32) {
    %c0_i32 = arith.constant 0 : i32
    %c0_i32_0 = arith.constant 0 : i32
    %c0_i32_1 = arith.constant 0 : i32
    return %c0_i32, %c0_i32_0 : i32, i32
  }
  func.func @transform_4(%arg0: i32, %arg1: memref<1xi32, #tpu.memory_space<smem>>) -> (i32, i32) {
    %c0_i32 = arith.constant 0 : i32
    %c0_i32_0 = arith.constant 0 : i32
    %c0_i32_1 = arith.constant 0 : i32
    return %c0_i32, %c0_i32_0 : i32, i32
  }
  func.func @transform_5(%arg0: i32, %arg1: memref<1xi32, #tpu.memory_space<smem>>) -> (i32, i32) {
    %c0_i32 = arith.constant 0 : i32
    %c0_i32_0 = arith.constant 0 : i32
    %c0_i32_1 = arith.constant 0 : i32
    return %c0_i32, %c0_i32_0 : i32, i32
  }
  func.func @transform_6(%arg0: i32, %arg1: memref<1xi32, #tpu.memory_space<smem>>) -> (i32, i32) {
    %c0_i32 = arith.constant 0 : i32
    %c0_i32_0 = arith.constant 0 : i32
    %c0_i32_1 = arith.constant 0 : i32
    return %c0_i32, %c0_i32_0 : i32, i32
  }
  func.func @transform_7(%arg0: i32, %arg1: memref<1xi32, #tpu.memory_space<smem>>) -> (i32, i32) {
    %c0_i32 = arith.constant 0 : i32
    %c0_i32_0 = arith.constant 0 : i32
    %c0_i32_1 = arith.constant 0 : i32
    return %c0_i32, %c0_i32_0 : i32, i32
  }
  func.func @transform_8(%arg0: i32, %arg1: memref<1xi32, #tpu.memory_space<smem>>) -> (i32, i32) {
    %c0_i32 = arith.constant 0 : i32
    %c0_i32_0 = arith.constant 0 : i32
    %c0_i32_1 = arith.constant 0 : i32
    return %c0_i32, %c0_i32_0 : i32, i32
  }
  func.func @transform_9(%arg0: i32, %arg1: memref<1xi32, #tpu.memory_space<smem>>) -> (i32, i32) {
    %c0_i32 = arith.constant 0 : i32
    %c0_i32_0 = arith.constant 0 : i32
    %c0_i32_1 = arith.constant 0 : i32
    return %c0_i32, %c0_i32_0 : i32, i32
  }
  func.func @transform_10(%arg0: i32, %arg1: memref<1xi32, #tpu.memory_space<smem>>) -> (i32, i32) {
    %c0_i32 = arith.constant 0 : i32
    %c0_i32_0 = arith.constant 0 : i32
    %c0_i32_1 = arith.constant 0 : i32
    return %c0_i32, %c0_i32_0 : i32, i32
  }
  func.func @transform_11(%arg0: i32, %arg1: memref<1xi32, #tpu.memory_space<smem>>) -> (i32, i32) {
    %c0_i32 = arith.constant 0 : i32
    %c0_i32_0 = arith.constant 0 : i32
    %c0_i32_1 = arith.constant 0 : i32
    return %c0_i32, %c0_i32_0 : i32, i32
  }
  func.func @transform_12(%arg0: i32, %arg1: memref<1xi32, #tpu.memory_space<smem>>) -> (i32, i32) {
    %c0_i32 = arith.constant 0 : i32
    %c0_i32_0 = arith.constant 0 : i32
    %c0_i32_1 = arith.constant 0 : i32
    return %c0_i32, %c0_i32_0 : i32, i32
  }
  func.func @transform_13(%arg0: i32, %arg1: memref<1xi32, #tpu.memory_space<smem>>) -> (i32, i32) {
    %c0_i32 = arith.constant 0 : i32
    %c0_i32_0 = arith.constant 0 : i32
    %c0_i32_1 = arith.constant 0 : i32
    return %c0_i32, %c0_i32_0 : i32, i32
  }
  func.func @transform_14(%arg0: i32, %arg1: memref<1xi32, #tpu.memory_space<smem>>) -> (i32, i32) {
    %c0_i32 = arith.constant 0 : i32
    %c0_i32_0 = arith.constant 0 : i32
    %c0_i32_1 = arith.constant 0 : i32
    return %c0_i32, %c0_i32_0 : i32, i32
  }
  func.func @transform_15(%arg0: i32, %arg1: memref<1xi32, #tpu.memory_space<smem>>) -> (i32, i32) {
    %c0_i32 = arith.constant 0 : i32
    %c0_i32_0 = arith.constant 0 : i32
    return %arg0, %c0_i32 : i32, i32
  }
}

</mosaic_0001>

<llo_original>
// kernel: quantum_gnn_forward.1
$region0: #{quantum_gnn_forward.1}
  #allocation0 [shape = 'u32[]', space=smem, size = 0x4, offset = 0x4, fixed_abs, tag = 'smem constant byte address 0x4 - core index']
  #allocation1 [shape = 'u32[144,128]{1,0:T(1,128)}', space=vmem, size = 0x12000, scoped, tag = 'internal scratch']
  #allocation2 [shape = 's32[1]{0}', space=sflag, size = 0x4, scoped, tag = 'scoped memory for quantum_gnn_forward.1']
  #allocation3 [shape = 's32[1]{0:T(128)S(6)}', space=smem, size = 0x200, scoped, tag = 'prefetched SMEM operand 0']
  #allocation4 [shape = 'f32[1,1]{1,0:T(1,128)S(1)}', space=vmem, size = 0x200, scoped, tag = 'scoped memory for quantum_gnn_forward.1']
  %s0 = inlined_call_operand.<no memory space> [shape: s32[1], index: 0, kind: input, shape index: {}]
  %s1 = inlined_call_operand.vmem [shape: f32[128,16], index: 1, kind: input, shape index: {}]
  %s2 = inlined_call_operand.vmem [shape: bf16[16,512], index: 2, kind: input, shape index: {}]
  %s3 = inlined_call_operand.vmem [shape: f32[1,512], index: 3, kind: input, shape index: {}]
  %s4 = inlined_call_operand.vmem [shape: bf16[512,256], index: 4, kind: input, shape index: {}]
  %s5 = inlined_call_operand.vmem [shape: f32[1,256], index: 5, kind: input, shape index: {}]
  %s6 = inlined_call_operand.vmem [shape: bf16[256,256], index: 6, kind: input, shape index: {}]
  %s7 = inlined_call_operand.vmem [shape: f32[1,256], index: 7, kind: input, shape index: {}]
  %s8 = inlined_call_operand.vmem [shape: bf16[256,256], index: 8, kind: input, shape index: {}]
  %s9 = inlined_call_operand.vmem [shape: f32[1,256], index: 9, kind: input, shape index: {}]
  %s10 = inlined_call_operand.vmem [shape: bf16[256,256], index: 10, kind: input, shape index: {}]
  %s11 = inlined_call_operand.vmem [shape: f32[1,256], index: 11, kind: input, shape index: {}]
  %s12 = inlined_call_operand.vmem [shape: bf16[256,256], index: 12, kind: input, shape index: {}]
  %s13 = inlined_call_operand.vmem [shape: f32[1,256], index: 13, kind: input, shape index: {}]
  %s14 = inlined_call_operand.vmem [shape: f32[1,256], index: 14, kind: input, shape index: {}]
  %s15 = inlined_call_operand.<no memory space> [shape: f32[1,1], index: 15, kind: input, shape index: {}]
  %s16 = inlined_call_operand.vmem [shape: f32[128,1], index: 16, kind: output, shape index: {}]
  %s17 = sld [smem:[#allocation0]]
  $region70: #{quantum_gnn_forward.1} parent=0
    _
  %s19 = ssub.s32 1, %s17
  %s20 = scalar_select 0, %s19, %s17
  %21 = sst [smem:[#allocation3]] %s0
  %v22 = vstv %s15
  %23 = vst [vmem:[#allocation4] sm:$0x1] %v22
  // Predicated region
  $region2: #{quantum_gnn_forward.1} parent=0 // pred_check
    _
  $region3: #{quantum_gnn_forward.1} parent=0 // pred_check_branch
    %25 = sbr.rel (0) target = $region5
  $region4: #{quantum_gnn_forward.1} parent=0 // pred_region
    _
  $region5: #{quantum_gnn_forward.1} parent=0 // pred_fallthru
    _
  // Predicated region
  $region6: #{quantum_gnn_forward.1} parent=0 // pred_check
    _
  $region7: #{quantum_gnn_forward.1} parent=0 // pred_check_branch
    %27 = sbr.rel (0) target = $region9
  $region8: #{quantum_gnn_forward.1} parent=0 // pred_region
    _
  $region9: #{quantum_gnn_forward.1} parent=0 // pred_fallthru
    _
  // Predicated region
  $region10: #{quantum_gnn_forward.1} parent=0 // pred_check
    _
  $region11: #{quantum_gnn_forward.1} parent=0 // pred_check_branch
    %29 = sbr.rel (0) target = $region13
  $region12: #{quantum_gnn_forward.1} parent=0 // pred_region
    _
  $region13: #{quantum_gnn_forward.1} parent=0 // pred_fallthru
    _
  // Predicated region
  $region14: #{quantum_gnn_forward.1} parent=0 // pred_check
    _
  $region15: #{quantum_gnn_forward.1} parent=0 // pred_check_branch
    %31 = sbr.rel (0) target = $region17
  $region16: #{quantum_gnn_forward.1} parent=0 // pred_region
    _
  $region17: #{quantum_gnn_forward.1} parent=0 // pred_fallthru
    _
  // Predicated region
  $region18: #{quantum_gnn_forward.1} parent=0 // pred_check
    _
  $region19: #{quantum_gnn_forward.1} parent=0 // pred_check_branch
    %33 = sbr.rel (0) target = $region21
  $region20: #{quantum_gnn_forward.1} parent=0 // pred_region
    _
  $region21: #{quantum_gnn_forward.1} parent=0 // pred_fallthru
    _
  // Predicated region
  $region22: #{quantum_gnn_forward.1} parent=0 // pred_check
    _
  $region23: #{quantum_gnn_forward.1} parent=0 // pred_check_branch
    %35 = sbr.rel (0) target = $region25
  $region24: #{quantum_gnn_forward.1} parent=0 // pred_region
    _
  $region25: #{quantum_gnn_forward.1} parent=0 // pred_fallthru
    _
  // Predicated region
  $region26: #{quantum_gnn_forward.1} parent=0 // pred_check
    _
  $region27: #{quantum_gnn_forward.1} parent=0 // pred_check_branch
    %37 = sbr.rel (0) target = $region29
  $region28: #{quantum_gnn_forward.1} parent=0 // pred_region
    _
  $region29: #{quantum_gnn_forward.1} parent=0 // pred_fallthru
    _
  // Predicated region
  $region30: #{quantum_gnn_forward.1} parent=0 // pred_check
    _
  $region31: #{quantum_gnn_forward.1} parent=0 // pred_check_branch
    %39 = sbr.rel (0) target = $region33
  $region32: #{quantum_gnn_forward.1} parent=0 // pred_region
    _
  $region33: #{quantum_gnn_forward.1} parent=0 // pred_fallthru
    _
  // Predicated region
  $region34: #{quantum_gnn_forward.1} parent=0 // pred_check
    _
  $region35: #{quantum_gnn_forward.1} parent=0 // pred_check_branch
    %41 = sbr.rel (0) target = $region37
  $region36: #{quantum_gnn_forward.1} parent=0 // pred_region
    _
  $region37: #{quantum_gnn_forward.1} parent=0 // pred_fallthru
    _
  // Predicated region
  $region38: #{quantum_gnn_forward.1} parent=0 // pred_check
    _
  $region39: #{quantum_gnn_forward.1} parent=0 // pred_check_branch
    %43 = sbr.rel (0) target = $region41
  $region40: #{quantum_gnn_forward.1} parent=0 // pred_region
    _
  $region41: #{quantum_gnn_forward.1} parent=0 // pred_fallthru
    _
  // Predicated region
  $region42: #{quantum_gnn_forward.1} parent=0 // pred_check
    _
  $region43: #{quantum_gnn_forward.1} parent=0 // pred_check_branch
    %45 = sbr.rel (0) target = $region45
  $region44: #{quantum_gnn_forward.1} parent=0 // pred_region
    _
  $region45: #{quantum_gnn_forward.1} parent=0 // pred_fallthru
    _
  // Predicated region
  $region46: #{quantum_gnn_forward.1} parent=0 // pred_check
    _
  $region47: #{quantum_gnn_forward.1} parent=0 // pred_check_branch
    %47 = sbr.rel (0) target = $region49
  $region48: #{quantum_gnn_forward.1} parent=0 // pred_region
    _
  $region49: #{quantum_gnn_forward.1} parent=0 // pred_fallthru
    _
  // Predicated region
  $region50: #{quantum_gnn_forward.1} parent=0 // pred_check
    _
  $region51: #{quantum_gnn_forward.1} parent=0 // pred_check_branch
    %49 = sbr.rel (0) target = $region53
  $region52: #{quantum_gnn_forward.1} parent=0 // pred_region
    _
  $region53: #{quantum_gnn_forward.1} parent=0 // pred_fallthru
    _
  // Predicated region
  $region54: #{quantum_gnn_forward.1} parent=0 // pred_check
    _
  $region55: #{quantum_gnn_forward.1} parent=0 // pred_check_branch
    %51 = sbr.rel (0) target = $region57
  $region56: #{quantum_gnn_forward.1} parent=0 // pred_region
    _
  $region57: #{quantum_gnn_forward.1} parent=0 // pred_fallthru
    _
  // Predicated region
  $region58: #{quantum_gnn_forward.1} parent=0 // pred_check
    _
  $region59: #{quantum_gnn_forward.1} parent=0 // pred_check_branch
    %53 = sbr.rel (0) target = $region61
  $region60: #{quantum_gnn_forward.1} parent=0 // pred_region
    _
  $region61: #{quantum_gnn_forward.1} parent=0 // pred_fallthru
    _
  %s55 = sld [smem:[#allocation3]]
  %s56 = smul.u32 0, 1000003
  %s57 = sadd.s32 %s55, %s56
  %v58 = vld [vmem:[%s1] sm:$0xff]
  %v59 = vld [vmem:[%s1 + $0x8] sm:$0xff]
  %v60 = vld [vmem:[%s1 + $0x10] sm:$0xff]
  %v61 = vld [vmem:[%s1 + $0x18] sm:$0xff]
  %v62 = vld [vmem:[%s1 + $0x20] sm:$0xff]
  %v63 = vld [vmem:[%s1 + $0x28] sm:$0xff]
  %v64 = vld [vmem:[%s1 + $0x30] sm:$0xff]
  %v65 = vld [vmem:[%s1 + $0x38] sm:$0xff]
  %v66 = vld [vmem:[%s1 + $0x40] sm:$0xff]
  %v67 = vld [vmem:[%s1 + $0x48] sm:$0xff]
  %v68 = vld [vmem:[%s1 + $0x50] sm:$0xff]
  %v69 = vld [vmem:[%s1 + $0x58] sm:$0xff]
  %v70 = vld [vmem:[%s1 + $0x60] sm:$0xff]
  %v71 = vld [vmem:[%s1 + $0x68] sm:$0xff]
  %v72 = vld [vmem:[%s1 + $0x70] sm:$0xff]
  %v73 = vld [vmem:[%s1 + $0x78] sm:$0xff]
  %v74 = vpack.c.bf16 %v59, %v58
  %v75 = vpack.c.bf16 %v61, %v60
  %v76 = vpack.c.bf16 %v63, %v62
  %v77 = vpack.c.bf16 %v65, %v64
  %v78 = vpack.c.bf16 %v67, %v66
  %v79 = vpack.c.bf16 %v69, %v68
  %v80 = vpack.c.bf16 %v71, %v70
  %v81 = vpack.c.bf16 %v73, %v72
  %v82 = vld [vmem:[%s2] sm:$0xff]
  %v83 = vld [vmem:[%s2 + $0x8] sm:$0xff]
  %v84 = vld [vmem:[%s2 + $0x10] sm:$0xff]
  %v85 = vld [vmem:[%s2 + $0x18] sm:$0xff]
  %v86 = vld [vmem:[%s3] sm:$0xf]
  %v88 = vlaneseq
  %v89 = vshrl.u32 %v88, 7
  %v90 = vsub.s32 0, %v89
  %v91 = vrot.slane %v86, %v90
  %v92 = vlaneseq
  %v93 = vshrl.u32 %v92, 7
  %v94 = vsub.s32 1, %v93
  %v95 = vrot.slane %v86, %v94
  %v96 = vlaneseq
  %v97 = vshrl.u32 %v96, 7
  %v98 = vsub.s32 2, %v97
  %v99 = vrot.slane %v86, %v98
  %v100 = vlaneseq
  %v101 = vshrl.u32 %v100, 7
  %v102 = vsub.s32 3, %v101
  %v103 = vrot.slane %v86, %v102
  %v112 = vunpack.c.l.b16 %v82
  %v113 = vunpack.c.h.b16 %v82
  %v114 = vunpack.c.l.b16 %v83
  %v115 = vunpack.c.h.b16 %v83
  %v116 = vunpack.c.l.b16 %v84
  %v117 = vunpack.c.h.b16 %v84
  %v118 = vunpack.c.l.b16 %v85
  %v119 = vunpack.c.h.b16 %v85
  %v120 = vpack.c.b16 %v116, %v112
  %v121 = vpack.c.b16 %v117, %v113
  %v122 = vpack.c.b16 %v118, %v114
  %v123 = vpack.c.b16 %v119, %v115
  %vm128 = vcmask 130048
  %v130 = vsel %vm128, %v74, 0
  %v133 = vsel %vm128, %v75, 0
  %v136 = vsel %vm128, %v76, 0
  %v139 = vsel %vm128, %v77, 0
  %v142 = vsel %vm128, %v78, 0
  %v145 = vsel %vm128, %v79, 0
  %v148 = vsel %vm128, %v80, 0
  %v151 = vsel %vm128, %v81, 0
  %153 = vmatprep.subr.bf16.mxu0 0
  %154 = vmatpush1.bf16.msra.mxu0 0
  %155 = vmatprep.subr.bf16.mxu0 0
  %156 = vmatpush1.bf16.msra.mxu0 0
  %157 = vmatprep.subr.bf16.mxu0 0
  %158 = vmatpush1.bf16.msra.mxu0 0
  %159 = vmatprep.subr.bf16.mxu0 0
  %160 = vmatpush1.bf16.msra.mxu0 0
  %161 = vmatprep.subr.bf16.mxu0 0
  %162 = vmatpush1.bf16.msra.mxu0 0
  %163 = vmatprep.subr.bf16.mxu0 0
  %164 = vmatpush1.bf16.msra.mxu0 0
  %165 = vmatprep.subr.bf16.mxu0 0
  %166 = vmatpush1.bf16.msra.mxu0 0
  %167 = vmatprep.subr.bf16.mxu0 %v121
  %168 = vmatpush1.bf16.msra.mxu0 %v120
  %169 = vmatprep.subr.bf16.mxu0 0
  %170 = vmatpush2.bf16.msra.mxu0 0
  %171 = vmatprep.subr.bf16.mxu0 0
  %172 = vmatpush2.bf16.msra.mxu0 0
  %173 = vmatprep.subr.bf16.mxu0 0
  %174 = vmatpush2.bf16.msra.mxu0 0
  %175 = vmatprep.subr.bf16.mxu0 0
  %176 = vmatpush2.bf16.msra.mxu0 0
  %177 = vmatprep.subr.bf16.mxu0 0
  %178 = vmatpush2.bf16.msra.mxu0 0
  %179 = vmatprep.subr.bf16.mxu0 0
  %180 = vmatpush2.bf16.msra.mxu0 0
  %181 = vmatprep.subr.bf16.mxu0 0
  %182 = vmatpush2.bf16.msra.mxu0 0
  %183 = vmatprep.subr.bf16.mxu0 0
  %184 = vmatpush2.bf16.msra.mxu0 0
  %185 = vmatprep.mubr.bf16.mxu0 0
  %186 = vmatmul.mubr.bf16.gmra.mxu0 %v130
  %v187 = vpop.f32.mrf.mxu0
  %v188 = vadd.f32 %v91, %v187
  %v189 = vpop.f32.mrf.mxu0
  %v190 = vadd.f32 %v95, %v189
  %v191 = vpop.f32.mrf.mxu0
  %v192 = vadd.f32 %v91, %v191
  %v193 = vpop.f32.mrf.mxu0
  %v194 = vadd.f32 %v95, %v193
  %195 = vmatprep.mubr.bf16.mxu0 0
  %196 = vmatmul.mubr.bf16.gmra.mxu0 %v133
  %v197 = vpop.f32.mrf.mxu0
  %v198 = vadd.f32 %v91, %v197
  %v199 = vpop.f32.mrf.mxu0
  %v200 = vadd.f32 %v95, %v199
  %v201 = vpop.f32.mrf.mxu0
  %v202 = vadd.f32 %v91, %v201
  %v203 = vpop.f32.mrf.mxu0
  %v204 = vadd.f32 %v95, %v203
  %205 = vmatprep.mubr.bf16.mxu0 0
  %206 = vmatmul.mubr.bf16.gmra.mxu0 %v136
  %v207 = vpop.f32.mrf.mxu0
  %v208 = vadd.f32 %v91, %v207
  %v209 = vpop.f32.mrf.mxu0
  %v210 = vadd.f32 %v95, %v209
  %v211 = vpop.f32.mrf.mxu0
  %v212 = vadd.f32 %v91, %v211
  %v213 = vpop.f32.mrf.mxu0
  %v214 = vadd.f32 %v95, %v213
  %215 = vmatprep.mubr.bf16.mxu0 0
  %216 = vmatmul.mubr.bf16.gmra.mxu0 %v139
  %v217 = vpop.f32.mrf.mxu0
  %v218 = vadd.f32 %v91, %v217
  %v219 = vpop.f32.mrf.mxu0
  %v220 = vadd.f32 %v95, %v219
  %v221 = vpop.f32.mrf.mxu0
  %v222 = vadd.f32 %v91, %v221
  %v223 = vpop.f32.mrf.mxu0
  %v224 = vadd.f32 %v95, %v223
  %225 = vmatprep.mubr.bf16.mxu0 0
  %226 = vmatmul.mubr.bf16.gmra.mxu0 %v142
  %v227 = vpop.f32.mrf.mxu0
  %v228 = vadd.f32 %v91, %v227
  %v229 = vpop.f32.mrf.mxu0
  %v230 = vadd.f32 %v95, %v229
  %v231 = vpop.f32.mrf.mxu0
  %v232 = vadd.f32 %v91, %v231
  %v233 = vpop.f32.mrf.mxu0
  %v234 = vadd.f32 %v95, %v233
  %235 = vmatprep.mubr.bf16.mxu0 0
  %236 = vmatmul.mubr.bf16.gmra.mxu0 %v145
  %v237 = vpop.f32.mrf.mxu0
  %v238 = vadd.f32 %v91, %v237
  %v239 = vpop.f32.mrf.mxu0
  %v240 = vadd.f32 %v95, %v239
  %v241 = vpop.f32.mrf.mxu0
  %v242 = vadd.f32 %v91, %v241
  %v243 = vpop.f32.mrf.mxu0
  %v244 = vadd.f32 %v95, %v243
  %245 = vmatprep.mubr.bf16.mxu0 0
  %246 = vmatmul.mubr.bf16.gmra.mxu0 %v148
  %v247 = vpop.f32.mrf.mxu0
  %v248 = vadd.f32 %v91, %v247
  %v249 = vpop.f32.mrf.mxu0
  %v250 = vadd.f32 %v95, %v249
  %v251 = vpop.f32.mrf.mxu0
  %v252 = vadd.f32 %v91, %v251
  %v253 = vpop.f32.mrf.mxu0
  %v254 = vadd.f32 %v95, %v253
  %255 = vmatprep.mubr.bf16.mxu0 0
  %256 = vmatmul.mubr.bf16.gmra.mxu0 %v151
  %v257 = vpop.f32.mrf.mxu0
  %v258 = vadd.f32 %v91, %v257
  %v259 = vpop.f32.mrf.mxu0
  %v260 = vadd.f32 %v95, %v259
  %v261 = vpop.f32.mrf.mxu0
  %v262 = vadd.f32 %v91, %v261
  %v263 = vpop.f32.mrf.mxu0
  %v264 = vadd.f32 %v95, %v263
  %265 = vdwg.mxu0
  %266 = vmatprep.subr.bf16.mxu0 0
  %267 = vmatpush1.bf16.msra.mxu0 0
  %268 = vmatprep.subr.bf16.mxu0 0
  %269 = vmatpush1.bf16.msra.mxu0 0
  %270 = vmatprep.subr.bf16.mxu0 0
  %271 = vmatpush1.bf16.msra.mxu0 0
  %272 = vmatprep.subr.bf16.mxu0 0
  %273 = vmatpush1.bf16.msra.mxu0 0
  %274 = vmatprep.subr.bf16.mxu0 0
  %275 = vmatpush1.bf16.msra.mxu0 0
  %276 = vmatprep.subr.bf16.mxu0 0
  %277 = vmatpush1.bf16.msra.mxu0 0
  %278 = vmatprep.subr.bf16.mxu0 0
  %279 = vmatpush1.bf16.msra.mxu0 0
  %280 = vmatprep.subr.bf16.mxu0 %v123
  %281 = vmatpush1.bf16.msra.mxu0 %v122
  %282 = vmatprep.subr.bf16.mxu0 0
  %283 = vmatpush2.bf16.msra.mxu0 0
  %284 = vmatprep.subr.bf16.mxu0 0
  %285 = vmatpush2.bf16.msra.mxu0 0
  %286 = vmatprep.subr.bf16.mxu0 0
  %287 = vmatpush2.bf16.msra.mxu0 0
  %288 = vmatprep.subr.bf16.mxu0 0
  %289 = vmatpush2.bf16.msra.mxu0 0
  %290 = vmatprep.subr.bf16.mxu0 0
  %291 = vmatpush2.bf16.msra.mxu0 0
  %292 = vmatprep.subr.bf16.mxu0 0
  %293 = vmatpush2.bf16.msra.mxu0 0
  %294 = vmatprep.subr.bf16.mxu0 0
  %295 = vmatpush2.bf16.msra.mxu0 0
  %296 = vmatprep.subr.bf16.mxu0 0
  %297 = vmatpush2.bf16.msra.mxu0 0
  %298 = vmatprep.mubr.bf16.mxu0 0
  %299 = vmatmul.mubr.bf16.gmra.mxu0 %v130
  %v300 = vpop.f32.mrf.mxu0
  %v301 = vadd.f32 %v99, %v300
  %v302 = vpop.f32.mrf.mxu0
  %v303 = vadd.f32 %v103, %v302
  %v304 = vpop.f32.mrf.mxu0
  %v305 = vadd.f32 %v99, %v304
  %v306 = vpop.f32.mrf.mxu0
  %v307 = vadd.f32 %v103, %v306
  %308 = vmatprep.mubr.bf16.mxu0 0
  %309 = vmatmul.mubr.bf16.gmra.mxu0 %v133
  %v310 = vpop.f32.mrf.mxu0
  %v311 = vadd.f32 %v99, %v310
  %v312 = vpop.f32.mrf.mxu0
  %v313 = vadd.f32 %v103, %v312
  %v314 = vpop.f32.mrf.mxu0
  %v315 = vadd.f32 %v99, %v314
  %v316 = vpop.f32.mrf.mxu0
  %v317 = vadd.f32 %v103, %v316
  %318 = vmatprep.mubr.bf16.mxu0 0
  %319 = vmatmul.mubr.bf16.gmra.mxu0 %v136
  %v320 = vpop.f32.mrf.mxu0
  %v321 = vadd.f32 %v99, %v320
  %v322 = vpop.f32.mrf.mxu0
  %v323 = vadd.f32 %v103, %v322
  %v324 = vpop.f32.mrf.mxu0
  %v325 = vadd.f32 %v99, %v324
  %v326 = vpop.f32.mrf.mxu0
  %v327 = vadd.f32 %v103, %v326
  %328 = vmatprep.mubr.bf16.mxu0 0
  %329 = vmatmul.mubr.bf16.gmra.mxu0 %v139
  %v330 = vpop.f32.mrf.mxu0
  %v331 = vadd.f32 %v99, %v330
  %v332 = vpop.f32.mrf.mxu0
  %v333 = vadd.f32 %v103, %v332
  %v334 = vpop.f32.mrf.mxu0
  %v335 = vadd.f32 %v99, %v334
  %v336 = vpop.f32.mrf.mxu0
  %v337 = vadd.f32 %v103, %v336
  %338 = vmatprep.mubr.bf16.mxu0 0
  %339 = vmatmul.mubr.bf16.gmra.mxu0 %v142
  %v340 = vpop.f32.mrf.mxu0
  %v341 = vadd.f32 %v99, %v340
  %v342 = vpop.f32.mrf.mxu0
  %v343 = vadd.f32 %v103, %v342
  %v344 = vpop.f32.mrf.mxu0
  %v345 = vadd.f32 %v99, %v344
  %v346 = vpop.f32.mrf.mxu0
  %v347 = vadd.f32 %v103, %v346
  %348 = vmatprep.mubr.bf16.mxu0 0
  %349 = vmatmul.mubr.bf16.gmra.mxu0 %v145
  %v350 = vpop.f32.mrf.mxu0
  %v351 = vadd.f32 %v99, %v350
  %v352 = vpop.f32.mrf.mxu0
  %v353 = vadd.f32 %v103, %v352
  %v354 = vpop.f32.mrf.mxu0
  %v355 = vadd.f32 %v99, %v354
  %v356 = vpop.f32.mrf.mxu0
  %v357 = vadd.f32 %v103, %v356
  %358 = vmatprep.mubr.bf16.mxu0 0
  %359 = vmatmul.mubr.bf16.gmra.mxu0 %v148
  %v360 = vpop.f32.mrf.mxu0
  %v361 = vadd.f32 %v99, %v360
  %v362 = vpop.f32.mrf.mxu0
  %v363 = vadd.f32 %v103, %v362
  %v364 = vpop.f32.mrf.mxu0
  %v365 = vadd.f32 %v99, %v364
  %v366 = vpop.f32.mrf.mxu0
  %v367 = vadd.f32 %v103, %v366
  %368 = vmatprep.mubr.bf16.mxu0 0
  %369 = vmatmul.mubr.bf16.gmra.mxu0 %v151
  %v370 = vpop.f32.mrf.mxu0
  %v371 = vadd.f32 %v99, %v370
  %v372 = vpop.f32.mrf.mxu0
  %v373 = vadd.f32 %v103, %v372
  %v374 = vpop.f32.mrf.mxu0
  %v375 = vadd.f32 %v99, %v374
  %v376 = vpop.f32.mrf.mxu0
  %v377 = vadd.f32 %v103, %v376
  %378 = vdwg.mxu0
  %v379 = vlaneseq
  %v380 = vshrl.u32 %v379, 7
  %v381 = vadd.s32 %v380, 8
  %v382 = vadd.s32 %v380, 16
  %v383 = vadd.s32 %v380, 24
  %v384 = vadd.s32 %v380, 32
  %v385 = vadd.s32 %v380, 40
  %v386 = vadd.s32 %v380, 48
  %v387 = vadd.s32 %v380, 56
  %v388 = vadd.s32 %v380, 64
  %v389 = vadd.s32 %v380, 72
  %v390 = vadd.s32 %v380, 80
  %v391 = vadd.s32 %v380, 88
  %v392 = vadd.s32 %v380, 96
  %v393 = vadd.s32 %v380, 104
  %v394 = vadd.s32 %v380, 112
  %v395 = vadd.s32 %v380, 120
  %v396 = vlaneseq
  %v397 = vand.u32 %v396, 127
  %v398 = vadd.s32 %v397, 128
  %v399 = vadd.s32 %v397, 256
  %v400 = vadd.s32 %v397, 384
  %v401 = vmul.u32 %v380, 512
  %v402 = vmul.u32 %v381, 512
  %v403 = vmul.u32 %v382, 512
  %v404 = vmul.u32 %v383, 512
  %v405 = vmul.u32 %v384, 512
  %v406 = vmul.u32 %v385, 512
  %v407 = vmul.u32 %v386, 512
  %v408 = vmul.u32 %v387, 512
  %v409 = vmul.u32 %v388, 512
  %v410 = vmul.u32 %v389, 512
  %v411 = vmul.u32 %v390, 512
  %v412 = vmul.u32 %v391, 512
  %v413 = vmul.u32 %v392, 512
  %v414 = vmul.u32 %v393, 512
  %v415 = vmul.u32 %v394, 512
  %v416 = vmul.u32 %v395, 512
  %v417 = vadd.s32 %v401, %v397
  %v418 = vadd.s32 %v401, %v398
  %v419 = vadd.s32 %v401, %v399
  %v420 = vadd.s32 %v401, %v400
  %v421 = vadd.s32 %v402, %v397
  %v422 = vadd.s32 %v402, %v398
  %v423 = vadd.s32 %v402, %v399
  %v424 = vadd.s32 %v402, %v400
  %v425 = vadd.s32 %v403, %v397
  %v426 = vadd.s32 %v403, %v398
  %v427 = vadd.s32 %v403, %v399
  %v428 = vadd.s32 %v403, %v400
  %v429 = vadd.s32 %v404, %v397
  %v430 = vadd.s32 %v404, %v398
  %v431 = vadd.s32 %v404, %v399
  %v432 = vadd.s32 %v404, %v400
  %v433 = vadd.s32 %v405, %v397
  %v434 = vadd.s32 %v405, %v398
  %v435 = vadd.s32 %v405, %v399
  %v436 = vadd.s32 %v405, %v400
  %v437 = vadd.s32 %v406, %v397
  %v438 = vadd.s32 %v406, %v398
  %v439 = vadd.s32 %v406, %v399
  %v440 = vadd.s32 %v406, %v400
  %v441 = vadd.s32 %v407, %v397
  %v442 = vadd.s32 %v407, %v398
  %v443 = vadd.s32 %v407, %v399
  %v444 = vadd.s32 %v407, %v400
  %v445 = vadd.s32 %v408, %v397
  %v446 = vadd.s32 %v408, %v398
  %v447 = vadd.s32 %v408, %v399
  %v448 = vadd.s32 %v408, %v400
  %v449 = vadd.s32 %v409, %v397
  %v450 = vadd.s32 %v409, %v398
  %v451 = vadd.s32 %v409, %v399
  %v452 = vadd.s32 %v409, %v400
  %v453 = vadd.s32 %v410, %v397
  %v454 = vadd.s32 %v410, %v398
  %v455 = vadd.s32 %v410, %v399
  %v456 = vadd.s32 %v410, %v400
  %v457 = vadd.s32 %v411, %v397
  %v458 = vadd.s32 %v411, %v398
  %v459 = vadd.s32 %v411, %v399
  %v460 = vadd.s32 %v411, %v400
  %v461 = vadd.s32 %v412, %v397
  %v462 = vadd.s32 %v412, %v398
  %v463 = vadd.s32 %v412, %v399
  %v464 = vadd.s32 %v412, %v400
  %v465 = vadd.s32 %v413, %v397
  %v466 = vadd.s32 %v413, %v398
  %v467 = vadd.s32 %v413, %v399
  %v468 = vadd.s32 %v413, %v400
  %v469 = vadd.s32 %v414, %v397
  %v470 = vadd.s32 %v414, %v398
  %v471 = vadd.s32 %v414, %v399
  %v472 = vadd.s32 %v414, %v400
  %v473 = vadd.s32 %v415, %v397
  %v474 = vadd.s32 %v415, %v398
  %v475 = vadd.s32 %v415, %v399
  %v476 = vadd.s32 %v415, %v400
  %v477 = vadd.s32 %v416, %v397
  %v478 = vadd.s32 %v416, %v398
  %v479 = vadd.s32 %v416, %v399
  %v480 = vadd.s32 %v416, %v400
  %v481 = vmul.u32 %v417, 2654435761
  %v482 = vmul.u32 %v418, 2654435761
  %v483 = vmul.u32 %v419, 2654435761
  %v484 = vmul.u32 %v420, 2654435761
  %v485 = vmul.u32 %v421, 2654435761
  %v486 = vmul.u32 %v422, 2654435761
  %v487 = vmul.u32 %v423, 2654435761
  %v488 = vmul.u32 %v424, 2654435761
  %v489 = vmul.u32 %v425, 2654435761
  %v490 = vmul.u32 %v426, 2654435761
  %v491 = vmul.u32 %v427, 2654435761
  %v492 = vmul.u32 %v428, 2654435761
  %v493 = vmul.u32 %v429, 2654435761
  %v494 = vmul.u32 %v430, 2654435761
  %v495 = vmul.u32 %v431, 2654435761
  %v496 = vmul.u32 %v432, 2654435761
  %v497 = vmul.u32 %v433, 2654435761
  %v498 = vmul.u32 %v434, 2654435761
  %v499 = vmul.u32 %v435, 2654435761
  %v500 = vmul.u32 %v436, 2654435761
  %v501 = vmul.u32 %v437, 2654435761
  %v502 = vmul.u32 %v438, 2654435761
  %v503 = vmul.u32 %v439, 2654435761
  %v504 = vmul.u32 %v440, 2654435761
  %v505 = vmul.u32 %v441, 2654435761
  %v506 = vmul.u32 %v442, 2654435761
  %v507 = vmul.u32 %v443, 2654435761
  %v508 = vmul.u32 %v444, 2654435761
  %v509 = vmul.u32 %v445, 2654435761
  %v510 = vmul.u32 %v446, 2654435761
  %v511 = vmul.u32 %v447, 2654435761
  %v512 = vmul.u32 %v448, 2654435761
  %v513 = vmul.u32 %v449, 2654435761
  %v514 = vmul.u32 %v450, 2654435761
  %v515 = vmul.u32 %v451, 2654435761
  %v516 = vmul.u32 %v452, 2654435761
  %v517 = vmul.u32 %v453, 2654435761
  %v518 = vmul.u32 %v454, 2654435761
  %v519 = vmul.u32 %v455, 2654435761
  %v520 = vmul.u32 %v456, 2654435761
  %v521 = vmul.u32 %v457, 2654435761
  %v522 = vmul.u32 %v458, 2654435761
  %v523 = vmul.u32 %v459, 2654435761
  %v524 = vmul.u32 %v460, 2654435761
  %v525 = vmul.u32 %v461, 2654435761
  %v526 = vmul.u32 %v462, 2654435761
  %v527 = vmul.u32 %v463, 2654435761
  %v528 = vmul.u32 %v464, 2654435761
  %v529 = vmul.u32 %v465, 2654435761
  %v530 = vmul.u32 %v466, 2654435761
  %v531 = vmul.u32 %v467, 2654435761
  %v532 = vmul.u32 %v468, 2654435761
  %v533 = vmul.u32 %v469, 2654435761
  %v534 = vmul.u32 %v470, 2654435761
  %v535 = vmul.u32 %v471, 2654435761
  %v536 = vmul.u32 %v472, 2654435761
  %v537 = vmul.u32 %v473, 2654435761
  %v538 = vmul.u32 %v474, 2654435761
  %v539 = vmul.u32 %v475, 2654435761
  %v540 = vmul.u32 %v476, 2654435761
  %v541 = vmul.u32 %v477, 2654435761
  %v542 = vmul.u32 %v478, 2654435761
  %v543 = vmul.u32 %v479, 2654435761
  %v544 = vmul.u32 %v480, 2654435761
  %v545 = vstv %s57
  %v546 = vadd.s32 %v481, %v545
  %v547 = vadd.s32 %v482, %v545
  %v548 = vadd.s32 %v483, %v545
  %v549 = vadd.s32 %v484, %v545
  %v550 = vadd.s32 %v485, %v545
  %v551 = vadd.s32 %v486, %v545
  %v552 = vadd.s32 %v487, %v545
  %v553 = vadd.s32 %v488, %v545
  %v554 = vadd.s32 %v489, %v545
  %v555 = vadd.s32 %v490, %v545
  %v556 = vadd.s32 %v491, %v545
  %v557 = vadd.s32 %v492, %v545
  %v558 = vadd.s32 %v493, %v545
  %v559 = vadd.s32 %v494, %v545
  %v560 = vadd.s32 %v495, %v545
  %v561 = vadd.s32 %v496, %v545
  %v562 = vadd.s32 %v497, %v545
  %v563 = vadd.s32 %v498, %v545
  %v564 = vadd.s32 %v499, %v545
  %v565 = vadd.s32 %v500, %v545
  %v566 = vadd.s32 %v501, %v545
  %v567 = vadd.s32 %v502, %v545
  %v568 = vadd.s32 %v503, %v545
  %v569 = vadd.s32 %v504, %v545
  %v570 = vadd.s32 %v505, %v545
  %v571 = vadd.s32 %v506, %v545
  %v572 = vadd.s32 %v507, %v545
  %v573 = vadd.s32 %v508, %v545
  %v574 = vadd.s32 %v509, %v545
  %v575 = vadd.s32 %v510, %v545
  %v576 = vadd.s32 %v511, %v545
  %v577 = vadd.s32 %v512, %v545
  %v578 = vadd.s32 %v513, %v545
  %v579 = vadd.s32 %v514, %v545
  %v580 = vadd.s32 %v515, %v545
  %v581 = vadd.s32 %v516, %v545
  %v582 = vadd.s32 %v517, %v545
  %v583 = vadd.s32 %v518, %v545
  %v584 = vadd.s32 %v519, %v545
  %v585 = vadd.s32 %v520, %v545
  %v586 = vadd.s32 %v521, %v545
  %v587 = vadd.s32 %v522, %v545
  %v588 = vadd.s32 %v523, %v545
  %v589 = vadd.s32 %v524, %v545
  %v590 = vadd.s32 %v525, %v545
  %v591 = vadd.s32 %v526, %v545
  %v592 = vadd.s32 %v527, %v545
  %v593 = vadd.s32 %v528, %v545
  %v594 = vadd.s32 %v529, %v545
  %v595 = vadd.s32 %v530, %v545
  %v596 = vadd.s32 %v531, %v545
  %v597 = vadd.s32 %v532, %v545
  %v598 = vadd.s32 %v533, %v545
  %v599 = vadd.s32 %v534, %v545
  %v600 = vadd.s32 %v535, %v545
  %v601 = vadd.s32 %v536, %v545
  %v602 = vadd.s32 %v537, %v545
  %v603 = vadd.s32 %v538, %v545
  %v604 = vadd.s32 %v539, %v545
  %v605 = vadd.s32 %v540, %v545
  %v606 = vadd.s32 %v541, %v545
  %v607 = vadd.s32 %v542, %v545
  %v608 = vadd.s32 %v543, %v545
  %v609 = vadd.s32 %v544, %v545
  %v610 = vshrl.u32 %v546, 16
  %v611 = vshrl.u32 %v547, 16
  %v612 = vshrl.u32 %v548, 16
  %v613 = vshrl.u32 %v549, 16
  %v614 = vshrl.u32 %v550, 16
  %v615 = vshrl.u32 %v551, 16
  %v616 = vshrl.u32 %v552, 16
  %v617 = vshrl.u32 %v553, 16
  %v618 = vshrl.u32 %v554, 16
  %v619 = vshrl.u32 %v555, 16
  %v620 = vshrl.u32 %v556, 16
  %v621 = vshrl.u32 %v557, 16
  %v622 = vshrl.u32 %v558, 16
  %v623 = vshrl.u32 %v559, 16
  %v624 = vshrl.u32 %v560, 16
  %v625 = vshrl.u32 %v561, 16
  %v626 = vshrl.u32 %v562, 16
  %v627 = vshrl.u32 %v563, 16
  %v628 = vshrl.u32 %v564, 16
  %v629 = vshrl.u32 %v565, 16
  %v630 = vshrl.u32 %v566, 16
  %v631 = vshrl.u32 %v567, 16
  %v632 = vshrl.u32 %v568, 16
  %v633 = vshrl.u32 %v569, 16
  %v634 = vshrl.u32 %v570, 16
  %v635 = vshrl.u32 %v571, 16
  %v636 = vshrl.u32 %v572, 16
  %v637 = vshrl.u32 %v573, 16
  %v638 = vshrl.u32 %v574, 16
  %v639 = vshrl.u32 %v575, 16
  %v640 = vshrl.u32 %v576, 16
  %v641 = vshrl.u32 %v577, 16
  %v642 = vshrl.u32 %v578, 16
  %v643 = vshrl.u32 %v579, 16
  %v644 = vshrl.u32 %v580, 16
  %v645 = vshrl.u32 %v581, 16
  %v646 = vshrl.u32 %v582, 16
  %v647 = vshrl.u32 %v583, 16
  %v648 = vshrl.u32 %v584, 16
  %v649 = vshrl.u32 %v585, 16
  %v650 = vshrl.u32 %v586, 16
  %v651 = vshrl.u32 %v587, 16
  %v652 = vshrl.u32 %v588, 16
  %v653 = vshrl.u32 %v589, 16
  %v654 = vshrl.u32 %v590, 16
  %v655 = vshrl.u32 %v591, 16
  %v656 = vshrl.u32 %v592, 16
  %v657 = vshrl.u32 %v593, 16
  %v658 = vshrl.u32 %v594, 16
  %v659 = vshrl.u32 %v595, 16
  %v660 = vshrl.u32 %v596, 16
  %v661 = vshrl.u32 %v597, 16
  %v662 = vshrl.u32 %v598, 16
  %v663 = vshrl.u32 %v599, 16
  %v664 = vshrl.u32 %v600, 16
  %v665 = vshrl.u32 %v601, 16
  %v666 = vshrl.u32 %v602, 16
  %v667 = vshrl.u32 %v603, 16
  %v668 = vshrl.u32 %v604, 16
  %v669 = vshrl.u32 %v605, 16
  %v670 = vshrl.u32 %v606, 16
  %v671 = vshrl.u32 %v607, 16
  %v672 = vshrl.u32 %v608, 16
  %v673 = vshrl.u32 %v609, 16
  %v674 = vxor.u32 %v546, %v610
  %v675 = vxor.u32 %v547, %v611
  %v676 = vxor.u32 %v548, %v612
  %v677 = vxor.u32 %v549, %v613
  %v678 = vxor.u32 %v550, %v614
  %v679 = vxor.u32 %v551, %v615
  %v680 = vxor.u32 %v552, %v616
  %v681 = vxor.u32 %v553, %v617
  %v682 = vxor.u32 %v554, %v618
  %v683 = vxor.u32 %v555, %v619
  %v684 = vxor.u32 %v556, %v620
  %v685 = vxor.u32 %v557, %v621
  %v686 = vxor.u32 %v558, %v622
  %v687 = vxor.u32 %v559, %v623
  %v688 = vxor.u32 %v560, %v624
  %v689 = vxor.u32 %v561, %v625
  %v690 = vxor.u32 %v562, %v626
  %v691 = vxor.u32 %v563, %v627
  %v692 = vxor.u32 %v564, %v628
  %v693 = vxor.u32 %v565, %v629
  %v694 = vxor.u32 %v566, %v630
  %v695 = vxor.u32 %v567, %v631
  %v696 = vxor.u32 %v568, %v632
  %v697 = vxor.u32 %v569, %v633
  %v698 = vxor.u32 %v570, %v634
  %v699 = vxor.u32 %v571, %v635
  %v700 = vxor.u32 %v572, %v636
  %v701 = vxor.u32 %v573, %v637
  %v702 = vxor.u32 %v574, %v638
  %v703 = vxor.u32 %v575, %v639
  %v704 = vxor.u32 %v576, %v640
  %v705 = vxor.u32 %v577, %v641
  %v706 = vxor.u32 %v578, %v642
  %v707 = vxor.u32 %v579, %v643
  %v708 = vxor.u32 %v580, %v644
  %v709 = vxor.u32 %v581, %v645
  %v710 = vxor.u32 %v582, %v646
  %v711 = vxor.u32 %v583, %v647
  %v712 = vxor.u32 %v584, %v648
  %v713 = vxor.u32 %v585, %v649
  %v714 = vxor.u32 %v586, %v650
  %v715 = vxor.u32 %v587, %v651
  %v716 = vxor.u32 %v588, %v652
  %v717 = vxor.u32 %v589, %v653
  %v718 = vxor.u32 %v590, %v654
  %v719 = vxor.u32 %v591, %v655
  %v720 = vxor.u32 %v592, %v656
  %v721 = vxor.u32 %v593, %v657
  %v722 = vxor.u32 %v594, %v658
  %v723 = vxor.u32 %v595, %v659
  %v724 = vxor.u32 %v596, %v660
  %v725 = vxor.u32 %v597, %v661
  %v726 = vxor.u32 %v598, %v662
  %v727 = vxor.u32 %v599, %v663
  %v728 = vxor.u32 %v600, %v664
  %v729 = vxor.u32 %v601, %v665
  %v730 = vxor.u32 %v602, %v666
  %v731 = vxor.u32 %v603, %v667
  %v732 = vxor.u32 %v604, %v668
  %v733 = vxor.u32 %v605, %v669
  %v734 = vxor.u32 %v606, %v670
  %v735 = vxor.u32 %v607, %v671
  %v736 = vxor.u32 %v608, %v672
  %v737 = vxor.u32 %v609, %v673
  %v738 = vmul.u32 %v674, 2146121005
  %v739 = vmul.u32 %v675, 2146121005
  %v740 = vmul.u32 %v676, 2146121005
  %v741 = vmul.u32 %v677, 2146121005
  %v742 = vmul.u32 %v678, 2146121005
  %v743 = vmul.u32 %v679, 2146121005
  %v744 = vmul.u32 %v680, 2146121005
  %v745 = vmul.u32 %v681, 2146121005
  %v746 = vmul.u32 %v682, 2146121005
  %v747 = vmul.u32 %v683, 2146121005
  %v748 = vmul.u32 %v684, 2146121005
  %v749 = vmul.u32 %v685, 2146121005
  %v750 = vmul.u32 %v686, 2146121005
  %v751 = vmul.u32 %v687, 2146121005
  %v752 = vmul.u32 %v688, 2146121005
  %v753 = vmul.u32 %v689, 2146121005
  %v754 = vmul.u32 %v690, 2146121005
  %v755 = vmul.u32 %v691, 2146121005
  %v756 = vmul.u32 %v692, 2146121005
  %v757 = vmul.u32 %v693, 2146121005
  %v758 = vmul.u32 %v694, 2146121005
  %v759 = vmul.u32 %v695, 2146121005
  %v760 = vmul.u32 %v696, 2146121005
  %v761 = vmul.u32 %v697, 2146121005
  %v762 = vmul.u32 %v698, 2146121005
  %v763 = vmul.u32 %v699, 2146121005
  %v764 = vmul.u32 %v700, 2146121005
  %v765 = vmul.u32 %v701, 2146121005
  %v766 = vmul.u32 %v702, 2146121005
  %v767 = vmul.u32 %v703, 2146121005
  %v768 = vmul.u32 %v704, 2146121005
  %v769 = vmul.u32 %v705, 2146121005
  %v770 = vmul.u32 %v706, 2146121005
  %v771 = vmul.u32 %v707, 2146121005
  %v772 = vmul.u32 %v708, 2146121005
  %v773 = vmul.u32 %v709, 2146121005
  %v774 = vmul.u32 %v710, 2146121005
  %v775 = vmul.u32 %v711, 2146121005
  %v776 = vmul.u32 %v712, 2146121005
  %v777 = vmul.u32 %v713, 2146121005
  %v778 = vmul.u32 %v714, 2146121005
  %v779 = vmul.u32 %v715, 2146121005
  %v780 = vmul.u32 %v716, 2146121005
  %v781 = vmul.u32 %v717, 2146121005
  %v782 = vmul.u32 %v718, 2146121005
  %v783 = vmul.u32 %v719, 2146121005
  %v784 = vmul.u32 %v720, 2146121005
  %v785 = vmul.u32 %v721, 2146121005
  %v786 = vmul.u32 %v722, 2146121005
  %v787 = vmul.u32 %v723, 2146121005
  %v788 = vmul.u32 %v724, 2146121005
  %v789 = vmul.u32 %v725, 2146121005
  %v790 = vmul.u32 %v726, 2146121005
  %v791 = vmul.u32 %v727, 2146121005
  %v792 = vmul.u32 %v728, 2146121005
  %v793 = vmul.u32 %v729, 2146121005
  %v794 = vmul.u32 %v730, 2146121005
  %v795 = vmul.u32 %v731, 2146121005
  %v796 = vmul.u32 %v732, 2146121005
  %v797 = vmul.u32 %v733, 2146121005
  %v798 = vmul.u32 %v734, 2146121005
  %v799 = vmul.u32 %v735, 2146121005
  %v800 = vmul.u32 %v736, 2146121005
  %v801 = vmul.u32 %v737, 2146121005
  %v802 = vshrl.u32 %v738, 15
  %v803 = vshrl.u32 %v739, 15
  %v804 = vshrl.u32 %v740, 15
  %v805 = vshrl.u32 %v741, 15
  %v806 = vshrl.u32 %v742, 15
  %v807 = vshrl.u32 %v743, 15
  %v808 = vshrl.u32 %v744, 15
  %v809 = vshrl.u32 %v745, 15
  %v810 = vshrl.u32 %v746, 15
  %v811 = vshrl.u32 %v747, 15
  %v812 = vshrl.u32 %v748, 15
  %v813 = vshrl.u32 %v749, 15
  %v814 = vshrl.u32 %v750, 15
  %v815 = vshrl.u32 %v751, 15
  %v816 = vshrl.u32 %v752, 15
  %v817 = vshrl.u32 %v753, 15
  %v818 = vshrl.u32 %v754, 15
  %v819 = vshrl.u32 %v755, 15
  %v820 = vshrl.u32 %v756, 15
  %v821 = vshrl.u32 %v757, 15
  %v822 = vshrl.u32 %v758, 15
  %v823 = vshrl.u32 %v759, 15
  %v824 = vshrl.u32 %v760, 15
  %v825 = vshrl.u32 %v761, 15
  %v826 = vshrl.u32 %v762, 15
  %v827 = vshrl.u32 %v763, 15
  %v828 = vshrl.u32 %v764, 15
  %v829 = vshrl.u32 %v765, 15
  %v830 = vshrl.u32 %v766, 15
  %v831 = vshrl.u32 %v767, 15
  %v832 = vshrl.u32 %v768, 15
  %v833 = vshrl.u32 %v769, 15
  %v834 = vshrl.u32 %v770, 15
  %v835 = vshrl.u32 %v771, 15
  %v836 = vshrl.u32 %v772, 15
  %v837 = vshrl.u32 %v773, 15
  %v838 = vshrl.u32 %v774, 15
  %v839 = vshrl.u32 %v775, 15
  %v840 = vshrl.u32 %v776, 15
  %v841 = vshrl.u32 %v777, 15
  %v842 = vshrl.u32 %v778, 15
  %v843 = vshrl.u32 %v779, 15
  %v844 = vshrl.u32 %v780, 15
  %v845 = vshrl.u32 %v781, 15
  %v846 = vshrl.u32 %v782, 15
  %v847 = vshrl.u32 %v783, 15
  %v848 = vshrl.u32 %v784, 15
  %v849 = vshrl.u32 %v785, 15
  %v850 = vshrl.u32 %v786, 15
  %v851 = vshrl.u32 %v787, 15
  %v852 = vshrl.u32 %v788, 15
  %v853 = vshrl.u32 %v789, 15
  %v854 = vshrl.u32 %v790, 15
  %v855 = vshrl.u32 %v791, 15
  %v856 = vshrl.u32 %v792, 15
  %v857 = vshrl.u32 %v793, 15
  %v858 = vshrl.u32 %v794, 15
  %v859 = vshrl.u32 %v795, 15
  %v860 = vshrl.u32 %v796, 15
  %v861 = vshrl.u32 %v797, 15
  %v862 = vshrl.u32 %v798, 15
  %v863 = vshrl.u32 %v799, 15
  %v864 = vshrl.u32 %v800, 15
  %v865 = vshrl.u32 %v801, 15
  %v866 = vxor.u32 %v738, %v802
  %v867 = vxor.u32 %v739, %v803
  %v868 = vxor.u32 %v740, %v804
  %v869 = vxor.u32 %v741, %v805
  %v870 = vxor.u32 %v742, %v806
  %v871 = vxor.u32 %v743, %v807
  %v872 = vxor.u32 %v744, %v808
  %v873 = vxor.u32 %v745, %v809
  %v874 = vxor.u32 %v746, %v810
  %v875 = vxor.u32 %v747, %v811
  %v876 = vxor.u32 %v748, %v812
  %v877 = vxor.u32 %v749, %v813
  %v878 = vxor.u32 %v750, %v814
  %v879 = vxor.u32 %v751, %v815
  %v880 = vxor.u32 %v752, %v816
  %v881 = vxor.u32 %v753, %v817
  %v882 = vxor.u32 %v754, %v818
  %v883 = vxor.u32 %v755, %v819
  %v884 = vxor.u32 %v756, %v820
  %v885 = vxor.u32 %v757, %v821
  %v886 = vxor.u32 %v758, %v822
  %v887 = vxor.u32 %v759, %v823
  %v888 = vxor.u32 %v760, %v824
  %v889 = vxor.u32 %v761, %v825
  %v890 = vxor.u32 %v762, %v826
  %v891 = vxor.u32 %v763, %v827
  %v892 = vxor.u32 %v764, %v828
  %v893 = vxor.u32 %v765, %v829
  %v894 = vxor.u32 %v766, %v830
  %v895 = vxor.u32 %v767, %v831
  %v896 = vxor.u32 %v768, %v832
  %v897 = vxor.u32 %v769, %v833
  %v898 = vxor.u32 %v770, %v834
  %v899 = vxor.u32 %v771, %v835
  %v900 = vxor.u32 %v772, %v836
  %v901 = vxor.u32 %v773, %v837
  %v902 = vxor.u32 %v774, %v838
  %v903 = vxor.u32 %v775, %v839
  %v904 = vxor.u32 %v776, %v840
  %v905 = vxor.u32 %v777, %v841
  %v906 = vxor.u32 %v778, %v842
  %v907 = vxor.u32 %v779, %v843
  %v908 = vxor.u32 %v780, %v844
  %v909 = vxor.u32 %v781, %v845
  %v910 = vxor.u32 %v782, %v846
  %v911 = vxor.u32 %v783, %v847
  %v912 = vxor.u32 %v784, %v848
  %v913 = vxor.u32 %v785, %v849
  %v914 = vxor.u32 %v786, %v850
  %v915 = vxor.u32 %v787, %v851
  %v916 = vxor.u32 %v788, %v852
  %v917 = vxor.u32 %v789, %v853
  %v918 = vxor.u32 %v790, %v854
  %v919 = vxor.u32 %v791, %v855
  %v920 = vxor.u32 %v792, %v856
  %v921 = vxor.u32 %v793, %v857
  %v922 = vxor.u32 %v794, %v858
  %v923 = vxor.u32 %v795, %v859
  %v924 = vxor.u32 %v796, %v860
  %v925 = vxor.u32 %v797, %v861
  %v926 = vxor.u32 %v798, %v862
  %v927 = vxor.u32 %v799, %v863
  %v928 = vxor.u32 %v800, %v864
  %v929 = vxor.u32 %v801, %v865
  %v930 = vmul.u32 %v866, 2221713035
  %v931 = vmul.u32 %v867, 2221713035
  %v932 = vmul.u32 %v868, 2221713035
  %v933 = vmul.u32 %v869, 2221713035
  %v934 = vmul.u32 %v870, 2221713035
  %v935 = vmul.u32 %v871, 2221713035
  %v936 = vmul.u32 %v872, 2221713035
  %v937 = vmul.u32 %v873, 2221713035
  %v938 = vmul.u32 %v874, 2221713035
  %v939 = vmul.u32 %v875, 2221713035
  %v940 = vmul.u32 %v876, 2221713035
  %v941 = vmul.u32 %v877, 2221713035
  %v942 = vmul.u32 %v878, 2221713035
  %v943 = vmul.u32 %v879, 2221713035
  %v944 = vmul.u32 %v880, 2221713035
  %v945 = vmul.u32 %v881, 2221713035
  %v946 = vmul.u32 %v882, 2221713035
  %v947 = vmul.u32 %v883, 2221713035
  %v948 = vmul.u32 %v884, 2221713035
  %v949 = vmul.u32 %v885, 2221713035
  %v950 = vmul.u32 %v886, 2221713035
  %v951 = vmul.u32 %v887, 2221713035
  %v952 = vmul.u32 %v888, 2221713035
  %v953 = vmul.u32 %v889, 2221713035
  %v954 = vmul.u32 %v890, 2221713035
  %v955 = vmul.u32 %v891, 2221713035
  %v956 = vmul.u32 %v892, 2221713035
  %v957 = vmul.u32 %v893, 2221713035
  %v958 = vmul.u32 %v894, 2221713035
  %v959 = vmul.u32 %v895, 2221713035
  %v960 = vmul.u32 %v896, 2221713035
  %v961 = vmul.u32 %v897, 2221713035
  %v962 = vmul.u32 %v898, 2221713035
  %v963 = vmul.u32 %v899, 2221713035
  %v964 = vmul.u32 %v900, 2221713035
  %v965 = vmul.u32 %v901, 2221713035
  %v966 = vmul.u32 %v902, 2221713035
  %v967 = vmul.u32 %v903, 2221713035
  %v968 = vmul.u32 %v904, 2221713035
  %v969 = vmul.u32 %v905, 2221713035
  %v970 = vmul.u32 %v906, 2221713035
  %v971 = vmul.u32 %v907, 2221713035
  %v972 = vmul.u32 %v908, 2221713035
  %v973 = vmul.u32 %v909, 2221713035
  %v974 = vmul.u32 %v910, 2221713035
  %v975 = vmul.u32 %v911, 2221713035
  %v976 = vmul.u32 %v912, 2221713035
  %v977 = vmul.u32 %v913, 2221713035
  %v978 = vmul.u32 %v914, 2221713035
  %v979 = vmul.u32 %v915, 2221713035
  %v980 = vmul.u32 %v916, 2221713035
  %v981 = vmul.u32 %v917, 2221713035
  %v982 = vmul.u32 %v918, 2221713035
  %v983 = vmul.u32 %v919, 2221713035
  %v984 = vmul.u32 %v920, 2221713035
  %v985 = vmul.u32 %v921, 2221713035
  %v986 = vmul.u32 %v922, 2221713035
  %v987 = vmul.u32 %v923, 2221713035
  %v988 = vmul.u32 %v924, 2221713035
  %v989 = vmul.u32 %v925, 2221713035
  %v990 = vmul.u32 %v926, 2221713035
  %v991 = vmul.u32 %v927, 2221713035
  %v992 = vmul.u32 %v928, 2221713035
  %v993 = vmul.u32 %v929, 2221713035
  %v994 = vshrl.u32 %v930, 16
  %v995 = vshrl.u32 %v931, 16
  %v996 = vshrl.u32 %v932, 16
  %v997 = vshrl.u32 %v933, 16
  %v998 = vshrl.u32 %v934, 16
  %v999 = vshrl.u32 %v935, 16
  %v1000 = vshrl.u32 %v936, 16
  %v1001 = vshrl.u32 %v937, 16
  %v1002 = vshrl.u32 %v938, 16
  %v1003 = vshrl.u32 %v939, 16
  %v1004 = vshrl.u32 %v940, 16
  %v1005 = vshrl.u32 %v941, 16
  %v1006 = vshrl.u32 %v942, 16
  %v1007 = vshrl.u32 %v943, 16
  %v1008 = vshrl.u32 %v944, 16
  %v1009 = vshrl.u32 %v945, 16
  %v1010 = vshrl.u32 %v946, 16
  %v1011 = vshrl.u32 %v947, 16
  %v1012 = vshrl.u32 %v948, 16
  %v1013 = vshrl.u32 %v949, 16
  %v1014 = vshrl.u32 %v950, 16
  %v1015 = vshrl.u32 %v951, 16
  %v1016 = vshrl.u32 %v952, 16
  %v1017 = vshrl.u32 %v953, 16
  %v1018 = vshrl.u32 %v954, 16
  %v1019 = vshrl.u32 %v955, 16
  %v1020 = vshrl.u32 %v956, 16
  %v1021 = vshrl.u32 %v957, 16
  %v1022 = vshrl.u32 %v958, 16
  %v1023 = vshrl.u32 %v959, 16
  %v1024 = vshrl.u32 %v960, 16
  %v1025 = vshrl.u32 %v961, 16
  %v1026 = vshrl.u32 %v962, 16
  %v1027 = vshrl.u32 %v963, 16
  %v1028 = vshrl.u32 %v964, 16
  %v1029 = vshrl.u32 %v965, 16
  %v1030 = vshrl.u32 %v966, 16
  %v1031 = vshrl.u32 %v967, 16
  %v1032 = vshrl.u32 %v968, 16
  %v1033 = vshrl.u32 %v969, 16
  %v1034 = vshrl.u32 %v970, 16
  %v1035 = vshrl.u32 %v971, 16
  %v1036 = vshrl.u32 %v972, 16
  %v1037 = vshrl.u32 %v973, 16
  %v1038 = vshrl.u32 %v974, 16
  %v1039 = vshrl.u32 %v975, 16
  %v1040 = vshrl.u32 %v976, 16
  %v1041 = vshrl.u32 %v977, 16
  %v1042 = vshrl.u32 %v978, 16
  %v1043 = vshrl.u32 %v979, 16
  %v1044 = vshrl.u32 %v980, 16
  %v1045 = vshrl.u32 %v981, 16
  %v1046 = vshrl.u32 %v982, 16
  %v1047 = vshrl.u32 %v983, 16
  %v1048 = vshrl.u32 %v984, 16
  %v1049 = vshrl.u32 %v985, 16
  %v1050 = vshrl.u32 %v986, 16
  %v1051 = vshrl.u32 %v987, 16
  %v1052 = vshrl.u32 %v988, 16
  %v1053 = vshrl.u32 %v989, 16
  %v1054 = vshrl.u32 %v990, 16
  %v1055 = vshrl.u32 %v991, 16
  %v1056 = vshrl.u32 %v992, 16
  %v1057 = vshrl.u32 %v993, 16
  %v1058 = vxor.u32 %v930, %v994
  %v1059 = vxor.u32 %v931, %v995
  %v1060 = vxor.u32 %v932, %v996
  %v1061 = vxor.u32 %v933, %v997
  %v1062 = vxor.u32 %v934, %v998
  %v1063 = vxor.u32 %v935, %v999
  %v1064 = vxor.u32 %v936, %v1000
  %v1065 = vxor.u32 %v937, %v1001
  %v1066 = vxor.u32 %v938, %v1002
  %v1067 = vxor.u32 %v939, %v1003
  %v1068 = vxor.u32 %v940, %v1004
  %v1069 = vxor.u32 %v941, %v1005
  %v1070 = vxor.u32 %v942, %v1006
  %v1071 = vxor.u32 %v943, %v1007
  %v1072 = vxor.u32 %v944, %v1008
  %v1073 = vxor.u32 %v945, %v1009
  %v1074 = vxor.u32 %v946, %v1010
  %v1075 = vxor.u32 %v947, %v1011
  %v1076 = vxor.u32 %v948, %v1012
  %v1077 = vxor.u32 %v949, %v1013
  %v1078 = vxor.u32 %v950, %v1014
  %v1079 = vxor.u32 %v951, %v1015
  %v1080 = vxor.u32 %v952, %v1016
  %v1081 = vxor.u32 %v953, %v1017
  %v1082 = vxor.u32 %v954, %v1018
  %v1083 = vxor.u32 %v955, %v1019
  %v1084 = vxor.u32 %v956, %v1020
  %v1085 = vxor.u32 %v957, %v1021
  %v1086 = vxor.u32 %v958, %v1022
  %v1087 = vxor.u32 %v959, %v1023
  %v1088 = vxor.u32 %v960, %v1024
  %v1089 = vxor.u32 %v961, %v1025
  %v1090 = vxor.u32 %v962, %v1026
  %v1091 = vxor.u32 %v963, %v1027
  %v1092 = vxor.u32 %v964, %v1028
  %v1093 = vxor.u32 %v965, %v1029
  %v1094 = vxor.u32 %v966, %v1030
  %v1095 = vxor.u32 %v967, %v1031
  %v1096 = vxor.u32 %v968, %v1032
  %v1097 = vxor.u32 %v969, %v1033
  %v1098 = vxor.u32 %v970, %v1034
  %v1099 = vxor.u32 %v971, %v1035
  %v1100 = vxor.u32 %v972, %v1036
  %v1101 = vxor.u32 %v973, %v1037
  %v1102 = vxor.u32 %v974, %v1038
  %v1103 = vxor.u32 %v975, %v1039
  %v1104 = vxor.u32 %v976, %v1040
  %v1105 = vxor.u32 %v977, %v1041
  %v1106 = vxor.u32 %v978, %v1042
  %v1107 = vxor.u32 %v979, %v1043
  %v1108 = vxor.u32 %v980, %v1044
  %v1109 = vxor.u32 %v981, %v1045
  %v1110 = vxor.u32 %v982, %v1046
  %v1111 = vxor.u32 %v983, %v1047
  %v1112 = vxor.u32 %v984, %v1048
  %v1113 = vxor.u32 %v985, %v1049
  %v1114 = vxor.u32 %v986, %v1050
  %v1115 = vxor.u32 %v987, %v1051
  %v1116 = vxor.u32 %v988, %v1052
  %v1117 = vxor.u32 %v989, %v1053
  %v1118 = vxor.u32 %v990, %v1054
  %v1119 = vxor.u32 %v991, %v1055
  %v1120 = vxor.u32 %v992, %v1056
  %v1121 = vxor.u32 %v993, %v1057
  %v1122 = vand.u32 %v1058, 65535
  %v1123 = vand.u32 %v1059, 65535
  %v1124 = vand.u32 %v1060, 65535
  %v1125 = vand.u32 %v1061, 65535
  %v1126 = vand.u32 %v1062, 65535
  %v1127 = vand.u32 %v1063, 65535
  %v1128 = vand.u32 %v1064, 65535
  %v1129 = vand.u32 %v1065, 65535
  %v1130 = vand.u32 %v1066, 65535
  %v1131 = vand.u32 %v1067, 65535
  %v1132 = vand.u32 %v1068, 65535
  %v1133 = vand.u32 %v1069, 65535
  %v1134 = vand.u32 %v1070, 65535
  %v1135 = vand.u32 %v1071, 65535
  %v1136 = vand.u32 %v1072, 65535
  %v1137 = vand.u32 %v1073, 65535
  %v1138 = vand.u32 %v1074, 65535
  %v1139 = vand.u32 %v1075, 65535
  %v1140 = vand.u32 %v1076, 65535
  %v1141 = vand.u32 %v1077, 65535
  %v1142 = vand.u32 %v1078, 65535
  %v1143 = vand.u32 %v1079, 65535
  %v1144 = vand.u32 %v1080, 65535
  %v1145 = vand.u32 %v1081, 65535
  %v1146 = vand.u32 %v1082, 65535
  %v1147 = vand.u32 %v1083, 65535
  %v1148 = vand.u32 %v1084, 65535
  %v1149 = vand.u32 %v1085, 65535
  %v1150 = vand.u32 %v1086, 65535
  %v1151 = vand.u32 %v1087, 65535
  %v1152 = vand.u32 %v1088, 65535
  %v1153 = vand.u32 %v1089, 65535
  %v1154 = vand.u32 %v1090, 65535
  %v1155 = vand.u32 %v1091, 65535
  %v1156 = vand.u32 %v1092, 65535
  %v1157 = vand.u32 %v1093, 65535
  %v1158 = vand.u32 %v1094, 65535
  %v1159 = vand.u32 %v1095, 65535
  %v1160 = vand.u32 %v1096, 65535
  %v1161 = vand.u32 %v1097, 65535
  %v1162 = vand.u32 %v1098, 65535
  %v1163 = vand.u32 %v1099, 65535
  %v1164 = vand.u32 %v1100, 65535
  %v1165 = vand.u32 %v1101, 65535
  %v1166 = vand.u32 %v1102, 65535
  %v1167 = vand.u32 %v1103, 65535
  %v1168 = vand.u32 %v1104, 65535
  %v1169 = vand.u32 %v1105, 65535
  %v1170 = vand.u32 %v1106, 65535
  %v1171 = vand.u32 %v1107, 65535
  %v1172 = vand.u32 %v1108, 65535
  %v1173 = vand.u32 %v1109, 65535
  %v1174 = vand.u32 %v1110, 65535
  %v1175 = vand.u32 %v1111, 65535
  %v1176 = vand.u32 %v1112, 65535
  %v1177 = vand.u32 %v1113, 65535
  %v1178 = vand.u32 %v1114, 65535
  %v1179 = vand.u32 %v1115, 65535
  %v1180 = vand.u32 %v1116, 65535
  %v1181 = vand.u32 %v1117, 65535
  %v1182 = vand.u32 %v1118, 65535
  %v1183 = vand.u32 %v1119, 65535
  %v1184 = vand.u32 %v1120, 65535
  %v1185 = vand.u32 %v1121, 65535
  %vm1186 = vcmp.ge.s32.totalorder %v1122, 6554
  %vm1187 = vcmp.ge.s32.totalorder %v1123, 6554
  %vm1188 = vcmp.ge.s32.totalorder %v1124, 6554
  %vm1189 = vcmp.ge.s32.totalorder %v1125, 6554
  %vm1190 = vcmp.ge.s32.totalorder %v1126, 6554
  %vm1191 = vcmp.ge.s32.totalorder %v1127, 6554
  %vm1192 = vcmp.ge.s32.totalorder %v1128, 6554
  %vm1193 = vcmp.ge.s32.totalorder %v1129, 6554
  %vm1194 = vcmp.ge.s32.totalorder %v1130, 6554
  %vm1195 = vcmp.ge.s32.totalorder %v1131, 6554
  %vm1196 = vcmp.ge.s32.totalorder %v1132, 6554
  %vm1197 = vcmp.ge.s32.totalorder %v1133, 6554
  %vm1198 = vcmp.ge.s32.totalorder %v1134, 6554
  %vm1199 = vcmp.ge.s32.totalorder %v1135, 6554
  %vm1200 = vcmp.ge.s32.totalorder %v1136, 6554
  %vm1201 = vcmp.ge.s32.totalorder %v1137, 6554
  %vm1202 = vcmp.ge.s32.totalorder %v1138, 6554
  %vm1203 = vcmp.ge.s32.totalorder %v1139, 6554
  %vm1204 = vcmp.ge.s32.totalorder %v1140, 6554
  %vm1205 = vcmp.ge.s32.totalorder %v1141, 6554
  %vm1206 = vcmp.ge.s32.totalorder %v1142, 6554
  %vm1207 = vcmp.ge.s32.totalorder %v1143, 6554
  %vm1208 = vcmp.ge.s32.totalorder %v1144, 6554
  %vm1209 = vcmp.ge.s32.totalorder %v1145, 6554
  %vm1210 = vcmp.ge.s32.totalorder %v1146, 6554
  %vm1211 = vcmp.ge.s32.totalorder %v1147, 6554
  %vm1212 = vcmp.ge.s32.totalorder %v1148, 6554
  %vm1213 = vcmp.ge.s32.totalorder %v1149, 6554
  %vm1214 = vcmp.ge.s32.totalorder %v1150, 6554
  %vm1215 = vcmp.ge.s32.totalorder %v1151, 6554
  %vm1216 = vcmp.ge.s32.totalorder %v1152, 6554
  %vm1217 = vcmp.ge.s32.totalorder %v1153, 6554
  %vm1218 = vcmp.ge.s32.totalorder %v1154, 6554
  %vm1219 = vcmp.ge.s32.totalorder %v1155, 6554
  %vm1220 = vcmp.ge.s32.totalorder %v1156, 6554
  %vm1221 = vcmp.ge.s32.totalorder %v1157, 6554
  %vm1222 = vcmp.ge.s32.totalorder %v1158, 6554
  %vm1223 = vcmp.ge.s32.totalorder %v1159, 6554
  %vm1224 = vcmp.ge.s32.totalorder %v1160, 6554
  %vm1225 = vcmp.ge.s32.totalorder %v1161, 6554
  %vm1226 = vcmp.ge.s32.totalorder %v1162, 6554
  %vm1227 = vcmp.ge.s32.totalorder %v1163, 6554
  %vm1228 = vcmp.ge.s32.totalorder %v1164, 6554
  %vm1229 = vcmp.ge.s32.totalorder %v1165, 6554
  %vm1230 = vcmp.ge.s32.totalorder %v1166, 6554
  %vm1231 = vcmp.ge.s32.totalorder %v1167, 6554
  %vm1232 = vcmp.ge.s32.totalorder %v1168, 6554
  %vm1233 = vcmp.ge.s32.totalorder %v1169, 6554
  %vm1234 = vcmp.ge.s32.totalorder %v1170, 6554
  %vm1235 = vcmp.ge.s32.totalorder %v1171, 6554
  %vm1236 = vcmp.ge.s32.totalorder %v1172, 6554
  %vm1237 = vcmp.ge.s32.totalorder %v1173, 6554
  %vm1238 = vcmp.ge.s32.totalorder %v1174, 6554
  %vm1239 = vcmp.ge.s32.totalorder %v1175, 6554
  %vm1240 = vcmp.ge.s32.totalorder %v1176, 6554
  %vm1241 = vcmp.ge.s32.totalorder %v1177, 6554
  %vm1242 = vcmp.ge.s32.totalorder %v1178, 6554
  %vm1243 = vcmp.ge.s32.totalorder %v1179, 6554
  %vm1244 = vcmp.ge.s32.totalorder %v1180, 6554
  %vm1245 = vcmp.ge.s32.totalorder %v1181, 6554
  %vm1246 = vcmp.ge.s32.totalorder %v1182, 6554
  %vm1247 = vcmp.ge.s32.totalorder %v1183, 6554
  %vm1248 = vcmp.ge.s32.totalorder %v1184, 6554
  %vm1249 = vcmp.ge.s32.totalorder %v1185, 6554
  %vm1250 = vcmp.gt.f32.partialorder %v188, 0.0
  %vm1251 = vcmp.gt.f32.partialorder %v190, 0.0
  %vm1252 = vcmp.gt.f32.partialorder %v301, 0.0
  %vm1253 = vcmp.gt.f32.partialorder %v303, 0.0
  %vm1254 = vcmp.gt.f32.partialorder %v192, 0.0
  %vm1255 = vcmp.gt.f32.partialorder %v194, 0.0
  %vm1256 = vcmp.gt.f32.partialorder %v305, 0.0
  %vm1257 = vcmp.gt.f32.partialorder %v307, 0.0
  %vm1258 = vcmp.gt.f32.partialorder %v198, 0.0
  %vm1259 = vcmp.gt.f32.partialorder %v200, 0.0
  %vm1260 = vcmp.gt.f32.partialorder %v311, 0.0
  %vm1261 = vcmp.gt.f32.partialorder %v313, 0.0
  %vm1262 = vcmp.gt.f32.partialorder %v202, 0.0
  %vm1263 = vcmp.gt.f32.partialorder %v204, 0.0
  %vm1264 = vcmp.gt.f32.partialorder %v315, 0.0
  %vm1265 = vcmp.gt.f32.partialorder %v317, 0.0
  %vm1266 = vcmp.gt.f32.partialorder %v208, 0.0
  %vm1267 = vcmp.gt.f32.partialorder %v210, 0.0
  %vm1268 = vcmp.gt.f32.partialorder %v321, 0.0
  %vm1269 = vcmp.gt.f32.partialorder %v323, 0.0
  %vm1270 = vcmp.gt.f32.partialorder %v212, 0.0
  %vm1271 = vcmp.gt.f32.partialorder %v214, 0.0
  %vm1272 = vcmp.gt.f32.partialorder %v325, 0.0
  %vm1273 = vcmp.gt.f32.partialorder %v327, 0.0
  %vm1274 = vcmp.gt.f32.partialorder %v218, 0.0
  %vm1275 = vcmp.gt.f32.partialorder %v220, 0.0
  %vm1276 = vcmp.gt.f32.partialorder %v331, 0.0
  %vm1277 = vcmp.gt.f32.partialorder %v333, 0.0
  %vm1278 = vcmp.gt.f32.partialorder %v222, 0.0
  %vm1279 = vcmp.gt.f32.partialorder %v224, 0.0
  %vm1280 = vcmp.gt.f32.partialorder %v335, 0.0
  %vm1281 = vcmp.gt.f32.partialorder %v337, 0.0
  %vm1282 = vcmp.gt.f32.partialorder %v228, 0.0
  %vm1283 = vcmp.gt.f32.partialorder %v230, 0.0
  %vm1284 = vcmp.gt.f32.partialorder %v341, 0.0
  %vm1285 = vcmp.gt.f32.partialorder %v343, 0.0
  %vm1286 = vcmp.gt.f32.partialorder %v232, 0.0
  %vm1287 = vcmp.gt.f32.partialorder %v234, 0.0
  %vm1288 = vcmp.gt.f32.partialorder %v345, 0.0
  %vm1289 = vcmp.gt.f32.partialorder %v347, 0.0
  %vm1290 = vcmp.gt.f32.partialorder %v238, 0.0
  %vm1291 = vcmp.gt.f32.partialorder %v240, 0.0
  %vm1292 = vcmp.gt.f32.partialorder %v351, 0.0
  %vm1293 = vcmp.gt.f32.partialorder %v353, 0.0
  %vm1294 = vcmp.gt.f32.partialorder %v242, 0.0
  %vm1295 = vcmp.gt.f32.partialorder %v244, 0.0
  %vm1296 = vcmp.gt.f32.partialorder %v355, 0.0
  %vm1297 = vcmp.gt.f32.partialorder %v357, 0.0
  %vm1298 = vcmp.gt.f32.partialorder %v248, 0.0
  %vm1299 = vcmp.gt.f32.partialorder %v250, 0.0
  %vm1300 = vcmp.gt.f32.partialorder %v361, 0.0
  %vm1301 = vcmp.gt.f32.partialorder %v363, 0.0
  %vm1302 = vcmp.gt.f32.partialorder %v252, 0.0
  %vm1303 = vcmp.gt.f32.partialorder %v254, 0.0
  %vm1304 = vcmp.gt.f32.partialorder %v365, 0.0
  %vm1305 = vcmp.gt.f32.partialorder %v367, 0.0
  %vm1306 = vcmp.gt.f32.partialorder %v258, 0.0
  %vm1307 = vcmp.gt.f32.partialorder %v260, 0.0
  %vm1308 = vcmp.gt.f32.partialorder %v371, 0.0
  %vm1309 = vcmp.gt.f32.partialorder %v373, 0.0
  %vm1310 = vcmp.gt.f32.partialorder %v262, 0.0
  %vm1311 = vcmp.gt.f32.partialorder %v264, 0.0
  %vm1312 = vcmp.gt.f32.partialorder %v375, 0.0
  %vm1313 = vcmp.gt.f32.partialorder %v377, 0.0
  %vm1314 = vmand %vm1186, %vm1250
  %vm1315 = vmand %vm1187, %vm1251
  %vm1316 = vmand %vm1188, %vm1252
  %vm1317 = vmand %vm1189, %vm1253
  %vm1318 = vmand %vm1190, %vm1254
  %vm1319 = vmand %vm1191, %vm1255
  %vm1320 = vmand %vm1192, %vm1256
  %vm1321 = vmand %vm1193, %vm1257
  %vm1322 = vmand %vm1194, %vm1258
  %vm1323 = vmand %vm1195, %vm1259
  %vm1324 = vmand %vm1196, %vm1260
  %vm1325 = vmand %vm1197, %vm1261
  %vm1326 = vmand %vm1198, %vm1262
  %vm1327 = vmand %vm1199, %vm1263
  %vm1328 = vmand %vm1200, %vm1264
  %vm1329 = vmand %vm1201, %vm1265
  %vm1330 = vmand %vm1202, %vm1266
  %vm1331 = vmand %vm1203, %vm1267
  %vm1332 = vmand %vm1204, %vm1268
  %vm1333 = vmand %vm1205, %vm1269
  %vm1334 = vmand %vm1206, %vm1270
  %vm1335 = vmand %vm1207, %vm1271
  %vm1336 = vmand %vm1208, %vm1272
  %vm1337 = vmand %vm1209, %vm1273
  %vm1338 = vmand %vm1210, %vm1274
  %vm1339 = vmand %vm1211, %vm1275
  %vm1340 = vmand %vm1212, %vm1276
  %vm1341 = vmand %vm1213, %vm1277
  %vm1342 = vmand %vm1214, %vm1278
  %vm1343 = vmand %vm1215, %vm1279
  %vm1344 = vmand %vm1216, %vm1280
  %vm1345 = vmand %vm1217, %vm1281
  %vm1346 = vmand %vm1218, %vm1282
  %vm1347 = vmand %vm1219, %vm1283
  %vm1348 = vmand %vm1220, %vm1284
  %vm1349 = vmand %vm1221, %vm1285
  %vm1350 = vmand %vm1222, %vm1286
  %vm1351 = vmand %vm1223, %vm1287
  %vm1352 = vmand %vm1224, %vm1288
  %vm1353 = vmand %vm1225, %vm1289
  %vm1354 = vmand %vm1226, %vm1290
  %vm1355 = vmand %vm1227, %vm1291
  %vm1356 = vmand %vm1228, %vm1292
  %vm1357 = vmand %vm1229, %vm1293
  %vm1358 = vmand %vm1230, %vm1294
  %vm1359 = vmand %vm1231, %vm1295
  %vm1360 = vmand %vm1232, %vm1296
  %vm1361 = vmand %vm1233, %vm1297
  %vm1362 = vmand %vm1234, %vm1298
  %vm1363 = vmand %vm1235, %vm1299
  %vm1364 = vmand %vm1236, %vm1300
  %vm1365 = vmand %vm1237, %vm1301
  %vm1366 = vmand %vm1238, %vm1302
  %vm1367 = vmand %vm1239, %vm1303
  %vm1368 = vmand %vm1240, %vm1304
  %vm1369 = vmand %vm1241, %vm1305
  %vm1370 = vmand %vm1242, %vm1306
  %vm1371 = vmand %vm1243, %vm1307
  %vm1372 = vmand %vm1244, %vm1308
  %vm1373 = vmand %vm1245, %vm1309
  %vm1374 = vmand %vm1246, %vm1310
  %vm1375 = vmand %vm1247, %vm1311
  %vm1376 = vmand %vm1248, %vm1312
  %vm1377 = vmand %vm1249, %vm1313
  %v1378 = vmul.f32 %v188, 1.1111112
  %v1379 = vmul.f32 %v190, 1.1111112
  %v1380 = vmul.f32 %v301, 1.1111112
  %v1381 = vmul.f32 %v303, 1.1111112
  %v1382 = vmul.f32 %v192, 1.1111112
  %v1383 = vmul.f32 %v194, 1.1111112
  %v1384 = vmul.f32 %v305, 1.1111112
  %v1385 = vmul.f32 %v307, 1.1111112
  %v1386 = vmul.f32 %v198, 1.1111112
  %v1387 = vmul.f32 %v200, 1.1111112
  %v1388 = vmul.f32 %v311, 1.1111112
  %v1389 = vmul.f32 %v313, 1.1111112
  %v1390 = vmul.f32 %v202, 1.1111112
  %v1391 = vmul.f32 %v204, 1.1111112
  %v1392 = vmul.f32 %v315, 1.1111112
  %v1393 = vmul.f32 %v317, 1.1111112
  %v1394 = vmul.f32 %v208, 1.1111112
  %v1395 = vmul.f32 %v210, 1.1111112
  %v1396 = vmul.f32 %v321, 1.1111112
  %v1397 = vmul.f32 %v323, 1.1111112
  %v1398 = vmul.f32 %v212, 1.1111112
  %v1399 = vmul.f32 %v214, 1.1111112
  %v1400 = vmul.f32 %v325, 1.1111112
  %v1401 = vmul.f32 %v327, 1.1111112
  %v1402 = vmul.f32 %v218, 1.1111112
  %v1403 = vmul.f32 %v220, 1.1111112
  %v1404 = vmul.f32 %v331, 1.1111112
  %v1405 = vmul.f32 %v333, 1.1111112
  %v1406 = vmul.f32 %v222, 1.1111112
  %v1407 = vmul.f32 %v224, 1.1111112
  %v1408 = vmul.f32 %v335, 1.1111112
  %v1409 = vmul.f32 %v337, 1.1111112
  %v1410 = vmul.f32 %v228, 1.1111112
  %v1411 = vmul.f32 %v230, 1.1111112
  %v1412 = vmul.f32 %v341, 1.1111112
  %v1413 = vmul.f32 %v343, 1.1111112
  %v1414 = vmul.f32 %v232, 1.1111112
  %v1415 = vmul.f32 %v234, 1.1111112
  %v1416 = vmul.f32 %v345, 1.1111112
  %v1417 = vmul.f32 %v347, 1.1111112
  %v1418 = vmul.f32 %v238, 1.1111112
  %v1419 = vmul.f32 %v240, 1.1111112
  %v1420 = vmul.f32 %v351, 1.1111112
  %v1421 = vmul.f32 %v353, 1.1111112
  %v1422 = vmul.f32 %v242, 1.1111112
  %v1423 = vmul.f32 %v244, 1.1111112
  %v1424 = vmul.f32 %v355, 1.1111112
  %v1425 = vmul.f32 %v357, 1.1111112
  %v1426 = vmul.f32 %v248, 1.1111112
  %v1427 = vmul.f32 %v250, 1.1111112
  %v1428 = vmul.f32 %v361, 1.1111112
  %v1429 = vmul.f32 %v363, 1.1111112
  %v1430 = vmul.f32 %v252, 1.1111112
  %v1431 = vmul.f32 %v254, 1.1111112
  %v1432 = vmul.f32 %v365, 1.1111112
  %v1433 = vmul.f32 %v367, 1.1111112
  %v1434 = vmul.f32 %v258, 1.1111112
  %v1435 = vmul.f32 %v260, 1.1111112
  %v1436 = vmul.f32 %v371, 1.1111112
  %v1437 = vmul.f32 %v373, 1.1111112
  %v1438 = vmul.f32 %v262, 1.1111112
  %v1439 = vmul.f32 %v264, 1.1111112
  %v1440 = vmul.f32 %v375, 1.1111112
  %v1441 = vmul.f32 %v377, 1.1111112
  %v1442 = vsel %vm1314, %v1378, 0.0
  %v1443 = vsel %vm1315, %v1379, 0.0
  %v1444 = vsel %vm1316, %v1380, 0.0
  %v1445 = vsel %vm1317, %v1381, 0.0
  %v1446 = vsel %vm1318, %v1382, 0.0
  %v1447 = vsel %vm1319, %v1383, 0.0
  %v1448 = vsel %vm1320, %v1384, 0.0
  %v1449 = vsel %vm1321, %v1385, 0.0
  %v1450 = vsel %vm1322, %v1386, 0.0
  %v1451 = vsel %vm1323, %v1387, 0.0
  %v1452 = vsel %vm1324, %v1388, 0.0
  %v1453 = vsel %vm1325, %v1389, 0.0
  %v1454 = vsel %vm1326, %v1390, 0.0
  %v1455 = vsel %vm1327, %v1391, 0.0
  %v1456 = vsel %vm1328, %v1392, 0.0
  %v1457 = vsel %vm1329, %v1393, 0.0
  %v1458 = vsel %vm1330, %v1394, 0.0
  %v1459 = vsel %vm1331, %v1395, 0.0
  %v1460 = vsel %vm1332, %v1396, 0.0
  %v1461 = vsel %vm1333, %v1397, 0.0
  %v1462 = vsel %vm1334, %v1398, 0.0
  %v1463 = vsel %vm1335, %v1399, 0.0
  %v1464 = vsel %vm1336, %v1400, 0.0
  %v1465 = vsel %vm1337, %v1401, 0.0
  %v1466 = vsel %vm1338, %v1402, 0.0
  %v1467 = vsel %vm1339, %v1403, 0.0
  %v1468 = vsel %vm1340, %v1404, 0.0
  %v1469 = vsel %vm1341, %v1405, 0.0
  %v1470 = vsel %vm1342, %v1406, 0.0
  %v1471 = vsel %vm1343, %v1407, 0.0
  %v1472 = vsel %vm1344, %v1408, 0.0
  %v1473 = vsel %vm1345, %v1409, 0.0
  %v1474 = vsel %vm1346, %v1410, 0.0
  %v1475 = vsel %vm1347, %v1411, 0.0
  %v1476 = vsel %vm1348, %v1412, 0.0
  %v1477 = vsel %vm1349, %v1413, 0.0
  %v1478 = vsel %vm1350, %v1414, 0.0
  %v1479 = vsel %vm1351, %v1415, 0.0
  %v1480 = vsel %vm1352, %v1416, 0.0
  %v1481 = vsel %vm1353, %v1417, 0.0
  %v1482 = vsel %vm1354, %v1418, 0.0
  %v1483 = vsel %vm1355, %v1419, 0.0
  %v1484 = vsel %vm1356, %v1420, 0.0
  %v1485 = vsel %vm1357, %v1421, 0.0
  %v1486 = vsel %vm1358, %v1422, 0.0
  %v1487 = vsel %vm1359, %v1423, 0.0
  %v1488 = vsel %vm1360, %v1424, 0.0
  %v1489 = vsel %vm1361, %v1425, 0.0
  %v1490 = vsel %vm1362, %v1426, 0.0
  %v1491 = vsel %vm1363, %v1427, 0.0
  %v1492 = vsel %vm1364, %v1428, 0.0
  %v1493 = vsel %vm1365, %v1429, 0.0
  %v1494 = vsel %vm1366, %v1430, 0.0
  %v1495 = vsel %vm1367, %v1431, 0.0
  %v1496 = vsel %vm1368, %v1432, 0.0
  %v1497 = vsel %vm1369, %v1433, 0.0
  %v1498 = vsel %vm1370, %v1434, 0.0
  %v1499 = vsel %vm1371, %v1435, 0.0
  %v1500 = vsel %vm1372, %v1436, 0.0
  %v1501 = vsel %vm1373, %v1437, 0.0
  %v1502 = vsel %vm1374, %v1438, 0.0
  %v1503 = vsel %vm1375, %v1439, 0.0
  %v1504 = vsel %vm1376, %v1440, 0.0
  %v1505 = vsel %vm1377, %v1441, 0.0
  %v1506 = vpack.c.bf16 %v1446, %v1442
  %v1507 = vpack.c.bf16 %v1447, %v1443
  %v1508 = vpack.c.bf16 %v1448, %v1444
  %v1509 = vpack.c.bf16 %v1449, %v1445
  %v1510 = vpack.c.bf16 %v1454, %v1450
  %v1511 = vpack.c.bf16 %v1455, %v1451
  %v1512 = vpack.c.bf16 %v1456, %v1452
  %v1513 = vpack.c.bf16 %v1457, %v1453
  %v1514 = vpack.c.bf16 %v1462, %v1458
  %v1515 = vpack.c.bf16 %v1463, %v1459
  %v1516 = vpack.c.bf16 %v1464, %v1460
  %v1517 = vpack.c.bf16 %v1465, %v1461
  %v1518 = vpack.c.bf16 %v1470, %v1466
  %v1519 = vpack.c.bf16 %v1471, %v1467
  %v1520 = vpack.c.bf16 %v1472, %v1468
  %v1521 = vpack.c.bf16 %v1473, %v1469
  %v1522 = vpack.c.bf16 %v1478, %v1474
  %v1523 = vpack.c.bf16 %v1479, %v1475
  %v1524 = vpack.c.bf16 %v1480, %v1476
  %v1525 = vpack.c.bf16 %v1481, %v1477
  %v1526 = vpack.c.bf16 %v1486, %v1482
  %v1527 = vpack.c.bf16 %v1487, %v1483
  %v1528 = vpack.c.bf16 %v1488, %v1484
  %v1529 = vpack.c.bf16 %v1489, %v1485
  %v1530 = vpack.c.bf16 %v1494, %v1490
  %v1531 = vpack.c.bf16 %v1495, %v1491
  %v1532 = vpack.c.bf16 %v1496, %v1492
  %v1533 = vpack.c.bf16 %v1497, %v1493
  %v1534 = vpack.c.bf16 %v1502, %v1498
  %v1535 = vpack.c.bf16 %v1503, %v1499
  %v1536 = vpack.c.bf16 %v1504, %v1500
  %v1537 = vpack.c.bf16 %v1505, %v1501
  %v1538 = vld [vmem:[%s4] sm:$0xff]
  %v1539 = vld [vmem:[%s4 + $0x8] sm:$0xff]
  %v1540 = vld [vmem:[%s4 + $0x10] sm:$0xff]
  %v1541 = vld [vmem:[%s4 + $0x18] sm:$0xff]
  %v1542 = vld [vmem:[%s4 + $0x20] sm:$0xff]
  %v1543 = vld [vmem:[%s4 + $0x28] sm:$0xff]
  %v1544 = vld [vmem:[%s4 + $0x30] sm:$0xff]
  %v1545 = vld [vmem:[%s4 + $0x38] sm:$0xff]
  %v1546 = vld [vmem:[%s4 + $0x40] sm:$0xff]
  %v1547 = vld [vmem:[%s4 + $0x48] sm:$0xff]
  %v1548 = vld [vmem:[%s4 + $0x50] sm:$0xff]
  %v1549 = vld [vmem:[%s4 + $0x58] sm:$0xff]
  %v1550 = vld [vmem:[%s4 + $0x60] sm:$0xff]
  %v1551 = vld [vmem:[%s4 + $0x68] sm:$0xff]
  %v1552 = vld [vmem:[%s4 + $0x70] sm:$0xff]
  %v1553 = vld [vmem:[%s4 + $0x78] sm:$0xff]
  %v1554 = vld [vmem:[%s4 + $0x80] sm:$0xff]
  %v1555 = vld [vmem:[%s4 + $0x88] sm:$0xff]
  %v1556 = vld [vmem:[%s4 + $0x90] sm:$0xff]
  %v1557 = vld [vmem:[%s4 + $0x98] sm:$0xff]
  %v1558 = vld [vmem:[%s4 + $0xa0] sm:$0xff]
  %v1559 = vld [vmem:[%s4 + $0xa8] sm:$0xff]
  %v1560 = vld [vmem:[%s4 + $0xb0] sm:$0xff]
  %v1561 = vld [vmem:[%s4 + $0xb8] sm:$0xff]
  %v1562 = vld [vmem:[%s4 + $0xc0] sm:$0xff]
  %v1563 = vld [vmem:[%s4 + $0xc8] sm:$0xff]
  %v1564 = vld [vmem:[%s4 + $0xd0] sm:$0xff]
  %v1565 = vld [vmem:[%s4 + $0xd8] sm:$0xff]
  %v1566 = vld [vmem:[%s4 + $0xe0] sm:$0xff]
  %v1567 = vld [vmem:[%s4 + $0xe8] sm:$0xff]
  %v1568 = vld [vmem:[%s4 + $0xf0] sm:$0xff]
  %v1569 = vld [vmem:[%s4 + $0xf8] sm:$0xff]
  %v1570 = vld [vmem:[%s4 + $0x100] sm:$0xff]
  %v1571 = vld [vmem:[%s4 + $0x108] sm:$0xff]
  %v1572 = vld [vmem:[%s4 + $0x110] sm:$0xff]
  %v1573 = vld [vmem:[%s4 + $0x118] sm:$0xff]
  %v1574 = vld [vmem:[%s4 + $0x120] sm:$0xff]
  %v1575 = vld [vmem:[%s4 + $0x128] sm:$0xff]
  %v1576 = vld [vmem:[%s4 + $0x130] sm:$0xff]
  %v1577 = vld [vmem:[%s4 + $0x138] sm:$0xff]
  %v1578 = vld [vmem:[%s4 + $0x140] sm:$0xff]
  %v1579 = vld [vmem:[%s4 + $0x148] sm:$0xff]
  %v1580 = vld [vmem:[%s4 + $0x150] sm:$0xff]
  %v1581 = vld [vmem:[%s4 + $0x158] sm:$0xff]
  %v1582 = vld [vmem:[%s4 + $0x160] sm:$0xff]
  %v1583 = vld [vmem:[%s4 + $0x168] sm:$0xff]
  %v1584 = vld [vmem:[%s4 + $0x170] sm:$0xff]
  %v1585 = vld [vmem:[%s4 + $0x178] sm:$0xff]
  %v1586 = vld [vmem:[%s4 + $0x180] sm:$0xff]
  %v1587 = vld [vmem:[%s4 + $0x188] sm:$0xff]
  %v1588 = vld [vmem:[%s4 + $0x190] sm:$0xff]
  %v1589 = vld [vmem:[%s4 + $0x198] sm:$0xff]
  %v1590 = vld [vmem:[%s4 + $0x1a0] sm:$0xff]
  %v1591 = vld [vmem:[%s4 + $0x1a8] sm:$0xff]
  %v1592 = vld [vmem:[%s4 + $0x1b0] sm:$0xff]
  %v1593 = vld [vmem:[%s4 + $0x1b8] sm:$0xff]
  %v1594 = vld [vmem:[%s4 + $0x1c0] sm:$0xff]
  %v1595 = vld [vmem:[%s4 + $0x1c8] sm:$0xff]
  %v1596 = vld [vmem:[%s4 + $0x1d0] sm:$0xff]
  %v1597 = vld [vmem:[%s4 + $0x1d8] sm:$0xff]
  %v1598 = vld [vmem:[%s4 + $0x1e0] sm:$0xff]
  %v1599 = vld [vmem:[%s4 + $0x1e8] sm:$0xff]
  %v1600 = vld [vmem:[%s4 + $0x1f0] sm:$0xff]
  %v1601 = vld [vmem:[%s4 + $0x1f8] sm:$0xff]
  %v1602 = vld [vmem:[%s5] sm:$0x3]
  %v1604 = vlaneseq
  %v1605 = vshrl.u32 %v1604, 7
  %v1606 = vsub.s32 0, %v1605
  %v1607 = vrot.slane %v1602, %v1606
  %v1608 = vlaneseq
  %v1609 = vshrl.u32 %v1608, 7
  %v1610 = vsub.s32 1, %v1609
  %v1611 = vrot.slane %v1602, %v1610
  %v1678 = vunpack.c.l.b16 %v1538
  %v1679 = vunpack.c.h.b16 %v1538
  %v1680 = vunpack.c.l.b16 %v1539
  %v1681 = vunpack.c.h.b16 %v1539
  %v1682 = vunpack.c.l.b16 %v1540
  %v1683 = vunpack.c.h.b16 %v1540
  %v1684 = vunpack.c.l.b16 %v1541
  %v1685 = vunpack.c.h.b16 %v1541
  %v1686 = vunpack.c.l.b16 %v1542
  %v1687 = vunpack.c.h.b16 %v1542
  %v1688 = vunpack.c.l.b16 %v1543
  %v1689 = vunpack.c.h.b16 %v1543
  %v1690 = vunpack.c.l.b16 %v1544
  %v1691 = vunpack.c.h.b16 %v1544
  %v1692 = vunpack.c.l.b16 %v1545
  %v1693 = vunpack.c.h.b16 %v1545
  %v1694 = vunpack.c.l.b16 %v1546
  %v1695 = vunpack.c.h.b16 %v1546
  %v1696 = vunpack.c.l.b16 %v1547
  %v1697 = vunpack.c.h.b16 %v1547
  %v1698 = vunpack.c.l.b16 %v1548
  %v1699 = vunpack.c.h.b16 %v1548
  %v1700 = vunpack.c.l.b16 %v1549
  %v1701 = vunpack.c.h.b16 %v1549
  %v1702 = vunpack.c.l.b16 %v1550
  %v1703 = vunpack.c.h.b16 %v1550
  %v1704 = vunpack.c.l.b16 %v1551
  %v1705 = vunpack.c.h.b16 %v1551
  %v1706 = vunpack.c.l.b16 %v1552
  %v1707 = vunpack.c.h.b16 %v1552
  %v1708 = vunpack.c.l.b16 %v1553
  %v1709 = vunpack.c.h.b16 %v1553
  %v1710 = vunpack.c.l.b16 %v1554
  %v1711 = vunpack.c.h.b16 %v1554
  %v1712 = vunpack.c.l.b16 %v1555
  %v1713 = vunpack.c.h.b16 %v1555
  %v1714 = vunpack.c.l.b16 %v1556
  %v1715 = vunpack.c.h.b16 %v1556
  %v1716 = vunpack.c.l.b16 %v1557
  %v1717 = vunpack.c.h.b16 %v1557
  %v1718 = vunpack.c.l.b16 %v1558
  %v1719 = vunpack.c.h.b16 %v1558
  %v1720 = vunpack.c.l.b16 %v1559
  %v1721 = vunpack.c.h.b16 %v1559
  %v1722 = vunpack.c.l.b16 %v1560
  %v1723 = vunpack.c.h.b16 %v1560
  %v1724 = vunpack.c.l.b16 %v1561
  %v1725 = vunpack.c.h.b16 %v1561
  %v1726 = vunpack.c.l.b16 %v1562
  %v1727 = vunpack.c.h.b16 %v1562
  %v1728 = vunpack.c.l.b16 %v1563
  %v1729 = vunpack.c.h.b16 %v1563
  %v1730 = vunpack.c.l.b16 %v1564
  %v1731 = vunpack.c.h.b16 %v1564
  %v1732 = vunpack.c.l.b16 %v1565
  %v1733 = vunpack.c.h.b16 %v1565
  %v1734 = vunpack.c.l.b16 %v1566
  %v1735 = vunpack.c.h.b16 %v1566
  %v1736 = vunpack.c.l.b16 %v1567
  %v1737 = vunpack.c.h.b16 %v1567
  %v1738 = vunpack.c.l.b16 %v1568
  %v1739 = vunpack.c.h.b16 %v1568
  %v1740 = vunpack.c.l.b16 %v1569
  %v1741 = vunpack.c.h.b16 %v1569
  %v1742 = vunpack.c.l.b16 %v1570
  %v1743 = vunpack.c.h.b16 %v1570
  %v1744 = vunpack.c.l.b16 %v1571
  %v1745 = vunpack.c.h.b16 %v1571
  %v1746 = vunpack.c.l.b16 %v1572
  %v1747 = vunpack.c.h.b16 %v1572
  %v1748 = vunpack.c.l.b16 %v1573
  %v1749 = vunpack.c.h.b16 %v1573
  %v1750 = vunpack.c.l.b16 %v1574
  %v1751 = vunpack.c.h.b16 %v1574
  %v1752 = vunpack.c.l.b16 %v1575
  %v1753 = vunpack.c.h.b16 %v1575
  %v1754 = vunpack.c.l.b16 %v1576
  %v1755 = vunpack.c.h.b16 %v1576
  %v1756 = vunpack.c.l.b16 %v1577
  %v1757 = vunpack.c.h.b16 %v1577
  %v1758 = vunpack.c.l.b16 %v1578
  %v1759 = vunpack.c.h.b16 %v1578
  %v1760 = vunpack.c.l.b16 %v1579
  %v1761 = vunpack.c.h.b16 %v1579
  %v1762 = vunpack.c.l.b16 %v1580
  %v1763 = vunpack.c.h.b16 %v1580
  %v1764 = vunpack.c.l.b16 %v1581
  %v1765 = vunpack.c.h.b16 %v1581
  %v1766 = vunpack.c.l.b16 %v1582
  %v1767 = vunpack.c.h.b16 %v1582
  %v1768 = vunpack.c.l.b16 %v1583
  %v1769 = vunpack.c.h.b16 %v1583
  %v1770 = vunpack.c.l.b16 %v1584
  %v1771 = vunpack.c.h.b16 %v1584
  %v1772 = vunpack.c.l.b16 %v1585
  %v1773 = vunpack.c.h.b16 %v1585
  %v1774 = vunpack.c.l.b16 %v1586
  %v1775 = vunpack.c.h.b16 %v1586
  %v1776 = vunpack.c.l.b16 %v1587
  %v1777 = vunpack.c.h.b16 %v1587
  %v1778 = vunpack.c.l.b16 %v1588
  %v1779 = vunpack.c.h.b16 %v1588
  %v1780 = vunpack.c.l.b16 %v1589
  %v1781 = vunpack.c.h.b16 %v1589
  %v1782 = vunpack.c.l.b16 %v1590
  %v1783 = vunpack.c.h.b16 %v1590
  %v1784 = vunpack.c.l.b16 %v1591
  %v1785 = vunpack.c.h.b16 %v1591
  %v1786 = vunpack.c.l.b16 %v1592
  %v1787 = vunpack.c.h.b16 %v1592
  %v1788 = vunpack.c.l.b16 %v1593
  %v1789 = vunpack.c.h.b16 %v1593
  %v1790 = vunpack.c.l.b16 %v1594
  %v1791 = vunpack.c.h.b16 %v1594
  %v1792 = vunpack.c.l.b16 %v1595
  %v1793 = vunpack.c.h.b16 %v1595
  %v1794 = vunpack.c.l.b16 %v1596
  %v1795 = vunpack.c.h.b16 %v1596
  %v1796 = vunpack.c.l.b16 %v1597
  %v1797 = vunpack.c.h.b16 %v1597
  %v1798 = vunpack.c.l.b16 %v1598
  %v1799 = vunpack.c.h.b16 %v1598
  %v1800 = vunpack.c.l.b16 %v1599
  %v1801 = vunpack.c.h.b16 %v1599
  %v1802 = vunpack.c.l.b16 %v1600
  %v1803 = vunpack.c.h.b16 %v1600
  %v1804 = vunpack.c.l.b16 %v1601
  %v1805 = vunpack.c.h.b16 %v1601
  %v1806 = vpack.c.b16 %v1680, %v1678
  %v1807 = vpack.c.b16 %v1681, %v1679
  %v1808 = vpack.c.b16 %v1684, %v1682
  %v1809 = vpack.c.b16 %v1685, %v1683
  %v1810 = vpack.c.b16 %v1688, %v1686
  %v1811 = vpack.c.b16 %v1689, %v1687
  %v1812 = vpack.c.b16 %v1692, %v1690
  %v1813 = vpack.c.b16 %v1693, %v1691
  %v1814 = vpack.c.b16 %v1696, %v1694
  %v1815 = vpack.c.b16 %v1697, %v1695
  %v1816 = vpack.c.b16 %v1700, %v1698
  %v1817 = vpack.c.b16 %v1701, %v1699
  %v1818 = vpack.c.b16 %v1704, %v1702
  %v1819 = vpack.c.b16 %v1705, %v1703
  %v1820 = vpack.c.b16 %v1708, %v1706
  %v1821 = vpack.c.b16 %v1709, %v1707
  %v1822 = vpack.c.b16 %v1712, %v1710
  %v1823 = vpack.c.b16 %v1713, %v1711
  %v1824 = vpack.c.b16 %v1716, %v1714
  %v1825 = vpack.c.b16 %v1717, %v1715
  %v1826 = vpack.c.b16 %v1720, %v1718
  %v1827 = vpack.c.b16 %v1721, %v1719
  %v1828 = vpack.c.b16 %v1724, %v1722
  %v1829 = vpack.c.b16 %v1725, %v1723
  %v1830 = vpack.c.b16 %v1728, %v1726
  %v1831 = vpack.c.b16 %v1729, %v1727
  %v1832 = vpack.c.b16 %v1732, %v1730
  %v1833 = vpack.c.b16 %v1733, %v1731
  %v1834 = vpack.c.b16 %v1736, %v1734
  %v1835 = vpack.c.b16 %v1737, %v1735
  %v1836 = vpack.c.b16 %v1740, %v1738
  %v1837 = vpack.c.b16 %v1741, %v1739
  %v1838 = vpack.c.b16 %v1744, %v1742
  %v1839 = vpack.c.b16 %v1745, %v1743
  %v1840 = vpack.c.b16 %v1748, %v1746
  %v1841 = vpack.c.b16 %v1749, %v1747
  %v1842 = vpack.c.b16 %v1752, %v1750
  %v1843 = vpack.c.b16 %v1753, %v1751
  %v1844 = vpack.c.b16 %v1756, %v1754
  %v1845 = vpack.c.b16 %v1757, %v1755
  %v1846 = vpack.c.b16 %v1760, %v1758
  %v1847 = vpack.c.b16 %v1761, %v1759
  %v1848 = vpack.c.b16 %v1764, %v1762
  %v1849 = vpack.c.b16 %v1765, %v1763
  %v1850 = vpack.c.b16 %v1768, %v1766
  %v1851 = vpack.c.b16 %v1769, %v1767
  %v1852 = vpack.c.b16 %v1772, %v1770
  %v1853 = vpack.c.b16 %v1773, %v1771
  %v1854 = vpack.c.b16 %v1776, %v1774
  %v1855 = vpack.c.b16 %v1777, %v1775
  %v1856 = vpack.c.b16 %v1780, %v1778
  %v1857 = vpack.c.b16 %v1781, %v1779
  %v1858 = vpack.c.b16 %v1784, %v1782
  %v1859 = vpack.c.b16 %v1785, %v1783
  %v1860 = vpack.c.b16 %v1788, %v1786
  %v1861 = vpack.c.b16 %v1789, %v1787
  %v1862 = vpack.c.b16 %v1792, %v1790
  %v1863 = vpack.c.b16 %v1793, %v1791
  %v1864 = vpack.c.b16 %v1796, %v1794
  %v1865 = vpack.c.b16 %v1797, %v1795
  %v1866 = vpack.c.b16 %v1800, %v1798
  %v1867 = vpack.c.b16 %v1801, %v1799
  %v1868 = vpack.c.b16 %v1804, %v1802
  %v1869 = vpack.c.b16 %v1805, %v1803
  %1934 = vmatprep.subr.bf16.mxu0 %v1821
  %1935 = vmatpush1.bf16.msra.mxu0 %v1820
  %1936 = vmatprep.subr.bf16.mxu0 %v1819
  %1937 = vmatpush1.bf16.msra.mxu0 %v1818
  %1938 = vmatprep.subr.bf16.mxu0 %v1817
  %1939 = vmatpush1.bf16.msra.mxu0 %v1816
  %1940 = vmatprep.subr.bf16.mxu0 %v1815
  %1941 = vmatpush1.bf16.msra.mxu0 %v1814
  %1942 = vmatprep.subr.bf16.mxu0 %v1813
  %1943 = vmatpush1.bf16.msra.mxu0 %v1812
  %1944 = vmatprep.subr.bf16.mxu0 %v1811
  %1945 = vmatpush1.bf16.msra.mxu0 %v1810
  %1946 = vmatprep.subr.bf16.mxu0 %v1809
  %1947 = vmatpush1.bf16.msra.mxu0 %v1808
  %1948 = vmatprep.subr.bf16.mxu0 %v1807
  %1949 = vmatpush1.bf16.msra.mxu0 %v1806
  %1950 = vmatprep.subr.bf16.mxu0 %v1837
  %1951 = vmatpush2.bf16.msra.mxu0 %v1836
  %1952 = vmatprep.subr.bf16.mxu0 %v1835
  %1953 = vmatpush2.bf16.msra.mxu0 %v1834
  %1954 = vmatprep.subr.bf16.mxu0 %v1833
  %1955 = vmatpush2.bf16.msra.mxu0 %v1832
  %1956 = vmatprep.subr.bf16.mxu0 %v1831
  %1957 = vmatpush2.bf16.msra.mxu0 %v1830
  %1958 = vmatprep.subr.bf16.mxu0 %v1829
  %1959 = vmatpush2.bf16.msra.mxu0 %v1828
  %1960 = vmatprep.subr.bf16.mxu0 %v1827
  %1961 = vmatpush2.bf16.msra.mxu0 %v1826
  %1962 = vmatprep.subr.bf16.mxu0 %v1825
  %1963 = vmatpush2.bf16.msra.mxu0 %v1824
  %1964 = vmatprep.subr.bf16.mxu0 %v1823
  %1965 = vmatpush2.bf16.msra.mxu0 %v1822
  %1966 = vmatprep.mubr.bf16.mxu0 %v1507
  %1967 = vmatmul.mubr.bf16.gmra.mxu0 %v1506
  %v1968 = vpop.f32.mrf.mxu0
  %v1969 = vadd.f32 %v1607, %v1968
  %v1970 = vpop.f32.mrf.mxu0
  %v1971 = vadd.f32 %v1611, %v1970
  %v1972 = vpop.f32.mrf.mxu0
  %v1973 = vadd.f32 %v1607, %v1972
  %v1974 = vpop.f32.mrf.mxu0
  %v1975 = vadd.f32 %v1611, %v1974
  %1976 = vmatprep.mubr.bf16.mxu0 %v1511
  %1977 = vmatmul.mubr.bf16.gmra.mxu0 %v1510
  %v1978 = vpop.f32.mrf.mxu0
  %v1979 = vadd.f32 %v1607, %v1978
  %v1980 = vpop.f32.mrf.mxu0
  %v1981 = vadd.f32 %v1611, %v1980
  %v1982 = vpop.f32.mrf.mxu0
  %v1983 = vadd.f32 %v1607, %v1982
  %v1984 = vpop.f32.mrf.mxu0
  %v1985 = vadd.f32 %v1611, %v1984
  %1986 = vmatprep.mubr.bf16.mxu0 %v1515
  %1987 = vmatmul.mubr.bf16.gmra.mxu0 %v1514
  %v1988 = vpop.f32.mrf.mxu0
  %v1989 = vadd.f32 %v1607, %v1988
  %v1990 = vpop.f32.mrf.mxu0
  %v1991 = vadd.f32 %v1611, %v1990
  %v1992 = vpop.f32.mrf.mxu0
  %v1993 = vadd.f32 %v1607, %v1992
  %v1994 = vpop.f32.mrf.mxu0
  %v1995 = vadd.f32 %v1611, %v1994
  %1996 = vmatprep.mubr.bf16.mxu0 %v1519
  %1997 = vmatmul.mubr.bf16.gmra.mxu0 %v1518
  %v1998 = vpop.f32.mrf.mxu0
  %v1999 = vadd.f32 %v1607, %v1998
  %v2000 = vpop.f32.mrf.mxu0
  %v2001 = vadd.f32 %v1611, %v2000
  %v2002 = vpop.f32.mrf.mxu0
  %v2003 = vadd.f32 %v1607, %v2002
  %v2004 = vpop.f32.mrf.mxu0
  %v2005 = vadd.f32 %v1611, %v2004
  %2006 = vmatprep.mubr.bf16.mxu0 %v1523
  %2007 = vmatmul.mubr.bf16.gmra.mxu0 %v1522
  %v2008 = vpop.f32.mrf.mxu0
  %v2009 = vadd.f32 %v1607, %v2008
  %v2010 = vpop.f32.mrf.mxu0
  %v2011 = vadd.f32 %v1611, %v2010
  %v2012 = vpop.f32.mrf.mxu0
  %v2013 = vadd.f32 %v1607, %v2012
  %v2014 = vpop.f32.mrf.mxu0
  %v2015 = vadd.f32 %v1611, %v2014
  %2016 = vmatprep.mubr.bf16.mxu0 %v1527
  %2017 = vmatmul.mubr.bf16.gmra.mxu0 %v1526
  %v2018 = vpop.f32.mrf.mxu0
  %v2019 = vadd.f32 %v1607, %v2018
  %v2020 = vpop.f32.mrf.mxu0
  %v2021 = vadd.f32 %v1611, %v2020
  %v2022 = vpop.f32.mrf.mxu0
  %v2023 = vadd.f32 %v1607, %v2022
  %v2024 = vpop.f32.mrf.mxu0
  %v2025 = vadd.f32 %v1611, %v2024
  %2026 = vmatprep.mubr.bf16.mxu0 %v1531
  %2027 = vmatmul.mubr.bf16.gmra.mxu0 %v1530
  %v2028 = vpop.f32.mrf.mxu0
  %v2029 = vadd.f32 %v1607, %v2028
  %v2030 = vpop.f32.mrf.mxu0
  %v2031 = vadd.f32 %v1611, %v2030
  %v2032 = vpop.f32.mrf.mxu0
  %v2033 = vadd.f32 %v1607, %v2032
  %v2034 = vpop.f32.mrf.mxu0
  %v2035 = vadd.f32 %v1611, %v2034
  %2036 = vmatprep.mubr.bf16.mxu0 %v1535
  %2037 = vmatmul.mubr.bf16.gmra.mxu0 %v1534
  %v2038 = vpop.f32.mrf.mxu0
  %v2039 = vadd.f32 %v1607, %v2038
  %v2040 = vpop.f32.mrf.mxu0
  %v2041 = vadd.f32 %v1611, %v2040
  %v2042 = vpop.f32.mrf.mxu0
  %v2043 = vadd.f32 %v1607, %v2042
  %v2044 = vpop.f32.mrf.mxu0
  %v2045 = vadd.f32 %v1611, %v2044
  %2046 = vdwg.mxu0
  %2047 = vmatprep.subr.bf16.mxu0 %v1853
  %2048 = vmatpush1.bf16.msra.mxu0 %v1852
  %2049 = vmatprep.subr.bf16.mxu0 %v1851
  %2050 = vmatpush1.bf16.msra.mxu0 %v1850
  %2051 = vmatprep.subr.bf16.mxu0 %v1849
  %2052 = vmatpush1.bf16.msra.mxu0 %v1848
  %2053 = vmatprep.subr.bf16.mxu0 %v1847
  %2054 = vmatpush1.bf16.msra.mxu0 %v1846
  %2055 = vmatprep.subr.bf16.mxu0 %v1845
  %2056 = vmatpush1.bf16.msra.mxu0 %v1844
  %2057 = vmatprep.subr.bf16.mxu0 %v1843
  %2058 = vmatpush1.bf16.msra.mxu0 %v1842
  %2059 = vmatprep.subr.bf16.mxu0 %v1841
  %2060 = vmatpush1.bf16.msra.mxu0 %v1840
  %2061 = vmatprep.subr.bf16.mxu0 %v1839
  %2062 = vmatpush1.bf16.msra.mxu0 %v1838
  %2063 = vmatprep.subr.bf16.mxu0 %v1869
  %2064 = vmatpush2.bf16.msra.mxu0 %v1868
  %2065 = vmatprep.subr.bf16.mxu0 %v1867
  %2066 = vmatpush2.bf16.msra.mxu0 %v1866
  %2067 = vmatprep.subr.bf16.mxu0 %v1865
  %2068 = vmatpush2.bf16.msra.mxu0 %v1864
  %2069 = vmatprep.subr.bf16.mxu0 %v1863
  %2070 = vmatpush2.bf16.msra.mxu0 %v1862
  %2071 = vmatprep.subr.bf16.mxu0 %v1861
  %2072 = vmatpush2.bf16.msra.mxu0 %v1860
  %2073 = vmatprep.subr.bf16.mxu0 %v1859
  %2074 = vmatpush2.bf16.msra.mxu0 %v1858
  %2075 = vmatprep.subr.bf16.mxu0 %v1857
  %2076 = vmatpush2.bf16.msra.mxu0 %v1856
  %2077 = vmatprep.subr.bf16.mxu0 %v1855
  %2078 = vmatpush2.bf16.msra.mxu0 %v1854
  %2079 = vmatprep.mubr.bf16.mxu0 %v1509
  %2080 = vmatmul.mubr.bf16.gmra.mxu0 %v1508
  %v2081 = vpop.f32.mrf.mxu0
  %v2082 = vadd.f32 %v1969, %v2081
  %v2083 = vpop.f32.mrf.mxu0
  %v2084 = vadd.f32 %v1971, %v2083
  %v2085 = vpop.f32.mrf.mxu0
  %v2086 = vadd.f32 %v1973, %v2085
  %v2087 = vpop.f32.mrf.mxu0
  %v2088 = vadd.f32 %v1975, %v2087
  %2089 = vmatprep.mubr.bf16.mxu0 %v1513
  %2090 = vmatmul.mubr.bf16.gmra.mxu0 %v1512
  %v2091 = vpop.f32.mrf.mxu0
  %v2092 = vadd.f32 %v1979, %v2091
  %v2093 = vpop.f32.mrf.mxu0
  %v2094 = vadd.f32 %v1981, %v2093
  %v2095 = vpop.f32.mrf.mxu0
  %v2096 = vadd.f32 %v1983, %v2095
  %v2097 = vpop.f32.mrf.mxu0
  %v2098 = vadd.f32 %v1985, %v2097
  %2099 = vmatprep.mubr.bf16.mxu0 %v1517
  %2100 = vmatmul.mubr.bf16.gmra.mxu0 %v1516
  %v2101 = vpop.f32.mrf.mxu0
  %v2102 = vadd.f32 %v1989, %v2101
  %v2103 = vpop.f32.mrf.mxu0
  %v2104 = vadd.f32 %v1991, %v2103
  %v2105 = vpop.f32.mrf.mxu0
  %v2106 = vadd.f32 %v1993, %v2105
  %v2107 = vpop.f32.mrf.mxu0
  %v2108 = vadd.f32 %v1995, %v2107
  %2109 = vmatprep.mubr.bf16.mxu0 %v1521
  %2110 = vmatmul.mubr.bf16.gmra.mxu0 %v1520
  %v2111 = vpop.f32.mrf.mxu0
  %v2112 = vadd.f32 %v1999, %v2111
  %v2113 = vpop.f32.mrf.mxu0
  %v2114 = vadd.f32 %v2001, %v2113
  %v2115 = vpop.f32.mrf.mxu0
  %v2116 = vadd.f32 %v2003, %v2115
  %v2117 = vpop.f32.mrf.mxu0
  %v2118 = vadd.f32 %v2005, %v2117
  %2119 = vmatprep.mubr.bf16.mxu0 %v1525
  %2120 = vmatmul.mubr.bf16.gmra.mxu0 %v1524
  %v2121 = vpop.f32.mrf.mxu0
  %v2122 = vadd.f32 %v2009, %v2121
  %v2123 = vpop.f32.mrf.mxu0
  %v2124 = vadd.f32 %v2011, %v2123
  %v2125 = vpop.f32.mrf.mxu0
  %v2126 = vadd.f32 %v2013, %v2125
  %v2127 = vpop.f32.mrf.mxu0
  %v2128 = vadd.f32 %v2015, %v2127
  %2129 = vmatprep.mubr.bf16.mxu0 %v1529
  %2130 = vmatmul.mubr.bf16.gmra.mxu0 %v1528
  %v2131 = vpop.f32.mrf.mxu0
  %v2132 = vadd.f32 %v2019, %v2131
  %v2133 = vpop.f32.mrf.mxu0
  %v2134 = vadd.f32 %v2021, %v2133
  %v2135 = vpop.f32.mrf.mxu0
  %v2136 = vadd.f32 %v2023, %v2135
  %v2137 = vpop.f32.mrf.mxu0
  %v2138 = vadd.f32 %v2025, %v2137
  %2139 = vmatprep.mubr.bf16.mxu0 %v1533
  %2140 = vmatmul.mubr.bf16.gmra.mxu0 %v1532
  %v2141 = vpop.f32.mrf.mxu0
  %v2142 = vadd.f32 %v2029, %v2141
  %v2143 = vpop.f32.mrf.mxu0
  %v2144 = vadd.f32 %v2031, %v2143
  %v2145 = vpop.f32.mrf.mxu0
  %v2146 = vadd.f32 %v2033, %v2145
  %v2147 = vpop.f32.mrf.mxu0
  %v2148 = vadd.f32 %v2035, %v2147
  %2149 = vmatprep.mubr.bf16.mxu0 %v1537
  %2150 = vmatmul.mubr.bf16.gmra.mxu0 %v1536
  %v2151 = vpop.f32.mrf.mxu0
  %v2152 = vadd.f32 %v2039, %v2151
  %v2153 = vpop.f32.mrf.mxu0
  %v2154 = vadd.f32 %v2041, %v2153
  %v2155 = vpop.f32.mrf.mxu0
  %v2156 = vadd.f32 %v2043, %v2155
  %v2157 = vpop.f32.mrf.mxu0
  %v2158 = vadd.f32 %v2045, %v2157
  %2159 = vdwg.mxu0
  %v2160 = vmul.u32 %v380, 256
  %v2161 = vmul.u32 %v381, 256
  %v2162 = vmul.u32 %v382, 256
  %v2163 = vmul.u32 %v383, 256
  %v2164 = vmul.u32 %v384, 256
  %v2165 = vmul.u32 %v385, 256
  %v2166 = vmul.u32 %v386, 256
  %v2167 = vmul.u32 %v387, 256
  %v2168 = vmul.u32 %v388, 256
  %v2169 = vmul.u32 %v389, 256
  %v2170 = vmul.u32 %v390, 256
  %v2171 = vmul.u32 %v391, 256
  %v2172 = vmul.u32 %v392, 256
  %v2173 = vmul.u32 %v393, 256
  %v2174 = vmul.u32 %v394, 256
  %v2175 = vmul.u32 %v395, 256
  %v2176 = vadd.s32 %v2160, %v397
  %v2177 = vadd.s32 %v2160, %v398
  %v2178 = vadd.s32 %v2161, %v397
  %v2179 = vadd.s32 %v2161, %v398
  %v2180 = vadd.s32 %v2162, %v397
  %v2181 = vadd.s32 %v2162, %v398
  %v2182 = vadd.s32 %v2163, %v397
  %v2183 = vadd.s32 %v2163, %v398
  %v2184 = vadd.s32 %v2164, %v397
  %v2185 = vadd.s32 %v2164, %v398
  %v2186 = vadd.s32 %v2165, %v397
  %v2187 = vadd.s32 %v2165, %v398
  %v2188 = vadd.s32 %v2166, %v397
  %v2189 = vadd.s32 %v2166, %v398
  %v2190 = vadd.s32 %v2167, %v397
  %v2191 = vadd.s32 %v2167, %v398
  %v2192 = vadd.s32 %v2168, %v397
  %v2193 = vadd.s32 %v2168, %v398
  %v2194 = vadd.s32 %v2169, %v397
  %v2195 = vadd.s32 %v2169, %v398
  %v2196 = vadd.s32 %v2170, %v397
  %v2197 = vadd.s32 %v2170, %v398
  %v2198 = vadd.s32 %v2171, %v397
  %v2199 = vadd.s32 %v2171, %v398
  %v2200 = vadd.s32 %v2172, %v397
  %v2201 = vadd.s32 %v2172, %v398
  %v2202 = vadd.s32 %v2173, %v397
  %v2203 = vadd.s32 %v2173, %v398
  %v2204 = vadd.s32 %v2174, %v397
  %v2205 = vadd.s32 %v2174, %v398
  %v2206 = vadd.s32 %v2175, %v397
  %v2207 = vadd.s32 %v2175, %v398
  %v2208 = vmul.u32 %v2176, 2246822519
  %v2209 = vmul.u32 %v2177, 2246822519
  %v2210 = vmul.u32 %v2178, 2246822519
  %v2211 = vmul.u32 %v2179, 2246822519
  %v2212 = vmul.u32 %v2180, 2246822519
  %v2213 = vmul.u32 %v2181, 2246822519
  %v2214 = vmul.u32 %v2182, 2246822519
  %v2215 = vmul.u32 %v2183, 2246822519
  %v2216 = vmul.u32 %v2184, 2246822519
  %v2217 = vmul.u32 %v2185, 2246822519
  %v2218 = vmul.u32 %v2186, 2246822519
  %v2219 = vmul.u32 %v2187, 2246822519
  %v2220 = vmul.u32 %v2188, 2246822519
  %v2221 = vmul.u32 %v2189, 2246822519
  %v2222 = vmul.u32 %v2190, 2246822519
  %v2223 = vmul.u32 %v2191, 2246822519
  %v2224 = vmul.u32 %v2192, 2246822519
  %v2225 = vmul.u32 %v2193, 2246822519
  %v2226 = vmul.u32 %v2194, 2246822519
  %v2227 = vmul.u32 %v2195, 2246822519
  %v2228 = vmul.u32 %v2196, 2246822519
  %v2229 = vmul.u32 %v2197, 2246822519
  %v2230 = vmul.u32 %v2198, 2246822519
  %v2231 = vmul.u32 %v2199, 2246822519
  %v2232 = vmul.u32 %v2200, 2246822519
  %v2233 = vmul.u32 %v2201, 2246822519
  %v2234 = vmul.u32 %v2202, 2246822519
  %v2235 = vmul.u32 %v2203, 2246822519
  %v2236 = vmul.u32 %v2204, 2246822519
  %v2237 = vmul.u32 %v2205, 2246822519
  %v2238 = vmul.u32 %v2206, 2246822519
  %v2239 = vmul.u32 %v2207, 2246822519
  %v2240 = vadd.s32 %v2208, %v545
  %v2241 = vadd.s32 %v2209, %v545
  %v2242 = vadd.s32 %v2210, %v545
  %v2243 = vadd.s32 %v2211, %v545
  %v2244 = vadd.s32 %v2212, %v545
  %v2245 = vadd.s32 %v2213, %v545
  %v2246 = vadd.s32 %v2214, %v545
  %v2247 = vadd.s32 %v2215, %v545
  %v2248 = vadd.s32 %v2216, %v545
  %v2249 = vadd.s32 %v2217, %v545
  %v2250 = vadd.s32 %v2218, %v545
  %v2251 = vadd.s32 %v2219, %v545
  %v2252 = vadd.s32 %v2220, %v545
  %v2253 = vadd.s32 %v2221, %v545
  %v2254 = vadd.s32 %v2222, %v545
  %v2255 = vadd.s32 %v2223, %v545
  %v2256 = vadd.s32 %v2224, %v545
  %v2257 = vadd.s32 %v2225, %v545
  %v2258 = vadd.s32 %v2226, %v545
  %v2259 = vadd.s32 %v2227, %v545
  %v2260 = vadd.s32 %v2228, %v545
  %v2261 = vadd.s32 %v2229, %v545
  %v2262 = vadd.s32 %v2230, %v545
  %v2263 = vadd.s32 %v2231, %v545
  %v2264 = vadd.s32 %v2232, %v545
  %v2265 = vadd.s32 %v2233, %v545
  %v2266 = vadd.s32 %v2234, %v545
  %v2267 = vadd.s32 %v2235, %v545
  %v2268 = vadd.s32 %v2236, %v545
  %v2269 = vadd.s32 %v2237, %v545
  %v2270 = vadd.s32 %v2238, %v545
  %v2271 = vadd.s32 %v2239, %v545
  %v2272 = vshrl.u32 %v2240, 16
  %v2273 = vshrl.u32 %v2241, 16
  %v2274 = vshrl.u32 %v2242, 16
  %v2275 = vshrl.u32 %v2243, 16
  %v2276 = vshrl.u32 %v2244, 16
  %v2277 = vshrl.u32 %v2245, 16
  %v2278 = vshrl.u32 %v2246, 16
  %v2279 = vshrl.u32 %v2247, 16
  %v2280 = vshrl.u32 %v2248, 16
  %v2281 = vshrl.u32 %v2249, 16
  %v2282 = vshrl.u32 %v2250, 16
  %v2283 = vshrl.u32 %v2251, 16
  %v2284 = vshrl.u32 %v2252, 16
  %v2285 = vshrl.u32 %v2253, 16
  %v2286 = vshrl.u32 %v2254, 16
  %v2287 = vshrl.u32 %v2255, 16
  %v2288 = vshrl.u32 %v2256, 16
  %v2289 = vshrl.u32 %v2257, 16
  %v2290 = vshrl.u32 %v2258, 16
  %v2291 = vshrl.u32 %v2259, 16
  %v2292 = vshrl.u32 %v2260, 16
  %v2293 = vshrl.u32 %v2261, 16
  %v2294 = vshrl.u32 %v2262, 16
  %v2295 = vshrl.u32 %v2263, 16
  %v2296 = vshrl.u32 %v2264, 16
  %v2297 = vshrl.u32 %v2265, 16
  %v2298 = vshrl.u32 %v2266, 16
  %v2299 = vshrl.u32 %v2267, 16
  %v2300 = vshrl.u32 %v2268, 16
  %v2301 = vshrl.u32 %v2269, 16
  %v2302 = vshrl.u32 %v2270, 16
  %v2303 = vshrl.u32 %v2271, 16
  %v2304 = vxor.u32 %v2240, %v2272
  %v2305 = vxor.u32 %v2241, %v2273
  %v2306 = vxor.u32 %v2242, %v2274
  %v2307 = vxor.u32 %v2243, %v2275
  %v2308 = vxor.u32 %v2244, %v2276
  %v2309 = vxor.u32 %v2245, %v2277
  %v2310 = vxor.u32 %v2246, %v2278
  %v2311 = vxor.u32 %v2247, %v2279
  %v2312 = vxor.u32 %v2248, %v2280
  %v2313 = vxor.u32 %v2249, %v2281
  %v2314 = vxor.u32 %v2250, %v2282
  %v2315 = vxor.u32 %v2251, %v2283
  %v2316 = vxor.u32 %v2252, %v2284
  %v2317 = vxor.u32 %v2253, %v2285
  %v2318 = vxor.u32 %v2254, %v2286
  %v2319 = vxor.u32 %v2255, %v2287
  %v2320 = vxor.u32 %v2256, %v2288
  %v2321 = vxor.u32 %v2257, %v2289
  %v2322 = vxor.u32 %v2258, %v2290
  %v2323 = vxor.u32 %v2259, %v2291
  %v2324 = vxor.u32 %v2260, %v2292
  %v2325 = vxor.u32 %v2261, %v2293
  %v2326 = vxor.u32 %v2262, %v2294
  %v2327 = vxor.u32 %v2263, %v2295
  %v2328 = vxor.u32 %v2264, %v2296
  %v2329 = vxor.u32 %v2265, %v2297
  %v2330 = vxor.u32 %v2266, %v2298
  %v2331 = vxor.u32 %v2267, %v2299
  %v2332 = vxor.u32 %v2268, %v2300
  %v2333 = vxor.u32 %v2269, %v2301
  %v2334 = vxor.u32 %v2270, %v2302
  %v2335 = vxor.u32 %v2271, %v2303
  %v2336 = vmul.u32 %v2304, 2146121005
  %v2337 = vmul.u32 %v2305, 2146121005
  %v2338 = vmul.u32 %v2306, 2146121005
  %v2339 = vmul.u32 %v2307, 2146121005
  %v2340 = vmul.u32 %v2308, 2146121005
  %v2341 = vmul.u32 %v2309, 2146121005
  %v2342 = vmul.u32 %v2310, 2146121005
  %v2343 = vmul.u32 %v2311, 2146121005
  %v2344 = vmul.u32 %v2312, 2146121005
  %v2345 = vmul.u32 %v2313, 2146121005
  %v2346 = vmul.u32 %v2314, 2146121005
  %v2347 = vmul.u32 %v2315, 2146121005
  %v2348 = vmul.u32 %v2316, 2146121005
  %v2349 = vmul.u32 %v2317, 2146121005
  %v2350 = vmul.u32 %v2318, 2146121005
  %v2351 = vmul.u32 %v2319, 2146121005
  %v2352 = vmul.u32 %v2320, 2146121005
  %v2353 = vmul.u32 %v2321, 2146121005
  %v2354 = vmul.u32 %v2322, 2146121005
  %v2355 = vmul.u32 %v2323, 2146121005
  %v2356 = vmul.u32 %v2324, 2146121005
  %v2357 = vmul.u32 %v2325, 2146121005
  %v2358 = vmul.u32 %v2326, 2146121005
  %v2359 = vmul.u32 %v2327, 2146121005
  %v2360 = vmul.u32 %v2328, 2146121005
  %v2361 = vmul.u32 %v2329, 2146121005
  %v2362 = vmul.u32 %v2330, 2146121005
  %v2363 = vmul.u32 %v2331, 2146121005
  %v2364 = vmul.u32 %v2332, 2146121005
  %v2365 = vmul.u32 %v2333, 2146121005
  %v2366 = vmul.u32 %v2334, 2146121005
  %v2367 = vmul.u32 %v2335, 2146121005
  %v2368 = vshrl.u32 %v2336, 15
  %v2369 = vshrl.u32 %v2337, 15
  %v2370 = vshrl.u32 %v2338, 15
  %v2371 = vshrl.u32 %v2339, 15
  %v2372 = vshrl.u32 %v2340, 15
  %v2373 = vshrl.u32 %v2341, 15
  %v2374 = vshrl.u32 %v2342, 15
  %v2375 = vshrl.u32 %v2343, 15
  %v2376 = vshrl.u32 %v2344, 15
  %v2377 = vshrl.u32 %v2345, 15
  %v2378 = vshrl.u32 %v2346, 15
  %v2379 = vshrl.u32 %v2347, 15
  %v2380 = vshrl.u32 %v2348, 15
  %v2381 = vshrl.u32 %v2349, 15
  %v2382 = vshrl.u32 %v2350, 15
  %v2383 = vshrl.u32 %v2351, 15
  %v2384 = vshrl.u32 %v2352, 15
  %v2385 = vshrl.u32 %v2353, 15
  %v2386 = vshrl.u32 %v2354, 15
  %v2387 = vshrl.u32 %v2355, 15
  %v2388 = vshrl.u32 %v2356, 15
  %v2389 = vshrl.u32 %v2357, 15
  %v2390 = vshrl.u32 %v2358, 15
  %v2391 = vshrl.u32 %v2359, 15
  %v2392 = vshrl.u32 %v2360, 15
  %v2393 = vshrl.u32 %v2361, 15
  %v2394 = vshrl.u32 %v2362, 15
  %v2395 = vshrl.u32 %v2363, 15
  %v2396 = vshrl.u32 %v2364, 15
  %v2397 = vshrl.u32 %v2365, 15
  %v2398 = vshrl.u32 %v2366, 15
  %v2399 = vshrl.u32 %v2367, 15
  %v2400 = vxor.u32 %v2336, %v2368
  %v2401 = vxor.u32 %v2337, %v2369
  %v2402 = vxor.u32 %v2338, %v2370
  %v2403 = vxor.u32 %v2339, %v2371
  %v2404 = vxor.u32 %v2340, %v2372
  %v2405 = vxor.u32 %v2341, %v2373
  %v2406 = vxor.u32 %v2342, %v2374
  %v2407 = vxor.u32 %v2343, %v2375
  %v2408 = vxor.u32 %v2344, %v2376
  %v2409 = vxor.u32 %v2345, %v2377
  %v2410 = vxor.u32 %v2346, %v2378
  %v2411 = vxor.u32 %v2347, %v2379
  %v2412 = vxor.u32 %v2348, %v2380
  %v2413 = vxor.u32 %v2349, %v2381
  %v2414 = vxor.u32 %v2350, %v2382
  %v2415 = vxor.u32 %v2351, %v2383
  %v2416 = vxor.u32 %v2352, %v2384
  %v2417 = vxor.u32 %v2353, %v2385
  %v2418 = vxor.u32 %v2354, %v2386
  %v2419 = vxor.u32 %v2355, %v2387
  %v2420 = vxor.u32 %v2356, %v2388
  %v2421 = vxor.u32 %v2357, %v2389
  %v2422 = vxor.u32 %v2358, %v2390
  %v2423 = vxor.u32 %v2359, %v2391
  %v2424 = vxor.u32 %v2360, %v2392
  %v2425 = vxor.u32 %v2361, %v2393
  %v2426 = vxor.u32 %v2362, %v2394
  %v2427 = vxor.u32 %v2363, %v2395
  %v2428 = vxor.u32 %v2364, %v2396
  %v2429 = vxor.u32 %v2365, %v2397
  %v2430 = vxor.u32 %v2366, %v2398
  %v2431 = vxor.u32 %v2367, %v2399
  %v2432 = vmul.u32 %v2400, 2221713035
  %v2433 = vmul.u32 %v2401, 2221713035
  %v2434 = vmul.u32 %v2402, 2221713035
  %v2435 = vmul.u32 %v2403, 2221713035
  %v2436 = vmul.u32 %v2404, 2221713035
  %v2437 = vmul.u32 %v2405, 2221713035
  %v2438 = vmul.u32 %v2406, 2221713035
  %v2439 = vmul.u32 %v2407, 2221713035
  %v2440 = vmul.u32 %v2408, 2221713035
  %v2441 = vmul.u32 %v2409, 2221713035
  %v2442 = vmul.u32 %v2410, 2221713035
  %v2443 = vmul.u32 %v2411, 2221713035
  %v2444 = vmul.u32 %v2412, 2221713035
  %v2445 = vmul.u32 %v2413, 2221713035
  %v2446 = vmul.u32 %v2414, 2221713035
  %v2447 = vmul.u32 %v2415, 2221713035
  %v2448 = vmul.u32 %v2416, 2221713035
  %v2449 = vmul.u32 %v2417, 2221713035
  %v2450 = vmul.u32 %v2418, 2221713035
  %v2451 = vmul.u32 %v2419, 2221713035
  %v2452 = vmul.u32 %v2420, 2221713035
  %v2453 = vmul.u32 %v2421, 2221713035
  %v2454 = vmul.u32 %v2422, 2221713035
  %v2455 = vmul.u32 %v2423, 2221713035
  %v2456 = vmul.u32 %v2424, 2221713035
  %v2457 = vmul.u32 %v2425, 2221713035
  %v2458 = vmul.u32 %v2426, 2221713035
  %v2459 = vmul.u32 %v2427, 2221713035
  %v2460 = vmul.u32 %v2428, 2221713035
  %v2461 = vmul.u32 %v2429, 2221713035
  %v2462 = vmul.u32 %v2430, 2221713035
  %v2463 = vmul.u32 %v2431, 2221713035
  %v2464 = vshrl.u32 %v2432, 16
  %v2465 = vshrl.u32 %v2433, 16
  %v2466 = vshrl.u32 %v2434, 16
  %v2467 = vshrl.u32 %v2435, 16
  %v2468 = vshrl.u32 %v2436, 16
  %v2469 = vshrl.u32 %v2437, 16
  %v2470 = vshrl.u32 %v2438, 16
  %v2471 = vshrl.u32 %v2439, 16
  %v2472 = vshrl.u32 %v2440, 16
  %v2473 = vshrl.u32 %v2441, 16
  %v2474 = vshrl.u32 %v2442, 16
  %v2475 = vshrl.u32 %v2443, 16
  %v2476 = vshrl.u32 %v2444, 16
  %v2477 = vshrl.u32 %v2445, 16
  %v2478 = vshrl.u32 %v2446, 16
  %v2479 = vshrl.u32 %v2447, 16
  %v2480 = vshrl.u32 %v2448, 16
  %v2481 = vshrl.u32 %v2449, 16
  %v2482 = vshrl.u32 %v2450, 16
  %v2483 = vshrl.u32 %v2451, 16
  %v2484 = vshrl.u32 %v2452, 16
  %v2485 = vshrl.u32 %v2453, 16
  %v2486 = vshrl.u32 %v2454, 16
  %v2487 = vshrl.u32 %v2455, 16
  %v2488 = vshrl.u32 %v2456, 16
  %v2489 = vshrl.u32 %v2457, 16
  %v2490 = vshrl.u32 %v2458, 16
  %v2491 = vshrl.u32 %v2459, 16
  %v2492 = vshrl.u32 %v2460, 16
  %v2493 = vshrl.u32 %v2461, 16
  %v2494 = vshrl.u32 %v2462, 16
  %v2495 = vshrl.u32 %v2463, 16
  %v2496 = vxor.u32 %v2432, %v2464
  %v2497 = vxor.u32 %v2433, %v2465
  %v2498 = vxor.u32 %v2434, %v2466
  %v2499 = vxor.u32 %v2435, %v2467
  %v2500 = vxor.u32 %v2436, %v2468
  %v2501 = vxor.u32 %v2437, %v2469
  %v2502 = vxor.u32 %v2438, %v2470
  %v2503 = vxor.u32 %v2439, %v2471
  %v2504 = vxor.u32 %v2440, %v2472
  %v2505 = vxor.u32 %v2441, %v2473
  %v2506 = vxor.u32 %v2442, %v2474
  %v2507 = vxor.u32 %v2443, %v2475
  %v2508 = vxor.u32 %v2444, %v2476
  %v2509 = vxor.u32 %v2445, %v2477
  %v2510 = vxor.u32 %v2446, %v2478
  %v2511 = vxor.u32 %v2447, %v2479
  %v2512 = vxor.u32 %v2448, %v2480
  %v2513 = vxor.u32 %v2449, %v2481
  %v2514 = vxor.u32 %v2450, %v2482
  %v2515 = vxor.u32 %v2451, %v2483
  %v2516 = vxor.u32 %v2452, %v2484
  %v2517 = vxor.u32 %v2453, %v2485
  %v2518 = vxor.u32 %v2454, %v2486
  %v2519 = vxor.u32 %v2455, %v2487
  %v2520 = vxor.u32 %v2456, %v2488
  %v2521 = vxor.u32 %v2457, %v2489
  %v2522 = vxor.u32 %v2458, %v2490
  %v2523 = vxor.u32 %v2459, %v2491
  %v2524 = vxor.u32 %v2460, %v2492
  %v2525 = vxor.u32 %v2461, %v2493
  %v2526 = vxor.u32 %v2462, %v2494
  %v2527 = vxor.u32 %v2463, %v2495
  %v2528 = vand.u32 %v2496, 65535
  %v2529 = vand.u32 %v2497, 65535
  %v2530 = vand.u32 %v2498, 65535
  %v2531 = vand.u32 %v2499, 65535
  %v2532 = vand.u32 %v2500, 65535
  %v2533 = vand.u32 %v2501, 65535
  %v2534 = vand.u32 %v2502, 65535
  %v2535 = vand.u32 %v2503, 65535
  %v2536 = vand.u32 %v2504, 65535
  %v2537 = vand.u32 %v2505, 65535
  %v2538 = vand.u32 %v2506, 65535
  %v2539 = vand.u32 %v2507, 65535
  %v2540 = vand.u32 %v2508, 65535
  %v2541 = vand.u32 %v2509, 65535
  %v2542 = vand.u32 %v2510, 65535
  %v2543 = vand.u32 %v2511, 65535
  %v2544 = vand.u32 %v2512, 65535
  %v2545 = vand.u32 %v2513, 65535
  %v2546 = vand.u32 %v2514, 65535
  %v2547 = vand.u32 %v2515, 65535
  %v2548 = vand.u32 %v2516, 65535
  %v2549 = vand.u32 %v2517, 65535
  %v2550 = vand.u32 %v2518, 65535
  %v2551 = vand.u32 %v2519, 65535
  %v2552 = vand.u32 %v2520, 65535
  %v2553 = vand.u32 %v2521, 65535
  %v2554 = vand.u32 %v2522, 65535
  %v2555 = vand.u32 %v2523, 65535
  %v2556 = vand.u32 %v2524, 65535
  %v2557 = vand.u32 %v2525, 65535
  %v2558 = vand.u32 %v2526, 65535
  %v2559 = vand.u32 %v2527, 65535
  %vm2560 = vcmp.ge.s32.totalorder %v2528, 6554
  %vm2561 = vcmp.ge.s32.totalorder %v2529, 6554
  %vm2562 = vcmp.ge.s32.totalorder %v2530, 6554
  %vm2563 = vcmp.ge.s32.totalorder %v2531, 6554
  %vm2564 = vcmp.ge.s32.totalorder %v2532, 6554
  %vm2565 = vcmp.ge.s32.totalorder %v2533, 6554
  %vm2566 = vcmp.ge.s32.totalorder %v2534, 6554
  %vm2567 = vcmp.ge.s32.totalorder %v2535, 6554
  %vm2568 = vcmp.ge.s32.totalorder %v2536, 6554
  %vm2569 = vcmp.ge.s32.totalorder %v2537, 6554
  %vm2570 = vcmp.ge.s32.totalorder %v2538, 6554
  %vm2571 = vcmp.ge.s32.totalorder %v2539, 6554
  %vm2572 = vcmp.ge.s32.totalorder %v2540, 6554
  %vm2573 = vcmp.ge.s32.totalorder %v2541, 6554
  %vm2574 = vcmp.ge.s32.totalorder %v2542, 6554
  %vm2575 = vcmp.ge.s32.totalorder %v2543, 6554
  %vm2576 = vcmp.ge.s32.totalorder %v2544, 6554
  %vm2577 = vcmp.ge.s32.totalorder %v2545, 6554
  %vm2578 = vcmp.ge.s32.totalorder %v2546, 6554
  %vm2579 = vcmp.ge.s32.totalorder %v2547, 6554
  %vm2580 = vcmp.ge.s32.totalorder %v2548, 6554
  %vm2581 = vcmp.ge.s32.totalorder %v2549, 6554
  %vm2582 = vcmp.ge.s32.totalorder %v2550, 6554
  %vm2583 = vcmp.ge.s32.totalorder %v2551, 6554
  %vm2584 = vcmp.ge.s32.totalorder %v2552, 6554
  %vm2585 = vcmp.ge.s32.totalorder %v2553, 6554
  %vm2586 = vcmp.ge.s32.totalorder %v2554, 6554
  %vm2587 = vcmp.ge.s32.totalorder %v2555, 6554
  %vm2588 = vcmp.ge.s32.totalorder %v2556, 6554
  %vm2589 = vcmp.ge.s32.totalorder %v2557, 6554
  %vm2590 = vcmp.ge.s32.totalorder %v2558, 6554
  %vm2591 = vcmp.ge.s32.totalorder %v2559, 6554
  %vm2592 = vcmp.gt.f32.partialorder %v2082, 0.0
  %vm2593 = vcmp.gt.f32.partialorder %v2084, 0.0
  %vm2594 = vcmp.gt.f32.partialorder %v2086, 0.0
  %vm2595 = vcmp.gt.f32.partialorder %v2088, 0.0
  %vm2596 = vcmp.gt.f32.partialorder %v2092, 0.0
  %vm2597 = vcmp.gt.f32.partialorder %v2094, 0.0
  %vm2598 = vcmp.gt.f32.partialorder %v2096, 0.0
  %vm2599 = vcmp.gt.f32.partialorder %v2098, 0.0
  %vm2600 = vcmp.gt.f32.partialorder %v2102, 0.0
  %vm2601 = vcmp.gt.f32.partialorder %v2104, 0.0
  %vm2602 = vcmp.gt.f32.partialorder %v2106, 0.0
  %vm2603 = vcmp.gt.f32.partialorder %v2108, 0.0
  %vm2604 = vcmp.gt.f32.partialorder %v2112, 0.0
  %vm2605 = vcmp.gt.f32.partialorder %v2114, 0.0
  %vm2606 = vcmp.gt.f32.partialorder %v2116, 0.0
  %vm2607 = vcmp.gt.f32.partialorder %v2118, 0.0
  %vm2608 = vcmp.gt.f32.partialorder %v2122, 0.0
  %vm2609 = vcmp.gt.f32.partialorder %v2124, 0.0
  %vm2610 = vcmp.gt.f32.partialorder %v2126, 0.0
  %vm2611 = vcmp.gt.f32.partialorder %v2128, 0.0
  %vm2612 = vcmp.gt.f32.partialorder %v2132, 0.0
  %vm2613 = vcmp.gt.f32.partialorder %v2134, 0.0
  %vm2614 = vcmp.gt.f32.partialorder %v2136, 0.0
  %vm2615 = vcmp.gt.f32.partialorder %v2138, 0.0
  %vm2616 = vcmp.gt.f32.partialorder %v2142, 0.0
  %vm2617 = vcmp.gt.f32.partialorder %v2144, 0.0
  %vm2618 = vcmp.gt.f32.partialorder %v2146, 0.0
  %vm2619 = vcmp.gt.f32.partialorder %v2148, 0.0
  %vm2620 = vcmp.gt.f32.partialorder %v2152, 0.0
  %vm2621 = vcmp.gt.f32.partialorder %v2154, 0.0
  %vm2622 = vcmp.gt.f32.partialorder %v2156, 0.0
  %vm2623 = vcmp.gt.f32.partialorder %v2158, 0.0
  %vm2624 = vmand %vm2560, %vm2592
  %vm2625 = vmand %vm2561, %vm2593
  %vm2626 = vmand %vm2562, %vm2594
  %vm2627 = vmand %vm2563, %vm2595
  %vm2628 = vmand %vm2564, %vm2596
  %vm2629 = vmand %vm2565, %vm2597
  %vm2630 = vmand %vm2566, %vm2598
  %vm2631 = vmand %vm2567, %vm2599
  %vm2632 = vmand %vm2568, %vm2600
  %vm2633 = vmand %vm2569, %vm2601
  %vm2634 = vmand %vm2570, %vm2602
  %vm2635 = vmand %vm2571, %vm2603
  %vm2636 = vmand %vm2572, %vm2604
  %vm2637 = vmand %vm2573, %vm2605
  %vm2638 = vmand %vm2574, %vm2606
  %vm2639 = vmand %vm2575, %vm2607
  %vm2640 = vmand %vm2576, %vm2608
  %vm2641 = vmand %vm2577, %vm2609
  %vm2642 = vmand %vm2578, %vm2610
  %vm2643 = vmand %vm2579, %vm2611
  %vm2644 = vmand %vm2580, %vm2612
  %vm2645 = vmand %vm2581, %vm2613
  %vm2646 = vmand %vm2582, %vm2614
  %vm2647 = vmand %vm2583, %vm2615
  %vm2648 = vmand %vm2584, %vm2616
  %vm2649 = vmand %vm2585, %vm2617
  %vm2650 = vmand %vm2586, %vm2618
  %vm2651 = vmand %vm2587, %vm2619
  %vm2652 = vmand %vm2588, %vm2620
  %vm2653 = vmand %vm2589, %vm2621
  %vm2654 = vmand %vm2590, %vm2622
  %vm2655 = vmand %vm2591, %vm2623
  %v2656 = vmul.f32 %v2082, 1.1111112
  %v2657 = vmul.f32 %v2084, 1.1111112
  %v2658 = vmul.f32 %v2086, 1.1111112
  %v2659 = vmul.f32 %v2088, 1.1111112
  %v2660 = vmul.f32 %v2092, 1.1111112
  %v2661 = vmul.f32 %v2094, 1.1111112
  %v2662 = vmul.f32 %v2096, 1.1111112
  %v2663 = vmul.f32 %v2098, 1.1111112
  %v2664 = vmul.f32 %v2102, 1.1111112
  %v2665 = vmul.f32 %v2104, 1.1111112
  %v2666 = vmul.f32 %v2106, 1.1111112
  %v2667 = vmul.f32 %v2108, 1.1111112
  %v2668 = vmul.f32 %v2112, 1.1111112
  %v2669 = vmul.f32 %v2114, 1.1111112
  %v2670 = vmul.f32 %v2116, 1.1111112
  %v2671 = vmul.f32 %v2118, 1.1111112
  %v2672 = vmul.f32 %v2122, 1.1111112
  %v2673 = vmul.f32 %v2124, 1.1111112
  %v2674 = vmul.f32 %v2126, 1.1111112
  %v2675 = vmul.f32 %v2128, 1.1111112
  %v2676 = vmul.f32 %v2132, 1.1111112
  %v2677 = vmul.f32 %v2134, 1.1111112
  %v2678 = vmul.f32 %v2136, 1.1111112
  %v2679 = vmul.f32 %v2138, 1.1111112
  %v2680 = vmul.f32 %v2142, 1.1111112
  %v2681 = vmul.f32 %v2144, 1.1111112
  %v2682 = vmul.f32 %v2146, 1.1111112
  %v2683 = vmul.f32 %v2148, 1.1111112
  %v2684 = vmul.f32 %v2152, 1.1111112
  %v2685 = vmul.f32 %v2154, 1.1111112
  %v2686 = vmul.f32 %v2156, 1.1111112
  %v2687 = vmul.f32 %v2158, 1.1111112
  %v2688 = vsel %vm2624, %v2656, 0.0
  %v2689 = vsel %vm2625, %v2657, 0.0
  %v2690 = vsel %vm2626, %v2658, 0.0
  %v2691 = vsel %vm2627, %v2659, 0.0
  %v2692 = vsel %vm2628, %v2660, 0.0
  %v2693 = vsel %vm2629, %v2661, 0.0
  %v2694 = vsel %vm2630, %v2662, 0.0
  %v2695 = vsel %vm2631, %v2663, 0.0
  %v2696 = vsel %vm2632, %v2664, 0.0
  %v2697 = vsel %vm2633, %v2665, 0.0
  %v2698 = vsel %vm2634, %v2666, 0.0
  %v2699 = vsel %vm2635, %v2667, 0.0
  %v2700 = vsel %vm2636, %v2668, 0.0
  %v2701 = vsel %vm2637, %v2669, 0.0
  %v2702 = vsel %vm2638, %v2670, 0.0
  %v2703 = vsel %vm2639, %v2671, 0.0
  %v2704 = vsel %vm2640, %v2672, 0.0
  %v2705 = vsel %vm2641, %v2673, 0.0
  %v2706 = vsel %vm2642, %v2674, 0.0
  %v2707 = vsel %vm2643, %v2675, 0.0
  %v2708 = vsel %vm2644, %v2676, 0.0
  %v2709 = vsel %vm2645, %v2677, 0.0
  %v2710 = vsel %vm2646, %v2678, 0.0
  %v2711 = vsel %vm2647, %v2679, 0.0
  %v2712 = vsel %vm2648, %v2680, 0.0
  %v2713 = vsel %vm2649, %v2681, 0.0
  %v2714 = vsel %vm2650, %v2682, 0.0
  %v2715 = vsel %vm2651, %v2683, 0.0
  %v2716 = vsel %vm2652, %v2684, 0.0
  %v2717 = vsel %vm2653, %v2685, 0.0
  %v2718 = vsel %vm2654, %v2686, 0.0
  %v2719 = vsel %vm2655, %v2687, 0.0
  %v2720 = vpack.c.bf16 %v2690, %v2688
  %v2721 = vpack.c.bf16 %v2691, %v2689
  %v2722 = vpack.c.bf16 %v2694, %v2692
  %v2723 = vpack.c.bf16 %v2695, %v2693
  %v2724 = vpack.c.bf16 %v2698, %v2696
  %v2725 = vpack.c.bf16 %v2699, %v2697
  %v2726 = vpack.c.bf16 %v2702, %v2700
  %v2727 = vpack.c.bf16 %v2703, %v2701
  %v2728 = vpack.c.bf16 %v2706, %v2704
  %v2729 = vpack.c.bf16 %v2707, %v2705
  %v2730 = vpack.c.bf16 %v2710, %v2708
  %v2731 = vpack.c.bf16 %v2711, %v2709
  %v2732 = vpack.c.bf16 %v2714, %v2712
  %v2733 = vpack.c.bf16 %v2715, %v2713
  %v2734 = vpack.c.bf16 %v2718, %v2716
  %v2735 = vpack.c.bf16 %v2719, %v2717
  %v2736 = vld [vmem:[%s6] sm:$0xff]
  %v2737 = vld [vmem:[%s6 + $0x8] sm:$0xff]
  %v2738 = vld [vmem:[%s6 + $0x10] sm:$0xff]
  %v2739 = vld [vmem:[%s6 + $0x18] sm:$0xff]
  %v2740 = vld [vmem:[%s6 + $0x20] sm:$0xff]
  %v2741 = vld [vmem:[%s6 + $0x28] sm:$0xff]
  %v2742 = vld [vmem:[%s6 + $0x30] sm:$0xff]
  %v2743 = vld [vmem:[%s6 + $0x38] sm:$0xff]
  %v2744 = vld [vmem:[%s6 + $0x40] sm:$0xff]
  %v2745 = vld [vmem:[%s6 + $0x48] sm:$0xff]
  %v2746 = vld [vmem:[%s6 + $0x50] sm:$0xff]
  %v2747 = vld [vmem:[%s6 + $0x58] sm:$0xff]
  %v2748 = vld [vmem:[%s6 + $0x60] sm:$0xff]
  %v2749 = vld [vmem:[%s6 + $0x68] sm:$0xff]
  %v2750 = vld [vmem:[%s6 + $0x70] sm:$0xff]
  %v2751 = vld [vmem:[%s6 + $0x78] sm:$0xff]
  %v2752 = vld [vmem:[%s6 + $0x80] sm:$0xff]
  %v2753 = vld [vmem:[%s6 + $0x88] sm:$0xff]
  %v2754 = vld [vmem:[%s6 + $0x90] sm:$0xff]
  %v2755 = vld [vmem:[%s6 + $0x98] sm:$0xff]
  %v2756 = vld [vmem:[%s6 + $0xa0] sm:$0xff]
  %v2757 = vld [vmem:[%s6 + $0xa8] sm:$0xff]
  %v2758 = vld [vmem:[%s6 + $0xb0] sm:$0xff]
  %v2759 = vld [vmem:[%s6 + $0xb8] sm:$0xff]
  %v2760 = vld [vmem:[%s6 + $0xc0] sm:$0xff]
  %v2761 = vld [vmem:[%s6 + $0xc8] sm:$0xff]
  %v2762 = vld [vmem:[%s6 + $0xd0] sm:$0xff]
  %v2763 = vld [vmem:[%s6 + $0xd8] sm:$0xff]
  %v2764 = vld [vmem:[%s6 + $0xe0] sm:$0xff]
  %v2765 = vld [vmem:[%s6 + $0xe8] sm:$0xff]
  %v2766 = vld [vmem:[%s6 + $0xf0] sm:$0xff]
  %v2767 = vld [vmem:[%s6 + $0xf8] sm:$0xff]
  %v2768 = vld [vmem:[%s7] sm:$0x3]
  %v2770 = vlaneseq
  %v2771 = vshrl.u32 %v2770, 7
  %v2772 = vsub.s32 0, %v2771
  %v2773 = vrot.slane %v2768, %v2772
  %v2774 = vlaneseq
  %v2775 = vshrl.u32 %v2774, 7
  %v2776 = vsub.s32 1, %v2775
  %v2777 = vrot.slane %v2768, %v2776
  %v2812 = vunpack.c.l.b16 %v2736
  %v2813 = vunpack.c.h.b16 %v2736
  %v2814 = vunpack.c.l.b16 %v2737
  %v2815 = vunpack.c.h.b16 %v2737
  %v2816 = vunpack.c.l.b16 %v2738
  %v2817 = vunpack.c.h.b16 %v2738
  %v2818 = vunpack.c.l.b16 %v2739
  %v2819 = vunpack.c.h.b16 %v2739
  %v2820 = vunpack.c.l.b16 %v2740
  %v2821 = vunpack.c.h.b16 %v2740
  %v2822 = vunpack.c.l.b16 %v2741
  %v2823 = vunpack.c.h.b16 %v2741
  %v2824 = vunpack.c.l.b16 %v2742
  %v2825 = vunpack.c.h.b16 %v2742
  %v2826 = vunpack.c.l.b16 %v2743
  %v2827 = vunpack.c.h.b16 %v2743
  %v2828 = vunpack.c.l.b16 %v2744
  %v2829 = vunpack.c.h.b16 %v2744
  %v2830 = vunpack.c.l.b16 %v2745
  %v2831 = vunpack.c.h.b16 %v2745
  %v2832 = vunpack.c.l.b16 %v2746
  %v2833 = vunpack.c.h.b16 %v2746
  %v2834 = vunpack.c.l.b16 %v2747
  %v2835 = vunpack.c.h.b16 %v2747
  %v2836 = vunpack.c.l.b16 %v2748
  %v2837 = vunpack.c.h.b16 %v2748
  %v2838 = vunpack.c.l.b16 %v2749
  %v2839 = vunpack.c.h.b16 %v2749
  %v2840 = vunpack.c.l.b16 %v2750
  %v2841 = vunpack.c.h.b16 %v2750
  %v2842 = vunpack.c.l.b16 %v2751
  %v2843 = vunpack.c.h.b16 %v2751
  %v2844 = vunpack.c.l.b16 %v2752
  %v2845 = vunpack.c.h.b16 %v2752
  %v2846 = vunpack.c.l.b16 %v2753
  %v2847 = vunpack.c.h.b16 %v2753
  %v2848 = vunpack.c.l.b16 %v2754
  %v2849 = vunpack.c.h.b16 %v2754
  %v2850 = vunpack.c.l.b16 %v2755
  %v2851 = vunpack.c.h.b16 %v2755
  %v2852 = vunpack.c.l.b16 %v2756
  %v2853 = vunpack.c.h.b16 %v2756
  %v2854 = vunpack.c.l.b16 %v2757
  %v2855 = vunpack.c.h.b16 %v2757
  %v2856 = vunpack.c.l.b16 %v2758
  %v2857 = vunpack.c.h.b16 %v2758
  %v2858 = vunpack.c.l.b16 %v2759
  %v2859 = vunpack.c.h.b16 %v2759
  %v2860 = vunpack.c.l.b16 %v2760
  %v2861 = vunpack.c.h.b16 %v2760
  %v2862 = vunpack.c.l.b16 %v2761
  %v2863 = vunpack.c.h.b16 %v2761
  %v2864 = vunpack.c.l.b16 %v2762
  %v2865 = vunpack.c.h.b16 %v2762
  %v2866 = vunpack.c.l.b16 %v2763
  %v2867 = vunpack.c.h.b16 %v2763
  %v2868 = vunpack.c.l.b16 %v2764
  %v2869 = vunpack.c.h.b16 %v2764
  %v2870 = vunpack.c.l.b16 %v2765
  %v2871 = vunpack.c.h.b16 %v2765
  %v2872 = vunpack.c.l.b16 %v2766
  %v2873 = vunpack.c.h.b16 %v2766
  %v2874 = vunpack.c.l.b16 %v2767
  %v2875 = vunpack.c.h.b16 %v2767
  %v2876 = vpack.c.b16 %v2814, %v2812
  %v2877 = vpack.c.b16 %v2815, %v2813
  %v2878 = vpack.c.b16 %v2818, %v2816
  %v2879 = vpack.c.b16 %v2819, %v2817
  %v2880 = vpack.c.b16 %v2822, %v2820
  %v2881 = vpack.c.b16 %v2823, %v2821
  %v2882 = vpack.c.b16 %v2826, %v2824
  %v2883 = vpack.c.b16 %v2827, %v2825
  %v2884 = vpack.c.b16 %v2830, %v2828
  %v2885 = vpack.c.b16 %v2831, %v2829
  %v2886 = vpack.c.b16 %v2834, %v2832
  %v2887 = vpack.c.b16 %v2835, %v2833
  %v2888 = vpack.c.b16 %v2838, %v2836
  %v2889 = vpack.c.b16 %v2839, %v2837
  %v2890 = vpack.c.b16 %v2842, %v2840
  %v2891 = vpack.c.b16 %v2843, %v2841
  %v2892 = vpack.c.b16 %v2846, %v2844
  %v2893 = vpack.c.b16 %v2847, %v2845
  %v2894 = vpack.c.b16 %v2850, %v2848
  %v2895 = vpack.c.b16 %v2851, %v2849
  %v2896 = vpack.c.b16 %v2854, %v2852
  %v2897 = vpack.c.b16 %v2855, %v2853
  %v2898 = vpack.c.b16 %v2858, %v2856
  %v2899 = vpack.c.b16 %v2859, %v2857
  %v2900 = vpack.c.b16 %v2862, %v2860
  %v2901 = vpack.c.b16 %v2863, %v2861
  %v2902 = vpack.c.b16 %v2866, %v2864
  %v2903 = vpack.c.b16 %v2867, %v2865
  %v2904 = vpack.c.b16 %v2870, %v2868
  %v2905 = vpack.c.b16 %v2871, %v2869
  %v2906 = vpack.c.b16 %v2874, %v2872
  %v2907 = vpack.c.b16 %v2875, %v2873
  %2940 = vmatprep.subr.bf16.mxu0 %v2891
  %2941 = vmatpush1.bf16.msra.mxu0 %v2890
  %2942 = vmatprep.subr.bf16.mxu0 %v2889
  %2943 = vmatpush1.bf16.msra.mxu0 %v2888
  %2944 = vmatprep.subr.bf16.mxu0 %v2887
  %2945 = vmatpush1.bf16.msra.mxu0 %v2886
  %2946 = vmatprep.subr.bf16.mxu0 %v2885
  %2947 = vmatpush1.bf16.msra.mxu0 %v2884
  %2948 = vmatprep.subr.bf16.mxu0 %v2883
  %2949 = vmatpush1.bf16.msra.mxu0 %v2882
  %2950 = vmatprep.subr.bf16.mxu0 %v2881
  %2951 = vmatpush1.bf16.msra.mxu0 %v2880
  %2952 = vmatprep.subr.bf16.mxu0 %v2879
  %2953 = vmatpush1.bf16.msra.mxu0 %v2878
  %2954 = vmatprep.subr.bf16.mxu0 %v2877
  %2955 = vmatpush1.bf16.msra.mxu0 %v2876
  %2956 = vmatprep.subr.bf16.mxu0 %v2907
  %2957 = vmatpush2.bf16.msra.mxu0 %v2906
  %2958 = vmatprep.subr.bf16.mxu0 %v2905
  %2959 = vmatpush2.bf16.msra.mxu0 %v2904
  %2960 = vmatprep.subr.bf16.mxu0 %v2903
  %2961 = vmatpush2.bf16.msra.mxu0 %v2902
  %2962 = vmatprep.subr.bf16.mxu0 %v2901
  %2963 = vmatpush2.bf16.msra.mxu0 %v2900
  %2964 = vmatprep.subr.bf16.mxu0 %v2899
  %2965 = vmatpush2.bf16.msra.mxu0 %v2898
  %2966 = vmatprep.subr.bf16.mxu0 %v2897
  %2967 = vmatpush2.bf16.msra.mxu0 %v2896
  %2968 = vmatprep.subr.bf16.mxu0 %v2895
  %2969 = vmatpush2.bf16.msra.mxu0 %v2894
  %2970 = vmatprep.subr.bf16.mxu0 %v2893
  %2971 = vmatpush2.bf16.msra.mxu0 %v2892
  %2972 = vmatprep.mubr.bf16.mxu0 %v2721
  %2973 = vmatmul.mubr.bf16.gmra.mxu0 %v2720
  %v2974 = vpop.f32.mrf.mxu0
  %v2975 = vadd.f32 %v2773, %v2974
  %v2976 = vpop.f32.mrf.mxu0
  %v2977 = vadd.f32 %v2777, %v2976
  %v2978 = vpop.f32.mrf.mxu0
  %v2979 = vadd.f32 %v2773, %v2978
  %v2980 = vpop.f32.mrf.mxu0
  %v2981 = vadd.f32 %v2777, %v2980
  %2982 = vmatprep.mubr.bf16.mxu0 %v2723
  %2983 = vmatmul.mubr.bf16.gmra.mxu0 %v2722
  %v2984 = vpop.f32.mrf.mxu0
  %v2985 = vadd.f32 %v2773, %v2984
  %v2986 = vpop.f32.mrf.mxu0
  %v2987 = vadd.f32 %v2777, %v2986
  %v2988 = vpop.f32.mrf.mxu0
  %v2989 = vadd.f32 %v2773, %v2988
  %v2990 = vpop.f32.mrf.mxu0
  %v2991 = vadd.f32 %v2777, %v2990
  %2992 = vmatprep.mubr.bf16.mxu0 %v2725
  %2993 = vmatmul.mubr.bf16.gmra.mxu0 %v2724
  %v2994 = vpop.f32.mrf.mxu0
  %v2995 = vadd.f32 %v2773, %v2994
  %v2996 = vpop.f32.mrf.mxu0
  %v2997 = vadd.f32 %v2777, %v2996
  %v2998 = vpop.f32.mrf.mxu0
  %v2999 = vadd.f32 %v2773, %v2998
  %v3000 = vpop.f32.mrf.mxu0
  %v3001 = vadd.f32 %v2777, %v3000
  %3002 = vmatprep.mubr.bf16.mxu0 %v2727
  %3003 = vmatmul.mubr.bf16.gmra.mxu0 %v2726
  %v3004 = vpop.f32.mrf.mxu0
  %v3005 = vadd.f32 %v2773, %v3004
  %v3006 = vpop.f32.mrf.mxu0
  %v3007 = vadd.f32 %v2777, %v3006
  %v3008 = vpop.f32.mrf.mxu0
  %v3009 = vadd.f32 %v2773, %v3008
  %v3010 = vpop.f32.mrf.mxu0
  %v3011 = vadd.f32 %v2777, %v3010
  %3012 = vmatprep.mubr.bf16.mxu0 %v2729
  %3013 = vmatmul.mubr.bf16.gmra.mxu0 %v2728
  %v3014 = vpop.f32.mrf.mxu0
  %v3015 = vadd.f32 %v2773, %v3014
  %v3016 = vpop.f32.mrf.mxu0
  %v3017 = vadd.f32 %v2777, %v3016
  %v3018 = vpop.f32.mrf.mxu0
  %v3019 = vadd.f32 %v2773, %v3018
  %v3020 = vpop.f32.mrf.mxu0
  %v3021 = vadd.f32 %v2777, %v3020
  %3022 = vmatprep.mubr.bf16.mxu0 %v2731
  %3023 = vmatmul.mubr.bf16.gmra.mxu0 %v2730
  %v3024 = vpop.f32.mrf.mxu0
  %v3025 = vadd.f32 %v2773, %v3024
  %v3026 = vpop.f32.mrf.mxu0
  %v3027 = vadd.f32 %v2777, %v3026
  %v3028 = vpop.f32.mrf.mxu0
  %v3029 = vadd.f32 %v2773, %v3028
  %v3030 = vpop.f32.mrf.mxu0
  %v3031 = vadd.f32 %v2777, %v3030
  %3032 = vmatprep.mubr.bf16.mxu0 %v2733
  %3033 = vmatmul.mubr.bf16.gmra.mxu0 %v2732
  %v3034 = vpop.f32.mrf.mxu0
  %v3035 = vadd.f32 %v2773, %v3034
  %v3036 = vpop.f32.mrf.mxu0
  %v3037 = vadd.f32 %v2777, %v3036
  %v3038 = vpop.f32.mrf.mxu0
  %v3039 = vadd.f32 %v2773, %v3038
  %v3040 = vpop.f32.mrf.mxu0
  %v3041 = vadd.f32 %v2777, %v3040
  %3042 = vmatprep.mubr.bf16.mxu0 %v2735
  %3043 = vmatmul.mubr.bf16.gmra.mxu0 %v2734
  %v3044 = vpop.f32.mrf.mxu0
  %v3045 = vadd.f32 %v2773, %v3044
  %v3046 = vpop.f32.mrf.mxu0
  %v3047 = vadd.f32 %v2777, %v3046
  %v3048 = vpop.f32.mrf.mxu0
  %v3049 = vadd.f32 %v2773, %v3048
  %v3050 = vpop.f32.mrf.mxu0
  %v3051 = vadd.f32 %v2777, %v3050
  %3052 = vdwg.mxu0
  %v3053 = vmul.u32 %v2176, 3266489917
  %v3054 = vmul.u32 %v2177, 3266489917
  %v3055 = vmul.u32 %v2178, 3266489917
  %v3056 = vmul.u32 %v2179, 3266489917
  %v3057 = vmul.u32 %v2180, 3266489917
  %v3058 = vmul.u32 %v2181, 3266489917
  %v3059 = vmul.u32 %v2182, 3266489917
  %v3060 = vmul.u32 %v2183, 3266489917
  %v3061 = vmul.u32 %v2184, 3266489917
  %v3062 = vmul.u32 %v2185, 3266489917
  %v3063 = vmul.u32 %v2186, 3266489917
  %v3064 = vmul.u32 %v2187, 3266489917
  %v3065 = vmul.u32 %v2188, 3266489917
  %v3066 = vmul.u32 %v2189, 3266489917
  %v3067 = vmul.u32 %v2190, 3266489917
  %v3068 = vmul.u32 %v2191, 3266489917
  %v3069 = vmul.u32 %v2192, 3266489917
  %v3070 = vmul.u32 %v2193, 3266489917
  %v3071 = vmul.u32 %v2194, 3266489917
  %v3072 = vmul.u32 %v2195, 3266489917
  %v3073 = vmul.u32 %v2196, 3266489917
  %v3074 = vmul.u32 %v2197, 3266489917
  %v3075 = vmul.u32 %v2198, 3266489917
  %v3076 = vmul.u32 %v2199, 3266489917
  %v3077 = vmul.u32 %v2200, 3266489917
  %v3078 = vmul.u32 %v2201, 3266489917
  %v3079 = vmul.u32 %v2202, 3266489917
  %v3080 = vmul.u32 %v2203, 3266489917
  %v3081 = vmul.u32 %v2204, 3266489917
  %v3082 = vmul.u32 %v2205, 3266489917
  %v3083 = vmul.u32 %v2206, 3266489917
  %v3084 = vmul.u32 %v2207, 3266489917
  %v3085 = vadd.s32 %v3053, %v545
  %v3086 = vadd.s32 %v3054, %v545
  %v3087 = vadd.s32 %v3055, %v545
  %v3088 = vadd.s32 %v3056, %v545
  %v3089 = vadd.s32 %v3057, %v545
  %v3090 = vadd.s32 %v3058, %v545
  %v3091 = vadd.s32 %v3059, %v545
  %v3092 = vadd.s32 %v3060, %v545
  %v3093 = vadd.s32 %v3061, %v545
  %v3094 = vadd.s32 %v3062, %v545
  %v3095 = vadd.s32 %v3063, %v545
  %v3096 = vadd.s32 %v3064, %v545
  %v3097 = vadd.s32 %v3065, %v545
  %v3098 = vadd.s32 %v3066, %v545
  %v3099 = vadd.s32 %v3067, %v545
  %v3100 = vadd.s32 %v3068, %v545
  %v3101 = vadd.s32 %v3069, %v545
  %v3102 = vadd.s32 %v3070, %v545
  %v3103 = vadd.s32 %v3071, %v545
  %v3104 = vadd.s32 %v3072, %v545
  %v3105 = vadd.s32 %v3073, %v545
  %v3106 = vadd.s32 %v3074, %v545
  %v3107 = vadd.s32 %v3075, %v545
  %v3108 = vadd.s32 %v3076, %v545
  %v3109 = vadd.s32 %v3077, %v545
  %v3110 = vadd.s32 %v3078, %v545
  %v3111 = vadd.s32 %v3079, %v545
  %v3112 = vadd.s32 %v3080, %v545
  %v3113 = vadd.s32 %v3081, %v545
  %v3114 = vadd.s32 %v3082, %v545
  %v3115 = vadd.s32 %v3083, %v545
  %v3116 = vadd.s32 %v3084, %v545
  %v3117 = vshrl.u32 %v3085, 16
  %v3118 = vshrl.u32 %v3086, 16
  %v3119 = vshrl.u32 %v3087, 16
  %v3120 = vshrl.u32 %v3088, 16
  %v3121 = vshrl.u32 %v3089, 16
  %v3122 = vshrl.u32 %v3090, 16
  %v3123 = vshrl.u32 %v3091, 16
  %v3124 = vshrl.u32 %v3092, 16
  %v3125 = vshrl.u32 %v3093, 16
  %v3126 = vshrl.u32 %v3094, 16
  %v3127 = vshrl.u32 %v3095, 16
  %v3128 = vshrl.u32 %v3096, 16
  %v3129 = vshrl.u32 %v3097, 16
  %v3130 = vshrl.u32 %v3098, 16
  %v3131 = vshrl.u32 %v3099, 16
  %v3132 = vshrl.u32 %v3100, 16
  %v3133 = vshrl.u32 %v3101, 16
  %v3134 = vshrl.u32 %v3102, 16
  %v3135 = vshrl.u32 %v3103, 16
  %v3136 = vshrl.u32 %v3104, 16
  %v3137 = vshrl.u32 %v3105, 16
  %v3138 = vshrl.u32 %v3106, 16
  %v3139 = vshrl.u32 %v3107, 16
  %v3140 = vshrl.u32 %v3108, 16
  %v3141 = vshrl.u32 %v3109, 16
  %v3142 = vshrl.u32 %v3110, 16
  %v3143 = vshrl.u32 %v3111, 16
  %v3144 = vshrl.u32 %v3112, 16
  %v3145 = vshrl.u32 %v3113, 16
  %v3146 = vshrl.u32 %v3114, 16
  %v3147 = vshrl.u32 %v3115, 16
  %v3148 = vshrl.u32 %v3116, 16
  %v3149 = vxor.u32 %v3085, %v3117
  %v3150 = vxor.u32 %v3086, %v3118
  %v3151 = vxor.u32 %v3087, %v3119
  %v3152 = vxor.u32 %v3088, %v3120
  %v3153 = vxor.u32 %v3089, %v3121
  %v3154 = vxor.u32 %v3090, %v3122
  %v3155 = vxor.u32 %v3091, %v3123
  %v3156 = vxor.u32 %v3092, %v3124
  %v3157 = vxor.u32 %v3093, %v3125
  %v3158 = vxor.u32 %v3094, %v3126
  %v3159 = vxor.u32 %v3095, %v3127
  %v3160 = vxor.u32 %v3096, %v3128
  %v3161 = vxor.u32 %v3097, %v3129
  %v3162 = vxor.u32 %v3098, %v3130
  %v3163 = vxor.u32 %v3099, %v3131
  %v3164 = vxor.u32 %v3100, %v3132
  %v3165 = vxor.u32 %v3101, %v3133
  %v3166 = vxor.u32 %v3102, %v3134
  %v3167 = vxor.u32 %v3103, %v3135
  %v3168 = vxor.u32 %v3104, %v3136
  %v3169 = vxor.u32 %v3105, %v3137
  %v3170 = vxor.u32 %v3106, %v3138
  %v3171 = vxor.u32 %v3107, %v3139
  %v3172 = vxor.u32 %v3108, %v3140
  %v3173 = vxor.u32 %v3109, %v3141
  %v3174 = vxor.u32 %v3110, %v3142
  %v3175 = vxor.u32 %v3111, %v3143
  %v3176 = vxor.u32 %v3112, %v3144
  %v3177 = vxor.u32 %v3113, %v3145
  %v3178 = vxor.u32 %v3114, %v3146
  %v3179 = vxor.u32 %v3115, %v3147
  %v3180 = vxor.u32 %v3116, %v3148
  %v3181 = vmul.u32 %v3149, 2146121005
  %v3182 = vmul.u32 %v3150, 2146121005
  %v3183 = vmul.u32 %v3151, 2146121005
  %v3184 = vmul.u32 %v3152, 2146121005
  %v3185 = vmul.u32 %v3153, 2146121005
  %v3186 = vmul.u32 %v3154, 2146121005
  %v3187 = vmul.u32 %v3155, 2146121005
  %v3188 = vmul.u32 %v3156, 2146121005
  %v3189 = vmul.u32 %v3157, 2146121005
  %v3190 = vmul.u32 %v3158, 2146121005
  %v3191 = vmul.u32 %v3159, 2146121005
  %v3192 = vmul.u32 %v3160, 2146121005
  %v3193 = vmul.u32 %v3161, 2146121005
  %v3194 = vmul.u32 %v3162, 2146121005
  %v3195 = vmul.u32 %v3163, 2146121005
  %v3196 = vmul.u32 %v3164, 2146121005
  %v3197 = vmul.u32 %v3165, 2146121005
  %v3198 = vmul.u32 %v3166, 2146121005
  %v3199 = vmul.u32 %v3167, 2146121005
  %v3200 = vmul.u32 %v3168, 2146121005
  %v3201 = vmul.u32 %v3169, 2146121005
  %v3202 = vmul.u32 %v3170, 2146121005
  %v3203 = vmul.u32 %v3171, 2146121005
  %v3204 = vmul.u32 %v3172, 2146121005
  %v3205 = vmul.u32 %v3173, 2146121005
  %v3206 = vmul.u32 %v3174, 2146121005
  %v3207 = vmul.u32 %v3175, 2146121005
  %v3208 = vmul.u32 %v3176, 2146121005
  %v3209 = vmul.u32 %v3177, 2146121005
  %v3210 = vmul.u32 %v3178, 2146121005
  %v3211 = vmul.u32 %v3179, 2146121005
  %v3212 = vmul.u32 %v3180, 2146121005
  %v3213 = vshrl.u32 %v3181, 15
  %v3214 = vshrl.u32 %v3182, 15
  %v3215 = vshrl.u32 %v3183, 15
  %v3216 = vshrl.u32 %v3184, 15
  %v3217 = vshrl.u32 %v3185, 15
  %v3218 = vshrl.u32 %v3186, 15
  %v3219 = vshrl.u32 %v3187, 15
  %v3220 = vshrl.u32 %v3188, 15
  %v3221 = vshrl.u32 %v3189, 15
  %v3222 = vshrl.u32 %v3190, 15
  %v3223 = vshrl.u32 %v3191, 15
  %v3224 = vshrl.u32 %v3192, 15
  %v3225 = vshrl.u32 %v3193, 15
  %v3226 = vshrl.u32 %v3194, 15
  %v3227 = vshrl.u32 %v3195, 15
  %v3228 = vshrl.u32 %v3196, 15
  %v3229 = vshrl.u32 %v3197, 15
  %v3230 = vshrl.u32 %v3198, 15
  %v3231 = vshrl.u32 %v3199, 15
  %v3232 = vshrl.u32 %v3200, 15
  %v3233 = vshrl.u32 %v3201, 15
  %v3234 = vshrl.u32 %v3202, 15
  %v3235 = vshrl.u32 %v3203, 15
  %v3236 = vshrl.u32 %v3204, 15
  %v3237 = vshrl.u32 %v3205, 15
  %v3238 = vshrl.u32 %v3206, 15
  %v3239 = vshrl.u32 %v3207, 15
  %v3240 = vshrl.u32 %v3208, 15
  %v3241 = vshrl.u32 %v3209, 15
  %v3242 = vshrl.u32 %v3210, 15
  %v3243 = vshrl.u32 %v3211, 15
  %v3244 = vshrl.u32 %v3212, 15
  %v3245 = vxor.u32 %v3181, %v3213
  %v3246 = vxor.u32 %v3182, %v3214
  %v3247 = vxor.u32 %v3183, %v3215
  %v3248 = vxor.u32 %v3184, %v3216
  %v3249 = vxor.u32 %v3185, %v3217
  %v3250 = vxor.u32 %v3186, %v3218
  %v3251 = vxor.u32 %v3187, %v3219
  %v3252 = vxor.u32 %v3188, %v3220
  %v3253 = vxor.u32 %v3189, %v3221
  %v3254 = vxor.u32 %v3190, %v3222
  %v3255 = vxor.u32 %v3191, %v3223
  %v3256 = vxor.u32 %v3192, %v3224
  %v3257 = vxor.u32 %v3193, %v3225
  %v3258 = vxor.u32 %v3194, %v3226
  %v3259 = vxor.u32 %v3195, %v3227
  %v3260 = vxor.u32 %v3196, %v3228
  %v3261 = vxor.u32 %v3197, %v3229
  %v3262 = vxor.u32 %v3198, %v3230
  %v3263 = vxor.u32 %v3199, %v3231
  %v3264 = vxor.u32 %v3200, %v3232
  %v3265 = vxor.u32 %v3201, %v3233
  %v3266 = vxor.u32 %v3202, %v3234
  %v3267 = vxor.u32 %v3203, %v3235
  %v3268 = vxor.u32 %v3204, %v3236
  %v3269 = vxor.u32 %v3205, %v3237
  %v3270 = vxor.u32 %v3206, %v3238
  %v3271 = vxor.u32 %v3207, %v3239
  %v3272 = vxor.u32 %v3208, %v3240
  %v3273 = vxor.u32 %v3209, %v3241
  %v3274 = vxor.u32 %v3210, %v3242
  %v3275 = vxor.u32 %v3211, %v3243
  %v3276 = vxor.u32 %v3212, %v3244
  %v3277 = vmul.u32 %v3245, 2221713035
  %v3278 = vmul.u32 %v3246, 2221713035
  %v3279 = vmul.u32 %v3247, 2221713035
  %v3280 = vmul.u32 %v3248, 2221713035
  %v3281 = vmul.u32 %v3249, 2221713035
  %v3282 = vmul.u32 %v3250, 2221713035
  %v3283 = vmul.u32 %v3251, 2221713035
  %v3284 = vmul.u32 %v3252, 2221713035
  %v3285 = vmul.u32 %v3253, 2221713035
  %v3286 = vmul.u32 %v3254, 2221713035
  %v3287 = vmul.u32 %v3255, 2221713035
  %v3288 = vmul.u32 %v3256, 2221713035
  %v3289 = vmul.u32 %v3257, 2221713035
  %v3290 = vmul.u32 %v3258, 2221713035
  %v3291 = vmul.u32 %v3259, 2221713035
  %v3292 = vmul.u32 %v3260, 2221713035
  %v3293 = vmul.u32 %v3261, 2221713035
  %v3294 = vmul.u32 %v3262, 2221713035
  %v3295 = vmul.u32 %v3263, 2221713035
  %v3296 = vmul.u32 %v3264, 2221713035
  %v3297 = vmul.u32 %v3265, 2221713035
  %v3298 = vmul.u32 %v3266, 2221713035
  %v3299 = vmul.u32 %v3267, 2221713035
  %v3300 = vmul.u32 %v3268, 2221713035
  %v3301 = vmul.u32 %v3269, 2221713035
  %v3302 = vmul.u32 %v3270, 2221713035
  %v3303 = vmul.u32 %v3271, 2221713035
  %v3304 = vmul.u32 %v3272, 2221713035
  %v3305 = vmul.u32 %v3273, 2221713035
  %v3306 = vmul.u32 %v3274, 2221713035
  %v3307 = vmul.u32 %v3275, 2221713035
  %v3308 = vmul.u32 %v3276, 2221713035
  %v3309 = vshrl.u32 %v3277, 16
  %v3310 = vshrl.u32 %v3278, 16
  %v3311 = vshrl.u32 %v3279, 16
  %v3312 = vshrl.u32 %v3280, 16
  %v3313 = vshrl.u32 %v3281, 16
  %v3314 = vshrl.u32 %v3282, 16
  %v3315 = vshrl.u32 %v3283, 16
  %v3316 = vshrl.u32 %v3284, 16
  %v3317 = vshrl.u32 %v3285, 16
  %v3318 = vshrl.u32 %v3286, 16
  %v3319 = vshrl.u32 %v3287, 16
  %v3320 = vshrl.u32 %v3288, 16
  %v3321 = vshrl.u32 %v3289, 16
  %v3322 = vshrl.u32 %v3290, 16
  %v3323 = vshrl.u32 %v3291, 16
  %v3324 = vshrl.u32 %v3292, 16
  %v3325 = vshrl.u32 %v3293, 16
  %v3326 = vshrl.u32 %v3294, 16
  %v3327 = vshrl.u32 %v3295, 16
  %v3328 = vshrl.u32 %v3296, 16
  %v3329 = vshrl.u32 %v3297, 16
  %v3330 = vshrl.u32 %v3298, 16
  %v3331 = vshrl.u32 %v3299, 16
  %v3332 = vshrl.u32 %v3300, 16
  %v3333 = vshrl.u32 %v3301, 16
  %v3334 = vshrl.u32 %v3302, 16
  %v3335 = vshrl.u32 %v3303, 16
  %v3336 = vshrl.u32 %v3304, 16
  %v3337 = vshrl.u32 %v3305, 16
  %v3338 = vshrl.u32 %v3306, 16
  %v3339 = vshrl.u32 %v3307, 16
  %v3340 = vshrl.u32 %v3308, 16
  %v3341 = vxor.u32 %v3277, %v3309
  %v3342 = vxor.u32 %v3278, %v3310
  %v3343 = vxor.u32 %v3279, %v3311
  %v3344 = vxor.u32 %v3280, %v3312
  %v3345 = vxor.u32 %v3281, %v3313
  %v3346 = vxor.u32 %v3282, %v3314
  %v3347 = vxor.u32 %v3283, %v3315
  %v3348 = vxor.u32 %v3284, %v3316
  %v3349 = vxor.u32 %v3285, %v3317
  %v3350 = vxor.u32 %v3286, %v3318
  %v3351 = vxor.u32 %v3287, %v3319
  %v3352 = vxor.u32 %v3288, %v3320
  %v3353 = vxor.u32 %v3289, %v3321
  %v3354 = vxor.u32 %v3290, %v3322
  %v3355 = vxor.u32 %v3291, %v3323
  %v3356 = vxor.u32 %v3292, %v3324
  %v3357 = vxor.u32 %v3293, %v3325
  %v3358 = vxor.u32 %v3294, %v3326
  %v3359 = vxor.u32 %v3295, %v3327
  %v3360 = vxor.u32 %v3296, %v3328
  %v3361 = vxor.u32 %v3297, %v3329
  %v3362 = vxor.u32 %v3298, %v3330
  %v3363 = vxor.u32 %v3299, %v3331
  %v3364 = vxor.u32 %v3300, %v3332
  %v3365 = vxor.u32 %v3301, %v3333
  %v3366 = vxor.u32 %v3302, %v3334
  %v3367 = vxor.u32 %v3303, %v3335
  %v3368 = vxor.u32 %v3304, %v3336
  %v3369 = vxor.u32 %v3305, %v3337
  %v3370 = vxor.u32 %v3306, %v3338
  %v3371 = vxor.u32 %v3307, %v3339
  %v3372 = vxor.u32 %v3308, %v3340
  %v3373 = vand.u32 %v3341, 65535
  %v3374 = vand.u32 %v3342, 65535
  %v3375 = vand.u32 %v3343, 65535
  %v3376 = vand.u32 %v3344, 65535
  %v3377 = vand.u32 %v3345, 65535
  %v3378 = vand.u32 %v3346, 65535
  %v3379 = vand.u32 %v3347, 65535
  %v3380 = vand.u32 %v3348, 65535
  %v3381 = vand.u32 %v3349, 65535
  %v3382 = vand.u32 %v3350, 65535
  %v3383 = vand.u32 %v3351, 65535
  %v3384 = vand.u32 %v3352, 65535
  %v3385 = vand.u32 %v3353, 65535
  %v3386 = vand.u32 %v3354, 65535
  %v3387 = vand.u32 %v3355, 65535
  %v3388 = vand.u32 %v3356, 65535
  %v3389 = vand.u32 %v3357, 65535
  %v3390 = vand.u32 %v3358, 65535
  %v3391 = vand.u32 %v3359, 65535
  %v3392 = vand.u32 %v3360, 65535
  %v3393 = vand.u32 %v3361, 65535
  %v3394 = vand.u32 %v3362, 65535
  %v3395 = vand.u32 %v3363, 65535
  %v3396 = vand.u32 %v3364, 65535
  %v3397 = vand.u32 %v3365, 65535
  %v3398 = vand.u32 %v3366, 65535
  %v3399 = vand.u32 %v3367, 65535
  %v3400 = vand.u32 %v3368, 65535
  %v3401 = vand.u32 %v3369, 65535
  %v3402 = vand.u32 %v3370, 65535
  %v3403 = vand.u32 %v3371, 65535
  %v3404 = vand.u32 %v3372, 65535
  %vm3405 = vcmp.ge.s32.totalorder %v3373, 6554
  %vm3406 = vcmp.ge.s32.totalorder %v3374, 6554
  %vm3407 = vcmp.ge.s32.totalorder %v3375, 6554
  %vm3408 = vcmp.ge.s32.totalorder %v3376, 6554
  %vm3409 = vcmp.ge.s32.totalorder %v3377, 6554
  %vm3410 = vcmp.ge.s32.totalorder %v3378, 6554
  %vm3411 = vcmp.ge.s32.totalorder %v3379, 6554
  %vm3412 = vcmp.ge.s32.totalorder %v3380, 6554
  %vm3413 = vcmp.ge.s32.totalorder %v3381, 6554
  %vm3414 = vcmp.ge.s32.totalorder %v3382, 6554
  %vm3415 = vcmp.ge.s32.totalorder %v3383, 6554
  %vm3416 = vcmp.ge.s32.totalorder %v3384, 6554
  %vm3417 = vcmp.ge.s32.totalorder %v3385, 6554
  %vm3418 = vcmp.ge.s32.totalorder %v3386, 6554
  %vm3419 = vcmp.ge.s32.totalorder %v3387, 6554
  %vm3420 = vcmp.ge.s32.totalorder %v3388, 6554
  %vm3421 = vcmp.ge.s32.totalorder %v3389, 6554
  %vm3422 = vcmp.ge.s32.totalorder %v3390, 6554
  %vm3423 = vcmp.ge.s32.totalorder %v3391, 6554
  %vm3424 = vcmp.ge.s32.totalorder %v3392, 6554
  %vm3425 = vcmp.ge.s32.totalorder %v3393, 6554
  %vm3426 = vcmp.ge.s32.totalorder %v3394, 6554
  %vm3427 = vcmp.ge.s32.totalorder %v3395, 6554
  %vm3428 = vcmp.ge.s32.totalorder %v3396, 6554
  %vm3429 = vcmp.ge.s32.totalorder %v3397, 6554
  %vm3430 = vcmp.ge.s32.totalorder %v3398, 6554
  %vm3431 = vcmp.ge.s32.totalorder %v3399, 6554
  %vm3432 = vcmp.ge.s32.totalorder %v3400, 6554
  %vm3433 = vcmp.ge.s32.totalorder %v3401, 6554
  %vm3434 = vcmp.ge.s32.totalorder %v3402, 6554
  %vm3435 = vcmp.ge.s32.totalorder %v3403, 6554
  %vm3436 = vcmp.ge.s32.totalorder %v3404, 6554
  %vm3437 = vcmp.gt.f32.partialorder %v2975, 0.0
  %vm3438 = vcmp.gt.f32.partialorder %v2977, 0.0
  %vm3439 = vcmp.gt.f32.partialorder %v2979, 0.0
  %vm3440 = vcmp.gt.f32.partialorder %v2981, 0.0
  %vm3441 = vcmp.gt.f32.partialorder %v2985, 0.0
  %vm3442 = vcmp.gt.f32.partialorder %v2987, 0.0
  %vm3443 = vcmp.gt.f32.partialorder %v2989, 0.0
  %vm3444 = vcmp.gt.f32.partialorder %v2991, 0.0
  %vm3445 = vcmp.gt.f32.partialorder %v2995, 0.0
  %vm3446 = vcmp.gt.f32.partialorder %v2997, 0.0
  %vm3447 = vcmp.gt.f32.partialorder %v2999, 0.0
  %vm3448 = vcmp.gt.f32.partialorder %v3001, 0.0
  %vm3449 = vcmp.gt.f32.partialorder %v3005, 0.0
  %vm3450 = vcmp.gt.f32.partialorder %v3007, 0.0
  %vm3451 = vcmp.gt.f32.partialorder %v3009, 0.0
  %vm3452 = vcmp.gt.f32.partialorder %v3011, 0.0
  %vm3453 = vcmp.gt.f32.partialorder %v3015, 0.0
  %vm3454 = vcmp.gt.f32.partialorder %v3017, 0.0
  %vm3455 = vcmp.gt.f32.partialorder %v3019, 0.0
  %vm3456 = vcmp.gt.f32.partialorder %v3021, 0.0
  %vm3457 = vcmp.gt.f32.partialorder %v3025, 0.0
  %vm3458 = vcmp.gt.f32.partialorder %v3027, 0.0
  %vm3459 = vcmp.gt.f32.partialorder %v3029, 0.0
  %vm3460 = vcmp.gt.f32.partialorder %v3031, 0.0
  %vm3461 = vcmp.gt.f32.partialorder %v3035, 0.0
  %vm3462 = vcmp.gt.f32.partialorder %v3037, 0.0
  %vm3463 = vcmp.gt.f32.partialorder %v3039, 0.0
  %vm3464 = vcmp.gt.f32.partialorder %v3041, 0.0
  %vm3465 = vcmp.gt.f32.partialorder %v3045, 0.0
  %vm3466 = vcmp.gt.f32.partialorder %v3047, 0.0
  %vm3467 = vcmp.gt.f32.partialorder %v3049, 0.0
  %vm3468 = vcmp.gt.f32.partialorder %v3051, 0.0
  %vm3469 = vmand %vm3405, %vm3437
  %vm3470 = vmand %vm3406, %vm3438
  %vm3471 = vmand %vm3407, %vm3439
  %vm3472 = vmand %vm3408, %vm3440
  %vm3473 = vmand %vm3409, %vm3441
  %vm3474 = vmand %vm3410, %vm3442
  %vm3475 = vmand %vm3411, %vm3443
  %vm3476 = vmand %vm3412, %vm3444
  %vm3477 = vmand %vm3413, %vm3445
  %vm3478 = vmand %vm3414, %vm3446
  %vm3479 = vmand %vm3415, %vm3447
  %vm3480 = vmand %vm3416, %vm3448
  %vm3481 = vmand %vm3417, %vm3449
  %vm3482 = vmand %vm3418, %vm3450
  %vm3483 = vmand %vm3419, %vm3451
  %vm3484 = vmand %vm3420, %vm3452
  %vm3485 = vmand %vm3421, %vm3453
  %vm3486 = vmand %vm3422, %vm3454
  %vm3487 = vmand %vm3423, %vm3455
  %vm3488 = vmand %vm3424, %vm3456
  %vm3489 = vmand %vm3425, %vm3457
  %vm3490 = vmand %vm3426, %vm3458
  %vm3491 = vmand %vm3427, %vm3459
  %vm3492 = vmand %vm3428, %vm3460
  %vm3493 = vmand %vm3429, %vm3461
  %vm3494 = vmand %vm3430, %vm3462
  %vm3495 = vmand %vm3431, %vm3463
  %vm3496 = vmand %vm3432, %vm3464
  %vm3497 = vmand %vm3433, %vm3465
  %vm3498 = vmand %vm3434, %vm3466
  %vm3499 = vmand %vm3435, %vm3467
  %vm3500 = vmand %vm3436, %vm3468
  %v3501 = vmul.f32 %v2975, 1.1111112
  %v3502 = vmul.f32 %v2977, 1.1111112
  %v3503 = vmul.f32 %v2979, 1.1111112
  %v3504 = vmul.f32 %v2981, 1.1111112
  %v3505 = vmul.f32 %v2985, 1.1111112
  %v3506 = vmul.f32 %v2987, 1.1111112
  %v3507 = vmul.f32 %v2989, 1.1111112
  %v3508 = vmul.f32 %v2991, 1.1111112
  %v3509 = vmul.f32 %v2995, 1.1111112
  %v3510 = vmul.f32 %v2997, 1.1111112
  %v3511 = vmul.f32 %v2999, 1.1111112
  %v3512 = vmul.f32 %v3001, 1.1111112
  %v3513 = vmul.f32 %v3005, 1.1111112
  %v3514 = vmul.f32 %v3007, 1.1111112
  %v3515 = vmul.f32 %v3009, 1.1111112
  %v3516 = vmul.f32 %v3011, 1.1111112
  %v3517 = vmul.f32 %v3015, 1.1111112
  %v3518 = vmul.f32 %v3017, 1.1111112
  %v3519 = vmul.f32 %v3019, 1.1111112
  %v3520 = vmul.f32 %v3021, 1.1111112
  %v3521 = vmul.f32 %v3025, 1.1111112
  %v3522 = vmul.f32 %v3027, 1.1111112
  %v3523 = vmul.f32 %v3029, 1.1111112
  %v3524 = vmul.f32 %v3031, 1.1111112
  %v3525 = vmul.f32 %v3035, 1.1111112
  %v3526 = vmul.f32 %v3037, 1.1111112
  %v3527 = vmul.f32 %v3039, 1.1111112
  %v3528 = vmul.f32 %v3041, 1.1111112
  %v3529 = vmul.f32 %v3045, 1.1111112
  %v3530 = vmul.f32 %v3047, 1.1111112
  %v3531 = vmul.f32 %v3049, 1.1111112
  %v3532 = vmul.f32 %v3051, 1.1111112
  %v3533 = vsel %vm3469, %v3501, 0.0
  %v3534 = vsel %vm3470, %v3502, 0.0
  %v3535 = vsel %vm3471, %v3503, 0.0
  %v3536 = vsel %vm3472, %v3504, 0.0
  %v3537 = vsel %vm3473, %v3505, 0.0
  %v3538 = vsel %vm3474, %v3506, 0.0
  %v3539 = vsel %vm3475, %v3507, 0.0
  %v3540 = vsel %vm3476, %v3508, 0.0
  %v3541 = vsel %vm3477, %v3509, 0.0
  %v3542 = vsel %vm3478, %v3510, 0.0
  %v3543 = vsel %vm3479, %v3511, 0.0
  %v3544 = vsel %vm3480, %v3512, 0.0
  %v3545 = vsel %vm3481, %v3513, 0.0
  %v3546 = vsel %vm3482, %v3514, 0.0
  %v3547 = vsel %vm3483, %v3515, 0.0
  %v3548 = vsel %vm3484, %v3516, 0.0
  %v3549 = vsel %vm3485, %v3517, 0.0
  %v3550 = vsel %vm3486, %v3518, 0.0
  %v3551 = vsel %vm3487, %v3519, 0.0
  %v3552 = vsel %vm3488, %v3520, 0.0
  %v3553 = vsel %vm3489, %v3521, 0.0
  %v3554 = vsel %vm3490, %v3522, 0.0
  %v3555 = vsel %vm3491, %v3523, 0.0
  %v3556 = vsel %vm3492, %v3524, 0.0
  %v3557 = vsel %vm3493, %v3525, 0.0
  %v3558 = vsel %vm3494, %v3526, 0.0
  %v3559 = vsel %vm3495, %v3527, 0.0
  %v3560 = vsel %vm3496, %v3528, 0.0
  %v3561 = vsel %vm3497, %v3529, 0.0
  %v3562 = vsel %vm3498, %v3530, 0.0
  %v3563 = vsel %vm3499, %v3531, 0.0
  %v3564 = vsel %vm3500, %v3532, 0.0
  %v3565 = vadd.f32 %v3533, %v2688
  %v3566 = vadd.f32 %v3534, %v2689
  %v3567 = vadd.f32 %v3535, %v2690
  %v3568 = vadd.f32 %v3536, %v2691
  %v3569 = vadd.f32 %v3537, %v2692
  %v3570 = vadd.f32 %v3538, %v2693
  %v3571 = vadd.f32 %v3539, %v2694
  %v3572 = vadd.f32 %v3540, %v2695
  %v3573 = vadd.f32 %v3541, %v2696
  %v3574 = vadd.f32 %v3542, %v2697
  %v3575 = vadd.f32 %v3543, %v2698
  %v3576 = vadd.f32 %v3544, %v2699
  %v3577 = vadd.f32 %v3545, %v2700
  %v3578 = vadd.f32 %v3546, %v2701
  %v3579 = vadd.f32 %v3547, %v2702
  %v3580 = vadd.f32 %v3548, %v2703
  %v3581 = vadd.f32 %v3549, %v2704
  %v3582 = vadd.f32 %v3550, %v2705
  %v3583 = vadd.f32 %v3551, %v2706
  %v3584 = vadd.f32 %v3552, %v2707
  %v3585 = vadd.f32 %v3553, %v2708
  %v3586 = vadd.f32 %v3554, %v2709
  %v3587 = vadd.f32 %v3555, %v2710
  %v3588 = vadd.f32 %v3556, %v2711
  %v3589 = vadd.f32 %v3557, %v2712
  %v3590 = vadd.f32 %v3558, %v2713
  %v3591 = vadd.f32 %v3559, %v2714
  %v3592 = vadd.f32 %v3560, %v2715
  %v3593 = vadd.f32 %v3561, %v2716
  %v3594 = vadd.f32 %v3562, %v2717
  %v3595 = vadd.f32 %v3563, %v2718
  %v3596 = vadd.f32 %v3564, %v2719
  %v3597 = vpack.c.bf16 %v3567, %v3565
  %v3598 = vpack.c.bf16 %v3568, %v3566
  %v3599 = vpack.c.bf16 %v3571, %v3569
  %v3600 = vpack.c.bf16 %v3572, %v3570
  %v3601 = vpack.c.bf16 %v3575, %v3573
  %v3602 = vpack.c.bf16 %v3576, %v3574
  %v3603 = vpack.c.bf16 %v3579, %v3577
  %v3604 = vpack.c.bf16 %v3580, %v3578
  %v3605 = vpack.c.bf16 %v3583, %v3581
  %v3606 = vpack.c.bf16 %v3584, %v3582
  %v3607 = vpack.c.bf16 %v3587, %v3585
  %v3608 = vpack.c.bf16 %v3588, %v3586
  %v3609 = vpack.c.bf16 %v3591, %v3589
  %v3610 = vpack.c.bf16 %v3592, %v3590
  %v3611 = vpack.c.bf16 %v3595, %v3593
  %v3612 = vpack.c.bf16 %v3596, %v3594
  %v3613 = vld [vmem:[%s8] sm:$0xff]
  %v3614 = vld [vmem:[%s8 + $0x8] sm:$0xff]
  %v3615 = vld [vmem:[%s8 + $0x10] sm:$0xff]
  %v3616 = vld [vmem:[%s8 + $0x18] sm:$0xff]
  %v3617 = vld [vmem:[%s8 + $0x20] sm:$0xff]
  %v3618 = vld [vmem:[%s8 + $0x28] sm:$0xff]
  %v3619 = vld [vmem:[%s8 + $0x30] sm:$0xff]
  %v3620 = vld [vmem:[%s8 + $0x38] sm:$0xff]
  %v3621 = vld [vmem:[%s8 + $0x40] sm:$0xff]
  %v3622 = vld [vmem:[%s8 + $0x48] sm:$0xff]
  %v3623 = vld [vmem:[%s8 + $0x50] sm:$0xff]
  %v3624 = vld [vmem:[%s8 + $0x58] sm:$0xff]
  %v3625 = vld [vmem:[%s8 + $0x60] sm:$0xff]
  %v3626 = vld [vmem:[%s8 + $0x68] sm:$0xff]
  %v3627 = vld [vmem:[%s8 + $0x70] sm:$0xff]
  %v3628 = vld [vmem:[%s8 + $0x78] sm:$0xff]
  %v3629 = vld [vmem:[%s8 + $0x80] sm:$0xff]
  %v3630 = vld [vmem:[%s8 + $0x88] sm:$0xff]
  %v3631 = vld [vmem:[%s8 + $0x90] sm:$0xff]
  %v3632 = vld [vmem:[%s8 + $0x98] sm:$0xff]
  %v3633 = vld [vmem:[%s8 + $0xa0] sm:$0xff]
  %v3634 = vld [vmem:[%s8 + $0xa8] sm:$0xff]
  %v3635 = vld [vmem:[%s8 + $0xb0] sm:$0xff]
  %v3636 = vld [vmem:[%s8 + $0xb8] sm:$0xff]
  %v3637 = vld [vmem:[%s8 + $0xc0] sm:$0xff]
  %v3638 = vld [vmem:[%s8 + $0xc8] sm:$0xff]
  %v3639 = vld [vmem:[%s8 + $0xd0] sm:$0xff]
  %v3640 = vld [vmem:[%s8 + $0xd8] sm:$0xff]
  %v3641 = vld [vmem:[%s8 + $0xe0] sm:$0xff]
  %v3642 = vld [vmem:[%s8 + $0xe8] sm:$0xff]
  %v3643 = vld [vmem:[%s8 + $0xf0] sm:$0xff]
  %v3644 = vld [vmem:[%s8 + $0xf8] sm:$0xff]
  %v3645 = vld [vmem:[%s9] sm:$0x3]
  %v3647 = vlaneseq
  %v3648 = vshrl.u32 %v3647, 7
  %v3649 = vsub.s32 0, %v3648
  %v3650 = vrot.slane %v3645, %v3649
  %v3651 = vlaneseq
  %v3652 = vshrl.u32 %v3651, 7
  %v3653 = vsub.s32 1, %v3652
  %v3654 = vrot.slane %v3645, %v3653
  %v3689 = vunpack.c.l.b16 %v3613
  %v3690 = vunpack.c.h.b16 %v3613
  %v3691 = vunpack.c.l.b16 %v3614
  %v3692 = vunpack.c.h.b16 %v3614
  %v3693 = vunpack.c.l.b16 %v3615
  %v3694 = vunpack.c.h.b16 %v3615
  %v3695 = vunpack.c.l.b16 %v3616
  %v3696 = vunpack.c.h.b16 %v3616
  %v3697 = vunpack.c.l.b16 %v3617
  %v3698 = vunpack.c.h.b16 %v3617
  %v3699 = vunpack.c.l.b16 %v3618
  %v3700 = vunpack.c.h.b16 %v3618
  %v3701 = vunpack.c.l.b16 %v3619
  %v3702 = vunpack.c.h.b16 %v3619
  %v3703 = vunpack.c.l.b16 %v3620
  %v3704 = vunpack.c.h.b16 %v3620
  %v3705 = vunpack.c.l.b16 %v3621
  %v3706 = vunpack.c.h.b16 %v3621
  %v3707 = vunpack.c.l.b16 %v3622
  %v3708 = vunpack.c.h.b16 %v3622
  %v3709 = vunpack.c.l.b16 %v3623
  %v3710 = vunpack.c.h.b16 %v3623
  %v3711 = vunpack.c.l.b16 %v3624
  %v3712 = vunpack.c.h.b16 %v3624
  %v3713 = vunpack.c.l.b16 %v3625
  %v3714 = vunpack.c.h.b16 %v3625
  %v3715 = vunpack.c.l.b16 %v3626
  %v3716 = vunpack.c.h.b16 %v3626
  %v3717 = vunpack.c.l.b16 %v3627
  %v3718 = vunpack.c.h.b16 %v3627
  %v3719 = vunpack.c.l.b16 %v3628
  %v3720 = vunpack.c.h.b16 %v3628
  %v3721 = vunpack.c.l.b16 %v3629
  %v3722 = vunpack.c.h.b16 %v3629
  %v3723 = vunpack.c.l.b16 %v3630
  %v3724 = vunpack.c.h.b16 %v3630
  %v3725 = vunpack.c.l.b16 %v3631
  %v3726 = vunpack.c.h.b16 %v3631
  %v3727 = vunpack.c.l.b16 %v3632
  %v3728 = vunpack.c.h.b16 %v3632
  %v3729 = vunpack.c.l.b16 %v3633
  %v3730 = vunpack.c.h.b16 %v3633
  %v3731 = vunpack.c.l.b16 %v3634
  %v3732 = vunpack.c.h.b16 %v3634
  %v3733 = vunpack.c.l.b16 %v3635
  %v3734 = vunpack.c.h.b16 %v3635
  %v3735 = vunpack.c.l.b16 %v3636
  %v3736 = vunpack.c.h.b16 %v3636
  %v3737 = vunpack.c.l.b16 %v3637
  %v3738 = vunpack.c.h.b16 %v3637
  %v3739 = vunpack.c.l.b16 %v3638
  %v3740 = vunpack.c.h.b16 %v3638
  %v3741 = vunpack.c.l.b16 %v3639
  %v3742 = vunpack.c.h.b16 %v3639
  %v3743 = vunpack.c.l.b16 %v3640
  %v3744 = vunpack.c.h.b16 %v3640
  %v3745 = vunpack.c.l.b16 %v3641
  %v3746 = vunpack.c.h.b16 %v3641
  %v3747 = vunpack.c.l.b16 %v3642
  %v3748 = vunpack.c.h.b16 %v3642
  %v3749 = vunpack.c.l.b16 %v3643
  %v3750 = vunpack.c.h.b16 %v3643
  %v3751 = vunpack.c.l.b16 %v3644
  %v3752 = vunpack.c.h.b16 %v3644
  %v3753 = vpack.c.b16 %v3691, %v3689
  %v3754 = vpack.c.b16 %v3692, %v3690
  %v3755 = vpack.c.b16 %v3695, %v3693
  %v3756 = vpack.c.b16 %v3696, %v3694
  %v3757 = vpack.c.b16 %v3699, %v3697
  %v3758 = vpack.c.b16 %v3700, %v3698
  %v3759 = vpack.c.b16 %v3703, %v3701
  %v3760 = vpack.c.b16 %v3704, %v3702
  %v3761 = vpack.c.b16 %v3707, %v3705
  %v3762 = vpack.c.b16 %v3708, %v3706
  %v3763 = vpack.c.b16 %v3711, %v3709
  %v3764 = vpack.c.b16 %v3712, %v3710
  %v3765 = vpack.c.b16 %v3715, %v3713
  %v3766 = vpack.c.b16 %v3716, %v3714
  %v3767 = vpack.c.b16 %v3719, %v3717
  %v3768 = vpack.c.b16 %v3720, %v3718
  %v3769 = vpack.c.b16 %v3723, %v3721
  %v3770 = vpack.c.b16 %v3724, %v3722
  %v3771 = vpack.c.b16 %v3727, %v3725
  %v3772 = vpack.c.b16 %v3728, %v3726
  %v3773 = vpack.c.b16 %v3731, %v3729
  %v3774 = vpack.c.b16 %v3732, %v3730
  %v3775 = vpack.c.b16 %v3735, %v3733
  %v3776 = vpack.c.b16 %v3736, %v3734
  %v3777 = vpack.c.b16 %v3739, %v3737
  %v3778 = vpack.c.b16 %v3740, %v3738
  %v3779 = vpack.c.b16 %v3743, %v3741
  %v3780 = vpack.c.b16 %v3744, %v3742
  %v3781 = vpack.c.b16 %v3747, %v3745
  %v3782 = vpack.c.b16 %v3748, %v3746
  %v3783 = vpack.c.b16 %v3751, %v3749
  %v3784 = vpack.c.b16 %v3752, %v3750
  %3817 = vmatprep.subr.bf16.mxu0 %v3768
  %3818 = vmatpush1.bf16.msra.mxu0 %v3767
  %3819 = vmatprep.subr.bf16.mxu0 %v3766
  %3820 = vmatpush1.bf16.msra.mxu0 %v3765
  %3821 = vmatprep.subr.bf16.mxu0 %v3764
  %3822 = vmatpush1.bf16.msra.mxu0 %v3763
  %3823 = vmatprep.subr.bf16.mxu0 %v3762
  %3824 = vmatpush1.bf16.msra.mxu0 %v3761
  %3825 = vmatprep.subr.bf16.mxu0 %v3760
  %3826 = vmatpush1.bf16.msra.mxu0 %v3759
  %3827 = vmatprep.subr.bf16.mxu0 %v3758
  %3828 = vmatpush1.bf16.msra.mxu0 %v3757
  %3829 = vmatprep.subr.bf16.mxu0 %v3756
  %3830 = vmatpush1.bf16.msra.mxu0 %v3755
  %3831 = vmatprep.subr.bf16.mxu0 %v3754
  %3832 = vmatpush1.bf16.msra.mxu0 %v3753
  %3833 = vmatprep.subr.bf16.mxu0 %v3784
  %3834 = vmatpush2.bf16.msra.mxu0 %v3783
  %3835 = vmatprep.subr.bf16.mxu0 %v3782
  %3836 = vmatpush2.bf16.msra.mxu0 %v3781
  %3837 = vmatprep.subr.bf16.mxu0 %v3780
  %3838 = vmatpush2.bf16.msra.mxu0 %v3779
  %3839 = vmatprep.subr.bf16.mxu0 %v3778
  %3840 = vmatpush2.bf16.msra.mxu0 %v3777
  %3841 = vmatprep.subr.bf16.mxu0 %v3776
  %3842 = vmatpush2.bf16.msra.mxu0 %v3775
  %3843 = vmatprep.subr.bf16.mxu0 %v3774
  %3844 = vmatpush2.bf16.msra.mxu0 %v3773
  %3845 = vmatprep.subr.bf16.mxu0 %v3772
  %3846 = vmatpush2.bf16.msra.mxu0 %v3771
  %3847 = vmatprep.subr.bf16.mxu0 %v3770
  %3848 = vmatpush2.bf16.msra.mxu0 %v3769
  %3849 = vmatprep.mubr.bf16.mxu0 %v3598
  %3850 = vmatmul.mubr.bf16.gmra.mxu0 %v3597
  %v3851 = vpop.f32.mrf.mxu0
  %v3852 = vadd.f32 %v3650, %v3851
  %v3853 = vpop.f32.mrf.mxu0
  %v3854 = vadd.f32 %v3654, %v3853
  %v3855 = vpop.f32.mrf.mxu0
  %v3856 = vadd.f32 %v3650, %v3855
  %v3857 = vpop.f32.mrf.mxu0
  %v3858 = vadd.f32 %v3654, %v3857
  %3859 = vmatprep.mubr.bf16.mxu0 %v3600
  %3860 = vmatmul.mubr.bf16.gmra.mxu0 %v3599
  %v3861 = vpop.f32.mrf.mxu0
  %v3862 = vadd.f32 %v3650, %v3861
  %v3863 = vpop.f32.mrf.mxu0
  %v3864 = vadd.f32 %v3654, %v3863
  %v3865 = vpop.f32.mrf.mxu0
  %v3866 = vadd.f32 %v3650, %v3865
  %v3867 = vpop.f32.mrf.mxu0
  %v3868 = vadd.f32 %v3654, %v3867
  %3869 = vmatprep.mubr.bf16.mxu0 %v3602
  %3870 = vmatmul.mubr.bf16.gmra.mxu0 %v3601
  %v3871 = vpop.f32.mrf.mxu0
  %v3872 = vadd.f32 %v3650, %v3871
  %v3873 = vpop.f32.mrf.mxu0
  %v3874 = vadd.f32 %v3654, %v3873
  %v3875 = vpop.f32.mrf.mxu0
  %v3876 = vadd.f32 %v3650, %v3875
  %v3877 = vpop.f32.mrf.mxu0
  %v3878 = vadd.f32 %v3654, %v3877
  %3879 = vmatprep.mubr.bf16.mxu0 %v3604
  %3880 = vmatmul.mubr.bf16.gmra.mxu0 %v3603
  %v3881 = vpop.f32.mrf.mxu0
  %v3882 = vadd.f32 %v3650, %v3881
  %v3883 = vpop.f32.mrf.mxu0
  %v3884 = vadd.f32 %v3654, %v3883
  %v3885 = vpop.f32.mrf.mxu0
  %v3886 = vadd.f32 %v3650, %v3885
  %v3887 = vpop.f32.mrf.mxu0
  %v3888 = vadd.f32 %v3654, %v3887
  %3889 = vmatprep.mubr.bf16.mxu0 %v3606
  %3890 = vmatmul.mubr.bf16.gmra.mxu0 %v3605
  %v3891 = vpop.f32.mrf.mxu0
  %v3892 = vadd.f32 %v3650, %v3891
  %v3893 = vpop.f32.mrf.mxu0
  %v3894 = vadd.f32 %v3654, %v3893
  %v3895 = vpop.f32.mrf.mxu0
  %v3896 = vadd.f32 %v3650, %v3895
  %v3897 = vpop.f32.mrf.mxu0
  %v3898 = vadd.f32 %v3654, %v3897
  %3899 = vmatprep.mubr.bf16.mxu0 %v3608
  %3900 = vmatmul.mubr.bf16.gmra.mxu0 %v3607
  %v3901 = vpop.f32.mrf.mxu0
  %v3902 = vadd.f32 %v3650, %v3901
  %v3903 = vpop.f32.mrf.mxu0
  %v3904 = vadd.f32 %v3654, %v3903
  %v3905 = vpop.f32.mrf.mxu0
  %v3906 = vadd.f32 %v3650, %v3905
  %v3907 = vpop.f32.mrf.mxu0
  %v3908 = vadd.f32 %v3654, %v3907
  %3909 = vmatprep.mubr.bf16.mxu0 %v3610
  %3910 = vmatmul.mubr.bf16.gmra.mxu0 %v3609
  %v3911 = vpop.f32.mrf.mxu0
  %v3912 = vadd.f32 %v3650, %v3911
  %v3913 = vpop.f32.mrf.mxu0
  %v3914 = vadd.f32 %v3654, %v3913
  %v3915 = vpop.f32.mrf.mxu0
  %v3916 = vadd.f32 %v3650, %v3915
  %v3917 = vpop.f32.mrf.mxu0
  %v3918 = vadd.f32 %v3654, %v3917
  %3919 = vmatprep.mubr.bf16.mxu0 %v3612
  %3920 = vmatmul.mubr.bf16.gmra.mxu0 %v3611
  %v3921 = vpop.f32.mrf.mxu0
  %v3922 = vadd.f32 %v3650, %v3921
  %v3923 = vpop.f32.mrf.mxu0
  %v3924 = vadd.f32 %v3654, %v3923
  %v3925 = vpop.f32.mrf.mxu0
  %v3926 = vadd.f32 %v3650, %v3925
  %v3927 = vpop.f32.mrf.mxu0
  %v3928 = vadd.f32 %v3654, %v3927
  %3929 = vdwg.mxu0
  %v3930 = vmul.u32 %v2176, 668265263
  %v3931 = vmul.u32 %v2177, 668265263
  %v3932 = vmul.u32 %v2178, 668265263
  %v3933 = vmul.u32 %v2179, 668265263
  %v3934 = vmul.u32 %v2180, 668265263
  %v3935 = vmul.u32 %v2181, 668265263
  %v3936 = vmul.u32 %v2182, 668265263
  %v3937 = vmul.u32 %v2183, 668265263
  %v3938 = vmul.u32 %v2184, 668265263
  %v3939 = vmul.u32 %v2185, 668265263
  %v3940 = vmul.u32 %v2186, 668265263
  %v3941 = vmul.u32 %v2187, 668265263
  %v3942 = vmul.u32 %v2188, 668265263
  %v3943 = vmul.u32 %v2189, 668265263
  %v3944 = vmul.u32 %v2190, 668265263
  %v3945 = vmul.u32 %v2191, 668265263
  %v3946 = vmul.u32 %v2192, 668265263
  %v3947 = vmul.u32 %v2193, 668265263
  %v3948 = vmul.u32 %v2194, 668265263
  %v3949 = vmul.u32 %v2195, 668265263
  %v3950 = vmul.u32 %v2196, 668265263
  %v3951 = vmul.u32 %v2197, 668265263
  %v3952 = vmul.u32 %v2198, 668265263
  %v3953 = vmul.u32 %v2199, 668265263
  %v3954 = vmul.u32 %v2200, 668265263
  %v3955 = vmul.u32 %v2201, 668265263
  %v3956 = vmul.u32 %v2202, 668265263
  %v3957 = vmul.u32 %v2203, 668265263
  %v3958 = vmul.u32 %v2204, 668265263
  %v3959 = vmul.u32 %v2205, 668265263
  %v3960 = vmul.u32 %v2206, 668265263
  %v3961 = vmul.u32 %v2207, 668265263
  %v3962 = vadd.s32 %v3930, %v545
  %v3963 = vadd.s32 %v3931, %v545
  %v3964 = vadd.s32 %v3932, %v545
  %v3965 = vadd.s32 %v3933, %v545
  %v3966 = vadd.s32 %v3934, %v545
  %v3967 = vadd.s32 %v3935, %v545
  %v3968 = vadd.s32 %v3936, %v545
  %v3969 = vadd.s32 %v3937, %v545
  %v3970 = vadd.s32 %v3938, %v545
  %v3971 = vadd.s32 %v3939, %v545
  %v3972 = vadd.s32 %v3940, %v545
  %v3973 = vadd.s32 %v3941, %v545
  %v3974 = vadd.s32 %v3942, %v545
  %v3975 = vadd.s32 %v3943, %v545
  %v3976 = vadd.s32 %v3944, %v545
  %v3977 = vadd.s32 %v3945, %v545
  %v3978 = vadd.s32 %v3946, %v545
  %v3979 = vadd.s32 %v3947, %v545
  %v3980 = vadd.s32 %v3948, %v545
  %v3981 = vadd.s32 %v3949, %v545
  %v3982 = vadd.s32 %v3950, %v545
  %v3983 = vadd.s32 %v3951, %v545
  %v3984 = vadd.s32 %v3952, %v545
  %v3985 = vadd.s32 %v3953, %v545
  %v3986 = vadd.s32 %v3954, %v545
  %v3987 = vadd.s32 %v3955, %v545
  %v3988 = vadd.s32 %v3956, %v545
  %v3989 = vadd.s32 %v3957, %v545
  %v3990 = vadd.s32 %v3958, %v545
  %v3991 = vadd.s32 %v3959, %v545
  %v3992 = vadd.s32 %v3960, %v545
  %v3993 = vadd.s32 %v3961, %v545
  %v3994 = vshrl.u32 %v3962, 16
  %v3995 = vshrl.u32 %v3963, 16
  %v3996 = vshrl.u32 %v3964, 16
  %v3997 = vshrl.u32 %v3965, 16
  %v3998 = vshrl.u32 %v3966, 16
  %v3999 = vshrl.u32 %v3967, 16
  %v4000 = vshrl.u32 %v3968, 16
  %v4001 = vshrl.u32 %v3969, 16
  %v4002 = vshrl.u32 %v3970, 16
  %v4003 = vshrl.u32 %v3971, 16
  %v4004 = vshrl.u32 %v3972, 16
  %v4005 = vshrl.u32 %v3973, 16
  %v4006 = vshrl.u32 %v3974, 16
  %v4007 = vshrl.u32 %v3975, 16
  %v4008 = vshrl.u32 %v3976, 16
  %v4009 = vshrl.u32 %v3977, 16
  %v4010 = vshrl.u32 %v3978, 16
  %v4011 = vshrl.u32 %v3979, 16
  %v4012 = vshrl.u32 %v3980, 16
  %v4013 = vshrl.u32 %v3981, 16
  %v4014 = vshrl.u32 %v3982, 16
  %v4015 = vshrl.u32 %v3983, 16
  %v4016 = vshrl.u32 %v3984, 16
  %v4017 = vshrl.u32 %v3985, 16
  %v4018 = vshrl.u32 %v3986, 16
  %v4019 = vshrl.u32 %v3987, 16
  %v4020 = vshrl.u32 %v3988, 16
  %v4021 = vshrl.u32 %v3989, 16
  %v4022 = vshrl.u32 %v3990, 16
  %v4023 = vshrl.u32 %v3991, 16
  %v4024 = vshrl.u32 %v3992, 16
  %v4025 = vshrl.u32 %v3993, 16
  %v4026 = vxor.u32 %v3962, %v3994
  %v4027 = vxor.u32 %v3963, %v3995
  %v4028 = vxor.u32 %v3964, %v3996
  %v4029 = vxor.u32 %v3965, %v3997
  %v4030 = vxor.u32 %v3966, %v3998
  %v4031 = vxor.u32 %v3967, %v3999
  %v4032 = vxor.u32 %v3968, %v4000
  %v4033 = vxor.u32 %v3969, %v4001
  %v4034 = vxor.u32 %v3970, %v4002
  %v4035 = vxor.u32 %v3971, %v4003
  %v4036 = vxor.u32 %v3972, %v4004
  %v4037 = vxor.u32 %v3973, %v4005
  %v4038 = vxor.u32 %v3974, %v4006
  %v4039 = vxor.u32 %v3975, %v4007
  %v4040 = vxor.u32 %v3976, %v4008
  %v4041 = vxor.u32 %v3977, %v4009
  %v4042 = vxor.u32 %v3978, %v4010
  %v4043 = vxor.u32 %v3979, %v4011
  %v4044 = vxor.u32 %v3980, %v4012
  %v4045 = vxor.u32 %v3981, %v4013
  %v4046 = vxor.u32 %v3982, %v4014
  %v4047 = vxor.u32 %v3983, %v4015
  %v4048 = vxor.u32 %v3984, %v4016
  %v4049 = vxor.u32 %v3985, %v4017
  %v4050 = vxor.u32 %v3986, %v4018
  %v4051 = vxor.u32 %v3987, %v4019
  %v4052 = vxor.u32 %v3988, %v4020
  %v4053 = vxor.u32 %v3989, %v4021
  %v4054 = vxor.u32 %v3990, %v4022
  %v4055 = vxor.u32 %v3991, %v4023
  %v4056 = vxor.u32 %v3992, %v4024
  %v4057 = vxor.u32 %v3993, %v4025
  %v4058 = vmul.u32 %v4026, 2146121005
  %v4059 = vmul.u32 %v4027, 2146121005
  %v4060 = vmul.u32 %v4028, 2146121005
  %v4061 = vmul.u32 %v4029, 2146121005
  %v4062 = vmul.u32 %v4030, 2146121005
  %v4063 = vmul.u32 %v4031, 2146121005
  %v4064 = vmul.u32 %v4032, 2146121005
  %v4065 = vmul.u32 %v4033, 2146121005
  %v4066 = vmul.u32 %v4034, 2146121005
  %v4067 = vmul.u32 %v4035, 2146121005
  %v4068 = vmul.u32 %v4036, 2146121005
  %v4069 = vmul.u32 %v4037, 2146121005
  %v4070 = vmul.u32 %v4038, 2146121005
  %v4071 = vmul.u32 %v4039, 2146121005
  %v4072 = vmul.u32 %v4040, 2146121005
  %v4073 = vmul.u32 %v4041, 2146121005
  %v4074 = vmul.u32 %v4042, 2146121005
  %v4075 = vmul.u32 %v4043, 2146121005
  %v4076 = vmul.u32 %v4044, 2146121005
  %v4077 = vmul.u32 %v4045, 2146121005
  %v4078 = vmul.u32 %v4046, 2146121005
  %v4079 = vmul.u32 %v4047, 2146121005
  %v4080 = vmul.u32 %v4048, 2146121005
  %v4081 = vmul.u32 %v4049, 2146121005
  %v4082 = vmul.u32 %v4050, 2146121005
  %v4083 = vmul.u32 %v4051, 2146121005
  %v4084 = vmul.u32 %v4052, 2146121005
  %v4085 = vmul.u32 %v4053, 2146121005
  %v4086 = vmul.u32 %v4054, 2146121005
  %v4087 = vmul.u32 %v4055, 2146121005
  %v4088 = vmul.u32 %v4056, 2146121005
  %v4089 = vmul.u32 %v4057, 2146121005
  %v4090 = vshrl.u32 %v4058, 15
  %v4091 = vshrl.u32 %v4059, 15
  %v4092 = vshrl.u32 %v4060, 15
  %v4093 = vshrl.u32 %v4061, 15
  %v4094 = vshrl.u32 %v4062, 15
  %v4095 = vshrl.u32 %v4063, 15
  %v4096 = vshrl.u32 %v4064, 15
  %v4097 = vshrl.u32 %v4065, 15
  %v4098 = vshrl.u32 %v4066, 15
  %v4099 = vshrl.u32 %v4067, 15
  %v4100 = vshrl.u32 %v4068, 15
  %v4101 = vshrl.u32 %v4069, 15
  %v4102 = vshrl.u32 %v4070, 15
  %v4103 = vshrl.u32 %v4071, 15
  %v4104 = vshrl.u32 %v4072, 15
  %v4105 = vshrl.u32 %v4073, 15
  %v4106 = vshrl.u32 %v4074, 15
  %v4107 = vshrl.u32 %v4075, 15
  %v4108 = vshrl.u32 %v4076, 15
  %v4109 = vshrl.u32 %v4077, 15
  %v4110 = vshrl.u32 %v4078, 15
  %v4111 = vshrl.u32 %v4079, 15
  %v4112 = vshrl.u32 %v4080, 15
  %v4113 = vshrl.u32 %v4081, 15
  %v4114 = vshrl.u32 %v4082, 15
  %v4115 = vshrl.u32 %v4083, 15
  %v4116 = vshrl.u32 %v4084, 15
  %v4117 = vshrl.u32 %v4085, 15
  %v4118 = vshrl.u32 %v4086, 15
  %v4119 = vshrl.u32 %v4087, 15
  %v4120 = vshrl.u32 %v4088, 15
  %v4121 = vshrl.u32 %v4089, 15
  %v4122 = vxor.u32 %v4058, %v4090
  %v4123 = vxor.u32 %v4059, %v4091
  %v4124 = vxor.u32 %v4060, %v4092
  %v4125 = vxor.u32 %v4061, %v4093
  %v4126 = vxor.u32 %v4062, %v4094
  %v4127 = vxor.u32 %v4063, %v4095
  %v4128 = vxor.u32 %v4064, %v4096
  %v4129 = vxor.u32 %v4065, %v4097
  %v4130 = vxor.u32 %v4066, %v4098
  %v4131 = vxor.u32 %v4067, %v4099
  %v4132 = vxor.u32 %v4068, %v4100
  %v4133 = vxor.u32 %v4069, %v4101
  %v4134 = vxor.u32 %v4070, %v4102
  %v4135 = vxor.u32 %v4071, %v4103
  %v4136 = vxor.u32 %v4072, %v4104
  %v4137 = vxor.u32 %v4073, %v4105
  %v4138 = vxor.u32 %v4074, %v4106
  %v4139 = vxor.u32 %v4075, %v4107
  %v4140 = vxor.u32 %v4076, %v4108
  %v4141 = vxor.u32 %v4077, %v4109
  %v4142 = vxor.u32 %v4078, %v4110
  %v4143 = vxor.u32 %v4079, %v4111
  %v4144 = vxor.u32 %v4080, %v4112
  %v4145 = vxor.u32 %v4081, %v4113
  %v4146 = vxor.u32 %v4082, %v4114
  %v4147 = vxor.u32 %v4083, %v4115
  %v4148 = vxor.u32 %v4084, %v4116
  %v4149 = vxor.u32 %v4085, %v4117
  %v4150 = vxor.u32 %v4086, %v4118
  %v4151 = vxor.u32 %v4087, %v4119
  %v4152 = vxor.u32 %v4088, %v4120
  %v4153 = vxor.u32 %v4089, %v4121
  %v4154 = vmul.u32 %v4122, 2221713035
  %v4155 = vmul.u32 %v4123, 2221713035
  %v4156 = vmul.u32 %v4124, 2221713035
  %v4157 = vmul.u32 %v4125, 2221713035
  %v4158 = vmul.u32 %v4126, 2221713035
  %v4159 = vmul.u32 %v4127, 2221713035
  %v4160 = vmul.u32 %v4128, 2221713035
  %v4161 = vmul.u32 %v4129, 2221713035
  %v4162 = vmul.u32 %v4130, 2221713035
  %v4163 = vmul.u32 %v4131, 2221713035
  %v4164 = vmul.u32 %v4132, 2221713035
  %v4165 = vmul.u32 %v4133, 2221713035
  %v4166 = vmul.u32 %v4134, 2221713035
  %v4167 = vmul.u32 %v4135, 2221713035
  %v4168 = vmul.u32 %v4136, 2221713035
  %v4169 = vmul.u32 %v4137, 2221713035
  %v4170 = vmul.u32 %v4138, 2221713035
  %v4171 = vmul.u32 %v4139, 2221713035
  %v4172 = vmul.u32 %v4140, 2221713035
  %v4173 = vmul.u32 %v4141, 2221713035
  %v4174 = vmul.u32 %v4142, 2221713035
  %v4175 = vmul.u32 %v4143, 2221713035
  %v4176 = vmul.u32 %v4144, 2221713035
  %v4177 = vmul.u32 %v4145, 2221713035
  %v4178 = vmul.u32 %v4146, 2221713035
  %v4179 = vmul.u32 %v4147, 2221713035
  %v4180 = vmul.u32 %v4148, 2221713035
  %v4181 = vmul.u32 %v4149, 2221713035
  %v4182 = vmul.u32 %v4150, 2221713035
  %v4183 = vmul.u32 %v4151, 2221713035
  %v4184 = vmul.u32 %v4152, 2221713035
  %v4185 = vmul.u32 %v4153, 2221713035
  %v4186 = vshrl.u32 %v4154, 16
  %v4187 = vshrl.u32 %v4155, 16
  %v4188 = vshrl.u32 %v4156, 16
  %v4189 = vshrl.u32 %v4157, 16
  %v4190 = vshrl.u32 %v4158, 16
  %v4191 = vshrl.u32 %v4159, 16
  %v4192 = vshrl.u32 %v4160, 16
  %v4193 = vshrl.u32 %v4161, 16
  %v4194 = vshrl.u32 %v4162, 16
  %v4195 = vshrl.u32 %v4163, 16
  %v4196 = vshrl.u32 %v4164, 16
  %v4197 = vshrl.u32 %v4165, 16
  %v4198 = vshrl.u32 %v4166, 16
  %v4199 = vshrl.u32 %v4167, 16
  %v4200 = vshrl.u32 %v4168, 16
  %v4201 = vshrl.u32 %v4169, 16
  %v4202 = vshrl.u32 %v4170, 16
  %v4203 = vshrl.u32 %v4171, 16
  %v4204 = vshrl.u32 %v4172, 16
  %v4205 = vshrl.u32 %v4173, 16
  %v4206 = vshrl.u32 %v4174, 16
  %v4207 = vshrl.u32 %v4175, 16
  %v4208 = vshrl.u32 %v4176, 16
  %v4209 = vshrl.u32 %v4177, 16
  %v4210 = vshrl.u32 %v4178, 16
  %v4211 = vshrl.u32 %v4179, 16
  %v4212 = vshrl.u32 %v4180, 16
  %v4213 = vshrl.u32 %v4181, 16
  %v4214 = vshrl.u32 %v4182, 16
  %v4215 = vshrl.u32 %v4183, 16
  %v4216 = vshrl.u32 %v4184, 16
  %v4217 = vshrl.u32 %v4185, 16
  %v4218 = vxor.u32 %v4154, %v4186
  %v4219 = vxor.u32 %v4155, %v4187
  %v4220 = vxor.u32 %v4156, %v4188
  %v4221 = vxor.u32 %v4157, %v4189
  %v4222 = vxor.u32 %v4158, %v4190
  %v4223 = vxor.u32 %v4159, %v4191
  %v4224 = vxor.u32 %v4160, %v4192
  %v4225 = vxor.u32 %v4161, %v4193
  %v4226 = vxor.u32 %v4162, %v4194
  %v4227 = vxor.u32 %v4163, %v4195
  %v4228 = vxor.u32 %v4164, %v4196
  %v4229 = vxor.u32 %v4165, %v4197
  %v4230 = vxor.u32 %v4166, %v4198
  %v4231 = vxor.u32 %v4167, %v4199
  %v4232 = vxor.u32 %v4168, %v4200
  %v4233 = vxor.u32 %v4169, %v4201
  %v4234 = vxor.u32 %v4170, %v4202
  %v4235 = vxor.u32 %v4171, %v4203
  %v4236 = vxor.u32 %v4172, %v4204
  %v4237 = vxor.u32 %v4173, %v4205
  %v4238 = vxor.u32 %v4174, %v4206
  %v4239 = vxor.u32 %v4175, %v4207
  %v4240 = vxor.u32 %v4176, %v4208
  %v4241 = vxor.u32 %v4177, %v4209
  %v4242 = vxor.u32 %v4178, %v4210
  %v4243 = vxor.u32 %v4179, %v4211
  %v4244 = vxor.u32 %v4180, %v4212
  %v4245 = vxor.u32 %v4181, %v4213
  %v4246 = vxor.u32 %v4182, %v4214
  %v4247 = vxor.u32 %v4183, %v4215
  %v4248 = vxor.u32 %v4184, %v4216
  %v4249 = vxor.u32 %v4185, %v4217
  %v4250 = vand.u32 %v4218, 65535
  %v4251 = vand.u32 %v4219, 65535
  %v4252 = vand.u32 %v4220, 65535
  %v4253 = vand.u32 %v4221, 65535
  %v4254 = vand.u32 %v4222, 65535
  %v4255 = vand.u32 %v4223, 65535
  %v4256 = vand.u32 %v4224, 65535
  %v4257 = vand.u32 %v4225, 65535
  %v4258 = vand.u32 %v4226, 65535
  %v4259 = vand.u32 %v4227, 65535
  %v4260 = vand.u32 %v4228, 65535
  %v4261 = vand.u32 %v4229, 65535
  %v4262 = vand.u32 %v4230, 65535
  %v4263 = vand.u32 %v4231, 65535
  %v4264 = vand.u32 %v4232, 65535
  %v4265 = vand.u32 %v4233, 65535
  %v4266 = vand.u32 %v4234, 65535
  %v4267 = vand.u32 %v4235, 65535
  %v4268 = vand.u32 %v4236, 65535
  %v4269 = vand.u32 %v4237, 65535
  %v4270 = vand.u32 %v4238, 65535
  %v4271 = vand.u32 %v4239, 65535
  %v4272 = vand.u32 %v4240, 65535
  %v4273 = vand.u32 %v4241, 65535
  %v4274 = vand.u32 %v4242, 65535
  %v4275 = vand.u32 %v4243, 65535
  %v4276 = vand.u32 %v4244, 65535
  %v4277 = vand.u32 %v4245, 65535
  %v4278 = vand.u32 %v4246, 65535
  %v4279 = vand.u32 %v4247, 65535
  %v4280 = vand.u32 %v4248, 65535
  %v4281 = vand.u32 %v4249, 65535
  %vm4282 = vcmp.ge.s32.totalorder %v4250, 6554
  %vm4283 = vcmp.ge.s32.totalorder %v4251, 6554
  %vm4284 = vcmp.ge.s32.totalorder %v4252, 6554
  %vm4285 = vcmp.ge.s32.totalorder %v4253, 6554
  %vm4286 = vcmp.ge.s32.totalorder %v4254, 6554
  %vm4287 = vcmp.ge.s32.totalorder %v4255, 6554
  %vm4288 = vcmp.ge.s32.totalorder %v4256, 6554
  %vm4289 = vcmp.ge.s32.totalorder %v4257, 6554
  %vm4290 = vcmp.ge.s32.totalorder %v4258, 6554
  %vm4291 = vcmp.ge.s32.totalorder %v4259, 6554
  %vm4292 = vcmp.ge.s32.totalorder %v4260, 6554
  %vm4293 = vcmp.ge.s32.totalorder %v4261, 6554
  %vm4294 = vcmp.ge.s32.totalorder %v4262, 6554
  %vm4295 = vcmp.ge.s32.totalorder %v4263, 6554
  %vm4296 = vcmp.ge.s32.totalorder %v4264, 6554
  %vm4297 = vcmp.ge.s32.totalorder %v4265, 6554
  %vm4298 = vcmp.ge.s32.totalorder %v4266, 6554
  %vm4299 = vcmp.ge.s32.totalorder %v4267, 6554
  %vm4300 = vcmp.ge.s32.totalorder %v4268, 6554
  %vm4301 = vcmp.ge.s32.totalorder %v4269, 6554
  %vm4302 = vcmp.ge.s32.totalorder %v4270, 6554
  %vm4303 = vcmp.ge.s32.totalorder %v4271, 6554
  %vm4304 = vcmp.ge.s32.totalorder %v4272, 6554
  %vm4305 = vcmp.ge.s32.totalorder %v4273, 6554
  %vm4306 = vcmp.ge.s32.totalorder %v4274, 6554
  %vm4307 = vcmp.ge.s32.totalorder %v4275, 6554
  %vm4308 = vcmp.ge.s32.totalorder %v4276, 6554
  %vm4309 = vcmp.ge.s32.totalorder %v4277, 6554
  %vm4310 = vcmp.ge.s32.totalorder %v4278, 6554
  %vm4311 = vcmp.ge.s32.totalorder %v4279, 6554
  %vm4312 = vcmp.ge.s32.totalorder %v4280, 6554
  %vm4313 = vcmp.ge.s32.totalorder %v4281, 6554
  %vm4314 = vcmp.gt.f32.partialorder %v3852, 0.0
  %vm4315 = vcmp.gt.f32.partialorder %v3854, 0.0
  %vm4316 = vcmp.gt.f32.partialorder %v3856, 0.0
  %vm4317 = vcmp.gt.f32.partialorder %v3858, 0.0
  %vm4318 = vcmp.gt.f32.partialorder %v3862, 0.0
  %vm4319 = vcmp.gt.f32.partialorder %v3864, 0.0
  %vm4320 = vcmp.gt.f32.partialorder %v3866, 0.0
  %vm4321 = vcmp.gt.f32.partialorder %v3868, 0.0
  %vm4322 = vcmp.gt.f32.partialorder %v3872, 0.0
  %vm4323 = vcmp.gt.f32.partialorder %v3874, 0.0
  %vm4324 = vcmp.gt.f32.partialorder %v3876, 0.0
  %vm4325 = vcmp.gt.f32.partialorder %v3878, 0.0
  %vm4326 = vcmp.gt.f32.partialorder %v3882, 0.0
  %vm4327 = vcmp.gt.f32.partialorder %v3884, 0.0
  %vm4328 = vcmp.gt.f32.partialorder %v3886, 0.0
  %vm4329 = vcmp.gt.f32.partialorder %v3888, 0.0
  %vm4330 = vcmp.gt.f32.partialorder %v3892, 0.0
  %vm4331 = vcmp.gt.f32.partialorder %v3894, 0.0
  %vm4332 = vcmp.gt.f32.partialorder %v3896, 0.0
  %vm4333 = vcmp.gt.f32.partialorder %v3898, 0.0
  %vm4334 = vcmp.gt.f32.partialorder %v3902, 0.0
  %vm4335 = vcmp.gt.f32.partialorder %v3904, 0.0
  %vm4336 = vcmp.gt.f32.partialorder %v3906, 0.0
  %vm4337 = vcmp.gt.f32.partialorder %v3908, 0.0
  %vm4338 = vcmp.gt.f32.partialorder %v3912, 0.0
  %vm4339 = vcmp.gt.f32.partialorder %v3914, 0.0
  %vm4340 = vcmp.gt.f32.partialorder %v3916, 0.0
  %vm4341 = vcmp.gt.f32.partialorder %v3918, 0.0
  %vm4342 = vcmp.gt.f32.partialorder %v3922, 0.0
  %vm4343 = vcmp.gt.f32.partialorder %v3924, 0.0
  %vm4344 = vcmp.gt.f32.partialorder %v3926, 0.0
  %vm4345 = vcmp.gt.f32.partialorder %v3928, 0.0
  %vm4346 = vmand %vm4282, %vm4314
  %vm4347 = vmand %vm4283, %vm4315
  %vm4348 = vmand %vm4284, %vm4316
  %vm4349 = vmand %vm4285, %vm4317
  %vm4350 = vmand %vm4286, %vm4318
  %vm4351 = vmand %vm4287, %vm4319
  %vm4352 = vmand %vm4288, %vm4320
  %vm4353 = vmand %vm4289, %vm4321
  %vm4354 = vmand %vm4290, %vm4322
  %vm4355 = vmand %vm4291, %vm4323
  %vm4356 = vmand %vm4292, %vm4324
  %vm4357 = vmand %vm4293, %vm4325
  %vm4358 = vmand %vm4294, %vm4326
  %vm4359 = vmand %vm4295, %vm4327
  %vm4360 = vmand %vm4296, %vm4328
  %vm4361 = vmand %vm4297, %vm4329
  %vm4362 = vmand %vm4298, %vm4330
  %vm4363 = vmand %vm4299, %vm4331
  %vm4364 = vmand %vm4300, %vm4332
  %vm4365 = vmand %vm4301, %vm4333
  %vm4366 = vmand %vm4302, %vm4334
  %vm4367 = vmand %vm4303, %vm4335
  %vm4368 = vmand %vm4304, %vm4336
  %vm4369 = vmand %vm4305, %vm4337
  %vm4370 = vmand %vm4306, %vm4338
  %vm4371 = vmand %vm4307, %vm4339
  %vm4372 = vmand %vm4308, %vm4340
  %vm4373 = vmand %vm4309, %vm4341
  %vm4374 = vmand %vm4310, %vm4342
  %vm4375 = vmand %vm4311, %vm4343
  %vm4376 = vmand %vm4312, %vm4344
  %vm4377 = vmand %vm4313, %vm4345
  %v4378 = vmul.f32 %v3852, 1.1111112
  %v4379 = vmul.f32 %v3854, 1.1111112
  %v4380 = vmul.f32 %v3856, 1.1111112
  %v4381 = vmul.f32 %v3858, 1.1111112
  %v4382 = vmul.f32 %v3862, 1.1111112
  %v4383 = vmul.f32 %v3864, 1.1111112
  %v4384 = vmul.f32 %v3866, 1.1111112
  %v4385 = vmul.f32 %v3868, 1.1111112
  %v4386 = vmul.f32 %v3872, 1.1111112
  %v4387 = vmul.f32 %v3874, 1.1111112
  %v4388 = vmul.f32 %v3876, 1.1111112
  %v4389 = vmul.f32 %v3878, 1.1111112
  %v4390 = vmul.f32 %v3882, 1.1111112
  %v4391 = vmul.f32 %v3884, 1.1111112
  %v4392 = vmul.f32 %v3886, 1.1111112
  %v4393 = vmul.f32 %v3888, 1.1111112
  %v4394 = vmul.f32 %v3892, 1.1111112
  %v4395 = vmul.f32 %v3894, 1.1111112
  %v4396 = vmul.f32 %v3896, 1.1111112
  %v4397 = vmul.f32 %v3898, 1.1111112
  %v4398 = vmul.f32 %v3902, 1.1111112
  %v4399 = vmul.f32 %v3904, 1.1111112
  %v4400 = vmul.f32 %v3906, 1.1111112
  %v4401 = vmul.f32 %v3908, 1.1111112
  %v4402 = vmul.f32 %v3912, 1.1111112
  %v4403 = vmul.f32 %v3914, 1.1111112
  %v4404 = vmul.f32 %v3916, 1.1111112
  %v4405 = vmul.f32 %v3918, 1.1111112
  %v4406 = vmul.f32 %v3922, 1.1111112
  %v4407 = vmul.f32 %v3924, 1.1111112
  %v4408 = vmul.f32 %v3926, 1.1111112
  %v4409 = vmul.f32 %v3928, 1.1111112
  %v4410 = vsel %vm4346, %v4378, 0.0
  %v4411 = vsel %vm4347, %v4379, 0.0
  %v4412 = vsel %vm4348, %v4380, 0.0
  %v4413 = vsel %vm4349, %v4381, 0.0
  %v4414 = vsel %vm4350, %v4382, 0.0
  %v4415 = vsel %vm4351, %v4383, 0.0
  %v4416 = vsel %vm4352, %v4384, 0.0
  %v4417 = vsel %vm4353, %v4385, 0.0
  %v4418 = vsel %vm4354, %v4386, 0.0
  %v4419 = vsel %vm4355, %v4387, 0.0
  %v4420 = vsel %vm4356, %v4388, 0.0
  %v4421 = vsel %vm4357, %v4389, 0.0
  %v4422 = vsel %vm4358, %v4390, 0.0
  %v4423 = vsel %vm4359, %v4391, 0.0
  %v4424 = vsel %vm4360, %v4392, 0.0
  %v4425 = vsel %vm4361, %v4393, 0.0
  %v4426 = vsel %vm4362, %v4394, 0.0
  %v4427 = vsel %vm4363, %v4395, 0.0
  %v4428 = vsel %vm4364, %v4396, 0.0
  %v4429 = vsel %vm4365, %v4397, 0.0
  %v4430 = vsel %vm4366, %v4398, 0.0
  %v4431 = vsel %vm4367, %v4399, 0.0
  %v4432 = vsel %vm4368, %v4400, 0.0
  %v4433 = vsel %vm4369, %v4401, 0.0
  %v4434 = vsel %vm4370, %v4402, 0.0
  %v4435 = vsel %vm4371, %v4403, 0.0
  %v4436 = vsel %vm4372, %v4404, 0.0
  %v4437 = vsel %vm4373, %v4405, 0.0
  %v4438 = vsel %vm4374, %v4406, 0.0
  %v4439 = vsel %vm4375, %v4407, 0.0
  %v4440 = vsel %vm4376, %v4408, 0.0
  %v4441 = vsel %vm4377, %v4409, 0.0
  %v4442 = vadd.f32 %v4410, %v3565
  %v4443 = vadd.f32 %v4411, %v3566
  %v4444 = vadd.f32 %v4412, %v3567
  %v4445 = vadd.f32 %v4413, %v3568
  %v4446 = vadd.f32 %v4414, %v3569
  %v4447 = vadd.f32 %v4415, %v3570
  %v4448 = vadd.f32 %v4416, %v3571
  %v4449 = vadd.f32 %v4417, %v3572
  %v4450 = vadd.f32 %v4418, %v3573
  %v4451 = vadd.f32 %v4419, %v3574
  %v4452 = vadd.f32 %v4420, %v3575
  %v4453 = vadd.f32 %v4421, %v3576
  %v4454 = vadd.f32 %v4422, %v3577
  %v4455 = vadd.f32 %v4423, %v3578
  %v4456 = vadd.f32 %v4424, %v3579
  %v4457 = vadd.f32 %v4425, %v3580
  %v4458 = vadd.f32 %v4426, %v3581
  %v4459 = vadd.f32 %v4427, %v3582
  %v4460 = vadd.f32 %v4428, %v3583
  %v4461 = vadd.f32 %v4429, %v3584
  %v4462 = vadd.f32 %v4430, %v3585
  %v4463 = vadd.f32 %v4431, %v3586
  %v4464 = vadd.f32 %v4432, %v3587
  %v4465 = vadd.f32 %v4433, %v3588
  %v4466 = vadd.f32 %v4434, %v3589
  %v4467 = vadd.f32 %v4435, %v3590
  %v4468 = vadd.f32 %v4436, %v3591
  %v4469 = vadd.f32 %v4437, %v3592
  %v4470 = vadd.f32 %v4438, %v3593
  %v4471 = vadd.f32 %v4439, %v3594
  %v4472 = vadd.f32 %v4440, %v3595
  %v4473 = vadd.f32 %v4441, %v3596
  %v4474 = vpack.c.bf16 %v4444, %v4442
  %v4475 = vpack.c.bf16 %v4445, %v4443
  %v4476 = vpack.c.bf16 %v4448, %v4446
  %v4477 = vpack.c.bf16 %v4449, %v4447
  %v4478 = vpack.c.bf16 %v4452, %v4450
  %v4479 = vpack.c.bf16 %v4453, %v4451
  %v4480 = vpack.c.bf16 %v4456, %v4454
  %v4481 = vpack.c.bf16 %v4457, %v4455
  %v4482 = vpack.c.bf16 %v4460, %v4458
  %v4483 = vpack.c.bf16 %v4461, %v4459
  %v4484 = vpack.c.bf16 %v4464, %v4462
  %v4485 = vpack.c.bf16 %v4465, %v4463
  %v4486 = vpack.c.bf16 %v4468, %v4466
  %v4487 = vpack.c.bf16 %v4469, %v4467
  %v4488 = vpack.c.bf16 %v4472, %v4470
  %v4489 = vpack.c.bf16 %v4473, %v4471
  %v4490 = vld [vmem:[%s10] sm:$0xff]
  %v4491 = vld [vmem:[%s10 + $0x8] sm:$0xff]
  %v4492 = vld [vmem:[%s10 + $0x10] sm:$0xff]
  %v4493 = vld [vmem:[%s10 + $0x18] sm:$0xff]
  %v4494 = vld [vmem:[%s10 + $0x20] sm:$0xff]
  %v4495 = vld [vmem:[%s10 + $0x28] sm:$0xff]
  %v4496 = vld [vmem:[%s10 + $0x30] sm:$0xff]
  %v4497 = vld [vmem:[%s10 + $0x38] sm:$0xff]
  %v4498 = vld [vmem:[%s10 + $0x40] sm:$0xff]
  %v4499 = vld [vmem:[%s10 + $0x48] sm:$0xff]
  %v4500 = vld [vmem:[%s10 + $0x50] sm:$0xff]
  %v4501 = vld [vmem:[%s10 + $0x58] sm:$0xff]
  %v4502 = vld [vmem:[%s10 + $0x60] sm:$0xff]
  %v4503 = vld [vmem:[%s10 + $0x68] sm:$0xff]
  %v4504 = vld [vmem:[%s10 + $0x70] sm:$0xff]
  %v4505 = vld [vmem:[%s10 + $0x78] sm:$0xff]
  %v4506 = vld [vmem:[%s10 + $0x80] sm:$0xff]
  %v4507 = vld [vmem:[%s10 + $0x88] sm:$0xff]
  %v4508 = vld [vmem:[%s10 + $0x90] sm:$0xff]
  %v4509 = vld [vmem:[%s10 + $0x98] sm:$0xff]
  %v4510 = vld [vmem:[%s10 + $0xa0] sm:$0xff]
  %v4511 = vld [vmem:[%s10 + $0xa8] sm:$0xff]
  %v4512 = vld [vmem:[%s10 + $0xb0] sm:$0xff]
  %v4513 = vld [vmem:[%s10 + $0xb8] sm:$0xff]
  %v4514 = vld [vmem:[%s10 + $0xc0] sm:$0xff]
  %v4515 = vld [vmem:[%s10 + $0xc8] sm:$0xff]
  %v4516 = vld [vmem:[%s10 + $0xd0] sm:$0xff]
  %v4517 = vld [vmem:[%s10 + $0xd8] sm:$0xff]
  %v4518 = vld [vmem:[%s10 + $0xe0] sm:$0xff]
  %v4519 = vld [vmem:[%s10 + $0xe8] sm:$0xff]
  %v4520 = vld [vmem:[%s10 + $0xf0] sm:$0xff]
  %v4521 = vld [vmem:[%s10 + $0xf8] sm:$0xff]
  %v4522 = vld [vmem:[%s11] sm:$0x3]
  %v4524 = vlaneseq
  %v4525 = vshrl.u32 %v4524, 7
  %v4526 = vsub.s32 0, %v4525
  %v4527 = vrot.slane %v4522, %v4526
  %v4528 = vlaneseq
  %v4529 = vshrl.u32 %v4528, 7
  %v4530 = vsub.s32 1, %v4529
  %v4531 = vrot.slane %v4522, %v4530
  %v4566 = vunpack.c.l.b16 %v4490
  %v4567 = vunpack.c.h.b16 %v4490
  %v4568 = vunpack.c.l.b16 %v4491
  %v4569 = vunpack.c.h.b16 %v4491
  %v4570 = vunpack.c.l.b16 %v4492
  %v4571 = vunpack.c.h.b16 %v4492
  %v4572 = vunpack.c.l.b16 %v4493
  %v4573 = vunpack.c.h.b16 %v4493
  %v4574 = vunpack.c.l.b16 %v4494
  %v4575 = vunpack.c.h.b16 %v4494
  %v4576 = vunpack.c.l.b16 %v4495
  %v4577 = vunpack.c.h.b16 %v4495
  %v4578 = vunpack.c.l.b16 %v4496
  %v4579 = vunpack.c.h.b16 %v4496
  %v4580 = vunpack.c.l.b16 %v4497
  %v4581 = vunpack.c.h.b16 %v4497
  %v4582 = vunpack.c.l.b16 %v4498
  %v4583 = vunpack.c.h.b16 %v4498
  %v4584 = vunpack.c.l.b16 %v4499
  %v4585 = vunpack.c.h.b16 %v4499
  %v4586 = vunpack.c.l.b16 %v4500
  %v4587 = vunpack.c.h.b16 %v4500
  %v4588 = vunpack.c.l.b16 %v4501
  %v4589 = vunpack.c.h.b16 %v4501
  %v4590 = vunpack.c.l.b16 %v4502
  %v4591 = vunpack.c.h.b16 %v4502
  %v4592 = vunpack.c.l.b16 %v4503
  %v4593 = vunpack.c.h.b16 %v4503
  %v4594 = vunpack.c.l.b16 %v4504
  %v4595 = vunpack.c.h.b16 %v4504
  %v4596 = vunpack.c.l.b16 %v4505
  %v4597 = vunpack.c.h.b16 %v4505
  %v4598 = vunpack.c.l.b16 %v4506
  %v4599 = vunpack.c.h.b16 %v4506
  %v4600 = vunpack.c.l.b16 %v4507
  %v4601 = vunpack.c.h.b16 %v4507
  %v4602 = vunpack.c.l.b16 %v4508
  %v4603 = vunpack.c.h.b16 %v4508
  %v4604 = vunpack.c.l.b16 %v4509
  %v4605 = vunpack.c.h.b16 %v4509
  %v4606 = vunpack.c.l.b16 %v4510
  %v4607 = vunpack.c.h.b16 %v4510
  %v4608 = vunpack.c.l.b16 %v4511
  %v4609 = vunpack.c.h.b16 %v4511
  %v4610 = vunpack.c.l.b16 %v4512
  %v4611 = vunpack.c.h.b16 %v4512
  %v4612 = vunpack.c.l.b16 %v4513
  %v4613 = vunpack.c.h.b16 %v4513
  %v4614 = vunpack.c.l.b16 %v4514
  %v4615 = vunpack.c.h.b16 %v4514
  %v4616 = vunpack.c.l.b16 %v4515
  %v4617 = vunpack.c.h.b16 %v4515
  %v4618 = vunpack.c.l.b16 %v4516
  %v4619 = vunpack.c.h.b16 %v4516
  %v4620 = vunpack.c.l.b16 %v4517
  %v4621 = vunpack.c.h.b16 %v4517
  %v4622 = vunpack.c.l.b16 %v4518
  %v4623 = vunpack.c.h.b16 %v4518
  %v4624 = vunpack.c.l.b16 %v4519
  %v4625 = vunpack.c.h.b16 %v4519
  %v4626 = vunpack.c.l.b16 %v4520
  %v4627 = vunpack.c.h.b16 %v4520
  %v4628 = vunpack.c.l.b16 %v4521
  %v4629 = vunpack.c.h.b16 %v4521
  %v4630 = vpack.c.b16 %v4568, %v4566
  %v4631 = vpack.c.b16 %v4569, %v4567
  %v4632 = vpack.c.b16 %v4572, %v4570
  %v4633 = vpack.c.b16 %v4573, %v4571
  %v4634 = vpack.c.b16 %v4576, %v4574
  %v4635 = vpack.c.b16 %v4577, %v4575
  %v4636 = vpack.c.b16 %v4580, %v4578
  %v4637 = vpack.c.b16 %v4581, %v4579
  %v4638 = vpack.c.b16 %v4584, %v4582
  %v4639 = vpack.c.b16 %v4585, %v4583
  %v4640 = vpack.c.b16 %v4588, %v4586
  %v4641 = vpack.c.b16 %v4589, %v4587
  %v4642 = vpack.c.b16 %v4592, %v4590
  %v4643 = vpack.c.b16 %v4593, %v4591
  %v4644 = vpack.c.b16 %v4596, %v4594
  %v4645 = vpack.c.b16 %v4597, %v4595
  %v4646 = vpack.c.b16 %v4600, %v4598
  %v4647 = vpack.c.b16 %v4601, %v4599
  %v4648 = vpack.c.b16 %v4604, %v4602
  %v4649 = vpack.c.b16 %v4605, %v4603
  %v4650 = vpack.c.b16 %v4608, %v4606
  %v4651 = vpack.c.b16 %v4609, %v4607
  %v4652 = vpack.c.b16 %v4612, %v4610
  %v4653 = vpack.c.b16 %v4613, %v4611
  %v4654 = vpack.c.b16 %v4616, %v4614
  %v4655 = vpack.c.b16 %v4617, %v4615
  %v4656 = vpack.c.b16 %v4620, %v4618
  %v4657 = vpack.c.b16 %v4621, %v4619
  %v4658 = vpack.c.b16 %v4624, %v4622
  %v4659 = vpack.c.b16 %v4625, %v4623
  %v4660 = vpack.c.b16 %v4628, %v4626
  %v4661 = vpack.c.b16 %v4629, %v4627
  %4694 = vmatprep.subr.bf16.mxu0 %v4645
  %4695 = vmatpush1.bf16.msra.mxu0 %v4644
  %4696 = vmatprep.subr.bf16.mxu0 %v4643
  %4697 = vmatpush1.bf16.msra.mxu0 %v4642
  %4698 = vmatprep.subr.bf16.mxu0 %v4641
  %4699 = vmatpush1.bf16.msra.mxu0 %v4640
  %4700 = vmatprep.subr.bf16.mxu0 %v4639
  %4701 = vmatpush1.bf16.msra.mxu0 %v4638
  %4702 = vmatprep.subr.bf16.mxu0 %v4637
  %4703 = vmatpush1.bf16.msra.mxu0 %v4636
  %4704 = vmatprep.subr.bf16.mxu0 %v4635
  %4705 = vmatpush1.bf16.msra.mxu0 %v4634
  %4706 = vmatprep.subr.bf16.mxu0 %v4633
  %4707 = vmatpush1.bf16.msra.mxu0 %v4632
  %4708 = vmatprep.subr.bf16.mxu0 %v4631
  %4709 = vmatpush1.bf16.msra.mxu0 %v4630
  %4710 = vmatprep.subr.bf16.mxu0 %v4661
  %4711 = vmatpush2.bf16.msra.mxu0 %v4660
  %4712 = vmatprep.subr.bf16.mxu0 %v4659
  %4713 = vmatpush2.bf16.msra.mxu0 %v4658
  %4714 = vmatprep.subr.bf16.mxu0 %v4657
  %4715 = vmatpush2.bf16.msra.mxu0 %v4656
  %4716 = vmatprep.subr.bf16.mxu0 %v4655
  %4717 = vmatpush2.bf16.msra.mxu0 %v4654
  %4718 = vmatprep.subr.bf16.mxu0 %v4653
  %4719 = vmatpush2.bf16.msra.mxu0 %v4652
  %4720 = vmatprep.subr.bf16.mxu0 %v4651
  %4721 = vmatpush2.bf16.msra.mxu0 %v4650
  %4722 = vmatprep.subr.bf16.mxu0 %v4649
  %4723 = vmatpush2.bf16.msra.mxu0 %v4648
  %4724 = vmatprep.subr.bf16.mxu0 %v4647
  %4725 = vmatpush2.bf16.msra.mxu0 %v4646
  %4726 = vmatprep.mubr.bf16.mxu0 %v4475
  %4727 = vmatmul.mubr.bf16.gmra.mxu0 %v4474
  %v4728 = vpop.f32.mrf.mxu0
  %v4729 = vadd.f32 %v4527, %v4728
  %v4730 = vpop.f32.mrf.mxu0
  %v4731 = vadd.f32 %v4531, %v4730
  %v4732 = vpop.f32.mrf.mxu0
  %v4733 = vadd.f32 %v4527, %v4732
  %v4734 = vpop.f32.mrf.mxu0
  %v4735 = vadd.f32 %v4531, %v4734
  %4736 = vmatprep.mubr.bf16.mxu0 %v4477
  %4737 = vmatmul.mubr.bf16.gmra.mxu0 %v4476
  %v4738 = vpop.f32.mrf.mxu0
  %v4739 = vadd.f32 %v4527, %v4738
  %v4740 = vpop.f32.mrf.mxu0
  %v4741 = vadd.f32 %v4531, %v4740
  %v4742 = vpop.f32.mrf.mxu0
  %v4743 = vadd.f32 %v4527, %v4742
  %v4744 = vpop.f32.mrf.mxu0
  %v4745 = vadd.f32 %v4531, %v4744
  %4746 = vmatprep.mubr.bf16.mxu0 %v4479
  %4747 = vmatmul.mubr.bf16.gmra.mxu0 %v4478
  %v4748 = vpop.f32.mrf.mxu0
  %v4749 = vadd.f32 %v4527, %v4748
  %v4750 = vpop.f32.mrf.mxu0
  %v4751 = vadd.f32 %v4531, %v4750
  %v4752 = vpop.f32.mrf.mxu0
  %v4753 = vadd.f32 %v4527, %v4752
  %v4754 = vpop.f32.mrf.mxu0
  %v4755 = vadd.f32 %v4531, %v4754
  %4756 = vmatprep.mubr.bf16.mxu0 %v4481
  %4757 = vmatmul.mubr.bf16.gmra.mxu0 %v4480
  %v4758 = vpop.f32.mrf.mxu0
  %v4759 = vadd.f32 %v4527, %v4758
  %v4760 = vpop.f32.mrf.mxu0
  %v4761 = vadd.f32 %v4531, %v4760
  %v4762 = vpop.f32.mrf.mxu0
  %v4763 = vadd.f32 %v4527, %v4762
  %v4764 = vpop.f32.mrf.mxu0
  %v4765 = vadd.f32 %v4531, %v4764
  %4766 = vmatprep.mubr.bf16.mxu0 %v4483
  %4767 = vmatmul.mubr.bf16.gmra.mxu0 %v4482
  %v4768 = vpop.f32.mrf.mxu0
  %v4769 = vadd.f32 %v4527, %v4768
  %v4770 = vpop.f32.mrf.mxu0
  %v4771 = vadd.f32 %v4531, %v4770
  %v4772 = vpop.f32.mrf.mxu0
  %v4773 = vadd.f32 %v4527, %v4772
  %v4774 = vpop.f32.mrf.mxu0
  %v4775 = vadd.f32 %v4531, %v4774
  %4776 = vmatprep.mubr.bf16.mxu0 %v4485
  %4777 = vmatmul.mubr.bf16.gmra.mxu0 %v4484
  %v4778 = vpop.f32.mrf.mxu0
  %v4779 = vadd.f32 %v4527, %v4778
  %v4780 = vpop.f32.mrf.mxu0
  %v4781 = vadd.f32 %v4531, %v4780
  %v4782 = vpop.f32.mrf.mxu0
  %v4783 = vadd.f32 %v4527, %v4782
  %v4784 = vpop.f32.mrf.mxu0
  %v4785 = vadd.f32 %v4531, %v4784
  %4786 = vmatprep.mubr.bf16.mxu0 %v4487
  %4787 = vmatmul.mubr.bf16.gmra.mxu0 %v4486
  %v4788 = vpop.f32.mrf.mxu0
  %v4789 = vadd.f32 %v4527, %v4788
  %v4790 = vpop.f32.mrf.mxu0
  %v4791 = vadd.f32 %v4531, %v4790
  %v4792 = vpop.f32.mrf.mxu0
  %v4793 = vadd.f32 %v4527, %v4792
  %v4794 = vpop.f32.mrf.mxu0
  %v4795 = vadd.f32 %v4531, %v4794
  %4796 = vmatprep.mubr.bf16.mxu0 %v4489
  %4797 = vmatmul.mubr.bf16.gmra.mxu0 %v4488
  %v4798 = vpop.f32.mrf.mxu0
  %v4799 = vadd.f32 %v4527, %v4798
  %v4800 = vpop.f32.mrf.mxu0
  %v4801 = vadd.f32 %v4531, %v4800
  %v4802 = vpop.f32.mrf.mxu0
  %v4803 = vadd.f32 %v4527, %v4802
  %v4804 = vpop.f32.mrf.mxu0
  %v4805 = vadd.f32 %v4531, %v4804
  %4806 = vdwg.mxu0
  %v4807 = vmul.u32 %v2176, 374761393
  %v4808 = vmul.u32 %v2177, 374761393
  %v4809 = vmul.u32 %v2178, 374761393
  %v4810 = vmul.u32 %v2179, 374761393
  %v4811 = vmul.u32 %v2180, 374761393
  %v4812 = vmul.u32 %v2181, 374761393
  %v4813 = vmul.u32 %v2182, 374761393
  %v4814 = vmul.u32 %v2183, 374761393
  %v4815 = vmul.u32 %v2184, 374761393
  %v4816 = vmul.u32 %v2185, 374761393
  %v4817 = vmul.u32 %v2186, 374761393
  %v4818 = vmul.u32 %v2187, 374761393
  %v4819 = vmul.u32 %v2188, 374761393
  %v4820 = vmul.u32 %v2189, 374761393
  %v4821 = vmul.u32 %v2190, 374761393
  %v4822 = vmul.u32 %v2191, 374761393
  %v4823 = vmul.u32 %v2192, 374761393
  %v4824 = vmul.u32 %v2193, 374761393
  %v4825 = vmul.u32 %v2194, 374761393
  %v4826 = vmul.u32 %v2195, 374761393
  %v4827 = vmul.u32 %v2196, 374761393
  %v4828 = vmul.u32 %v2197, 374761393
  %v4829 = vmul.u32 %v2198, 374761393
  %v4830 = vmul.u32 %v2199, 374761393
  %v4831 = vmul.u32 %v2200, 374761393
  %v4832 = vmul.u32 %v2201, 374761393
  %v4833 = vmul.u32 %v2202, 374761393
  %v4834 = vmul.u32 %v2203, 374761393
  %v4835 = vmul.u32 %v2204, 374761393
  %v4836 = vmul.u32 %v2205, 374761393
  %v4837 = vmul.u32 %v2206, 374761393
  %v4838 = vmul.u32 %v2207, 374761393
  %v4839 = vadd.s32 %v4807, %v545
  %v4840 = vadd.s32 %v4808, %v545
  %v4841 = vadd.s32 %v4809, %v545
  %v4842 = vadd.s32 %v4810, %v545
  %v4843 = vadd.s32 %v4811, %v545
  %v4844 = vadd.s32 %v4812, %v545
  %v4845 = vadd.s32 %v4813, %v545
  %v4846 = vadd.s32 %v4814, %v545
  %v4847 = vadd.s32 %v4815, %v545
  %v4848 = vadd.s32 %v4816, %v545
  %v4849 = vadd.s32 %v4817, %v545
  %v4850 = vadd.s32 %v4818, %v545
  %v4851 = vadd.s32 %v4819, %v545
  %v4852 = vadd.s32 %v4820, %v545
  %v4853 = vadd.s32 %v4821, %v545
  %v4854 = vadd.s32 %v4822, %v545
  %v4855 = vadd.s32 %v4823, %v545
  %v4856 = vadd.s32 %v4824, %v545
  %v4857 = vadd.s32 %v4825, %v545
  %v4858 = vadd.s32 %v4826, %v545
  %v4859 = vadd.s32 %v4827, %v545
  %v4860 = vadd.s32 %v4828, %v545
  %v4861 = vadd.s32 %v4829, %v545
  %v4862 = vadd.s32 %v4830, %v545
  %v4863 = vadd.s32 %v4831, %v545
  %v4864 = vadd.s32 %v4832, %v545
  %v4865 = vadd.s32 %v4833, %v545
  %v4866 = vadd.s32 %v4834, %v545
  %v4867 = vadd.s32 %v4835, %v545
  %v4868 = vadd.s32 %v4836, %v545
  %v4869 = vadd.s32 %v4837, %v545
  %v4870 = vadd.s32 %v4838, %v545
  %v4871 = vshrl.u32 %v4839, 16
  %v4872 = vshrl.u32 %v4840, 16
  %v4873 = vshrl.u32 %v4841, 16
  %v4874 = vshrl.u32 %v4842, 16
  %v4875 = vshrl.u32 %v4843, 16
  %v4876 = vshrl.u32 %v4844, 16
  %v4877 = vshrl.u32 %v4845, 16
  %v4878 = vshrl.u32 %v4846, 16
  %v4879 = vshrl.u32 %v4847, 16
  %v4880 = vshrl.u32 %v4848, 16
  %v4881 = vshrl.u32 %v4849, 16
  %v4882 = vshrl.u32 %v4850, 16
  %v4883 = vshrl.u32 %v4851, 16
  %v4884 = vshrl.u32 %v4852, 16
  %v4885 = vshrl.u32 %v4853, 16
  %v4886 = vshrl.u32 %v4854, 16
  %v4887 = vshrl.u32 %v4855, 16
  %v4888 = vshrl.u32 %v4856, 16
  %v4889 = vshrl.u32 %v4857, 16
  %v4890 = vshrl.u32 %v4858, 16
  %v4891 = vshrl.u32 %v4859, 16
  %v4892 = vshrl.u32 %v4860, 16
  %v4893 = vshrl.u32 %v4861, 16
  %v4894 = vshrl.u32 %v4862, 16
  %v4895 = vshrl.u32 %v4863, 16
  %v4896 = vshrl.u32 %v4864, 16
  %v4897 = vshrl.u32 %v4865, 16
  %v4898 = vshrl.u32 %v4866, 16
  %v4899 = vshrl.u32 %v4867, 16
  %v4900 = vshrl.u32 %v4868, 16
  %v4901 = vshrl.u32 %v4869, 16
  %v4902 = vshrl.u32 %v4870, 16
  %v4903 = vxor.u32 %v4839, %v4871
  %v4904 = vxor.u32 %v4840, %v4872
  %v4905 = vxor.u32 %v4841, %v4873
  %v4906 = vxor.u32 %v4842, %v4874
  %v4907 = vxor.u32 %v4843, %v4875
  %v4908 = vxor.u32 %v4844, %v4876
  %v4909 = vxor.u32 %v4845, %v4877
  %v4910 = vxor.u32 %v4846, %v4878
  %v4911 = vxor.u32 %v4847, %v4879
  %v4912 = vxor.u32 %v4848, %v4880
  %v4913 = vxor.u32 %v4849, %v4881
  %v4914 = vxor.u32 %v4850, %v4882
  %v4915 = vxor.u32 %v4851, %v4883
  %v4916 = vxor.u32 %v4852, %v4884
  %v4917 = vxor.u32 %v4853, %v4885
  %v4918 = vxor.u32 %v4854, %v4886
  %v4919 = vxor.u32 %v4855, %v4887
  %v4920 = vxor.u32 %v4856, %v4888
  %v4921 = vxor.u32 %v4857, %v4889
  %v4922 = vxor.u32 %v4858, %v4890
  %v4923 = vxor.u32 %v4859, %v4891
  %v4924 = vxor.u32 %v4860, %v4892
  %v4925 = vxor.u32 %v4861, %v4893
  %v4926 = vxor.u32 %v4862, %v4894
  %v4927 = vxor.u32 %v4863, %v4895
  %v4928 = vxor.u32 %v4864, %v4896
  %v4929 = vxor.u32 %v4865, %v4897
  %v4930 = vxor.u32 %v4866, %v4898
  %v4931 = vxor.u32 %v4867, %v4899
  %v4932 = vxor.u32 %v4868, %v4900
  %v4933 = vxor.u32 %v4869, %v4901
  %v4934 = vxor.u32 %v4870, %v4902
  %v4935 = vmul.u32 %v4903, 2146121005
  %v4936 = vmul.u32 %v4904, 2146121005
  %v4937 = vmul.u32 %v4905, 2146121005
  %v4938 = vmul.u32 %v4906, 2146121005
  %v4939 = vmul.u32 %v4907, 2146121005
  %v4940 = vmul.u32 %v4908, 2146121005
  %v4941 = vmul.u32 %v4909, 2146121005
  %v4942 = vmul.u32 %v4910, 2146121005
  %v4943 = vmul.u32 %v4911, 2146121005
  %v4944 = vmul.u32 %v4912, 2146121005
  %v4945 = vmul.u32 %v4913, 2146121005
  %v4946 = vmul.u32 %v4914, 2146121005
  %v4947 = vmul.u32 %v4915, 2146121005
  %v4948 = vmul.u32 %v4916, 2146121005
  %v4949 = vmul.u32 %v4917, 2146121005
  %v4950 = vmul.u32 %v4918, 2146121005
  %v4951 = vmul.u32 %v4919, 2146121005
  %v4952 = vmul.u32 %v4920, 2146121005
  %v4953 = vmul.u32 %v4921, 2146121005
  %v4954 = vmul.u32 %v4922, 2146121005
  %v4955 = vmul.u32 %v4923, 2146121005
  %v4956 = vmul.u32 %v4924, 2146121005
  %v4957 = vmul.u32 %v4925, 2146121005
  %v4958 = vmul.u32 %v4926, 2146121005
  %v4959 = vmul.u32 %v4927, 2146121005
  %v4960 = vmul.u32 %v4928, 2146121005
  %v4961 = vmul.u32 %v4929, 2146121005
  %v4962 = vmul.u32 %v4930, 2146121005
  %v4963 = vmul.u32 %v4931, 2146121005
  %v4964 = vmul.u32 %v4932, 2146121005
  %v4965 = vmul.u32 %v4933, 2146121005
  %v4966 = vmul.u32 %v4934, 2146121005
  %v4967 = vshrl.u32 %v4935, 15
  %v4968 = vshrl.u32 %v4936, 15
  %v4969 = vshrl.u32 %v4937, 15
  %v4970 = vshrl.u32 %v4938, 15
  %v4971 = vshrl.u32 %v4939, 15
  %v4972 = vshrl.u32 %v4940, 15
  %v4973 = vshrl.u32 %v4941, 15
  %v4974 = vshrl.u32 %v4942, 15
  %v4975 = vshrl.u32 %v4943, 15
  %v4976 = vshrl.u32 %v4944, 15
  %v4977 = vshrl.u32 %v4945, 15
  %v4978 = vshrl.u32 %v4946, 15
  %v4979 = vshrl.u32 %v4947, 15
  %v4980 = vshrl.u32 %v4948, 15
  %v4981 = vshrl.u32 %v4949, 15
  %v4982 = vshrl.u32 %v4950, 15
  %v4983 = vshrl.u32 %v4951, 15
  %v4984 = vshrl.u32 %v4952, 15
  %v4985 = vshrl.u32 %v4953, 15
  %v4986 = vshrl.u32 %v4954, 15
  %v4987 = vshrl.u32 %v4955, 15
  %v4988 = vshrl.u32 %v4956, 15
  %v4989 = vshrl.u32 %v4957, 15
  %v4990 = vshrl.u32 %v4958, 15
  %v4991 = vshrl.u32 %v4959, 15
  %v4992 = vshrl.u32 %v4960, 15
  %v4993 = vshrl.u32 %v4961, 15
  %v4994 = vshrl.u32 %v4962, 15
  %v4995 = vshrl.u32 %v4963, 15
  %v4996 = vshrl.u32 %v4964, 15
  %v4997 = vshrl.u32 %v4965, 15
  %v4998 = vshrl.u32 %v4966, 15
  %v4999 = vxor.u32 %v4935, %v4967
  %v5000 = vxor.u32 %v4936, %v4968
  %v5001 = vxor.u32 %v4937, %v4969
  %v5002 = vxor.u32 %v4938, %v4970
  %v5003 = vxor.u32 %v4939, %v4971
  %v5004 = vxor.u32 %v4940, %v4972
  %v5005 = vxor.u32 %v4941, %v4973
  %v5006 = vxor.u32 %v4942, %v4974
  %v5007 = vxor.u32 %v4943, %v4975
  %v5008 = vxor.u32 %v4944, %v4976
  %v5009 = vxor.u32 %v4945, %v4977
  %v5010 = vxor.u32 %v4946, %v4978
  %v5011 = vxor.u32 %v4947, %v4979
  %v5012 = vxor.u32 %v4948, %v4980
  %v5013 = vxor.u32 %v4949, %v4981
  %v5014 = vxor.u32 %v4950, %v4982
  %v5015 = vxor.u32 %v4951, %v4983
  %v5016 = vxor.u32 %v4952, %v4984
  %v5017 = vxor.u32 %v4953, %v4985
  %v5018 = vxor.u32 %v4954, %v4986
  %v5019 = vxor.u32 %v4955, %v4987
  %v5020 = vxor.u32 %v4956, %v4988
  %v5021 = vxor.u32 %v4957, %v4989
  %v5022 = vxor.u32 %v4958, %v4990
  %v5023 = vxor.u32 %v4959, %v4991
  %v5024 = vxor.u32 %v4960, %v4992
  %v5025 = vxor.u32 %v4961, %v4993
  %v5026 = vxor.u32 %v4962, %v4994
  %v5027 = vxor.u32 %v4963, %v4995
  %v5028 = vxor.u32 %v4964, %v4996
  %v5029 = vxor.u32 %v4965, %v4997
  %v5030 = vxor.u32 %v4966, %v4998
  %v5031 = vmul.u32 %v4999, 2221713035
  %v5032 = vmul.u32 %v5000, 2221713035
  %v5033 = vmul.u32 %v5001, 2221713035
  %v5034 = vmul.u32 %v5002, 2221713035
  %v5035 = vmul.u32 %v5003, 2221713035
  %v5036 = vmul.u32 %v5004, 2221713035
  %v5037 = vmul.u32 %v5005, 2221713035
  %v5038 = vmul.u32 %v5006, 2221713035
  %v5039 = vmul.u32 %v5007, 2221713035
  %v5040 = vmul.u32 %v5008, 2221713035
  %v5041 = vmul.u32 %v5009, 2221713035
  %v5042 = vmul.u32 %v5010, 2221713035
  %v5043 = vmul.u32 %v5011, 2221713035
  %v5044 = vmul.u32 %v5012, 2221713035
  %v5045 = vmul.u32 %v5013, 2221713035
  %v5046 = vmul.u32 %v5014, 2221713035
  %v5047 = vmul.u32 %v5015, 2221713035
  %v5048 = vmul.u32 %v5016, 2221713035
  %v5049 = vmul.u32 %v5017, 2221713035
  %v5050 = vmul.u32 %v5018, 2221713035
  %v5051 = vmul.u32 %v5019, 2221713035
  %v5052 = vmul.u32 %v5020, 2221713035
  %v5053 = vmul.u32 %v5021, 2221713035
  %v5054 = vmul.u32 %v5022, 2221713035
  %v5055 = vmul.u32 %v5023, 2221713035
  %v5056 = vmul.u32 %v5024, 2221713035
  %v5057 = vmul.u32 %v5025, 2221713035
  %v5058 = vmul.u32 %v5026, 2221713035
  %v5059 = vmul.u32 %v5027, 2221713035
  %v5060 = vmul.u32 %v5028, 2221713035
  %v5061 = vmul.u32 %v5029, 2221713035
  %v5062 = vmul.u32 %v5030, 2221713035
  %v5063 = vshrl.u32 %v5031, 16
  %v5064 = vshrl.u32 %v5032, 16
  %v5065 = vshrl.u32 %v5033, 16
  %v5066 = vshrl.u32 %v5034, 16
  %v5067 = vshrl.u32 %v5035, 16
  %v5068 = vshrl.u32 %v5036, 16
  %v5069 = vshrl.u32 %v5037, 16
  %v5070 = vshrl.u32 %v5038, 16
  %v5071 = vshrl.u32 %v5039, 16
  %v5072 = vshrl.u32 %v5040, 16
  %v5073 = vshrl.u32 %v5041, 16
  %v5074 = vshrl.u32 %v5042, 16
  %v5075 = vshrl.u32 %v5043, 16
  %v5076 = vshrl.u32 %v5044, 16
  %v5077 = vshrl.u32 %v5045, 16
  %v5078 = vshrl.u32 %v5046, 16
  %v5079 = vshrl.u32 %v5047, 16
  %v5080 = vshrl.u32 %v5048, 16
  %v5081 = vshrl.u32 %v5049, 16
  %v5082 = vshrl.u32 %v5050, 16
  %v5083 = vshrl.u32 %v5051, 16
  %v5084 = vshrl.u32 %v5052, 16
  %v5085 = vshrl.u32 %v5053, 16
  %v5086 = vshrl.u32 %v5054, 16
  %v5087 = vshrl.u32 %v5055, 16
  %v5088 = vshrl.u32 %v5056, 16
  %v5089 = vshrl.u32 %v5057, 16
  %v5090 = vshrl.u32 %v5058, 16
  %v5091 = vshrl.u32 %v5059, 16
  %v5092 = vshrl.u32 %v5060, 16
  %v5093 = vshrl.u32 %v5061, 16
  %v5094 = vshrl.u32 %v5062, 16
  %v5095 = vxor.u32 %v5031, %v5063
  %v5096 = vxor.u32 %v5032, %v5064
  %v5097 = vxor.u32 %v5033, %v5065
  %v5098 = vxor.u32 %v5034, %v5066
  %v5099 = vxor.u32 %v5035, %v5067
  %v5100 = vxor.u32 %v5036, %v5068
  %v5101 = vxor.u32 %v5037, %v5069
  %v5102 = vxor.u32 %v5038, %v5070
  %v5103 = vxor.u32 %v5039, %v5071
  %v5104 = vxor.u32 %v5040, %v5072
  %v5105 = vxor.u32 %v5041, %v5073
  %v5106 = vxor.u32 %v5042, %v5074
  %v5107 = vxor.u32 %v5043, %v5075
  %v5108 = vxor.u32 %v5044, %v5076
  %v5109 = vxor.u32 %v5045, %v5077
  %v5110 = vxor.u32 %v5046, %v5078
  %v5111 = vxor.u32 %v5047, %v5079
  %v5112 = vxor.u32 %v5048, %v5080
  %v5113 = vxor.u32 %v5049, %v5081
  %v5114 = vxor.u32 %v5050, %v5082
  %v5115 = vxor.u32 %v5051, %v5083
  %v5116 = vxor.u32 %v5052, %v5084
  %v5117 = vxor.u32 %v5053, %v5085
  %v5118 = vxor.u32 %v5054, %v5086
  %v5119 = vxor.u32 %v5055, %v5087
  %v5120 = vxor.u32 %v5056, %v5088
  %v5121 = vxor.u32 %v5057, %v5089
  %v5122 = vxor.u32 %v5058, %v5090
  %v5123 = vxor.u32 %v5059, %v5091
  %v5124 = vxor.u32 %v5060, %v5092
  %v5125 = vxor.u32 %v5061, %v5093
  %v5126 = vxor.u32 %v5062, %v5094
  %v5127 = vand.u32 %v5095, 65535
  %v5128 = vand.u32 %v5096, 65535
  %v5129 = vand.u32 %v5097, 65535
  %v5130 = vand.u32 %v5098, 65535
  %v5131 = vand.u32 %v5099, 65535
  %v5132 = vand.u32 %v5100, 65535
  %v5133 = vand.u32 %v5101, 65535
  %v5134 = vand.u32 %v5102, 65535
  %v5135 = vand.u32 %v5103, 65535
  %v5136 = vand.u32 %v5104, 65535
  %v5137 = vand.u32 %v5105, 65535
  %v5138 = vand.u32 %v5106, 65535
  %v5139 = vand.u32 %v5107, 65535
  %v5140 = vand.u32 %v5108, 65535
  %v5141 = vand.u32 %v5109, 65535
  %v5142 = vand.u32 %v5110, 65535
  %v5143 = vand.u32 %v5111, 65535
  %v5144 = vand.u32 %v5112, 65535
  %v5145 = vand.u32 %v5113, 65535
  %v5146 = vand.u32 %v5114, 65535
  %v5147 = vand.u32 %v5115, 65535
  %v5148 = vand.u32 %v5116, 65535
  %v5149 = vand.u32 %v5117, 65535
  %v5150 = vand.u32 %v5118, 65535
  %v5151 = vand.u32 %v5119, 65535
  %v5152 = vand.u32 %v5120, 65535
  %v5153 = vand.u32 %v5121, 65535
  %v5154 = vand.u32 %v5122, 65535
  %v5155 = vand.u32 %v5123, 65535
  %v5156 = vand.u32 %v5124, 65535
  %v5157 = vand.u32 %v5125, 65535
  %v5158 = vand.u32 %v5126, 65535
  %vm5159 = vcmp.ge.s32.totalorder %v5127, 6554
  %vm5160 = vcmp.ge.s32.totalorder %v5128, 6554
  %vm5161 = vcmp.ge.s32.totalorder %v5129, 6554
  %vm5162 = vcmp.ge.s32.totalorder %v5130, 6554
  %vm5163 = vcmp.ge.s32.totalorder %v5131, 6554
  %vm5164 = vcmp.ge.s32.totalorder %v5132, 6554
  %vm5165 = vcmp.ge.s32.totalorder %v5133, 6554
  %vm5166 = vcmp.ge.s32.totalorder %v5134, 6554
  %vm5167 = vcmp.ge.s32.totalorder %v5135, 6554
  %vm5168 = vcmp.ge.s32.totalorder %v5136, 6554
  %vm5169 = vcmp.ge.s32.totalorder %v5137, 6554
  %vm5170 = vcmp.ge.s32.totalorder %v5138, 6554
  %vm5171 = vcmp.ge.s32.totalorder %v5139, 6554
  %vm5172 = vcmp.ge.s32.totalorder %v5140, 6554
  %vm5173 = vcmp.ge.s32.totalorder %v5141, 6554
  %vm5174 = vcmp.ge.s32.totalorder %v5142, 6554
  %vm5175 = vcmp.ge.s32.totalorder %v5143, 6554
  %vm5176 = vcmp.ge.s32.totalorder %v5144, 6554
  %vm5177 = vcmp.ge.s32.totalorder %v5145, 6554
  %vm5178 = vcmp.ge.s32.totalorder %v5146, 6554
  %vm5179 = vcmp.ge.s32.totalorder %v5147, 6554
  %vm5180 = vcmp.ge.s32.totalorder %v5148, 6554
  %vm5181 = vcmp.ge.s32.totalorder %v5149, 6554
  %vm5182 = vcmp.ge.s32.totalorder %v5150, 6554
  %vm5183 = vcmp.ge.s32.totalorder %v5151, 6554
  %vm5184 = vcmp.ge.s32.totalorder %v5152, 6554
  %vm5185 = vcmp.ge.s32.totalorder %v5153, 6554
  %vm5186 = vcmp.ge.s32.totalorder %v5154, 6554
  %vm5187 = vcmp.ge.s32.totalorder %v5155, 6554
  %vm5188 = vcmp.ge.s32.totalorder %v5156, 6554
  %vm5189 = vcmp.ge.s32.totalorder %v5157, 6554
  %vm5190 = vcmp.ge.s32.totalorder %v5158, 6554
  %vm5191 = vcmp.gt.f32.partialorder %v4729, 0.0
  %vm5192 = vcmp.gt.f32.partialorder %v4731, 0.0
  %vm5193 = vcmp.gt.f32.partialorder %v4733, 0.0
  %vm5194 = vcmp.gt.f32.partialorder %v4735, 0.0
  %vm5195 = vcmp.gt.f32.partialorder %v4739, 0.0
  %vm5196 = vcmp.gt.f32.partialorder %v4741, 0.0
  %vm5197 = vcmp.gt.f32.partialorder %v4743, 0.0
  %vm5198 = vcmp.gt.f32.partialorder %v4745, 0.0
  %vm5199 = vcmp.gt.f32.partialorder %v4749, 0.0
  %vm5200 = vcmp.gt.f32.partialorder %v4751, 0.0
  %vm5201 = vcmp.gt.f32.partialorder %v4753, 0.0
  %vm5202 = vcmp.gt.f32.partialorder %v4755, 0.0
  %vm5203 = vcmp.gt.f32.partialorder %v4759, 0.0
  %vm5204 = vcmp.gt.f32.partialorder %v4761, 0.0
  %vm5205 = vcmp.gt.f32.partialorder %v4763, 0.0
  %vm5206 = vcmp.gt.f32.partialorder %v4765, 0.0
  %vm5207 = vcmp.gt.f32.partialorder %v4769, 0.0
  %vm5208 = vcmp.gt.f32.partialorder %v4771, 0.0
  %vm5209 = vcmp.gt.f32.partialorder %v4773, 0.0
  %vm5210 = vcmp.gt.f32.partialorder %v4775, 0.0
  %vm5211 = vcmp.gt.f32.partialorder %v4779, 0.0
  %vm5212 = vcmp.gt.f32.partialorder %v4781, 0.0
  %vm5213 = vcmp.gt.f32.partialorder %v4783, 0.0
  %vm5214 = vcmp.gt.f32.partialorder %v4785, 0.0
  %vm5215 = vcmp.gt.f32.partialorder %v4789, 0.0
  %vm5216 = vcmp.gt.f32.partialorder %v4791, 0.0
  %vm5217 = vcmp.gt.f32.partialorder %v4793, 0.0
  %vm5218 = vcmp.gt.f32.partialorder %v4795, 0.0
  %vm5219 = vcmp.gt.f32.partialorder %v4799, 0.0
  %vm5220 = vcmp.gt.f32.partialorder %v4801, 0.0
  %vm5221 = vcmp.gt.f32.partialorder %v4803, 0.0
  %vm5222 = vcmp.gt.f32.partialorder %v4805, 0.0
  %vm5223 = vmand %vm5159, %vm5191
  %vm5224 = vmand %vm5160, %vm5192
  %vm5225 = vmand %vm5161, %vm5193
  %vm5226 = vmand %vm5162, %vm5194
  %vm5227 = vmand %vm5163, %vm5195
  %vm5228 = vmand %vm5164, %vm5196
  %vm5229 = vmand %vm5165, %vm5197
  %vm5230 = vmand %vm5166, %vm5198
  %vm5231 = vmand %vm5167, %vm5199
  %vm5232 = vmand %vm5168, %vm5200
  %vm5233 = vmand %vm5169, %vm5201
  %vm5234 = vmand %vm5170, %vm5202
  %vm5235 = vmand %vm5171, %vm5203
  %vm5236 = vmand %vm5172, %vm5204
  %vm5237 = vmand %vm5173, %vm5205
  %vm5238 = vmand %vm5174, %vm5206
  %vm5239 = vmand %vm5175, %vm5207
  %vm5240 = vmand %vm5176, %vm5208
  %vm5241 = vmand %vm5177, %vm5209
  %vm5242 = vmand %vm5178, %vm5210
  %vm5243 = vmand %vm5179, %vm5211
  %vm5244 = vmand %vm5180, %vm5212
  %vm5245 = vmand %vm5181, %vm5213
  %vm5246 = vmand %vm5182, %vm5214
  %vm5247 = vmand %vm5183, %vm5215
  %vm5248 = vmand %vm5184, %vm5216
  %vm5249 = vmand %vm5185, %vm5217
  %vm5250 = vmand %vm5186, %vm5218
  %vm5251 = vmand %vm5187, %vm5219
  %vm5252 = vmand %vm5188, %vm5220
  %vm5253 = vmand %vm5189, %vm5221
  %vm5254 = vmand %vm5190, %vm5222
  %v5255 = vmul.f32 %v4729, 1.1111112
  %v5256 = vmul.f32 %v4731, 1.1111112
  %v5257 = vmul.f32 %v4733, 1.1111112
  %v5258 = vmul.f32 %v4735, 1.1111112
  %v5259 = vmul.f32 %v4739, 1.1111112
  %v5260 = vmul.f32 %v4741, 1.1111112
  %v5261 = vmul.f32 %v4743, 1.1111112
  %v5262 = vmul.f32 %v4745, 1.1111112
  %v5263 = vmul.f32 %v4749, 1.1111112
  %v5264 = vmul.f32 %v4751, 1.1111112
  %v5265 = vmul.f32 %v4753, 1.1111112
  %v5266 = vmul.f32 %v4755, 1.1111112
  %v5267 = vmul.f32 %v4759, 1.1111112
  %v5268 = vmul.f32 %v4761, 1.1111112
  %v5269 = vmul.f32 %v4763, 1.1111112
  %v5270 = vmul.f32 %v4765, 1.1111112
  %v5271 = vmul.f32 %v4769, 1.1111112
  %v5272 = vmul.f32 %v4771, 1.1111112
  %v5273 = vmul.f32 %v4773, 1.1111112
  %v5274 = vmul.f32 %v4775, 1.1111112
  %v5275 = vmul.f32 %v4779, 1.1111112
  %v5276 = vmul.f32 %v4781, 1.1111112
  %v5277 = vmul.f32 %v4783, 1.1111112
  %v5278 = vmul.f32 %v4785, 1.1111112
  %v5279 = vmul.f32 %v4789, 1.1111112
  %v5280 = vmul.f32 %v4791, 1.1111112
  %v5281 = vmul.f32 %v4793, 1.1111112
  %v5282 = vmul.f32 %v4795, 1.1111112
  %v5283 = vmul.f32 %v4799, 1.1111112
  %v5284 = vmul.f32 %v4801, 1.1111112
  %v5285 = vmul.f32 %v4803, 1.1111112
  %v5286 = vmul.f32 %v4805, 1.1111112
  %v5287 = vsel %vm5223, %v5255, 0.0
  %v5288 = vsel %vm5224, %v5256, 0.0
  %v5289 = vsel %vm5225, %v5257, 0.0
  %v5290 = vsel %vm5226, %v5258, 0.0
  %v5291 = vsel %vm5227, %v5259, 0.0
  %v5292 = vsel %vm5228, %v5260, 0.0
  %v5293 = vsel %vm5229, %v5261, 0.0
  %v5294 = vsel %vm5230, %v5262, 0.0
  %v5295 = vsel %vm5231, %v5263, 0.0
  %v5296 = vsel %vm5232, %v5264, 0.0
  %v5297 = vsel %vm5233, %v5265, 0.0
  %v5298 = vsel %vm5234, %v5266, 0.0
  %v5299 = vsel %vm5235, %v5267, 0.0
  %v5300 = vsel %vm5236, %v5268, 0.0
  %v5301 = vsel %vm5237, %v5269, 0.0
  %v5302 = vsel %vm5238, %v5270, 0.0
  %v5303 = vsel %vm5239, %v5271, 0.0
  %v5304 = vsel %vm5240, %v5272, 0.0
  %v5305 = vsel %vm5241, %v5273, 0.0
  %v5306 = vsel %vm5242, %v5274, 0.0
  %v5307 = vsel %vm5243, %v5275, 0.0
  %v5308 = vsel %vm5244, %v5276, 0.0
  %v5309 = vsel %vm5245, %v5277, 0.0
  %v5310 = vsel %vm5246, %v5278, 0.0
  %v5311 = vsel %vm5247, %v5279, 0.0
  %v5312 = vsel %vm5248, %v5280, 0.0
  %v5313 = vsel %vm5249, %v5281, 0.0
  %v5314 = vsel %vm5250, %v5282, 0.0
  %v5315 = vsel %vm5251, %v5283, 0.0
  %v5316 = vsel %vm5252, %v5284, 0.0
  %v5317 = vsel %vm5253, %v5285, 0.0
  %v5318 = vsel %vm5254, %v5286, 0.0
  %v5319 = vadd.f32 %v5287, %v4442
  %v5320 = vadd.f32 %v5288, %v4443
  %v5321 = vadd.f32 %v5289, %v4444
  %v5322 = vadd.f32 %v5290, %v4445
  %v5323 = vadd.f32 %v5291, %v4446
  %v5324 = vadd.f32 %v5292, %v4447
  %v5325 = vadd.f32 %v5293, %v4448
  %v5326 = vadd.f32 %v5294, %v4449
  %v5327 = vadd.f32 %v5295, %v4450
  %v5328 = vadd.f32 %v5296, %v4451
  %v5329 = vadd.f32 %v5297, %v4452
  %v5330 = vadd.f32 %v5298, %v4453
  %v5331 = vadd.f32 %v5299, %v4454
  %v5332 = vadd.f32 %v5300, %v4455
  %v5333 = vadd.f32 %v5301, %v4456
  %v5334 = vadd.f32 %v5302, %v4457
  %v5335 = vadd.f32 %v5303, %v4458
  %v5336 = vadd.f32 %v5304, %v4459
  %v5337 = vadd.f32 %v5305, %v4460
  %v5338 = vadd.f32 %v5306, %v4461
  %v5339 = vadd.f32 %v5307, %v4462
  %v5340 = vadd.f32 %v5308, %v4463
  %v5341 = vadd.f32 %v5309, %v4464
  %v5342 = vadd.f32 %v5310, %v4465
  %v5343 = vadd.f32 %v5311, %v4466
  %v5344 = vadd.f32 %v5312, %v4467
  %v5345 = vadd.f32 %v5313, %v4468
  %v5346 = vadd.f32 %v5314, %v4469
  %v5347 = vadd.f32 %v5315, %v4470
  %v5348 = vadd.f32 %v5316, %v4471
  %v5349 = vadd.f32 %v5317, %v4472
  %v5350 = vadd.f32 %v5318, %v4473
  %v5351 = vpack.c.bf16 %v5321, %v5319
  %v5352 = vpack.c.bf16 %v5322, %v5320
  %v5353 = vpack.c.bf16 %v5325, %v5323
  %v5354 = vpack.c.bf16 %v5326, %v5324
  %v5355 = vpack.c.bf16 %v5329, %v5327
  %v5356 = vpack.c.bf16 %v5330, %v5328
  %v5357 = vpack.c.bf16 %v5333, %v5331
  %v5358 = vpack.c.bf16 %v5334, %v5332
  %v5359 = vpack.c.bf16 %v5337, %v5335
  %v5360 = vpack.c.bf16 %v5338, %v5336
  %v5361 = vpack.c.bf16 %v5341, %v5339
  %v5362 = vpack.c.bf16 %v5342, %v5340
  %v5363 = vpack.c.bf16 %v5345, %v5343
  %v5364 = vpack.c.bf16 %v5346, %v5344
  %v5365 = vpack.c.bf16 %v5349, %v5347
  %v5366 = vpack.c.bf16 %v5350, %v5348
  %v5367 = vld [vmem:[%s12] sm:$0xff]
  %v5368 = vld [vmem:[%s12 + $0x8] sm:$0xff]
  %v5369 = vld [vmem:[%s12 + $0x10] sm:$0xff]
  %v5370 = vld [vmem:[%s12 + $0x18] sm:$0xff]
  %v5371 = vld [vmem:[%s12 + $0x20] sm:$0xff]
  %v5372 = vld [vmem:[%s12 + $0x28] sm:$0xff]
  %v5373 = vld [vmem:[%s12 + $0x30] sm:$0xff]
  %v5374 = vld [vmem:[%s12 + $0x38] sm:$0xff]
  %v5375 = vld [vmem:[%s12 + $0x40] sm:$0xff]
  %v5376 = vld [vmem:[%s12 + $0x48] sm:$0xff]
  %v5377 = vld [vmem:[%s12 + $0x50] sm:$0xff]
  %v5378 = vld [vmem:[%s12 + $0x58] sm:$0xff]
  %v5379 = vld [vmem:[%s12 + $0x60] sm:$0xff]
  %v5380 = vld [vmem:[%s12 + $0x68] sm:$0xff]
  %v5381 = vld [vmem:[%s12 + $0x70] sm:$0xff]
  %v5382 = vld [vmem:[%s12 + $0x78] sm:$0xff]
  %v5383 = vld [vmem:[%s12 + $0x80] sm:$0xff]
  %v5384 = vld [vmem:[%s12 + $0x88] sm:$0xff]
  %v5385 = vld [vmem:[%s12 + $0x90] sm:$0xff]
  %v5386 = vld [vmem:[%s12 + $0x98] sm:$0xff]
  %v5387 = vld [vmem:[%s12 + $0xa0] sm:$0xff]
  %v5388 = vld [vmem:[%s12 + $0xa8] sm:$0xff]
  %v5389 = vld [vmem:[%s12 + $0xb0] sm:$0xff]
  %v5390 = vld [vmem:[%s12 + $0xb8] sm:$0xff]
  %v5391 = vld [vmem:[%s12 + $0xc0] sm:$0xff]
  %v5392 = vld [vmem:[%s12 + $0xc8] sm:$0xff]
  %v5393 = vld [vmem:[%s12 + $0xd0] sm:$0xff]
  %v5394 = vld [vmem:[%s12 + $0xd8] sm:$0xff]
  %v5395 = vld [vmem:[%s12 + $0xe0] sm:$0xff]
  %v5396 = vld [vmem:[%s12 + $0xe8] sm:$0xff]
  %v5397 = vld [vmem:[%s12 + $0xf0] sm:$0xff]
  %v5398 = vld [vmem:[%s12 + $0xf8] sm:$0xff]
  %v5399 = vld [vmem:[%s13] sm:$0x3]
  %v5401 = vlaneseq
  %v5402 = vshrl.u32 %v5401, 7
  %v5403 = vsub.s32 0, %v5402
  %v5404 = vrot.slane %v5399, %v5403
  %v5405 = vlaneseq
  %v5406 = vshrl.u32 %v5405, 7
  %v5407 = vsub.s32 1, %v5406
  %v5408 = vrot.slane %v5399, %v5407
  %v5443 = vunpack.c.l.b16 %v5367
  %v5444 = vunpack.c.h.b16 %v5367
  %v5445 = vunpack.c.l.b16 %v5368
  %v5446 = vunpack.c.h.b16 %v5368
  %v5447 = vunpack.c.l.b16 %v5369
  %v5448 = vunpack.c.h.b16 %v5369
  %v5449 = vunpack.c.l.b16 %v5370
  %v5450 = vunpack.c.h.b16 %v5370
  %v5451 = vunpack.c.l.b16 %v5371
  %v5452 = vunpack.c.h.b16 %v5371
  %v5453 = vunpack.c.l.b16 %v5372
  %v5454 = vunpack.c.h.b16 %v5372
  %v5455 = vunpack.c.l.b16 %v5373
  %v5456 = vunpack.c.h.b16 %v5373
  %v5457 = vunpack.c.l.b16 %v5374
  %v5458 = vunpack.c.h.b16 %v5374
  %v5459 = vunpack.c.l.b16 %v5375
  %v5460 = vunpack.c.h.b16 %v5375
  %v5461 = vunpack.c.l.b16 %v5376
  %v5462 = vunpack.c.h.b16 %v5376
  %v5463 = vunpack.c.l.b16 %v5377
  %v5464 = vunpack.c.h.b16 %v5377
  %v5465 = vunpack.c.l.b16 %v5378
  %v5466 = vunpack.c.h.b16 %v5378
  %v5467 = vunpack.c.l.b16 %v5379
  %v5468 = vunpack.c.h.b16 %v5379
  %v5469 = vunpack.c.l.b16 %v5380
  %v5470 = vunpack.c.h.b16 %v5380
  %v5471 = vunpack.c.l.b16 %v5381
  %v5472 = vunpack.c.h.b16 %v5381
  %v5473 = vunpack.c.l.b16 %v5382
  %v5474 = vunpack.c.h.b16 %v5382
  %v5475 = vunpack.c.l.b16 %v5383
  %v5476 = vunpack.c.h.b16 %v5383
  %v5477 = vunpack.c.l.b16 %v5384
  %v5478 = vunpack.c.h.b16 %v5384
  %v5479 = vunpack.c.l.b16 %v5385
  %v5480 = vunpack.c.h.b16 %v5385
  %v5481 = vunpack.c.l.b16 %v5386
  %v5482 = vunpack.c.h.b16 %v5386
  %v5483 = vunpack.c.l.b16 %v5387
  %v5484 = vunpack.c.h.b16 %v5387
  %v5485 = vunpack.c.l.b16 %v5388
  %v5486 = vunpack.c.h.b16 %v5388
  %v5487 = vunpack.c.l.b16 %v5389
  %v5488 = vunpack.c.h.b16 %v5389
  %v5489 = vunpack.c.l.b16 %v5390
  %v5490 = vunpack.c.h.b16 %v5390
  %v5491 = vunpack.c.l.b16 %v5391
  %v5492 = vunpack.c.h.b16 %v5391
  %v5493 = vunpack.c.l.b16 %v5392
  %v5494 = vunpack.c.h.b16 %v5392
  %v5495 = vunpack.c.l.b16 %v5393
  %v5496 = vunpack.c.h.b16 %v5393
  %v5497 = vunpack.c.l.b16 %v5394
  %v5498 = vunpack.c.h.b16 %v5394
  %v5499 = vunpack.c.l.b16 %v5395
  %v5500 = vunpack.c.h.b16 %v5395
  %v5501 = vunpack.c.l.b16 %v5396
  %v5502 = vunpack.c.h.b16 %v5396
  %v5503 = vunpack.c.l.b16 %v5397
  %v5504 = vunpack.c.h.b16 %v5397
  %v5505 = vunpack.c.l.b16 %v5398
  %v5506 = vunpack.c.h.b16 %v5398
  %v5507 = vpack.c.b16 %v5445, %v5443
  %v5508 = vpack.c.b16 %v5446, %v5444
  %v5509 = vpack.c.b16 %v5449, %v5447
  %v5510 = vpack.c.b16 %v5450, %v5448
  %v5511 = vpack.c.b16 %v5453, %v5451
  %v5512 = vpack.c.b16 %v5454, %v5452
  %v5513 = vpack.c.b16 %v5457, %v5455
  %v5514 = vpack.c.b16 %v5458, %v5456
  %v5515 = vpack.c.b16 %v5461, %v5459
  %v5516 = vpack.c.b16 %v5462, %v5460
  %v5517 = vpack.c.b16 %v5465, %v5463
  %v5518 = vpack.c.b16 %v5466, %v5464
  %v5519 = vpack.c.b16 %v5469, %v5467
  %v5520 = vpack.c.b16 %v5470, %v5468
  %v5521 = vpack.c.b16 %v5473, %v5471
  %v5522 = vpack.c.b16 %v5474, %v5472
  %v5523 = vpack.c.b16 %v5477, %v5475
  %v5524 = vpack.c.b16 %v5478, %v5476
  %v5525 = vpack.c.b16 %v5481, %v5479
  %v5526 = vpack.c.b16 %v5482, %v5480
  %v5527 = vpack.c.b16 %v5485, %v5483
  %v5528 = vpack.c.b16 %v5486, %v5484
  %v5529 = vpack.c.b16 %v5489, %v5487
  %v5530 = vpack.c.b16 %v5490, %v5488
  %v5531 = vpack.c.b16 %v5493, %v5491
  %v5532 = vpack.c.b16 %v5494, %v5492
  %v5533 = vpack.c.b16 %v5497, %v5495
  %v5534 = vpack.c.b16 %v5498, %v5496
  %v5535 = vpack.c.b16 %v5501, %v5499
  %v5536 = vpack.c.b16 %v5502, %v5500
  %v5537 = vpack.c.b16 %v5505, %v5503
  %v5538 = vpack.c.b16 %v5506, %v5504
  %5571 = vmatprep.subr.bf16.mxu0 %v5522
  %5572 = vmatpush1.bf16.msra.mxu0 %v5521
  %5573 = vmatprep.subr.bf16.mxu0 %v5520
  %5574 = vmatpush1.bf16.msra.mxu0 %v5519
  %5575 = vmatprep.subr.bf16.mxu0 %v5518
  %5576 = vmatpush1.bf16.msra.mxu0 %v5517
  %5577 = vmatprep.subr.bf16.mxu0 %v5516
  %5578 = vmatpush1.bf16.msra.mxu0 %v5515
  %5579 = vmatprep.subr.bf16.mxu0 %v5514
  %5580 = vmatpush1.bf16.msra.mxu0 %v5513
  %5581 = vmatprep.subr.bf16.mxu0 %v5512
  %5582 = vmatpush1.bf16.msra.mxu0 %v5511
  %5583 = vmatprep.subr.bf16.mxu0 %v5510
  %5584 = vmatpush1.bf16.msra.mxu0 %v5509
  %5585 = vmatprep.subr.bf16.mxu0 %v5508
  %5586 = vmatpush1.bf16.msra.mxu0 %v5507
  %5587 = vmatprep.subr.bf16.mxu0 %v5538
  %5588 = vmatpush2.bf16.msra.mxu0 %v5537
  %5589 = vmatprep.subr.bf16.mxu0 %v5536
  %5590 = vmatpush2.bf16.msra.mxu0 %v5535
  %5591 = vmatprep.subr.bf16.mxu0 %v5534
  %5592 = vmatpush2.bf16.msra.mxu0 %v5533
  %5593 = vmatprep.subr.bf16.mxu0 %v5532
  %5594 = vmatpush2.bf16.msra.mxu0 %v5531
  %5595 = vmatprep.subr.bf16.mxu0 %v5530
  %5596 = vmatpush2.bf16.msra.mxu0 %v5529
  %5597 = vmatprep.subr.bf16.mxu0 %v5528
  %5598 = vmatpush2.bf16.msra.mxu0 %v5527
  %5599 = vmatprep.subr.bf16.mxu0 %v5526
  %5600 = vmatpush2.bf16.msra.mxu0 %v5525
  %5601 = vmatprep.subr.bf16.mxu0 %v5524
  %5602 = vmatpush2.bf16.msra.mxu0 %v5523
  %5603 = vmatprep.mubr.bf16.mxu0 %v5352
  %5604 = vmatmul.mubr.bf16.gmra.mxu0 %v5351
  %v5605 = vpop.f32.mrf.mxu0
  %v5606 = vadd.f32 %v5404, %v5605
  %v5607 = vpop.f32.mrf.mxu0
  %v5608 = vadd.f32 %v5408, %v5607
  %v5609 = vpop.f32.mrf.mxu0
  %v5610 = vadd.f32 %v5404, %v5609
  %v5611 = vpop.f32.mrf.mxu0
  %v5612 = vadd.f32 %v5408, %v5611
  %5613 = vmatprep.mubr.bf16.mxu0 %v5354
  %5614 = vmatmul.mubr.bf16.gmra.mxu0 %v5353
  %v5615 = vpop.f32.mrf.mxu0
  %v5616 = vadd.f32 %v5404, %v5615
  %v5617 = vpop.f32.mrf.mxu0
  %v5618 = vadd.f32 %v5408, %v5617
  %v5619 = vpop.f32.mrf.mxu0
  %v5620 = vadd.f32 %v5404, %v5619
  %v5621 = vpop.f32.mrf.mxu0
  %v5622 = vadd.f32 %v5408, %v5621
  %5623 = vmatprep.mubr.bf16.mxu0 %v5356
  %5624 = vmatmul.mubr.bf16.gmra.mxu0 %v5355
  %v5625 = vpop.f32.mrf.mxu0
  %v5626 = vadd.f32 %v5404, %v5625
  %v5627 = vpop.f32.mrf.mxu0
  %v5628 = vadd.f32 %v5408, %v5627
  %v5629 = vpop.f32.mrf.mxu0
  %v5630 = vadd.f32 %v5404, %v5629
  %v5631 = vpop.f32.mrf.mxu0
  %v5632 = vadd.f32 %v5408, %v5631
  %5633 = vmatprep.mubr.bf16.mxu0 %v5358
  %5634 = vmatmul.mubr.bf16.gmra.mxu0 %v5357
  %v5635 = vpop.f32.mrf.mxu0
  %v5636 = vadd.f32 %v5404, %v5635
  %v5637 = vpop.f32.mrf.mxu0
  %v5638 = vadd.f32 %v5408, %v5637
  %v5639 = vpop.f32.mrf.mxu0
  %v5640 = vadd.f32 %v5404, %v5639
  %v5641 = vpop.f32.mrf.mxu0
  %v5642 = vadd.f32 %v5408, %v5641
  %5643 = vmatprep.mubr.bf16.mxu0 %v5360
  %5644 = vmatmul.mubr.bf16.gmra.mxu0 %v5359
  %v5645 = vpop.f32.mrf.mxu0
  %v5646 = vadd.f32 %v5404, %v5645
  %v5647 = vpop.f32.mrf.mxu0
  %v5648 = vadd.f32 %v5408, %v5647
  %v5649 = vpop.f32.mrf.mxu0
  %v5650 = vadd.f32 %v5404, %v5649
  %v5651 = vpop.f32.mrf.mxu0
  %v5652 = vadd.f32 %v5408, %v5651
  %5653 = vmatprep.mubr.bf16.mxu0 %v5362
  %5654 = vmatmul.mubr.bf16.gmra.mxu0 %v5361
  %v5655 = vpop.f32.mrf.mxu0
  %v5656 = vadd.f32 %v5404, %v5655
  %v5657 = vpop.f32.mrf.mxu0
  %v5658 = vadd.f32 %v5408, %v5657
  %v5659 = vpop.f32.mrf.mxu0
  %v5660 = vadd.f32 %v5404, %v5659
  %v5661 = vpop.f32.mrf.mxu0
  %v5662 = vadd.f32 %v5408, %v5661
  %5663 = vmatprep.mubr.bf16.mxu0 %v5364
  %5664 = vmatmul.mubr.bf16.gmra.mxu0 %v5363
  %v5665 = vpop.f32.mrf.mxu0
  %v5666 = vadd.f32 %v5404, %v5665
  %v5667 = vpop.f32.mrf.mxu0
  %v5668 = vadd.f32 %v5408, %v5667
  %v5669 = vpop.f32.mrf.mxu0
  %v5670 = vadd.f32 %v5404, %v5669
  %v5671 = vpop.f32.mrf.mxu0
  %v5672 = vadd.f32 %v5408, %v5671
  %5673 = vmatprep.mubr.bf16.mxu0 %v5366
  %5674 = vmatmul.mubr.bf16.gmra.mxu0 %v5365
  %v5675 = vpop.f32.mrf.mxu0
  %v5676 = vadd.f32 %v5404, %v5675
  %v5677 = vpop.f32.mrf.mxu0
  %v5678 = vadd.f32 %v5408, %v5677
  %v5679 = vpop.f32.mrf.mxu0
  %v5680 = vadd.f32 %v5404, %v5679
  %v5681 = vpop.f32.mrf.mxu0
  %v5682 = vadd.f32 %v5408, %v5681
  %5683 = vdwg.mxu0
  %v5684 = vmul.u32 %v2176, 1013904243
  %v5685 = vmul.u32 %v2177, 1013904243
  %v5686 = vmul.u32 %v2178, 1013904243
  %v5687 = vmul.u32 %v2179, 1013904243
  %v5688 = vmul.u32 %v2180, 1013904243
  %v5689 = vmul.u32 %v2181, 1013904243
  %v5690 = vmul.u32 %v2182, 1013904243
  %v5691 = vmul.u32 %v2183, 1013904243
  %v5692 = vmul.u32 %v2184, 1013904243
  %v5693 = vmul.u32 %v2185, 1013904243
  %v5694 = vmul.u32 %v2186, 1013904243
  %v5695 = vmul.u32 %v2187, 1013904243
  %v5696 = vmul.u32 %v2188, 1013904243
  %v5697 = vmul.u32 %v2189, 1013904243
  %v5698 = vmul.u32 %v2190, 1013904243
  %v5699 = vmul.u32 %v2191, 1013904243
  %v5700 = vmul.u32 %v2192, 1013904243
  %v5701 = vmul.u32 %v2193, 1013904243
  %v5702 = vmul.u32 %v2194, 1013904243
  %v5703 = vmul.u32 %v2195, 1013904243
  %v5704 = vmul.u32 %v2196, 1013904243
  %v5705 = vmul.u32 %v2197, 1013904243
  %v5706 = vmul.u32 %v2198, 1013904243
  %v5707 = vmul.u32 %v2199, 1013904243
  %v5708 = vmul.u32 %v2200, 1013904243
  %v5709 = vmul.u32 %v2201, 1013904243
  %v5710 = vmul.u32 %v2202, 1013904243
  %v5711 = vmul.u32 %v2203, 1013904243
  %v5712 = vmul.u32 %v2204, 1013904243
  %v5713 = vmul.u32 %v2205, 1013904243
  %v5714 = vmul.u32 %v2206, 1013904243
  %v5715 = vmul.u32 %v2207, 1013904243
  %v5716 = vadd.s32 %v5684, %v545
  %v5717 = vadd.s32 %v5685, %v545
  %v5718 = vadd.s32 %v5686, %v545
  %v5719 = vadd.s32 %v5687, %v545
  %v5720 = vadd.s32 %v5688, %v545
  %v5721 = vadd.s32 %v5689, %v545
  %v5722 = vadd.s32 %v5690, %v545
  %v5723 = vadd.s32 %v5691, %v545
  %v5724 = vadd.s32 %v5692, %v545
  %v5725 = vadd.s32 %v5693, %v545
  %v5726 = vadd.s32 %v5694, %v545
  %v5727 = vadd.s32 %v5695, %v545
  %v5728 = vadd.s32 %v5696, %v545
  %v5729 = vadd.s32 %v5697, %v545
  %v5730 = vadd.s32 %v5698, %v545
  %v5731 = vadd.s32 %v5699, %v545
  %v5732 = vadd.s32 %v5700, %v545
  %v5733 = vadd.s32 %v5701, %v545
  %v5734 = vadd.s32 %v5702, %v545
  %v5735 = vadd.s32 %v5703, %v545
  %v5736 = vadd.s32 %v5704, %v545
  %v5737 = vadd.s32 %v5705, %v545
  %v5738 = vadd.s32 %v5706, %v545
  %v5739 = vadd.s32 %v5707, %v545
  %v5740 = vadd.s32 %v5708, %v545
  %v5741 = vadd.s32 %v5709, %v545
  %v5742 = vadd.s32 %v5710, %v545
  %v5743 = vadd.s32 %v5711, %v545
  %v5744 = vadd.s32 %v5712, %v545
  %v5745 = vadd.s32 %v5713, %v545
  %v5746 = vadd.s32 %v5714, %v545
  %v5747 = vadd.s32 %v5715, %v545
  %v5748 = vshrl.u32 %v5716, 16
  %v5749 = vshrl.u32 %v5717, 16
  %v5750 = vshrl.u32 %v5718, 16
  %v5751 = vshrl.u32 %v5719, 16
  %v5752 = vshrl.u32 %v5720, 16
  %v5753 = vshrl.u32 %v5721, 16
  %v5754 = vshrl.u32 %v5722, 16
  %v5755 = vshrl.u32 %v5723, 16
  %v5756 = vshrl.u32 %v5724, 16
  %v5757 = vshrl.u32 %v5725, 16
  %v5758 = vshrl.u32 %v5726, 16
  %v5759 = vshrl.u32 %v5727, 16
  %v5760 = vshrl.u32 %v5728, 16
  %v5761 = vshrl.u32 %v5729, 16
  %v5762 = vshrl.u32 %v5730, 16
  %v5763 = vshrl.u32 %v5731, 16
  %v5764 = vshrl.u32 %v5732, 16
  %v5765 = vshrl.u32 %v5733, 16
  %v5766 = vshrl.u32 %v5734, 16
  %v5767 = vshrl.u32 %v5735, 16
  %v5768 = vshrl.u32 %v5736, 16
  %v5769 = vshrl.u32 %v5737, 16
  %v5770 = vshrl.u32 %v5738, 16
  %v5771 = vshrl.u32 %v5739, 16
  %v5772 = vshrl.u32 %v5740, 16
  %v5773 = vshrl.u32 %v5741, 16
  %v5774 = vshrl.u32 %v5742, 16
  %v5775 = vshrl.u32 %v5743, 16
  %v5776 = vshrl.u32 %v5744, 16
  %v5777 = vshrl.u32 %v5745, 16
  %v5778 = vshrl.u32 %v5746, 16
  %v5779 = vshrl.u32 %v5747, 16
  %v5780 = vxor.u32 %v5716, %v5748
  %v5781 = vxor.u32 %v5717, %v5749
  %v5782 = vxor.u32 %v5718, %v5750
  %v5783 = vxor.u32 %v5719, %v5751
  %v5784 = vxor.u32 %v5720, %v5752
  %v5785 = vxor.u32 %v5721, %v5753
  %v5786 = vxor.u32 %v5722, %v5754
  %v5787 = vxor.u32 %v5723, %v5755
  %v5788 = vxor.u32 %v5724, %v5756
  %v5789 = vxor.u32 %v5725, %v5757
  %v5790 = vxor.u32 %v5726, %v5758
  %v5791 = vxor.u32 %v5727, %v5759
  %v5792 = vxor.u32 %v5728, %v5760
  %v5793 = vxor.u32 %v5729, %v5761
  %v5794 = vxor.u32 %v5730, %v5762
  %v5795 = vxor.u32 %v5731, %v5763
  %v5796 = vxor.u32 %v5732, %v5764
  %v5797 = vxor.u32 %v5733, %v5765
  %v5798 = vxor.u32 %v5734, %v5766
  %v5799 = vxor.u32 %v5735, %v5767
  %v5800 = vxor.u32 %v5736, %v5768
  %v5801 = vxor.u32 %v5737, %v5769
  %v5802 = vxor.u32 %v5738, %v5770
  %v5803 = vxor.u32 %v5739, %v5771
  %v5804 = vxor.u32 %v5740, %v5772
  %v5805 = vxor.u32 %v5741, %v5773
  %v5806 = vxor.u32 %v5742, %v5774
  %v5807 = vxor.u32 %v5743, %v5775
  %v5808 = vxor.u32 %v5744, %v5776
  %v5809 = vxor.u32 %v5745, %v5777
  %v5810 = vxor.u32 %v5746, %v5778
  %v5811 = vxor.u32 %v5747, %v5779
  %v5812 = vmul.u32 %v5780, 2146121005
  %v5813 = vmul.u32 %v5781, 2146121005
  %v5814 = vmul.u32 %v5782, 2146121005
  %v5815 = vmul.u32 %v5783, 2146121005
  %v5816 = vmul.u32 %v5784, 2146121005
  %v5817 = vmul.u32 %v5785, 2146121005
  %v5818 = vmul.u32 %v5786, 2146121005
  %v5819 = vmul.u32 %v5787, 2146121005
  %v5820 = vmul.u32 %v5788, 2146121005
  %v5821 = vmul.u32 %v5789, 2146121005
  %v5822 = vmul.u32 %v5790, 2146121005
  %v5823 = vmul.u32 %v5791, 2146121005
  %v5824 = vmul.u32 %v5792, 2146121005
  %v5825 = vmul.u32 %v5793, 2146121005
  %v5826 = vmul.u32 %v5794, 2146121005
  %v5827 = vmul.u32 %v5795, 2146121005
  %v5828 = vmul.u32 %v5796, 2146121005
  %v5829 = vmul.u32 %v5797, 2146121005
  %v5830 = vmul.u32 %v5798, 2146121005
  %v5831 = vmul.u32 %v5799, 2146121005
  %v5832 = vmul.u32 %v5800, 2146121005
  %v5833 = vmul.u32 %v5801, 2146121005
  %v5834 = vmul.u32 %v5802, 2146121005
  %v5835 = vmul.u32 %v5803, 2146121005
  %v5836 = vmul.u32 %v5804, 2146121005
  %v5837 = vmul.u32 %v5805, 2146121005
  %v5838 = vmul.u32 %v5806, 2146121005
  %v5839 = vmul.u32 %v5807, 2146121005
  %v5840 = vmul.u32 %v5808, 2146121005
  %v5841 = vmul.u32 %v5809, 2146121005
  %v5842 = vmul.u32 %v5810, 2146121005
  %v5843 = vmul.u32 %v5811, 2146121005
  %v5844 = vshrl.u32 %v5812, 15
  %v5845 = vshrl.u32 %v5813, 15
  %v5846 = vshrl.u32 %v5814, 15
  %v5847 = vshrl.u32 %v5815, 15
  %v5848 = vshrl.u32 %v5816, 15
  %v5849 = vshrl.u32 %v5817, 15
  %v5850 = vshrl.u32 %v5818, 15
  %v5851 = vshrl.u32 %v5819, 15
  %v5852 = vshrl.u32 %v5820, 15
  %v5853 = vshrl.u32 %v5821, 15
  %v5854 = vshrl.u32 %v5822, 15
  %v5855 = vshrl.u32 %v5823, 15
  %v5856 = vshrl.u32 %v5824, 15
  %v5857 = vshrl.u32 %v5825, 15
  %v5858 = vshrl.u32 %v5826, 15
  %v5859 = vshrl.u32 %v5827, 15
  %v5860 = vshrl.u32 %v5828, 15
  %v5861 = vshrl.u32 %v5829, 15
  %v5862 = vshrl.u32 %v5830, 15
  %v5863 = vshrl.u32 %v5831, 15
  %v5864 = vshrl.u32 %v5832, 15
  %v5865 = vshrl.u32 %v5833, 15
  %v5866 = vshrl.u32 %v5834, 15
  %v5867 = vshrl.u32 %v5835, 15
  %v5868 = vshrl.u32 %v5836, 15
  %v5869 = vshrl.u32 %v5837, 15
  %v5870 = vshrl.u32 %v5838, 15
  %v5871 = vshrl.u32 %v5839, 15
  %v5872 = vshrl.u32 %v5840, 15
  %v5873 = vshrl.u32 %v5841, 15
  %v5874 = vshrl.u32 %v5842, 15
  %v5875 = vshrl.u32 %v5843, 15
  %v5876 = vxor.u32 %v5812, %v5844
  %v5877 = vxor.u32 %v5813, %v5845
  %v5878 = vxor.u32 %v5814, %v5846
  %v5879 = vxor.u32 %v5815, %v5847
  %v5880 = vxor.u32 %v5816, %v5848
  %v5881 = vxor.u32 %v5817, %v5849
  %v5882 = vxor.u32 %v5818, %v5850
  %v5883 = vxor.u32 %v5819, %v5851
  %v5884 = vxor.u32 %v5820, %v5852
  %v5885 = vxor.u32 %v5821, %v5853
  %v5886 = vxor.u32 %v5822, %v5854
  %v5887 = vxor.u32 %v5823, %v5855
  %v5888 = vxor.u32 %v5824, %v5856
  %v5889 = vxor.u32 %v5825, %v5857
  %v5890 = vxor.u32 %v5826, %v5858
  %v5891 = vxor.u32 %v5827, %v5859
  %v5892 = vxor.u32 %v5828, %v5860
  %v5893 = vxor.u32 %v5829, %v5861
  %v5894 = vxor.u32 %v5830, %v5862
  %v5895 = vxor.u32 %v5831, %v5863
  %v5896 = vxor.u32 %v5832, %v5864
  %v5897 = vxor.u32 %v5833, %v5865
  %v5898 = vxor.u32 %v5834, %v5866
  %v5899 = vxor.u32 %v5835, %v5867
  %v5900 = vxor.u32 %v5836, %v5868
  %v5901 = vxor.u32 %v5837, %v5869
  %v5902 = vxor.u32 %v5838, %v5870
  %v5903 = vxor.u32 %v5839, %v5871
  %v5904 = vxor.u32 %v5840, %v5872
  %v5905 = vxor.u32 %v5841, %v5873
  %v5906 = vxor.u32 %v5842, %v5874
  %v5907 = vxor.u32 %v5843, %v5875
  %v5908 = vmul.u32 %v5876, 2221713035
  %v5909 = vmul.u32 %v5877, 2221713035
  %v5910 = vmul.u32 %v5878, 2221713035
  %v5911 = vmul.u32 %v5879, 2221713035
  %v5912 = vmul.u32 %v5880, 2221713035
  %v5913 = vmul.u32 %v5881, 2221713035
  %v5914 = vmul.u32 %v5882, 2221713035
  %v5915 = vmul.u32 %v5883, 2221713035
  %v5916 = vmul.u32 %v5884, 2221713035
  %v5917 = vmul.u32 %v5885, 2221713035
  %v5918 = vmul.u32 %v5886, 2221713035
  %v5919 = vmul.u32 %v5887, 2221713035
  %v5920 = vmul.u32 %v5888, 2221713035
  %v5921 = vmul.u32 %v5889, 2221713035
  %v5922 = vmul.u32 %v5890, 2221713035
  %v5923 = vmul.u32 %v5891, 2221713035
  %v5924 = vmul.u32 %v5892, 2221713035
  %v5925 = vmul.u32 %v5893, 2221713035
  %v5926 = vmul.u32 %v5894, 2221713035
  %v5927 = vmul.u32 %v5895, 2221713035
  %v5928 = vmul.u32 %v5896, 2221713035
  %v5929 = vmul.u32 %v5897, 2221713035
  %v5930 = vmul.u32 %v5898, 2221713035
  %v5931 = vmul.u32 %v5899, 2221713035
  %v5932 = vmul.u32 %v5900, 2221713035
  %v5933 = vmul.u32 %v5901, 2221713035
  %v5934 = vmul.u32 %v5902, 2221713035
  %v5935 = vmul.u32 %v5903, 2221713035
  %v5936 = vmul.u32 %v5904, 2221713035
  %v5937 = vmul.u32 %v5905, 2221713035
  %v5938 = vmul.u32 %v5906, 2221713035
  %v5939 = vmul.u32 %v5907, 2221713035
  %v5940 = vshrl.u32 %v5908, 16
  %v5941 = vshrl.u32 %v5909, 16
  %v5942 = vshrl.u32 %v5910, 16
  %v5943 = vshrl.u32 %v5911, 16
  %v5944 = vshrl.u32 %v5912, 16
  %v5945 = vshrl.u32 %v5913, 16
  %v5946 = vshrl.u32 %v5914, 16
  %v5947 = vshrl.u32 %v5915, 16
  %v5948 = vshrl.u32 %v5916, 16
  %v5949 = vshrl.u32 %v5917, 16
  %v5950 = vshrl.u32 %v5918, 16
  %v5951 = vshrl.u32 %v5919, 16
  %v5952 = vshrl.u32 %v5920, 16
  %v5953 = vshrl.u32 %v5921, 16
  %v5954 = vshrl.u32 %v5922, 16
  %v5955 = vshrl.u32 %v5923, 16
  %v5956 = vshrl.u32 %v5924, 16
  %v5957 = vshrl.u32 %v5925, 16
  %v5958 = vshrl.u32 %v5926, 16
  %v5959 = vshrl.u32 %v5927, 16
  %v5960 = vshrl.u32 %v5928, 16
  %v5961 = vshrl.u32 %v5929, 16
  %v5962 = vshrl.u32 %v5930, 16
  %v5963 = vshrl.u32 %v5931, 16
  %v5964 = vshrl.u32 %v5932, 16
  %v5965 = vshrl.u32 %v5933, 16
  %v5966 = vshrl.u32 %v5934, 16
  %v5967 = vshrl.u32 %v5935, 16
  %v5968 = vshrl.u32 %v5936, 16
  %v5969 = vshrl.u32 %v5937, 16
  %v5970 = vshrl.u32 %v5938, 16
  %v5971 = vshrl.u32 %v5939, 16
  %v5972 = vxor.u32 %v5908, %v5940
  %v5973 = vxor.u32 %v5909, %v5941
  %v5974 = vxor.u32 %v5910, %v5942
  %v5975 = vxor.u32 %v5911, %v5943
  %v5976 = vxor.u32 %v5912, %v5944
  %v5977 = vxor.u32 %v5913, %v5945
  %v5978 = vxor.u32 %v5914, %v5946
  %v5979 = vxor.u32 %v5915, %v5947
  %v5980 = vxor.u32 %v5916, %v5948
  %v5981 = vxor.u32 %v5917, %v5949
  %v5982 = vxor.u32 %v5918, %v5950
  %v5983 = vxor.u32 %v5919, %v5951
  %v5984 = vxor.u32 %v5920, %v5952
  %v5985 = vxor.u32 %v5921, %v5953
  %v5986 = vxor.u32 %v5922, %v5954
  %v5987 = vxor.u32 %v5923, %v5955
  %v5988 = vxor.u32 %v5924, %v5956
  %v5989 = vxor.u32 %v5925, %v5957
  %v5990 = vxor.u32 %v5926, %v5958
  %v5991 = vxor.u32 %v5927, %v5959
  %v5992 = vxor.u32 %v5928, %v5960
  %v5993 = vxor.u32 %v5929, %v5961
  %v5994 = vxor.u32 %v5930, %v5962
  %v5995 = vxor.u32 %v5931, %v5963
  %v5996 = vxor.u32 %v5932, %v5964
  %v5997 = vxor.u32 %v5933, %v5965
  %v5998 = vxor.u32 %v5934, %v5966
  %v5999 = vxor.u32 %v5935, %v5967
  %v6000 = vxor.u32 %v5936, %v5968
  %v6001 = vxor.u32 %v5937, %v5969
  %v6002 = vxor.u32 %v5938, %v5970
  %v6003 = vxor.u32 %v5939, %v5971
  %v6004 = vand.u32 %v5972, 65535
  %v6005 = vand.u32 %v5973, 65535
  %v6006 = vand.u32 %v5974, 65535
  %v6007 = vand.u32 %v5975, 65535
  %v6008 = vand.u32 %v5976, 65535
  %v6009 = vand.u32 %v5977, 65535
  %v6010 = vand.u32 %v5978, 65535
  %v6011 = vand.u32 %v5979, 65535
  %v6012 = vand.u32 %v5980, 65535
  %v6013 = vand.u32 %v5981, 65535
  %v6014 = vand.u32 %v5982, 65535
  %v6015 = vand.u32 %v5983, 65535
  %v6016 = vand.u32 %v5984, 65535
  %v6017 = vand.u32 %v5985, 65535
  %v6018 = vand.u32 %v5986, 65535
  %v6019 = vand.u32 %v5987, 65535
  %v6020 = vand.u32 %v5988, 65535
  %v6021 = vand.u32 %v5989, 65535
  %v6022 = vand.u32 %v5990, 65535
  %v6023 = vand.u32 %v5991, 65535
  %v6024 = vand.u32 %v5992, 65535
  %v6025 = vand.u32 %v5993, 65535
  %v6026 = vand.u32 %v5994, 65535
  %v6027 = vand.u32 %v5995, 65535
  %v6028 = vand.u32 %v5996, 65535
  %v6029 = vand.u32 %v5997, 65535
  %v6030 = vand.u32 %v5998, 65535
  %v6031 = vand.u32 %v5999, 65535
  %v6032 = vand.u32 %v6000, 65535
  %v6033 = vand.u32 %v6001, 65535
  %v6034 = vand.u32 %v6002, 65535
  %v6035 = vand.u32 %v6003, 65535
  %vm6036 = vcmp.ge.s32.totalorder %v6004, 6554
  %vm6037 = vcmp.ge.s32.totalorder %v6005, 6554
  %vm6038 = vcmp.ge.s32.totalorder %v6006, 6554
  %vm6039 = vcmp.ge.s32.totalorder %v6007, 6554
  %vm6040 = vcmp.ge.s32.totalorder %v6008, 6554
  %vm6041 = vcmp.ge.s32.totalorder %v6009, 6554
  %vm6042 = vcmp.ge.s32.totalorder %v6010, 6554
  %vm6043 = vcmp.ge.s32.totalorder %v6011, 6554
  %vm6044 = vcmp.ge.s32.totalorder %v6012, 6554
  %vm6045 = vcmp.ge.s32.totalorder %v6013, 6554
  %vm6046 = vcmp.ge.s32.totalorder %v6014, 6554
  %vm6047 = vcmp.ge.s32.totalorder %v6015, 6554
  %vm6048 = vcmp.ge.s32.totalorder %v6016, 6554
  %vm6049 = vcmp.ge.s32.totalorder %v6017, 6554
  %vm6050 = vcmp.ge.s32.totalorder %v6018, 6554
  %vm6051 = vcmp.ge.s32.totalorder %v6019, 6554
  %vm6052 = vcmp.ge.s32.totalorder %v6020, 6554
  %vm6053 = vcmp.ge.s32.totalorder %v6021, 6554
  %vm6054 = vcmp.ge.s32.totalorder %v6022, 6554
  %vm6055 = vcmp.ge.s32.totalorder %v6023, 6554
  %vm6056 = vcmp.ge.s32.totalorder %v6024, 6554
  %vm6057 = vcmp.ge.s32.totalorder %v6025, 6554
  %vm6058 = vcmp.ge.s32.totalorder %v6026, 6554
  %vm6059 = vcmp.ge.s32.totalorder %v6027, 6554
  %vm6060 = vcmp.ge.s32.totalorder %v6028, 6554
  %vm6061 = vcmp.ge.s32.totalorder %v6029, 6554
  %vm6062 = vcmp.ge.s32.totalorder %v6030, 6554
  %vm6063 = vcmp.ge.s32.totalorder %v6031, 6554
  %vm6064 = vcmp.ge.s32.totalorder %v6032, 6554
  %vm6065 = vcmp.ge.s32.totalorder %v6033, 6554
  %vm6066 = vcmp.ge.s32.totalorder %v6034, 6554
  %vm6067 = vcmp.ge.s32.totalorder %v6035, 6554
  %vm6068 = vcmp.gt.f32.partialorder %v5606, 0.0
  %vm6069 = vcmp.gt.f32.partialorder %v5608, 0.0
  %vm6070 = vcmp.gt.f32.partialorder %v5610, 0.0
  %vm6071 = vcmp.gt.f32.partialorder %v5612, 0.0
  %vm6072 = vcmp.gt.f32.partialorder %v5616, 0.0
  %vm6073 = vcmp.gt.f32.partialorder %v5618, 0.0
  %vm6074 = vcmp.gt.f32.partialorder %v5620, 0.0
  %vm6075 = vcmp.gt.f32.partialorder %v5622, 0.0
  %vm6076 = vcmp.gt.f32.partialorder %v5626, 0.0
  %vm6077 = vcmp.gt.f32.partialorder %v5628, 0.0
  %vm6078 = vcmp.gt.f32.partialorder %v5630, 0.0
  %vm6079 = vcmp.gt.f32.partialorder %v5632, 0.0
  %vm6080 = vcmp.gt.f32.partialorder %v5636, 0.0
  %vm6081 = vcmp.gt.f32.partialorder %v5638, 0.0
  %vm6082 = vcmp.gt.f32.partialorder %v5640, 0.0
  %vm6083 = vcmp.gt.f32.partialorder %v5642, 0.0
  %vm6084 = vcmp.gt.f32.partialorder %v5646, 0.0
  %vm6085 = vcmp.gt.f32.partialorder %v5648, 0.0
  %vm6086 = vcmp.gt.f32.partialorder %v5650, 0.0
  %vm6087 = vcmp.gt.f32.partialorder %v5652, 0.0
  %vm6088 = vcmp.gt.f32.partialorder %v5656, 0.0
  %vm6089 = vcmp.gt.f32.partialorder %v5658, 0.0
  %vm6090 = vcmp.gt.f32.partialorder %v5660, 0.0
  %vm6091 = vcmp.gt.f32.partialorder %v5662, 0.0
  %vm6092 = vcmp.gt.f32.partialorder %v5666, 0.0
  %vm6093 = vcmp.gt.f32.partialorder %v5668, 0.0
  %vm6094 = vcmp.gt.f32.partialorder %v5670, 0.0
  %vm6095 = vcmp.gt.f32.partialorder %v5672, 0.0
  %vm6096 = vcmp.gt.f32.partialorder %v5676, 0.0
  %vm6097 = vcmp.gt.f32.partialorder %v5678, 0.0
  %vm6098 = vcmp.gt.f32.partialorder %v5680, 0.0
  %vm6099 = vcmp.gt.f32.partialorder %v5682, 0.0
  %vm6100 = vmand %vm6036, %vm6068
  %vm6101 = vmand %vm6037, %vm6069
  %vm6102 = vmand %vm6038, %vm6070
  %vm6103 = vmand %vm6039, %vm6071
  %vm6104 = vmand %vm6040, %vm6072
  %vm6105 = vmand %vm6041, %vm6073
  %vm6106 = vmand %vm6042, %vm6074
  %vm6107 = vmand %vm6043, %vm6075
  %vm6108 = vmand %vm6044, %vm6076
  %vm6109 = vmand %vm6045, %vm6077
  %vm6110 = vmand %vm6046, %vm6078
  %vm6111 = vmand %vm6047, %vm6079
  %vm6112 = vmand %vm6048, %vm6080
  %vm6113 = vmand %vm6049, %vm6081
  %vm6114 = vmand %vm6050, %vm6082
  %vm6115 = vmand %vm6051, %vm6083
  %vm6116 = vmand %vm6052, %vm6084
  %vm6117 = vmand %vm6053, %vm6085
  %vm6118 = vmand %vm6054, %vm6086
  %vm6119 = vmand %vm6055, %vm6087
  %vm6120 = vmand %vm6056, %vm6088
  %vm6121 = vmand %vm6057, %vm6089
  %vm6122 = vmand %vm6058, %vm6090
  %vm6123 = vmand %vm6059, %vm6091
  %vm6124 = vmand %vm6060, %vm6092
  %vm6125 = vmand %vm6061, %vm6093
  %vm6126 = vmand %vm6062, %vm6094
  %vm6127 = vmand %vm6063, %vm6095
  %vm6128 = vmand %vm6064, %vm6096
  %vm6129 = vmand %vm6065, %vm6097
  %vm6130 = vmand %vm6066, %vm6098
  %vm6131 = vmand %vm6067, %vm6099
  %v6132 = vmul.f32 %v5606, 1.1111112
  %v6133 = vmul.f32 %v5608, 1.1111112
  %v6134 = vmul.f32 %v5610, 1.1111112
  %v6135 = vmul.f32 %v5612, 1.1111112
  %v6136 = vmul.f32 %v5616, 1.1111112
  %v6137 = vmul.f32 %v5618, 1.1111112
  %v6138 = vmul.f32 %v5620, 1.1111112
  %v6139 = vmul.f32 %v5622, 1.1111112
  %v6140 = vmul.f32 %v5626, 1.1111112
  %v6141 = vmul.f32 %v5628, 1.1111112
  %v6142 = vmul.f32 %v5630, 1.1111112
  %v6143 = vmul.f32 %v5632, 1.1111112
  %v6144 = vmul.f32 %v5636, 1.1111112
  %v6145 = vmul.f32 %v5638, 1.1111112
  %v6146 = vmul.f32 %v5640, 1.1111112
  %v6147 = vmul.f32 %v5642, 1.1111112
  %v6148 = vmul.f32 %v5646, 1.1111112
  %v6149 = vmul.f32 %v5648, 1.1111112
  %v6150 = vmul.f32 %v5650, 1.1111112
  %v6151 = vmul.f32 %v5652, 1.1111112
  %v6152 = vmul.f32 %v5656, 1.1111112
  %v6153 = vmul.f32 %v5658, 1.1111112
  %v6154 = vmul.f32 %v5660, 1.1111112
  %v6155 = vmul.f32 %v5662, 1.1111112
  %v6156 = vmul.f32 %v5666, 1.1111112
  %v6157 = vmul.f32 %v5668, 1.1111112
  %v6158 = vmul.f32 %v5670, 1.1111112
  %v6159 = vmul.f32 %v5672, 1.1111112
  %v6160 = vmul.f32 %v5676, 1.1111112
  %v6161 = vmul.f32 %v5678, 1.1111112
  %v6162 = vmul.f32 %v5680, 1.1111112
  %v6163 = vmul.f32 %v5682, 1.1111112
  %v6164 = vsel %vm6100, %v6132, 0.0
  %v6165 = vsel %vm6101, %v6133, 0.0
  %v6166 = vsel %vm6102, %v6134, 0.0
  %v6167 = vsel %vm6103, %v6135, 0.0
  %v6168 = vsel %vm6104, %v6136, 0.0
  %v6169 = vsel %vm6105, %v6137, 0.0
  %v6170 = vsel %vm6106, %v6138, 0.0
  %v6171 = vsel %vm6107, %v6139, 0.0
  %v6172 = vsel %vm6108, %v6140, 0.0
  %v6173 = vsel %vm6109, %v6141, 0.0
  %v6174 = vsel %vm6110, %v6142, 0.0
  %v6175 = vsel %vm6111, %v6143, 0.0
  %v6176 = vsel %vm6112, %v6144, 0.0
  %v6177 = vsel %vm6113, %v6145, 0.0
  %v6178 = vsel %vm6114, %v6146, 0.0
  %v6179 = vsel %vm6115, %v6147, 0.0
  %v6180 = vsel %vm6116, %v6148, 0.0
  %v6181 = vsel %vm6117, %v6149, 0.0
  %v6182 = vsel %vm6118, %v6150, 0.0
  %v6183 = vsel %vm6119, %v6151, 0.0
  %v6184 = vsel %vm6120, %v6152, 0.0
  %v6185 = vsel %vm6121, %v6153, 0.0
  %v6186 = vsel %vm6122, %v6154, 0.0
  %v6187 = vsel %vm6123, %v6155, 0.0
  %v6188 = vsel %vm6124, %v6156, 0.0
  %v6189 = vsel %vm6125, %v6157, 0.0
  %v6190 = vsel %vm6126, %v6158, 0.0
  %v6191 = vsel %vm6127, %v6159, 0.0
  %v6192 = vsel %vm6128, %v6160, 0.0
  %v6193 = vsel %vm6129, %v6161, 0.0
  %v6194 = vsel %vm6130, %v6162, 0.0
  %v6195 = vsel %vm6131, %v6163, 0.0
  %v6196 = vadd.f32 %v6164, %v5319
  %v6197 = vadd.f32 %v6165, %v5320
  %v6198 = vadd.f32 %v6166, %v5321
  %v6199 = vadd.f32 %v6167, %v5322
  %v6200 = vadd.f32 %v6168, %v5323
  %v6201 = vadd.f32 %v6169, %v5324
  %v6202 = vadd.f32 %v6170, %v5325
  %v6203 = vadd.f32 %v6171, %v5326
  %v6204 = vadd.f32 %v6172, %v5327
  %v6205 = vadd.f32 %v6173, %v5328
  %v6206 = vadd.f32 %v6174, %v5329
  %v6207 = vadd.f32 %v6175, %v5330
  %v6208 = vadd.f32 %v6176, %v5331
  %v6209 = vadd.f32 %v6177, %v5332
  %v6210 = vadd.f32 %v6178, %v5333
  %v6211 = vadd.f32 %v6179, %v5334
  %v6212 = vadd.f32 %v6180, %v5335
  %v6213 = vadd.f32 %v6181, %v5336
  %v6214 = vadd.f32 %v6182, %v5337
  %v6215 = vadd.f32 %v6183, %v5338
  %v6216 = vadd.f32 %v6184, %v5339
  %v6217 = vadd.f32 %v6185, %v5340
  %v6218 = vadd.f32 %v6186, %v5341
  %v6219 = vadd.f32 %v6187, %v5342
  %v6220 = vadd.f32 %v6188, %v5343
  %v6221 = vadd.f32 %v6189, %v5344
  %v6222 = vadd.f32 %v6190, %v5345
  %v6223 = vadd.f32 %v6191, %v5346
  %v6224 = vadd.f32 %v6192, %v5347
  %v6225 = vadd.f32 %v6193, %v5348
  %v6226 = vadd.f32 %v6194, %v5349
  %v6227 = vadd.f32 %v6195, %v5350
  %v6228 = vld [vmem:[%s14] sm:$0x3]
  %v6230 = vlaneseq
  %v6231 = vshrl.u32 %v6230, 7
  %v6232 = vsub.s32 0, %v6231
  %v6233 = vrot.slane %v6228, %v6232
  %v6234 = vlaneseq
  %v6235 = vshrl.u32 %v6234, 7
  %v6236 = vsub.s32 1, %v6235
  %v6237 = vrot.slane %v6228, %v6236
  %v6240 = vmul.f32 %v6196, %v6233
  %v6241 = vmul.f32 %v6197, %v6237
  %v6242 = vmul.f32 %v6198, %v6233
  %v6243 = vmul.f32 %v6199, %v6237
  %v6244 = vmul.f32 %v6200, %v6233
  %v6245 = vmul.f32 %v6201, %v6237
  %v6246 = vmul.f32 %v6202, %v6233
  %v6247 = vmul.f32 %v6203, %v6237
  %v6248 = vmul.f32 %v6204, %v6233
  %v6249 = vmul.f32 %v6205, %v6237
  %v6250 = vmul.f32 %v6206, %v6233
  %v6251 = vmul.f32 %v6207, %v6237
  %v6252 = vmul.f32 %v6208, %v6233
  %v6253 = vmul.f32 %v6209, %v6237
  %v6254 = vmul.f32 %v6210, %v6233
  %v6255 = vmul.f32 %v6211, %v6237
  %v6256 = vmul.f32 %v6212, %v6233
  %v6257 = vmul.f32 %v6213, %v6237
  %v6258 = vmul.f32 %v6214, %v6233
  %v6259 = vmul.f32 %v6215, %v6237
  %v6260 = vmul.f32 %v6216, %v6233
  %v6261 = vmul.f32 %v6217, %v6237
  %v6262 = vmul.f32 %v6218, %v6233
  %v6263 = vmul.f32 %v6219, %v6237
  %v6264 = vmul.f32 %v6220, %v6233
  %v6265 = vmul.f32 %v6221, %v6237
  %v6266 = vmul.f32 %v6222, %v6233
  %v6267 = vmul.f32 %v6223, %v6237
  %v6268 = vmul.f32 %v6224, %v6233
  %v6269 = vmul.f32 %v6225, %v6237
  %v6270 = vmul.f32 %v6226, %v6233
  %v6271 = vmul.f32 %v6227, %v6237
  %v6272 = vadd.f32 %v6240, %v6241
  %6273 = vadd.xlane.f32.xlu0 %v6272
  %v6274 = vpop.xlane.xlu0 %6273
  %v6275 = vadd.f32 %v6242, %v6243
  %6276 = vadd.xlane.f32.xlu0 %v6275
  %v6277 = vpop.xlane.xlu0 %6276
  %v6278 = vadd.f32 %v6244, %v6245
  %6279 = vadd.xlane.f32.xlu0 %v6278
  %v6280 = vpop.xlane.xlu0 %6279
  %v6281 = vadd.f32 %v6246, %v6247
  %6282 = vadd.xlane.f32.xlu0 %v6281
  %v6283 = vpop.xlane.xlu0 %6282
  %v6284 = vadd.f32 %v6248, %v6249
  %6285 = vadd.xlane.f32.xlu0 %v6284
  %v6286 = vpop.xlane.xlu0 %6285
  %v6287 = vadd.f32 %v6250, %v6251
  %6288 = vadd.xlane.f32.xlu0 %v6287
  %v6289 = vpop.xlane.xlu0 %6288
  %v6290 = vadd.f32 %v6252, %v6253
  %6291 = vadd.xlane.f32.xlu0 %v6290
  %v6292 = vpop.xlane.xlu0 %6291
  %v6293 = vadd.f32 %v6254, %v6255
  %6294 = vadd.xlane.f32.xlu0 %v6293
  %v6295 = vpop.xlane.xlu0 %6294
  %v6296 = vadd.f32 %v6256, %v6257
  %6297 = vadd.xlane.f32.xlu0 %v6296
  %v6298 = vpop.xlane.xlu0 %6297
  %v6299 = vadd.f32 %v6258, %v6259
  %6300 = vadd.xlane.f32.xlu0 %v6299
  %v6301 = vpop.xlane.xlu0 %6300
  %v6302 = vadd.f32 %v6260, %v6261
  %6303 = vadd.xlane.f32.xlu0 %v6302
  %v6304 = vpop.xlane.xlu0 %6303
  %v6305 = vadd.f32 %v6262, %v6263
  %6306 = vadd.xlane.f32.xlu0 %v6305
  %v6307 = vpop.xlane.xlu0 %6306
  %v6308 = vadd.f32 %v6264, %v6265
  %6309 = vadd.xlane.f32.xlu0 %v6308
  %v6310 = vpop.xlane.xlu0 %6309
  %v6311 = vadd.f32 %v6266, %v6267
  %6312 = vadd.xlane.f32.xlu0 %v6311
  %v6313 = vpop.xlane.xlu0 %6312
  %v6314 = vadd.f32 %v6268, %v6269
  %6315 = vadd.xlane.f32.xlu0 %v6314
  %v6316 = vpop.xlane.xlu0 %6315
  %v6317 = vadd.f32 %v6270, %v6271
  %6318 = vadd.xlane.f32.xlu0 %v6317
  %v6319 = vpop.xlane.xlu0 %6318
  %v6320 = vld [vmem:[#allocation4] sm:$0x1]
  %v6322 = vlaneseq
  %v6323 = vshrl.u32 %v6322, 7
  %v6324 = vsub.s32 0, %v6323
  %v6325 = vrot.slane %v6320, %v6324
  %v6327 = vadd.f32 %v6274, %v6325
  %v6328 = vadd.f32 %v6277, %v6325
  %v6329 = vadd.f32 %v6280, %v6325
  %v6330 = vadd.f32 %v6283, %v6325
  %v6331 = vadd.f32 %v6286, %v6325
  %v6332 = vadd.f32 %v6289, %v6325
  %v6333 = vadd.f32 %v6292, %v6325
  %v6334 = vadd.f32 %v6295, %v6325
  %v6335 = vadd.f32 %v6298, %v6325
  %v6336 = vadd.f32 %v6301, %v6325
  %v6337 = vadd.f32 %v6304, %v6325
  %v6338 = vadd.f32 %v6307, %v6325
  %v6339 = vadd.f32 %v6310, %v6325
  %v6340 = vadd.f32 %v6313, %v6325
  %v6341 = vadd.f32 %v6316, %v6325
  %v6342 = vadd.f32 %v6319, %v6325
  %vm6343 = vcmask 7168
  %6344 = vst.msk [vmem:[%s16] sm:$0xff] %vm6343, %v6327
  %6345 = vst.msk [vmem:[%s16 + $0x8] sm:$0xff] %vm6343, %v6328
  %6346 = vst.msk [vmem:[%s16 + $0x10] sm:$0xff] %vm6343, %v6329
  %6347 = vst.msk [vmem:[%s16 + $0x18] sm:$0xff] %vm6343, %v6330
  %6348 = vst.msk [vmem:[%s16 + $0x20] sm:$0xff] %vm6343, %v6331
  %6349 = vst.msk [vmem:[%s16 + $0x28] sm:$0xff] %vm6343, %v6332
  %6350 = vst.msk [vmem:[%s16 + $0x30] sm:$0xff] %vm6343, %v6333
  %6351 = vst.msk [vmem:[%s16 + $0x38] sm:$0xff] %vm6343, %v6334
  %6352 = vst.msk [vmem:[%s16 + $0x40] sm:$0xff] %vm6343, %v6335
  %6353 = vst.msk [vmem:[%s16 + $0x48] sm:$0xff] %vm6343, %v6336
  %6354 = vst.msk [vmem:[%s16 + $0x50] sm:$0xff] %vm6343, %v6337
  %6355 = vst.msk [vmem:[%s16 + $0x58] sm:$0xff] %vm6343, %v6338
  %6356 = vst.msk [vmem:[%s16 + $0x60] sm:$0xff] %vm6343, %v6339
  %6357 = vst.msk [vmem:[%s16 + $0x68] sm:$0xff] %vm6343, %v6340
  %6358 = vst.msk [vmem:[%s16 + $0x70] sm:$0xff] %vm6343, %v6341
  %6359 = vst.msk [vmem:[%s16 + $0x78] sm:$0xff] %vm6343, %v6342
  // Predicated region
  $region62: #{quantum_gnn_forward.1} parent=0 // pred_check
    _
  $region63: #{quantum_gnn_forward.1} parent=0 // pred_check_branch
    %6361 = sbr.rel (0) target = $region65
  $region64: #{quantum_gnn_forward.1} parent=0 // pred_region
    _
  $region65: #{quantum_gnn_forward.1} parent=0 // pred_fallthru
    _
  // Predicated region
  $region66: #{quantum_gnn_forward.1} parent=0 // pred_check
    _
  $region67: #{quantum_gnn_forward.1} parent=0 // pred_check_branch
    %6363 = sbr.rel (0) target = $region69
  $region68: #{quantum_gnn_forward.1} parent=0 // pred_region
    _
  $region69: #{quantum_gnn_forward.1} parent=0 // pred_fallthru
    _

</llo_original>
